<compile_context>
chip_gen: v6e
topology: v6e:2x2x1
jax: 0.10.0
libtpu: 0.0.40
codegen_flags: <defaults>
</compile_context>

<pallas_src>
import functools

import numpy as np
import jax
import jax.numpy as jnp
from jax.experimental import pallas as pl
from jax.experimental.pallas import tpu as pltpu


# ----------------------------------------------------------------------------
# Kernel 1: MaxPool2d(kernel_size=3, stride=factor, padding=1)
# ----------------------------------------------------------------------------
def _maxpool_kernel(z_ref, sel_ref, out_ref, *, H, W, f, Hout, Wout):
    z = z_ref[0]                                        # (H, W, C)
    C = z.shape[-1]
    # 3-tap max along H (outer dim); edge clamping == -inf padding for a max pool.
    up = jnp.concatenate([z[:1], z[:H - 1]], axis=0)
    dn = jnp.concatenate([z[1:], z[H - 1:]], axis=0)
    mh = jnp.maximum(jnp.maximum(up, z), dn)            # (H, W, C)
    # stride-f downsample along H: rows 0, f, 2f, ...  (outer-dim regroup, no data move).
    mh = mh.reshape(Hout, f, W, C)[:, 0]                # (Hout, W, C)
    # Put W on the lane dim, then 3-tap max along W with clamped edges.
    mt = jnp.swapaxes(mh, -1, -2)                       # (Hout, C, W)
    lt = jnp.concatenate([mt[..., :1], mt[..., :W - 1]], axis=-1)
    rt = jnp.concatenate([mt[..., 1:], mt[..., W - 1:]], axis=-1)
    mw = jnp.maximum(jnp.maximum(lt, mt), rt)           # (Hout, C, W)
    # stride-f downsample along W via a tiny (W, Wout) 0/1 selection matmul.
    pooled = jnp.dot(mw.reshape(Hout * C, W), sel_ref[...],
                     preferred_element_type=jnp.float32)          # (Hout*C, Wout)
    out_ref[0] = jnp.swapaxes(pooled.reshape(Hout, C, Wout), -1, -2).astype(out_ref.dtype)


def maxpool3x3(z, sel, factor):
    N, H, W, C = z.shape
    assert H % factor == 0 and W % factor == 0
    Hout, Wout = H // factor, W // factor
    return pl.pallas_call(
        functools.partial(_maxpool_kernel, H=H, W=W, f=factor, Hout=Hout, Wout=Wout),
        grid=(N,),
        in_specs=[pl.BlockSpec((1, H, W, C), lambda n: (n, 0, 0, 0)),
                  pl.BlockSpec((W, Wout), lambda n: (0, 0))],
        out_specs=pl.BlockSpec((1, Hout, Wout, C), lambda n: (n, 0, 0, 0)),
        out_shape=jax.ShapeDtypeStruct((N, Hout, Wout, C), z.dtype),
        compiler_params=pltpu.CompilerParams(dimension_semantics=("parallel",)),
    )(z, sel)


# ----------------------------------------------------------------------------
# Kernel 2a: Conv3x3 (no bias, fused channel concat, zero-halo in VMEM scratch)
#            -> im2col single bf16 MXU matmul + per-image BN partial stats
# ----------------------------------------------------------------------------
def _conv3x3_stats_kernel(*refs, n_in, H, W):
    x_refs = refs[:n_in]
    mask_ref = refs[n_in]           # (H*W, 2): [col>=1, col<=W-2] as 0/1 f32
    w_ref = refs[n_in + 1]          # (9*Cin, Cout)
    out_ref = refs[n_in + 2]        # (1, H*W, Cout)
    stats_ref = refs[n_in + 3]      # (1, 2, Cout)   per-image (sum, sumsq)
    buf = refs[n_in + 4]            # VMEM scratch (H*W + 2*W + 2, Cin)

    HW = H * W
    if n_in == 1:
        x2d = x_refs[0][0]
    else:
        # fused torch.cat((y, z_), dim=channels) -- never materialized in HBM
        x2d = jnp.concatenate([r[0] for r in x_refs], axis=-1)   # (HW, Cin)
    Cin = x2d.shape[-1]

    # "Virtually padded" image: zero halo rows before/after the flattened rows.
    buf[0:W + 1, :] = jnp.zeros((W + 1, Cin), jnp.float32)
    buf[W + 1 + HW:W + 1 + HW + W + 1, :] = jnp.zeros((W + 1, Cin), jnp.float32)
    buf[W + 1:W + 1 + HW, :] = x2d

    ml = mask_ref[:, 0:1]           # valid if source column j-1 exists
    mr = mask_ref[:, 1:2]           # valid if source column j+1 exists

    taps = []
    for dy in (-1, 0, 1):
        for dx in (-1, 0, 1):
            k = dy * W + dx
            tap = buf[W + 1 + k:W + 1 + k + HW, :]               # (HW, Cin)
            if dx == -1:
                tap = tap * ml
            elif dx == 1:
                tap = tap * mr
            taps.append(tap)
    patches = jnp.concatenate(taps, axis=-1)                     # (HW, 9*Cin)

    acc = jnp.dot(patches.astype(jnp.bfloat16),
                  w_ref[...].astype(jnp.bfloat16),
                  preferred_element_type=jnp.float32)            # (HW, Cout), f32 acc
    out_ref[0] = acc
    stats_ref[0, 0:1, :] = jnp.sum(acc, axis=0, keepdims=True)
    stats_ref[0, 1:2, :] = jnp.sum(acc * acc, axis=0, keepdims=True)


def _edge_mask(H, W):
    col = np.arange(H * W) % W
    m = np.ones((H * W, 2), np.float32)
    m[:, 0] = (col >= 1).astype(np.float32)
    m[:, 1] = (col <= W - 2).astype(np.float32)
    return m


def conv3x3_bn_stats(xs, w, H, W):
    """xs: list of (N, H*W, Ci) activations (logically channel-concatenated).
    w: (9*sum(Ci), Cout).  Returns conv output (N, H*W, Cout) and per-image
    BN partial stats (N, 2, Cout) = (sum, sum of squares)."""
    N, HW = xs[0].shape[0], xs[0].shape[1]
    cin = sum(int(x.shape[-1]) for x in xs)
    cout = int(w.shape[-1])
    mask = jnp.asarray(_edge_mask(H, W))

    in_specs = [pl.BlockSpec((1, HW, int(x.shape[-1])), lambda n: (n, 0, 0)) for x in xs]
    in_specs.append(pl.BlockSpec((HW, 2), lambda n: (0, 0)))
    in_specs.append(pl.BlockSpec(tuple(w.shape), lambda n: (0, 0)))

    return pl.pallas_call(
        functools.partial(_conv3x3_stats_kernel, n_in=len(xs), H=H, W=W),
        grid=(N,),
        in_specs=in_specs,
        out_specs=[pl.BlockSpec((1, HW, cout), lambda n: (n, 0, 0)),
                   pl.BlockSpec((1, 2, cout), lambda n: (n, 0, 0))],
        out_shape=[jax.ShapeDtypeStruct((N, HW, cout), jnp.float32),
                   jax.ShapeDtypeStruct((N, 2, cout), jnp.float32)],
        scratch_shapes=[pltpu.VMEM((HW + 2 * W + 2, cin), jnp.float32)],
        compiler_params=pltpu.CompilerParams(dimension_semantics=("parallel",)),
    )(*xs, mask, w)


# ----------------------------------------------------------------------------
# Kernel 2b: BatchNorm2d (training-mode batch stats, reduced from partials) + ReLU
# ----------------------------------------------------------------------------
def _bn_relu_kernel(x_ref, stats_ref, g_ref, b_ref, out_ref, *, count, eps):
    x = x_ref[0]                                       # (HW, C) f32
    st = jnp.sum(stats_ref[...], axis=0)               # (2, C): reduce per-image partials
    mean = st[0:1, :] * (1.0 / count)
    var = st[1:2, :] * (1.0 / count) - mean * mean     # biased variance (train-mode BN)
    inv = jax.lax.rsqrt(var + eps)
    y = (x - mean) * (inv * g_ref[...]) + b_ref[...]
    out_ref[0] = jnp.maximum(y, 0.0)


def bn_relu(x, stats, gamma, beta, count, eps=1e-5):
    N, HW, C = x.shape
    return pl.pallas_call(
        functools.partial(_bn_relu_kernel, count=float(count), eps=float(eps)),
        grid=(N,),
        in_specs=[pl.BlockSpec((1, HW, C), lambda n: (n, 0, 0)),
                  pl.BlockSpec(tuple(stats.shape), lambda n: (0, 0, 0)),
                  pl.BlockSpec((1, C), lambda n: (0, 0)),
                  pl.BlockSpec((1, C), lambda n: (0, 0))],
        out_specs=pl.BlockSpec((1, HW, C), lambda n: (n, 0, 0)),
        out_shape=jax.ShapeDtypeStruct((N, HW, C), jnp.float32),
        compiler_params=pltpu.CompilerParams(dimension_semantics=("parallel",)),
    )(x, stats, gamma, beta)


# ----------------------------------------------------------------------------
# Kernel 3: Conv1x1 (+bias) -> separable bilinear upsample (align_corners=True) -> + z
# ----------------------------------------------------------------------------
def _convz_up_add_kernel(y_ref, z_ref, wz_ref, bz_ref, bh_ref, bwt_ref, zout_ref,
                         *, Hy, Wy, H, W):
    zc = wz_ref.shape[1]
    yv = y_ref[0]                                                  # (Hy*Wy, Cy)
    u = jnp.dot(yv, wz_ref[...], preferred_element_type=jnp.float32) + bz_ref[...]
    # W-direction upsample: channel-major layout + tiny (Wy, W) matmul.
    ut = jnp.swapaxes(u.reshape(Hy, Wy, zc), -1, -2)               # (Hy, zc, Wy)
    s = jnp.dot(ut.reshape(Hy * zc, Wy), bwt_ref[...],
                preferred_element_type=jnp.float32)                # (Hy*zc, W)
    s = jnp.swapaxes(s.reshape(Hy, zc, W), -1, -2)                 # (Hy, W, zc)
    # H-direction upsample: accumulate the Hy weighted source rows (cheap VPU MACs),
    # fused with the residual add.
    acc = z_ref[0]                                                 # (H, W, zc)
    for h in range(Hy):
        acc = acc + bh_ref[:, h:h + 1, :] * s[h:h + 1]             # (H,1,1)*(1,W,zc)
    zout_ref[0] = acc


def convz_upsample_add(y_new, z, wz, bz, bh_b, bwt, Hy, Wy):
    N, H, W, zc = z.shape
    HyWy, Cy = int(y_new.shape[1]), int(y_new.shape[2])
    return pl.pallas_call(
        functools.partial(_convz_up_add_kernel, Hy=Hy, Wy=Wy, H=H, W=W),
        grid=(N,),
        in_specs=[pl.BlockSpec((1, HyWy, Cy), lambda n: (n, 0, 0)),
                  pl.BlockSpec((1, H, W, zc), lambda n: (n, 0, 0, 0)),
                  pl.BlockSpec(tuple(wz.shape), lambda n: (0, 0)),
                  pl.BlockSpec(tuple(bz.shape), lambda n: (0, 0)),
                  pl.BlockSpec(tuple(bh_b.shape), lambda n: (0, 0, 0)),
                  pl.BlockSpec(tuple(bwt.shape), lambda n: (0, 0))],
        out_specs=pl.BlockSpec((1, H, W, zc), lambda n: (n, 0, 0, 0)),
        out_shape=jax.ShapeDtypeStruct((N, H, W, zc), jnp.float32),
        compiler_params=pltpu.CompilerParams(dimension_semantics=("parallel",)),
    )(y_new, z, wz, bz, bh_b, bwt)


# ----------------------------------------------------------------------------
# Small resampling matrices (linear in spatial size), built once in glue
# ----------------------------------------------------------------------------
def _bilinear_matrix(out_size, in_size):
    # nn.UpsamplingBilinear2d => align_corners=True
    M = np.zeros((out_size, in_size), np.float32)
    for p in range(out_size):
        src = 0.0 if out_size == 1 else p * (in_size - 1) / (out_size - 1)
        h0 = int(np.floor(src))
        h1 = min(h0 + 1, in_size - 1)
        f = src - h0
        M[p, h0] += 1.0 - f
        M[p, h1] += f
    return M


def _select_matrix(in_size, factor):
    out_size = in_size // factor
    M = np.zeros((in_size, out_size), np.float32)
    for p in range(out_size):
        M[p * factor, p] = 1.0
    return M


# ----------------------------------------------------------------------------
# FRRU / FRRLayer forward (JAX glue orchestrating the Pallas kernels)
# ----------------------------------------------------------------------------
def init_frru_params(key, y_in_c, y_out_c, z_c):
    # Conv weights stored as (ky, kx, Cin) x Cout, pre-flattened for the im2col matmul.
    k1, k2, k3, k4, k5, k6, k7, k8 = jax.random.split(key, 8)
    cin1 = y_in_c + z_c
    return dict(
        w1=0.1 * jax.random.normal(k1, (9 * cin1, y_out_c), jnp.float32),
        g1=1.0 + 0.1 * jax.random.normal(k2, (1, y_out_c), jnp.float32),
        b1=0.1 * jax.random.normal(k3, (1, y_out_c), jnp.float32),
        w2=0.1 * jax.random.normal(k4, (9 * y_out_c, y_out_c), jnp.float32),
        g2=1.0 + 0.1 * jax.random.normal(k5, (1, y_out_c), jnp.float32),
        b2=0.1 * jax.random.normal(k6, (1, y_out_c), jnp.float32),
        wz=0.1 * jax.random.normal(k7, (y_out_c, z_c), jnp.float32),
        bz=0.05 * jax.random.normal(k8, (1, z_c), jnp.float32),
    )


def frru_forward(y_flat, z, p, factor, sel, bh_b, bwt, eps=1e-5):
    # y_flat: (N, Hy*Wy, Cy);  z: (N, H, W, zc)
    N, H, W, zc = z.shape
    Hy, Wy = H // factor, W // factor
    z_pool = maxpool3x3(z, sel, factor)                          # Pallas
    z_pool_flat = z_pool.reshape(N, Hy * Wy, zc)                 # free HBM reshape
    c1, st1 = conv3x3_bn_stats([y_flat, z_pool_flat], p["w1"], Hy, Wy)   # Pallas (fused cat)
    h = bn_relu(c1, st1, p["g1"], p["b1"], count=N * Hy * Wy, eps=eps)   # Pallas
    c2, st2 = conv3x3_bn_stats([h], p["w2"], Hy, Wy)                     # Pallas
    y_new = bn_relu(c2, st2, p["g2"], p["b2"], count=N * Hy * Wy, eps=eps)
    z_out = convz_upsample_add(y_new, z, p["wz"], p["bz"], bh_b, bwt, Hy, Wy)  # Pallas
    return y_new, z_out


if __name__ == "__main__":
    key = jax.random.PRNGKey(0)
    in_channels, out_channels, z_c = 4, 8, 32
    factor, num_blocks = 2, 2
    N, H, W = 2, 16, 16
    Hy, Wy = H // factor, W // factor

    ky, kz, kp = jax.random.split(key, 3)
    y = jax.random.normal(ky, (N, Hy, Wy, in_channels), jnp.float32)
    z = jax.random.normal(kz, (N, H, W, z_c), jnp.float32)

    pkeys = jax.random.split(kp, num_blocks)
    params = [init_frru_params(pkeys[0], in_channels, out_channels, z_c)]
    for i in range(1, num_blocks):
        params.append(init_frru_params(pkeys[i], out_channels, out_channels, z_c))

    # Small resampling matrices shared by all blocks (linear in spatial size):
    sel = jnp.asarray(_select_matrix(W, factor))                 # (W, Wout) 0/1
    bh_b = jnp.asarray(_bilinear_matrix(H, Hy)[:, :, None])      # (H, Hy, 1)
    bwt = jnp.asarray(_bilinear_matrix(W, Wy).T)                 # (Wy, W)

    @jax.jit
    def run(y_in, z_in, params_list):
        y_f = y_in.reshape(N, Hy * Wy, y_in.shape[-1])
        z_cur = z_in
        for p in params_list:
            y_f, z_cur = frru_forward(y_f, z_cur, p, factor, sel, bh_b, bwt)
        return y_f.reshape(N, Hy, Wy, -1), z_cur

    y_out, z_out = run(y, z, params)
    y_out, z_out = jax.block_until_ready((y_out, z_out))

    assert y_out.shape == (N, Hy, Wy, out_channels)
    assert z_out.shape == (N, H, W, z_c)
    assert bool(jnp.all(jnp.isfinite(y_out))) and bool(jnp.all(jnp.isfinite(z_out)))
    print("KERNEL_OK")
</pallas_src>

<mosaic_0001>
module attributes {stable_mosaic.version = 11 : i64} {
  func.func @_conv3x3_stats_kernel(%arg0: i32, %arg1: memref<1x64x4xf32, #tpu.memory_space<vmem>>, %arg2: memref<1x64x32xf32, #tpu.memory_space<vmem>>, %arg3: memref<64x2xf32, #tpu.memory_space<vmem>>, %arg4: memref<324x8xf32, #tpu.memory_space<vmem>>, %arg5: memref<1x64x8xf32, #tpu.memory_space<vmem>>, %arg6: memref<1x2x8xf32, #tpu.memory_space<vmem>>, %arg7: memref<82x36xf32, #tpu.memory_space<vmem>>) attributes {dimension_semantics = [#tpu.dimension_semantics<parallel>], iteration_bounds = array<i64: 2>, scalar_prefetch = 0 : i64, scratch_operands = 1 : i64, tpu.core_type = #tpu.core_type<tc>, window_params = [{transform_indices = @transform_0, window_bounds = array<i64: 1, 64, 4>}, {transform_indices = @transform_1, window_bounds = array<i64: 1, 64, 32>}, {pipeline_mode = #tpu.pipeline_mode<synchronous>, transform_indices = @transform_2, window_bounds = array<i64: 64, 2>}, {pipeline_mode = #tpu.pipeline_mode<synchronous>, transform_indices = @transform_3, window_bounds = array<i64: 324, 8>}, {transform_indices = @transform_4, window_bounds = array<i64: 1, 64, 8>}, {transform_indices = @transform_5, window_bounds = array<i64: 1, 2, 8>}]} {
    %c0 = arith.constant 0 : index
    %c0_0 = arith.constant 0 : index
    %c0_1 = arith.constant 0 : index
    %0 = vector.load %arg1[%c0, %c0_0, %c0_1] : memref<1x64x4xf32, #tpu.memory_space<vmem>>, vector<1x64x4xf32>
    %1 = vector.shape_cast %0 : vector<1x64x4xf32> to vector<64x4xf32>
    %c0_2 = arith.constant 0 : index
    %c0_3 = arith.constant 0 : index
    %c0_4 = arith.constant 0 : index
    %2 = vector.load %arg2[%c0_2, %c0_3, %c0_4] : memref<1x64x32xf32, #tpu.memory_space<vmem>>, vector<1x64x32xf32>
    %3 = vector.shape_cast %2 : vector<1x64x32xf32> to vector<64x32xf32>
    %4 = tpu.concatenate %1, %3 in 1 : vector<64x4xf32>, vector<64x32xf32> -> vector<64x36xf32>
    %cst = arith.constant 0.000000e+00 : f32
    %5 = vector.broadcast %cst : f32 to vector<9x36xf32>
    %c0_5 = arith.constant 0 : index
    %c0_6 = arith.constant 0 : index
    %6 = vector.load %arg7[%c0_5, %c0_6] : memref<82x36xf32, #tpu.memory_space<vmem>>, vector<9x36xf32>
    tpu.vector_store %arg7[%c0_5, %c0_6], %5 {strides = array<i32>} : memref<82x36xf32, #tpu.memory_space<vmem>>, vector<9x36xf32>,
    %cst_7 = arith.constant 0.000000e+00 : f32
    %7 = vector.broadcast %cst_7 : f32 to vector<9x36xf32>
    %c73 = arith.constant 73 : index
    %c0_8 = arith.constant 0 : index
    %8 = vector.load %arg7[%c73, %c0_8] : memref<82x36xf32, #tpu.memory_space<vmem>>, vector<9x36xf32>
    tpu.vector_store %arg7[%c73, %c0_8], %7 {strides = array<i32>} : memref<82x36xf32, #tpu.memory_space<vmem>>, vector<9x36xf32>,
    %c9 = arith.constant 9 : index
    %c0_9 = arith.constant 0 : index
    %9 = vector.load %arg7[%c9, %c0_9] : memref<82x36xf32, #tpu.memory_space<vmem>>, vector<64x36xf32>
    tpu.vector_store %arg7[%c9, %c0_9], %4 {strides = array<i32>} : memref<82x36xf32, #tpu.memory_space<vmem>>, vector<64x36xf32>,
    %c0_10 = arith.constant 0 : index
    %c0_11 = arith.constant 0 : index
    %10 = vector.load %arg3[%c0_10, %c0_11] : memref<64x2xf32, #tpu.memory_space<vmem>>, vector<64x1xf32>
    %c0_12 = arith.constant 0 : index
    %c1 = arith.constant 1 : index
    %11 = vector.load %arg3[%c0_12, %c1] : memref<64x2xf32, #tpu.memory_space<vmem>>, vector<64x1xf32>
    %c0_13 = arith.constant 0 : index
    %c0_14 = arith.constant 0 : index
    %12 = vector.load %arg7[%c0_13, %c0_14] : memref<82x36xf32, #tpu.memory_space<vmem>>, vector<64x36xf32>
    %13 = vector.broadcast %10 : vector<64x1xf32> to vector<64x36xf32>
    %14 = arith.mulf %12, %13 : vector<64x36xf32>
    %c1_15 = arith.constant 1 : index
    %c0_16 = arith.constant 0 : index
    %15 = vector.load %arg7[%c1_15, %c0_16] : memref<82x36xf32, #tpu.memory_space<vmem>>, vector<64x36xf32>
    %c2 = arith.constant 2 : index
    %c0_17 = arith.constant 0 : index
    %16 = vector.load %arg7[%c2, %c0_17] : memref<82x36xf32, #tpu.memory_space<vmem>>, vector<64x36xf32>
    %17 = vector.broadcast %11 : vector<64x1xf32> to vector<64x36xf32>
    %18 = arith.mulf %16, %17 : vector<64x36xf32>
    %c8 = arith.constant 8 : index
    %c0_18 = arith.constant 0 : index
    %19 = vector.load %arg7[%c8, %c0_18] : memref<82x36xf32, #tpu.memory_space<vmem>>, vector<64x36xf32>
    %20 = vector.broadcast %10 : vector<64x1xf32> to vector<64x36xf32>
    %21 = arith.mulf %19, %20 : vector<64x36xf32>
    %c9_19 = arith.constant 9 : index
    %c0_20 = arith.constant 0 : index
    %22 = vector.load %arg7[%c9_19, %c0_20] : memref<82x36xf32, #tpu.memory_space<vmem>>, vector<64x36xf32>
    %c10 = arith.constant 10 : index
    %c0_21 = arith.constant 0 : index
    %23 = vector.load %arg7[%c10, %c0_21] : memref<82x36xf32, #tpu.memory_space<vmem>>, vector<64x36xf32>
    %24 = vector.broadcast %11 : vector<64x1xf32> to vector<64x36xf32>
    %25 = arith.mulf %23, %24 : vector<64x36xf32>
    %c16 = arith.constant 16 : index
    %c0_22 = arith.constant 0 : index
    %26 = vector.load %arg7[%c16, %c0_22] : memref<82x36xf32, #tpu.memory_space<vmem>>, vector<64x36xf32>
    %27 = vector.broadcast %10 : vector<64x1xf32> to vector<64x36xf32>
    %28 = arith.mulf %26, %27 : vector<64x36xf32>
    %c17 = arith.constant 17 : index
    %c0_23 = arith.constant 0 : index
    %29 = vector.load %arg7[%c17, %c0_23] : memref<82x36xf32, #tpu.memory_space<vmem>>, vector<64x36xf32>
    %c18 = arith.constant 18 : index
    %c0_24 = arith.constant 0 : index
    %30 = vector.load %arg7[%c18, %c0_24] : memref<82x36xf32, #tpu.memory_space<vmem>>, vector<64x36xf32>
    %31 = vector.broadcast %11 : vector<64x1xf32> to vector<64x36xf32>
    %32 = arith.mulf %30, %31 : vector<64x36xf32>
    %33 = tpu.concatenate %14, %15, %18, %21, %22, %25, %28, %29, %32 in 1 : vector<64x36xf32>, vector<64x36xf32>, vector<64x36xf32>, vector<64x36xf32>, vector<64x36xf32>, vector<64x36xf32>, vector<64x36xf32>, vector<64x36xf32>, vector<64x36xf32> -> vector<64x324xf32>
    %34 = arith.truncf %33 : vector<64x324xf32> to vector<64x324xbf16>
    %c0_25 = arith.constant 0 : index
    %c0_26 = arith.constant 0 : index
    %35 = vector.load %arg4[%c0_25, %c0_26] : memref<324x8xf32, #tpu.memory_space<vmem>>, vector<324x8xf32>
    %36 = arith.truncf %35 : vector<324x8xf32> to vector<324x8xbf16>
    %cst_27 = arith.constant dense<0.000000e+00> : vector<64x8xf32>
    %37 = tpu.matmul %34, %36, %cst_27 {dimension_numbers = #tpu.dot_dimension_numbers<[1], [0], [0], [1], [0, 0, 1, 1], [], []>} : vector<64x324xbf16>, vector<324x8xbf16>, vector<64x8xf32> -> vector<64x8xf32>
    %c0_28 = arith.constant 0 : index
    %c0_29 = arith.constant 0 : index
    %c0_30 = arith.constant 0 : index
    %38 = vector.load %arg5[%c0_28, %c0_29, %c0_30] : memref<1x64x8xf32, #tpu.memory_space<vmem>>, vector<1x64x8xf32>
    %39 = vector.shape_cast %38 : vector<1x64x8xf32> to vector<64x8xf32>
    %40 = vector.shape_cast %37 : vector<64x8xf32> to vector<1x64x8xf32>
    tpu.vector_store %arg5[%c0_28, %c0_29, %c0_30], %40 {strides = array<i32>} : memref<1x64x8xf32, #tpu.memory_space<vmem>>, vector<1x64x8xf32>,
    %cst_31 = arith.constant dense<0.000000e+00> : vector<8xf32>
    %41 = vector.multi_reduction <add>, %37, %cst_31 [0] : vector<64x8xf32> to vector<8xf32>
    %42 = vector.shape_cast %41 : vector<8xf32> to vector<1x8xf32>
    %c0_32 = arith.constant 0 : index
    %c0_33 = arith.constant 0 : index
    %c0_34 = arith.constant 0 : index
    %43 = vector.load %arg6[%c0_32, %c0_33, %c0_34] : memref<1x2x8xf32, #tpu.memory_space<vmem>>, vector<1x1x8xf32>
    %44 = vector.shape_cast %43 : vector<1x1x8xf32> to vector<1x8xf32>
    %45 = vector.shape_cast %42 : vector<1x8xf32> to vector<1x1x8xf32>
    tpu.vector_store %arg6[%c0_32, %c0_33, %c0_34], %45 {strides = array<i32>} : memref<1x2x8xf32, #tpu.memory_space<vmem>>, vector<1x1x8xf32>,
    %46 = arith.mulf %37, %37 : vector<64x8xf32>
    %cst_35 = arith.constant dense<0.000000e+00> : vector<8xf32>
    %47 = vector.multi_reduction <add>, %46, %cst_35 [0] : vector<64x8xf32> to vector<8xf32>
    %48 = vector.shape_cast %47 : vector<8xf32> to vector<1x8xf32>
    %c0_36 = arith.constant 0 : index
    %c1_37 = arith.constant 1 : index
    %c0_38 = arith.constant 0 : index
    %49 = vector.load %arg6[%c0_36, %c1_37, %c0_38] : memref<1x2x8xf32, #tpu.memory_space<vmem>>, vector<1x1x8xf32>
    %50 = vector.shape_cast %49 : vector<1x1x8xf32> to vector<1x8xf32>
    %51 = vector.shape_cast %48 : vector<1x8xf32> to vector<1x1x8xf32>
    tpu.vector_store %arg6[%c0_36, %c1_37, %c0_38], %51 {strides = array<i32>} : memref<1x2x8xf32, #tpu.memory_space<vmem>>, vector<1x1x8xf32>,
    return
  }
  func.func @transform_0(%arg0: i32) -> (i32, i32, i32) {
    %c0_i32 = arith.constant 0 : i32
    %c0_i32_0 = arith.constant 0 : i32
    %c0_i32_1 = arith.constant 0 : i32
    return %arg0, %c0_i32, %c0_i32_0 : i32, i32, i32
  }
  func.func @transform_1(%arg0: i32) -> (i32, i32, i32) {
    %c0_i32 = arith.constant 0 : i32
    %c0_i32_0 = arith.constant 0 : i32
    %c0_i32_1 = arith.constant 0 : i32
    return %arg0, %c0_i32, %c0_i32_0 : i32, i32, i32
  }
  func.func @transform_2(%arg0: i32) -> (i32, i32) {
    %c0_i32 = arith.constant 0 : i32
    %c0_i32_0 = arith.constant 0 : i32
    %c0_i32_1 = arith.constant 0 : i32
    return %c0_i32, %c0_i32_0 : i32, i32
  }
  func.func @transform_3(%arg0: i32) -> (i32, i32) {
    %c0_i32 = arith.constant 0 : i32
    %c0_i32_0 = arith.constant 0 : i32
    %c0_i32_1 = arith.constant 0 : i32
    return %c0_i32, %c0_i32_0 : i32, i32
  }
  func.func @transform_4(%arg0: i32) -> (i32, i32, i32) {
    %c0_i32 = arith.constant 0 : i32
    %c0_i32_0 = arith.constant 0 : i32
    %c0_i32_1 = arith.constant 0 : i32
    return %arg0, %c0_i32, %c0_i32_0 : i32, i32, i32
  }
  func.func @transform_5(%arg0: i32) -> (i32, i32, i32) {
    %c0_i32 = arith.constant 0 : i32
    %c0_i32_0 = arith.constant 0 : i32
    %c0_i32_1 = arith.constant 0 : i32
    return %arg0, %c0_i32, %c0_i32_0 : i32, i32, i32
  }
}

module attributes {stable_mosaic.version = 11 : i64} {
  func.func @_maxpool_kernel(%arg0: i32, %arg1: memref<1x16x16x32xf32, #tpu.memory_space<vmem>>, %arg2: memref<16x8xf32, #tpu.memory_space<vmem>>, %arg3: memref<1x8x8x32xf32, #tpu.memory_space<vmem>>) attributes {dimension_semantics = [#tpu.dimension_semantics<parallel>], iteration_bounds = array<i64: 2>, scalar_prefetch = 0 : i64, scratch_operands = 0 : i64, tpu.core_type = #tpu.core_type<tc>, window_params = [{transform_indices = @transform_0, window_bounds = array<i64: 1, 16, 16, 32>}, {pipeline_mode = #tpu.pipeline_mode<synchronous>, transform_indices = @transform_1, window_bounds = array<i64: 16, 8>}, {transform_indices = @transform_2, window_bounds = array<i64: 1, 8, 8, 32>}]} {
    %c0 = arith.constant 0 : index
    %c0_0 = arith.constant 0 : index
    %c0_1 = arith.constant 0 : index
    %c0_2 = arith.constant 0 : index
    %0 = vector.load %arg1[%c0, %c0_0, %c0_1, %c0_2] : memref<1x16x16x32xf32, #tpu.memory_space<vmem>>, vector<1x16x16x32xf32>
    %1 = vector.shape_cast %0 : vector<1x16x16x32xf32> to vector<16x16x32xf32>
    %2 = vector.extract_strided_slice %1 {offsets = [0, 0, 0], sizes = [1, 16, 32], strides = [1, 1, 1]} : vector<16x16x32xf32> to vector<1x16x32xf32>
    %3 = vector.extract_strided_slice %1 {offsets = [0, 0, 0], sizes = [15, 16, 32], strides = [1, 1, 1]} : vector<16x16x32xf32> to vector<15x16x32xf32>
    %4 = tpu.concatenate %2, %3 in 0 : vector<1x16x32xf32>, vector<15x16x32xf32> -> vector<16x16x32xf32>
    %5 = vector.extract_strided_slice %1 {offsets = [1, 0, 0], sizes = [15, 16, 32], strides = [1, 1, 1]} : vector<16x16x32xf32> to vector<15x16x32xf32>
    %6 = vector.extract_strided_slice %1 {offsets = [15, 0, 0], sizes = [1, 16, 32], strides = [1, 1, 1]} : vector<16x16x32xf32> to vector<1x16x32xf32>
    %7 = tpu.concatenate %5, %6 in 0 : vector<15x16x32xf32>, vector<1x16x32xf32> -> vector<16x16x32xf32>
    %8 = arith.maximumf %4, %1 : vector<16x16x32xf32>
    %9 = arith.maximumf %8, %7 : vector<16x16x32xf32>
    %10 = vector.shape_cast %9 : vector<16x16x32xf32> to vector<8x2x16x32xf32>
    %11 = vector.extract_strided_slice %10 {offsets = [0, 0, 0, 0], sizes = [8, 1, 16, 32], strides = [1, 1, 1, 1]} : vector<8x2x16x32xf32> to vector<8x1x16x32xf32>
    %12 = vector.shape_cast %11 : vector<8x1x16x32xf32> to vector<8x16x32xf32>
    %13 = tpu.transpose %12, [0, 2, 1] : vector<8x16x32xf32> -> vector<8x32x16xf32>
    %14 = vector.extract_strided_slice %13 {offsets = [0, 0, 0], sizes = [8, 32, 1], strides = [1, 1, 1]} : vector<8x32x16xf32> to vector<8x32x1xf32>
    %15 = vector.extract_strided_slice %13 {offsets = [0, 0, 0], sizes = [8, 32, 15], strides = [1, 1, 1]} : vector<8x32x16xf32> to vector<8x32x15xf32>
    %16 = tpu.concatenate %14, %15 in 2 : vector<8x32x1xf32>, vector<8x32x15xf32> -> vector<8x32x16xf32>
    %17 = vector.extract_strided_slice %13 {offsets = [0, 0, 1], sizes = [8, 32, 15], strides = [1, 1, 1]} : vector<8x32x16xf32> to vector<8x32x15xf32>
    %18 = vector.extract_strided_slice %13 {offsets = [0, 0, 15], sizes = [8, 32, 1], strides = [1, 1, 1]} : vector<8x32x16xf32> to vector<8x32x1xf32>
    %19 = tpu.concatenate %17, %18 in 2 : vector<8x32x15xf32>, vector<8x32x1xf32> -> vector<8x32x16xf32>
    %20 = arith.maximumf %16, %13 : vector<8x32x16xf32>
    %21 = arith.maximumf %20, %19 : vector<8x32x16xf32>
    %22 = vector.shape_cast %21 : vector<8x32x16xf32> to vector<256x16xf32>
    %c0_3 = arith.constant 0 : index
    %c0_4 = arith.constant 0 : index
    %23 = vector.load %arg2[%c0_3, %c0_4] : memref<16x8xf32, #tpu.memory_space<vmem>>, vector<16x8xf32>
    %cst = arith.constant dense<0.000000e+00> : vector<256x8xf32>
    %24 = tpu.matmul %22, %23, %cst {dimension_numbers = #tpu.dot_dimension_numbers<[1], [0], [0], [1], [0, 0, 1, 1], [], []>} : vector<256x16xf32>, vector<16x8xf32>, vector<256x8xf32> -> vector<256x8xf32>
    %25 = vector.shape_cast %24 : vector<256x8xf32> to vector<8x32x8xf32>
    %26 = tpu.transpose %25, [0, 2, 1] : vector<8x32x8xf32> -> vector<8x8x32xf32>
    %c0_5 = arith.constant 0 : index
    %c0_6 = arith.constant 0 : index
    %c0_7 = arith.constant 0 : index
    %c0_8 = arith.constant 0 : index
    %27 = vector.load %arg3[%c0_5, %c0_6, %c0_7, %c0_8] : memref<1x8x8x32xf32, #tpu.memory_space<vmem>>, vector<1x8x8x32xf32>
    %28 = vector.shape_cast %27 : vector<1x8x8x32xf32> to vector<8x8x32xf32>
    %29 = vector.shape_cast %26 : vector<8x8x32xf32> to vector<1x8x8x32xf32>
    tpu.vector_store %arg3[%c0_5, %c0_6, %c0_7, %c0_8], %29 {strides = array<i32>} : memref<1x8x8x32xf32, #tpu.memory_space<vmem>>, vector<1x8x8x32xf32>,
    return
  }
  func.func @transform_0(%arg0: i32) -> (i32, i32, i32, i32) {
    %c0_i32 = arith.constant 0 : i32
    %c0_i32_0 = arith.constant 0 : i32
    %c0_i32_1 = arith.constant 0 : i32
    %c0_i32_2 = arith.constant 0 : i32
    return %arg0, %c0_i32, %c0_i32_0, %c0_i32_1 : i32, i32, i32, i32
  }
  func.func @transform_1(%arg0: i32) -> (i32, i32) {
    %c0_i32 = arith.constant 0 : i32
    %c0_i32_0 = arith.constant 0 : i32
    %c0_i32_1 = arith.constant 0 : i32
    return %c0_i32, %c0_i32_0 : i32, i32
  }
  func.func @transform_2(%arg0: i32) -> (i32, i32, i32, i32) {
    %c0_i32 = arith.constant 0 : i32
    %c0_i32_0 = arith.constant 0 : i32
    %c0_i32_1 = arith.constant 0 : i32
    %c0_i32_2 = arith.constant 0 : i32
    return %arg0, %c0_i32, %c0_i32_0, %c0_i32_1 : i32, i32, i32, i32
  }
}

module attributes {stable_mosaic.version = 11 : i64} {
  func.func @_bn_relu_kernel(%arg0: i32, %arg1: memref<1x64x8xf32, #tpu.memory_space<vmem>>, %arg2: memref<2x2x8xf32, #tpu.memory_space<vmem>>, %arg3: memref<1x8xf32, #tpu.memory_space<vmem>>, %arg4: memref<1x8xf32, #tpu.memory_space<vmem>>, %arg5: memref<1x64x8xf32, #tpu.memory_space<vmem>>) attributes {dimension_semantics = [#tpu.dimension_semantics<parallel>], iteration_bounds = array<i64: 2>, scalar_prefetch = 0 : i64, scratch_operands = 0 : i64, tpu.core_type = #tpu.core_type<tc>, window_params = [{transform_indices = @transform_0, window_bounds = array<i64: 1, 64, 8>}, {pipeline_mode = #tpu.pipeline_mode<synchronous>, transform_indices = @transform_1, window_bounds = array<i64: 2, 2, 8>}, {pipeline_mode = #tpu.pipeline_mode<synchronous>, transform_indices = @transform_2, window_bounds = array<i64: 1, 8>}, {pipeline_mode = #tpu.pipeline_mode<synchronous>, transform_indices = @transform_3, window_bounds = array<i64: 1, 8>}, {transform_indices = @transform_4, window_bounds = array<i64: 1, 64, 8>}]} {
    %c0 = arith.constant 0 : index
    %c0_0 = arith.constant 0 : index
    %c0_1 = arith.constant 0 : index
    %0 = vector.load %arg1[%c0, %c0_0, %c0_1] : memref<1x64x8xf32, #tpu.memory_space<vmem>>, vector<1x64x8xf32>
    %1 = vector.shape_cast %0 : vector<1x64x8xf32> to vector<64x8xf32>
    %c0_2 = arith.constant 0 : index
    %c0_3 = arith.constant 0 : index
    %c0_4 = arith.constant 0 : index
    %2 = vector.load %arg2[%c0_2, %c0_3, %c0_4] : memref<2x2x8xf32, #tpu.memory_space<vmem>>, vector<2x2x8xf32>
    %cst = arith.constant dense<0.000000e+00> : vector<2x8xf32>
    %3 = vector.multi_reduction <add>, %2, %cst [0] : vector<2x2x8xf32> to vector<2x8xf32>
    %4 = vector.extract_strided_slice %3 {offsets = [0, 0], sizes = [1, 8], strides = [1, 1]} : vector<2x8xf32> to vector<1x8xf32>
    %cst_5 = arith.constant 7.812500e-03 : f32
    %5 = vector.broadcast %cst_5 : f32 to vector<1x8xf32>
    %6 = arith.mulf %4, %5 : vector<1x8xf32>
    %7 = vector.extract_strided_slice %3 {offsets = [1, 0], sizes = [1, 8], strides = [1, 1]} : vector<2x8xf32> to vector<1x8xf32>
    %cst_6 = arith.constant 7.812500e-03 : f32
    %8 = vector.broadcast %cst_6 : f32 to vector<1x8xf32>
    %9 = arith.mulf %7, %8 : vector<1x8xf32>
    %10 = arith.mulf %6, %6 : vector<1x8xf32>
    %11 = arith.subf %9, %10 : vector<1x8xf32>
    %cst_7 = arith.constant 9.99999974E-6 : f32
    %12 = vector.broadcast %cst_7 : f32 to vector<1x8xf32>
    %13 = arith.addf %11, %12 : vector<1x8xf32>
    %14 = math.rsqrt %13 : vector<1x8xf32>
    %15 = vector.broadcast %6 : vector<1x8xf32> to vector<64x8xf32>
    %16 = arith.subf %1, %15 : vector<64x8xf32>
    %c0_8 = arith.constant 0 : index
    %c0_9 = arith.constant 0 : index
    %17 = vector.load %arg3[%c0_8, %c0_9] : memref<1x8xf32, #tpu.memory_space<vmem>>, vector<1x8xf32>
    %18 = arith.mulf %14, %17 : vector<1x8xf32>
    %19 = vector.broadcast %18 : vector<1x8xf32> to vector<64x8xf32>
    %20 = arith.mulf %16, %19 : vector<64x8xf32>
    %c0_10 = arith.constant 0 : index
    %c0_11 = arith.constant 0 : index
    %21 = vector.load %arg4[%c0_10, %c0_11] : memref<1x8xf32, #tpu.memory_space<vmem>>, vector<1x8xf32>
    %22 = vector.broadcast %21 : vector<1x8xf32> to vector<64x8xf32>
    %23 = arith.addf %20, %22 : vector<64x8xf32>
    %cst_12 = arith.constant 0.000000e+00 : f32
    %24 = vector.broadcast %cst_12 : f32 to vector<64x8xf32>
    %25 = arith.maximumf %23, %24 : vector<64x8xf32>
    %c0_13 = arith.constant 0 : index
    %c0_14 = arith.constant 0 : index
    %c0_15 = arith.constant 0 : index
    %26 = vector.load %arg5[%c0_13, %c0_14, %c0_15] : memref<1x64x8xf32, #tpu.memory_space<vmem>>, vector<1x64x8xf32>
    %27 = vector.shape_cast %26 : vector<1x64x8xf32> to vector<64x8xf32>
    %28 = vector.shape_cast %25 : vector<64x8xf32> to vector<1x64x8xf32>
    tpu.vector_store %arg5[%c0_13, %c0_14, %c0_15], %28 {strides = array<i32>} : memref<1x64x8xf32, #tpu.memory_space<vmem>>, vector<1x64x8xf32>,
    return
  }
  func.func @transform_0(%arg0: i32) -> (i32, i32, i32) {
    %c0_i32 = arith.constant 0 : i32
    %c0_i32_0 = arith.constant 0 : i32
    %c0_i32_1 = arith.constant 0 : i32
    return %arg0, %c0_i32, %c0_i32_0 : i32, i32, i32
  }
  func.func @transform_1(%arg0: i32) -> (i32, i32, i32) {
    %c0_i32 = arith.constant 0 : i32
    %c0_i32_0 = arith.constant 0 : i32
    %c0_i32_1 = arith.constant 0 : i32
    %c0_i32_2 = arith.constant 0 : i32
    return %c0_i32, %c0_i32_0, %c0_i32_1 : i32, i32, i32
  }
  func.func @transform_2(%arg0: i32) -> (i32, i32) {
    %c0_i32 = arith.constant 0 : i32
    %c0_i32_0 = arith.constant 0 : i32
    %c0_i32_1 = arith.constant 0 : i32
    return %c0_i32, %c0_i32_0 : i32, i32
  }
  func.func @transform_3(%arg0: i32) -> (i32, i32) {
    %c0_i32 = arith.constant 0 : i32
    %c0_i32_0 = arith.constant 0 : i32
    %c0_i32_1 = arith.constant 0 : i32
    return %c0_i32, %c0_i32_0 : i32, i32
  }
  func.func @transform_4(%arg0: i32) -> (i32, i32, i32) {
    %c0_i32 = arith.constant 0 : i32
    %c0_i32_0 = arith.constant 0 : i32
    %c0_i32_1 = arith.constant 0 : i32
    return %arg0, %c0_i32, %c0_i32_0 : i32, i32, i32
  }
}

module attributes {stable_mosaic.version = 11 : i64} {
  func.func @_conv3x3_stats_kernel(%arg0: i32, %arg1: memref<1x64x8xf32, #tpu.memory_space<vmem>>, %arg2: memref<64x2xf32, #tpu.memory_space<vmem>>, %arg3: memref<72x8xf32, #tpu.memory_space<vmem>>, %arg4: memref<1x64x8xf32, #tpu.memory_space<vmem>>, %arg5: memref<1x2x8xf32, #tpu.memory_space<vmem>>, %arg6: memref<82x8xf32, #tpu.memory_space<vmem>>) attributes {dimension_semantics = [#tpu.dimension_semantics<parallel>], iteration_bounds = array<i64: 2>, scalar_prefetch = 0 : i64, scratch_operands = 1 : i64, tpu.core_type = #tpu.core_type<tc>, window_params = [{transform_indices = @transform_0, window_bounds = array<i64: 1, 64, 8>}, {pipeline_mode = #tpu.pipeline_mode<synchronous>, transform_indices = @transform_1, window_bounds = array<i64: 64, 2>}, {pipeline_mode = #tpu.pipeline_mode<synchronous>, transform_indices = @transform_2, window_bounds = array<i64: 72, 8>}, {transform_indices = @transform_3, window_bounds = array<i64: 1, 64, 8>}, {transform_indices = @transform_4, window_bounds = array<i64: 1, 2, 8>}]} {
    %c0 = arith.constant 0 : index
    %c0_0 = arith.constant 0 : index
    %c0_1 = arith.constant 0 : index
    %0 = vector.load %arg1[%c0, %c0_0, %c0_1] : memref<1x64x8xf32, #tpu.memory_space<vmem>>, vector<1x64x8xf32>
    %1 = vector.shape_cast %0 : vector<1x64x8xf32> to vector<64x8xf32>
    %cst = arith.constant 0.000000e+00 : f32
    %2 = vector.broadcast %cst : f32 to vector<9x8xf32>
    %c0_2 = arith.constant 0 : index
    %c0_3 = arith.constant 0 : index
    %3 = vector.load %arg6[%c0_2, %c0_3] : memref<82x8xf32, #tpu.memory_space<vmem>>, vector<9x8xf32>
    tpu.vector_store %arg6[%c0_2, %c0_3], %2 {strides = array<i32>} : memref<82x8xf32, #tpu.memory_space<vmem>>, vector<9x8xf32>,
    %cst_4 = arith.constant 0.000000e+00 : f32
    %4 = vector.broadcast %cst_4 : f32 to vector<9x8xf32>
    %c73 = arith.constant 73 : index
    %c0_5 = arith.constant 0 : index
    %5 = vector.load %arg6[%c73, %c0_5] : memref<82x8xf32, #tpu.memory_space<vmem>>, vector<9x8xf32>
    tpu.vector_store %arg6[%c73, %c0_5], %4 {strides = array<i32>} : memref<82x8xf32, #tpu.memory_space<vmem>>, vector<9x8xf32>,
    %c9 = arith.constant 9 : index
    %c0_6 = arith.constant 0 : index
    %6 = vector.load %arg6[%c9, %c0_6] : memref<82x8xf32, #tpu.memory_space<vmem>>, vector<64x8xf32>
    tpu.vector_store %arg6[%c9, %c0_6], %1 {strides = array<i32>} : memref<82x8xf32, #tpu.memory_space<vmem>>, vector<64x8xf32>,
    %c0_7 = arith.constant 0 : index
    %c0_8 = arith.constant 0 : index
    %7 = vector.load %arg2[%c0_7, %c0_8] : memref<64x2xf32, #tpu.memory_space<vmem>>, vector<64x1xf32>
    %c0_9 = arith.constant 0 : index
    %c1 = arith.constant 1 : index
    %8 = vector.load %arg2[%c0_9, %c1] : memref<64x2xf32, #tpu.memory_space<vmem>>, vector<64x1xf32>
    %c0_10 = arith.constant 0 : index
    %c0_11 = arith.constant 0 : index
    %9 = vector.load %arg6[%c0_10, %c0_11] : memref<82x8xf32, #tpu.memory_space<vmem>>, vector<64x8xf32>
    %10 = vector.broadcast %7 : vector<64x1xf32> to vector<64x8xf32>
    %11 = arith.mulf %9, %10 : vector<64x8xf32>
    %c1_12 = arith.constant 1 : index
    %c0_13 = arith.constant 0 : index
    %12 = vector.load %arg6[%c1_12, %c0_13] : memref<82x8xf32, #tpu.memory_space<vmem>>, vector<64x8xf32>
    %c2 = arith.constant 2 : index
    %c0_14 = arith.constant 0 : index
    %13 = vector.load %arg6[%c2, %c0_14] : memref<82x8xf32, #tpu.memory_space<vmem>>, vector<64x8xf32>
    %14 = vector.broadcast %8 : vector<64x1xf32> to vector<64x8xf32>
    %15 = arith.mulf %13, %14 : vector<64x8xf32>
    %c8 = arith.constant 8 : index
    %c0_15 = arith.constant 0 : index
    %16 = vector.load %arg6[%c8, %c0_15] : memref<82x8xf32, #tpu.memory_space<vmem>>, vector<64x8xf32>
    %17 = vector.broadcast %7 : vector<64x1xf32> to vector<64x8xf32>
    %18 = arith.mulf %16, %17 : vector<64x8xf32>
    %c9_16 = arith.constant 9 : index
    %c0_17 = arith.constant 0 : index
    %19 = vector.load %arg6[%c9_16, %c0_17] : memref<82x8xf32, #tpu.memory_space<vmem>>, vector<64x8xf32>
    %c10 = arith.constant 10 : index
    %c0_18 = arith.constant 0 : index
    %20 = vector.load %arg6[%c10, %c0_18] : memref<82x8xf32, #tpu.memory_space<vmem>>, vector<64x8xf32>
    %21 = vector.broadcast %8 : vector<64x1xf32> to vector<64x8xf32>
    %22 = arith.mulf %20, %21 : vector<64x8xf32>
    %c16 = arith.constant 16 : index
    %c0_19 = arith.constant 0 : index
    %23 = vector.load %arg6[%c16, %c0_19] : memref<82x8xf32, #tpu.memory_space<vmem>>, vector<64x8xf32>
    %24 = vector.broadcast %7 : vector<64x1xf32> to vector<64x8xf32>
    %25 = arith.mulf %23, %24 : vector<64x8xf32>
    %c17 = arith.constant 17 : index
    %c0_20 = arith.constant 0 : index
    %26 = vector.load %arg6[%c17, %c0_20] : memref<82x8xf32, #tpu.memory_space<vmem>>, vector<64x8xf32>
    %c18 = arith.constant 18 : index
    %c0_21 = arith.constant 0 : index
    %27 = vector.load %arg6[%c18, %c0_21] : memref<82x8xf32, #tpu.memory_space<vmem>>, vector<64x8xf32>
    %28 = vector.broadcast %8 : vector<64x1xf32> to vector<64x8xf32>
    %29 = arith.mulf %27, %28 : vector<64x8xf32>
    %30 = tpu.concatenate %11, %12, %15, %18, %19, %22, %25, %26, %29 in 1 : vector<64x8xf32>, vector<64x8xf32>, vector<64x8xf32>, vector<64x8xf32>, vector<64x8xf32>, vector<64x8xf32>, vector<64x8xf32>, vector<64x8xf32>, vector<64x8xf32> -> vector<64x72xf32>
    %31 = arith.truncf %30 : vector<64x72xf32> to vector<64x72xbf16>
    %c0_22 = arith.constant 0 : index
    %c0_23 = arith.constant 0 : index
    %32 = vector.load %arg3[%c0_22, %c0_23] : memref<72x8xf32, #tpu.memory_space<vmem>>, vector<72x8xf32>
    %33 = arith.truncf %32 : vector<72x8xf32> to vector<72x8xbf16>
    %cst_24 = arith.constant dense<0.000000e+00> : vector<64x8xf32>
    %34 = tpu.matmul %31, %33, %cst_24 {dimension_numbers = #tpu.dot_dimension_numbers<[1], [0], [0], [1], [0, 0, 1, 1], [], []>} : vector<64x72xbf16>, vector<72x8xbf16>, vector<64x8xf32> -> vector<64x8xf32>
    %c0_25 = arith.constant 0 : index
    %c0_26 = arith.constant 0 : index
    %c0_27 = arith.constant 0 : index
    %35 = vector.load %arg4[%c0_25, %c0_26, %c0_27] : memref<1x64x8xf32, #tpu.memory_space<vmem>>, vector<1x64x8xf32>
    %36 = vector.shape_cast %35 : vector<1x64x8xf32> to vector<64x8xf32>
    %37 = vector.shape_cast %34 : vector<64x8xf32> to vector<1x64x8xf32>
    tpu.vector_store %arg4[%c0_25, %c0_26, %c0_27], %37 {strides = array<i32>} : memref<1x64x8xf32, #tpu.memory_space<vmem>>, vector<1x64x8xf32>,
    %cst_28 = arith.constant dense<0.000000e+00> : vector<8xf32>
    %38 = vector.multi_reduction <add>, %34, %cst_28 [0] : vector<64x8xf32> to vector<8xf32>
    %39 = vector.shape_cast %38 : vector<8xf32> to vector<1x8xf32>
    %c0_29 = arith.constant 0 : index
    %c0_30 = arith.constant 0 : index
    %c0_31 = arith.constant 0 : index
    %40 = vector.load %arg5[%c0_29, %c0_30, %c0_31] : memref<1x2x8xf32, #tpu.memory_space<vmem>>, vector<1x1x8xf32>
    %41 = vector.shape_cast %40 : vector<1x1x8xf32> to vector<1x8xf32>
    %42 = vector.shape_cast %39 : vector<1x8xf32> to vector<1x1x8xf32>
    tpu.vector_store %arg5[%c0_29, %c0_30, %c0_31], %42 {strides = array<i32>} : memref<1x2x8xf32, #tpu.memory_space<vmem>>, vector<1x1x8xf32>,
    %43 = arith.mulf %34, %34 : vector<64x8xf32>
    %cst_32 = arith.constant dense<0.000000e+00> : vector<8xf32>
    %44 = vector.multi_reduction <add>, %43, %cst_32 [0] : vector<64x8xf32> to vector<8xf32>
    %45 = vector.shape_cast %44 : vector<8xf32> to vector<1x8xf32>
    %c0_33 = arith.constant 0 : index
    %c1_34 = arith.constant 1 : index
    %c0_35 = arith.constant 0 : index
    %46 = vector.load %arg5[%c0_33, %c1_34, %c0_35] : memref<1x2x8xf32, #tpu.memory_space<vmem>>, vector<1x1x8xf32>
    %47 = vector.shape_cast %46 : vector<1x1x8xf32> to vector<1x8xf32>
    %48 = vector.shape_cast %45 : vector<1x8xf32> to vector<1x1x8xf32>
    tpu.vector_store %arg5[%c0_33, %c1_34, %c0_35], %48 {strides = array<i32>} : memref<1x2x8xf32, #tpu.memory_space<vmem>>, vector<1x1x8xf32>,
    return
  }
  func.func @transform_0(%arg0: i32) -> (i32, i32, i32) {
    %c0_i32 = arith.constant 0 : i32
    %c0_i32_0 = arith.constant 0 : i32
    %c0_i32_1 = arith.constant 0 : i32
    return %arg0, %c0_i32, %c0_i32_0 : i32, i32, i32
  }
  func.func @transform_1(%arg0: i32) -> (i32, i32) {
    %c0_i32 = arith.constant 0 : i32
    %c0_i32_0 = arith.constant 0 : i32
    %c0_i32_1 = arith.constant 0 : i32
    return %c0_i32, %c0_i32_0 : i32, i32
  }
  func.func @transform_2(%arg0: i32) -> (i32, i32) {
    %c0_i32 = arith.constant 0 : i32
    %c0_i32_0 = arith.constant 0 : i32
    %c0_i32_1 = arith.constant 0 : i32
    return %c0_i32, %c0_i32_0 : i32, i32
  }
  func.func @transform_3(%arg0: i32) -> (i32, i32, i32) {
    %c0_i32 = arith.constant 0 : i32
    %c0_i32_0 = arith.constant 0 : i32
    %c0_i32_1 = arith.constant 0 : i32
    return %arg0, %c0_i32, %c0_i32_0 : i32, i32, i32
  }
  func.func @transform_4(%arg0: i32) -> (i32, i32, i32) {
    %c0_i32 = arith.constant 0 : i32
    %c0_i32_0 = arith.constant 0 : i32
    %c0_i32_1 = arith.constant 0 : i32
    return %arg0, %c0_i32, %c0_i32_0 : i32, i32, i32
  }
}

module attributes {stable_mosaic.version = 11 : i64} {
  func.func @_convz_up_add_kernel(%arg0: i32, %arg1: memref<1x64x8xf32, #tpu.memory_space<vmem>>, %arg2: memref<1x16x16x32xf32, #tpu.memory_space<vmem>>, %arg3: memref<8x32xf32, #tpu.memory_space<vmem>>, %arg4: memref<1x32xf32, #tpu.memory_space<vmem>>, %arg5: memref<16x8x1xf32, #tpu.memory_space<vmem>>, %arg6: memref<8x16xf32, #tpu.memory_space<vmem>>, %arg7: memref<1x16x16x32xf32, #tpu.memory_space<vmem>>) attributes {dimension_semantics = [#tpu.dimension_semantics<parallel>], iteration_bounds = array<i64: 2>, scalar_prefetch = 0 : i64, scratch_operands = 0 : i64, tpu.core_type = #tpu.core_type<tc>, window_params = [{transform_indices = @transform_0, window_bounds = array<i64: 1, 64, 8>}, {transform_indices = @transform_1, window_bounds = array<i64: 1, 16, 16, 32>}, {pipeline_mode = #tpu.pipeline_mode<synchronous>, transform_indices = @transform_2, window_bounds = array<i64: 8, 32>}, {pipeline_mode = #tpu.pipeline_mode<synchronous>, transform_indices = @transform_3, window_bounds = array<i64: 1, 32>}, {pipeline_mode = #tpu.pipeline_mode<synchronous>, transform_indices = @transform_4, window_bounds = array<i64: 16, 8, 1>}, {pipeline_mode = #tpu.pipeline_mode<synchronous>, transform_indices = @transform_5, window_bounds = array<i64: 8, 16>}, {transform_indices = @transform_6, window_bounds = array<i64: 1, 16, 16, 32>}]} {
    %c0 = arith.constant 0 : index
    %c0_0 = arith.constant 0 : index
    %c0_1 = arith.constant 0 : index
    %0 = vector.load %arg1[%c0, %c0_0, %c0_1] : memref<1x64x8xf32, #tpu.memory_space<vmem>>, vector<1x64x8xf32>
    %1 = vector.shape_cast %0 : vector<1x64x8xf32> to vector<64x8xf32>
    %c0_2 = arith.constant 0 : index
    %c0_3 = arith.constant 0 : index
    %2 = vector.load %arg3[%c0_2, %c0_3] : memref<8x32xf32, #tpu.memory_space<vmem>>, vector<8x32xf32>
    %cst = arith.constant dense<0.000000e+00> : vector<64x32xf32>
    %3 = tpu.matmul %1, %2, %cst {dimension_numbers = #tpu.dot_dimension_numbers<[1], [0], [0], [1], [0, 0, 1, 1], [], []>} : vector<64x8xf32>, vector<8x32xf32>, vector<64x32xf32> -> vector<64x32xf32>
    %c0_4 = arith.constant 0 : index
    %c0_5 = arith.constant 0 : index
    %4 = vector.load %arg4[%c0_4, %c0_5] : memref<1x32xf32, #tpu.memory_space<vmem>>, vector<1x32xf32>
    %5 = vector.broadcast %4 : vector<1x32xf32> to vector<64x32xf32>
    %6 = arith.addf %3, %5 : vector<64x32xf32>
    %7 = vector.shape_cast %6 : vector<64x32xf32> to vector<8x8x32xf32>
    %8 = tpu.transpose %7, [0, 2, 1] : vector<8x8x32xf32> -> vector<8x32x8xf32>
    %9 = vector.shape_cast %8 : vector<8x32x8xf32> to vector<256x8xf32>
    %c0_6 = arith.constant 0 : index
    %c0_7 = arith.constant 0 : index
    %10 = vector.load %arg6[%c0_6, %c0_7] : memref<8x16xf32, #tpu.memory_space<vmem>>, vector<8x16xf32>
    %cst_8 = arith.constant dense<0.000000e+00> : vector<256x16xf32>
    %11 = tpu.matmul %9, %10, %cst_8 {dimension_numbers = #tpu.dot_dimension_numbers<[1], [0], [0], [1], [0, 0, 1, 1], [], []>} : vector<256x8xf32>, vector<8x16xf32>, vector<256x16xf32> -> vector<256x16xf32>
    %12 = vector.shape_cast %11 : vector<256x16xf32> to vector<8x32x16xf32>
    %13 = tpu.transpose %12, [0, 2, 1] : vector<8x32x16xf32> -> vector<8x16x32xf32>
    %c0_9 = arith.constant 0 : index
    %c0_10 = arith.constant 0 : index
    %c0_11 = arith.constant 0 : index
    %c0_12 = arith.constant 0 : index
    %14 = vector.load %arg2[%c0_9, %c0_10, %c0_11, %c0_12] : memref<1x16x16x32xf32, #tpu.memory_space<vmem>>, vector<1x16x16x32xf32>
    %15 = vector.shape_cast %14 : vector<1x16x16x32xf32> to vector<16x16x32xf32>
    %c0_13 = arith.constant 0 : index
    %c0_14 = arith.constant 0 : index
    %c0_15 = arith.constant 0 : index
    %16 = vector.load %arg5[%c0_13, %c0_14, %c0_15] : memref<16x8x1xf32, #tpu.memory_space<vmem>>, vector<16x1x1xf32>
    %17 = vector.extract_strided_slice %13 {offsets = [0, 0, 0], sizes = [1, 16, 32], strides = [1, 1, 1]} : vector<8x16x32xf32> to vector<1x16x32xf32>
    %18 = vector.broadcast %16 : vector<16x1x1xf32> to vector<16x16x32xf32>
    %19 = vector.broadcast %17 : vector<1x16x32xf32> to vector<16x16x32xf32>
    %20 = arith.mulf %18, %19 : vector<16x16x32xf32>
    %21 = arith.addf %15, %20 : vector<16x16x32xf32>
    %c0_16 = arith.constant 0 : index
    %c1 = arith.constant 1 : index
    %c0_17 = arith.constant 0 : index
    %22 = vector.load %arg5[%c0_16, %c1, %c0_17] : memref<16x8x1xf32, #tpu.memory_space<vmem>>, vector<16x1x1xf32>
    %23 = vector.extract_strided_slice %13 {offsets = [1, 0, 0], sizes = [1, 16, 32], strides = [1, 1, 1]} : vector<8x16x32xf32> to vector<1x16x32xf32>
    %24 = vector.broadcast %22 : vector<16x1x1xf32> to vector<16x16x32xf32>
    %25 = vector.broadcast %23 : vector<1x16x32xf32> to vector<16x16x32xf32>
    %26 = arith.mulf %24, %25 : vector<16x16x32xf32>
    %27 = arith.addf %21, %26 : vector<16x16x32xf32>
    %c0_18 = arith.constant 0 : index
    %c2 = arith.constant 2 : index
    %c0_19 = arith.constant 0 : index
    %28 = vector.load %arg5[%c0_18, %c2, %c0_19] : memref<16x8x1xf32, #tpu.memory_space<vmem>>, vector<16x1x1xf32>
    %29 = vector.extract_strided_slice %13 {offsets = [2, 0, 0], sizes = [1, 16, 32], strides = [1, 1, 1]} : vector<8x16x32xf32> to vector<1x16x32xf32>
    %30 = vector.broadcast %28 : vector<16x1x1xf32> to vector<16x16x32xf32>
    %31 = vector.broadcast %29 : vector<1x16x32xf32> to vector<16x16x32xf32>
    %32 = arith.mulf %30, %31 : vector<16x16x32xf32>
    %33 = arith.addf %27, %32 : vector<16x16x32xf32>
    %c0_20 = arith.constant 0 : index
    %c3 = arith.constant 3 : index
    %c0_21 = arith.constant 0 : index
    %34 = vector.load %arg5[%c0_20, %c3, %c0_21] : memref<16x8x1xf32, #tpu.memory_space<vmem>>, vector<16x1x1xf32>
    %35 = vector.extract_strided_slice %13 {offsets = [3, 0, 0], sizes = [1, 16, 32], strides = [1, 1, 1]} : vector<8x16x32xf32> to vector<1x16x32xf32>
    %36 = vector.broadcast %34 : vector<16x1x1xf32> to vector<16x16x32xf32>
    %37 = vector.broadcast %35 : vector<1x16x32xf32> to vector<16x16x32xf32>
    %38 = arith.mulf %36, %37 : vector<16x16x32xf32>
    %39 = arith.addf %33, %38 : vector<16x16x32xf32>
    %c0_22 = arith.constant 0 : index
    %c4 = arith.constant 4 : index
    %c0_23 = arith.constant 0 : index
    %40 = vector.load %arg5[%c0_22, %c4, %c0_23] : memref<16x8x1xf32, #tpu.memory_space<vmem>>, vector<16x1x1xf32>
    %41 = vector.extract_strided_slice %13 {offsets = [4, 0, 0], sizes = [1, 16, 32], strides = [1, 1, 1]} : vector<8x16x32xf32> to vector<1x16x32xf32>
    %42 = vector.broadcast %40 : vector<16x1x1xf32> to vector<16x16x32xf32>
    %43 = vector.broadcast %41 : vector<1x16x32xf32> to vector<16x16x32xf32>
    %44 = arith.mulf %42, %43 : vector<16x16x32xf32>
    %45 = arith.addf %39, %44 : vector<16x16x32xf32>
    %c0_24 = arith.constant 0 : index
    %c5 = arith.constant 5 : index
    %c0_25 = arith.constant 0 : index
    %46 = vector.load %arg5[%c0_24, %c5, %c0_25] : memref<16x8x1xf32, #tpu.memory_space<vmem>>, vector<16x1x1xf32>
    %47 = vector.extract_strided_slice %13 {offsets = [5, 0, 0], sizes = [1, 16, 32], strides = [1, 1, 1]} : vector<8x16x32xf32> to vector<1x16x32xf32>
    %48 = vector.broadcast %46 : vector<16x1x1xf32> to vector<16x16x32xf32>
    %49 = vector.broadcast %47 : vector<1x16x32xf32> to vector<16x16x32xf32>
    %50 = arith.mulf %48, %49 : vector<16x16x32xf32>
    %51 = arith.addf %45, %50 : vector<16x16x32xf32>
    %c0_26 = arith.constant 0 : index
    %c6 = arith.constant 6 : index
    %c0_27 = arith.constant 0 : index
    %52 = vector.load %arg5[%c0_26, %c6, %c0_27] : memref<16x8x1xf32, #tpu.memory_space<vmem>>, vector<16x1x1xf32>
    %53 = vector.extract_strided_slice %13 {offsets = [6, 0, 0], sizes = [1, 16, 32], strides = [1, 1, 1]} : vector<8x16x32xf32> to vector<1x16x32xf32>
    %54 = vector.broadcast %52 : vector<16x1x1xf32> to vector<16x16x32xf32>
    %55 = vector.broadcast %53 : vector<1x16x32xf32> to vector<16x16x32xf32>
    %56 = arith.mulf %54, %55 : vector<16x16x32xf32>
    %57 = arith.addf %51, %56 : vector<16x16x32xf32>
    %c0_28 = arith.constant 0 : index
    %c7 = arith.constant 7 : index
    %c0_29 = arith.constant 0 : index
    %58 = vector.load %arg5[%c0_28, %c7, %c0_29] : memref<16x8x1xf32, #tpu.memory_space<vmem>>, vector<16x1x1xf32>
    %59 = vector.extract_strided_slice %13 {offsets = [7, 0, 0], sizes = [1, 16, 32], strides = [1, 1, 1]} : vector<8x16x32xf32> to vector<1x16x32xf32>
    %60 = vector.broadcast %58 : vector<16x1x1xf32> to vector<16x16x32xf32>
    %61 = vector.broadcast %59 : vector<1x16x32xf32> to vector<16x16x32xf32>
    %62 = arith.mulf %60, %61 : vector<16x16x32xf32>
    %63 = arith.addf %57, %62 : vector<16x16x32xf32>
    %c0_30 = arith.constant 0 : index
    %c0_31 = arith.constant 0 : index
    %c0_32 = arith.constant 0 : index
    %c0_33 = arith.constant 0 : index
    %64 = vector.load %arg7[%c0_30, %c0_31, %c0_32, %c0_33] : memref<1x16x16x32xf32, #tpu.memory_space<vmem>>, vector<1x16x16x32xf32>
    %65 = vector.shape_cast %64 : vector<1x16x16x32xf32> to vector<16x16x32xf32>
    %66 = vector.shape_cast %63 : vector<16x16x32xf32> to vector<1x16x16x32xf32>
    tpu.vector_store %arg7[%c0_30, %c0_31, %c0_32, %c0_33], %66 {strides = array<i32>} : memref<1x16x16x32xf32, #tpu.memory_space<vmem>>, vector<1x16x16x32xf32>,
    return
  }
  func.func @transform_0(%arg0: i32) -> (i32, i32, i32) {
    %c0_i32 = arith.constant 0 : i32
    %c0_i32_0 = arith.constant 0 : i32
    %c0_i32_1 = arith.constant 0 : i32
    return %arg0, %c0_i32, %c0_i32_0 : i32, i32, i32
  }
  func.func @transform_1(%arg0: i32) -> (i32, i32, i32, i32) {
    %c0_i32 = arith.constant 0 : i32
    %c0_i32_0 = arith.constant 0 : i32
    %c0_i32_1 = arith.constant 0 : i32
    %c0_i32_2 = arith.constant 0 : i32
    return %arg0, %c0_i32, %c0_i32_0, %c0_i32_1 : i32, i32, i32, i32
  }
  func.func @transform_2(%arg0: i32) -> (i32, i32) {
    %c0_i32 = arith.constant 0 : i32
    %c0_i32_0 = arith.constant 0 : i32
    %c0_i32_1 = arith.constant 0 : i32
    return %c0_i32, %c0_i32_0 : i32, i32
  }
  func.func @transform_3(%arg0: i32) -> (i32, i32) {
    %c0_i32 = arith.constant 0 : i32
    %c0_i32_0 = arith.constant 0 : i32
    %c0_i32_1 = arith.constant 0 : i32
    return %c0_i32, %c0_i32_0 : i32, i32
  }
  func.func @transform_4(%arg0: i32) -> (i32, i32, i32) {
    %c0_i32 = arith.constant 0 : i32
    %c0_i32_0 = arith.constant 0 : i32
    %c0_i32_1 = arith.constant 0 : i32
    %c0_i32_2 = arith.constant 0 : i32
    return %c0_i32, %c0_i32_0, %c0_i32_1 : i32, i32, i32
  }
  func.func @transform_5(%arg0: i32) -> (i32, i32) {
    %c0_i32 = arith.constant 0 : i32
    %c0_i32_0 = arith.constant 0 : i32
    %c0_i32_1 = arith.constant 0 : i32
    return %c0_i32, %c0_i32_0 : i32, i32
  }
  func.func @transform_6(%arg0: i32) -> (i32, i32, i32, i32) {
    %c0_i32 = arith.constant 0 : i32
    %c0_i32_0 = arith.constant 0 : i32
    %c0_i32_1 = arith.constant 0 : i32
    %c0_i32_2 = arith.constant 0 : i32
    return %arg0, %c0_i32, %c0_i32_0, %c0_i32_1 : i32, i32, i32, i32
  }
}

module attributes {stable_mosaic.version = 11 : i64} {
  func.func @_convz_up_add_kernel(%arg0: i32, %arg1: memref<1x64x8xf32, #tpu.memory_space<vmem>>, %arg2: memref<1x16x16x32xf32, #tpu.memory_space<vmem>>, %arg3: memref<8x32xf32, #tpu.memory_space<vmem>>, %arg4: memref<1x32xf32, #tpu.memory_space<vmem>>, %arg5: memref<16x8x1xf32, #tpu.memory_space<vmem>>, %arg6: memref<8x16xf32, #tpu.memory_space<vmem>>, %arg7: memref<1x16x16x32xf32, #tpu.memory_space<vmem>>) attributes {dimension_semantics = [#tpu.dimension_semantics<parallel>], iteration_bounds = array<i64: 2>, scalar_prefetch = 0 : i64, scratch_operands = 0 : i64, tpu.core_type = #tpu.core_type<tc>, window_params = [{transform_indices = @transform_0, window_bounds = array<i64: 1, 64, 8>}, {transform_indices = @transform_1, window_bounds = array<i64: 1, 16, 16, 32>}, {pipeline_mode = #tpu.pipeline_mode<synchronous>, transform_indices = @transform_2, window_bounds = array<i64: 8, 32>}, {pipeline_mode = #tpu.pipeline_mode<synchronous>, transform_indices = @transform_3, window_bounds = array<i64: 1, 32>}, {pipeline_mode = #tpu.pipeline_mode<synchronous>, transform_indices = @transform_4, window_bounds = array<i64: 16, 8, 1>}, {pipeline_mode = #tpu.pipeline_mode<synchronous>, transform_indices = @transform_5, window_bounds = array<i64: 8, 16>}, {transform_indices = @transform_6, window_bounds = array<i64: 1, 16, 16, 32>}]} {
    %c0 = arith.constant 0 : index
    %c0_0 = arith.constant 0 : index
    %c0_1 = arith.constant 0 : index
    %0 = vector.load %arg1[%c0, %c0_0, %c0_1] : memref<1x64x8xf32, #tpu.memory_space<vmem>>, vector<1x64x8xf32>
    %1 = vector.shape_cast %0 : vector<1x64x8xf32> to vector<64x8xf32>
    %c0_2 = arith.constant 0 : index
    %c0_3 = arith.constant 0 : index
    %2 = vector.load %arg3[%c0_2, %c0_3] : memref<8x32xf32, #tpu.memory_space<vmem>>, vector<8x32xf32>
    %cst = arith.constant dense<0.000000e+00> : vector<64x32xf32>
    %3 = tpu.matmul %1, %2, %cst {dimension_numbers = #tpu.dot_dimension_numbers<[1], [0], [0], [1], [0, 0, 1, 1], [], []>} : vector<64x8xf32>, vector<8x32xf32>, vector<64x32xf32> -> vector<64x32xf32>
    %c0_4 = arith.constant 0 : index
    %c0_5 = arith.constant 0 : index
    %4 = vector.load %arg4[%c0_4, %c0_5] : memref<1x32xf32, #tpu.memory_space<vmem>>, vector<1x32xf32>
    %5 = vector.broadcast %4 : vector<1x32xf32> to vector<64x32xf32>
    %6 = arith.addf %3, %5 : vector<64x32xf32>
    %7 = vector.shape_cast %6 : vector<64x32xf32> to vector<8x8x32xf32>
    %8 = tpu.transpose %7, [0, 2, 1] : vector<8x8x32xf32> -> vector<8x32x8xf32>
    %9 = vector.shape_cast %8 : vector<8x32x8xf32> to vector<256x8xf32>
    %c0_6 = arith.constant 0 : index
    %c0_7 = arith.constant 0 : index
    %10 = vector.load %arg6[%c0_6, %c0_7] : memref<8x16xf32, #tpu.memory_space<vmem>>, vector<8x16xf32>
    %cst_8 = arith.constant dense<0.000000e+00> : vector<256x16xf32>
    %11 = tpu.matmul %9, %10, %cst_8 {dimension_numbers = #tpu.dot_dimension_numbers<[1], [0], [0], [1], [0, 0, 1, 1], [], []>} : vector<256x8xf32>, vector<8x16xf32>, vector<256x16xf32> -> vector<256x16xf32>
    %12 = vector.shape_cast %11 : vector<256x16xf32> to vector<8x32x16xf32>
    %13 = tpu.transpose %12, [0, 2, 1] : vector<8x32x16xf32> -> vector<8x16x32xf32>
    %c0_9 = arith.constant 0 : index
    %c0_10 = arith.constant 0 : index
    %c0_11 = arith.constant 0 : index
    %c0_12 = arith.constant 0 : index
    %14 = vector.load %arg2[%c0_9, %c0_10, %c0_11, %c0_12] : memref<1x16x16x32xf32, #tpu.memory_space<vmem>>, vector<1x16x16x32xf32>
    %15 = vector.shape_cast %14 : vector<1x16x16x32xf32> to vector<16x16x32xf32>
    %c0_13 = arith.constant 0 : index
    %c0_14 = arith.constant 0 : index
    %c0_15 = arith.constant 0 : index
    %16 = vector.load %arg5[%c0_13, %c0_14, %c0_15] : memref<16x8x1xf32, #tpu.memory_space<vmem>>, vector<16x1x1xf32>
    %17 = vector.extract_strided_slice %13 {offsets = [0, 0, 0], sizes = [1, 16, 32], strides = [1, 1, 1]} : vector<8x16x32xf32> to vector<1x16x32xf32>
    %18 = vector.broadcast %16 : vector<16x1x1xf32> to vector<16x16x32xf32>
    %19 = vector.broadcast %17 : vector<1x16x32xf32> to vector<16x16x32xf32>
    %20 = arith.mulf %18, %19 : vector<16x16x32xf32>
    %21 = arith.addf %15, %20 : vector<16x16x32xf32>
    %c0_16 = arith.constant 0 : index
    %c1 = arith.constant 1 : index
    %c0_17 = arith.constant 0 : index
    %22 = vector.load %arg5[%c0_16, %c1, %c0_17] : memref<16x8x1xf32, #tpu.memory_space<vmem>>, vector<16x1x1xf32>
    %23 = vector.extract_strided_slice %13 {offsets = [1, 0, 0], sizes = [1, 16, 32], strides = [1, 1, 1]} : vector<8x16x32xf32> to vector<1x16x32xf32>
    %24 = vector.broadcast %22 : vector<16x1x1xf32> to vector<16x16x32xf32>
    %25 = vector.broadcast %23 : vector<1x16x32xf32> to vector<16x16x32xf32>
    %26 = arith.mulf %24, %25 : vector<16x16x32xf32>
    %27 = arith.addf %21, %26 : vector<16x16x32xf32>
    %c0_18 = arith.constant 0 : index
    %c2 = arith.constant 2 : index
    %c0_19 = arith.constant 0 : index
    %28 = vector.load %arg5[%c0_18, %c2, %c0_19] : memref<16x8x1xf32, #tpu.memory_space<vmem>>, vector<16x1x1xf32>
    %29 = vector.extract_strided_slice %13 {offsets = [2, 0, 0], sizes = [1, 16, 32], strides = [1, 1, 1]} : vector<8x16x32xf32> to vector<1x16x32xf32>
    %30 = vector.broadcast %28 : vector<16x1x1xf32> to vector<16x16x32xf32>
    %31 = vector.broadcast %29 : vector<1x16x32xf32> to vector<16x16x32xf32>
    %32 = arith.mulf %30, %31 : vector<16x16x32xf32>
    %33 = arith.addf %27, %32 : vector<16x16x32xf32>
    %c0_20 = arith.constant 0 : index
    %c3 = arith.constant 3 : index
    %c0_21 = arith.constant 0 : index
    %34 = vector.load %arg5[%c0_20, %c3, %c0_21] : memref<16x8x1xf32, #tpu.memory_space<vmem>>, vector<16x1x1xf32>
    %35 = vector.extract_strided_slice %13 {offsets = [3, 0, 0], sizes = [1, 16, 32], strides = [1, 1, 1]} : vector<8x16x32xf32> to vector<1x16x32xf32>
    %36 = vector.broadcast %34 : vector<16x1x1xf32> to vector<16x16x32xf32>
    %37 = vector.broadcast %35 : vector<1x16x32xf32> to vector<16x16x32xf32>
    %38 = arith.mulf %36, %37 : vector<16x16x32xf32>
    %39 = arith.addf %33, %38 : vector<16x16x32xf32>
    %c0_22 = arith.constant 0 : index
    %c4 = arith.constant 4 : index
    %c0_23 = arith.constant 0 : index
    %40 = vector.load %arg5[%c0_22, %c4, %c0_23] : memref<16x8x1xf32, #tpu.memory_space<vmem>>, vector<16x1x1xf32>
    %41 = vector.extract_strided_slice %13 {offsets = [4, 0, 0], sizes = [1, 16, 32], strides = [1, 1, 1]} : vector<8x16x32xf32> to vector<1x16x32xf32>
    %42 = vector.broadcast %40 : vector<16x1x1xf32> to vector<16x16x32xf32>
    %43 = vector.broadcast %41 : vector<1x16x32xf32> to vector<16x16x32xf32>
    %44 = arith.mulf %42, %43 : vector<16x16x32xf32>
    %45 = arith.addf %39, %44 : vector<16x16x32xf32>
    %c0_24 = arith.constant 0 : index
    %c5 = arith.constant 5 : index
    %c0_25 = arith.constant 0 : index
    %46 = vector.load %arg5[%c0_24, %c5, %c0_25] : memref<16x8x1xf32, #tpu.memory_space<vmem>>, vector<16x1x1xf32>
    %47 = vector.extract_strided_slice %13 {offsets = [5, 0, 0], sizes = [1, 16, 32], strides = [1, 1, 1]} : vector<8x16x32xf32> to vector<1x16x32xf32>
    %48 = vector.broadcast %46 : vector<16x1x1xf32> to vector<16x16x32xf32>
    %49 = vector.broadcast %47 : vector<1x16x32xf32> to vector<16x16x32xf32>
    %50 = arith.mulf %48, %49 : vector<16x16x32xf32>
    %51 = arith.addf %45, %50 : vector<16x16x32xf32>
    %c0_26 = arith.constant 0 : index
    %c6 = arith.constant 6 : index
    %c0_27 = arith.constant 0 : index
    %52 = vector.load %arg5[%c0_26, %c6, %c0_27] : memref<16x8x1xf32, #tpu.memory_space<vmem>>, vector<16x1x1xf32>
    %53 = vector.extract_strided_slice %13 {offsets = [6, 0, 0], sizes = [1, 16, 32], strides = [1, 1, 1]} : vector<8x16x32xf32> to vector<1x16x32xf32>
    %54 = vector.broadcast %52 : vector<16x1x1xf32> to vector<16x16x32xf32>
    %55 = vector.broadcast %53 : vector<1x16x32xf32> to vector<16x16x32xf32>
    %56 = arith.mulf %54, %55 : vector<16x16x32xf32>
    %57 = arith.addf %51, %56 : vector<16x16x32xf32>
    %c0_28 = arith.constant 0 : index
    %c7 = arith.constant 7 : index
    %c0_29 = arith.constant 0 : index
    %58 = vector.load %arg5[%c0_28, %c7, %c0_29] : memref<16x8x1xf32, #tpu.memory_space<vmem>>, vector<16x1x1xf32>
    %59 = vector.extract_strided_slice %13 {offsets = [7, 0, 0], sizes = [1, 16, 32], strides = [1, 1, 1]} : vector<8x16x32xf32> to vector<1x16x32xf32>
    %60 = vector.broadcast %58 : vector<16x1x1xf32> to vector<16x16x32xf32>
    %61 = vector.broadcast %59 : vector<1x16x32xf32> to vector<16x16x32xf32>
    %62 = arith.mulf %60, %61 : vector<16x16x32xf32>
    %63 = arith.addf %57, %62 : vector<16x16x32xf32>
    %c0_30 = arith.constant 0 : index
    %c0_31 = arith.constant 0 : index
    %c0_32 = arith.constant 0 : index
    %c0_33 = arith.constant 0 : index
    %64 = vector.load %arg7[%c0_30, %c0_31, %c0_32, %c0_33] : memref<1x16x16x32xf32, #tpu.memory_space<vmem>>, vector<1x16x16x32xf32>
    %65 = vector.shape_cast %64 : vector<1x16x16x32xf32> to vector<16x16x32xf32>
    %66 = vector.shape_cast %63 : vector<16x16x32xf32> to vector<1x16x16x32xf32>
    tpu.vector_store %arg7[%c0_30, %c0_31, %c0_32, %c0_33], %66 {strides = array<i32>} : memref<1x16x16x32xf32, #tpu.memory_space<vmem>>, vector<1x16x16x32xf32>,
    return
  }
  func.func @transform_0(%arg0: i32) -> (i32, i32, i32) {
    %c0_i32 = arith.constant 0 : i32
    %c0_i32_0 = arith.constant 0 : i32
    %c0_i32_1 = arith.constant 0 : i32
    return %arg0, %c0_i32, %c0_i32_0 : i32, i32, i32
  }
  func.func @transform_1(%arg0: i32) -> (i32, i32, i32, i32) {
    %c0_i32 = arith.constant 0 : i32
    %c0_i32_0 = arith.constant 0 : i32
    %c0_i32_1 = arith.constant 0 : i32
    %c0_i32_2 = arith.constant 0 : i32
    return %arg0, %c0_i32, %c0_i32_0, %c0_i32_1 : i32, i32, i32, i32
  }
  func.func @transform_2(%arg0: i32) -> (i32, i32) {
    %c0_i32 = arith.constant 0 : i32
    %c0_i32_0 = arith.constant 0 : i32
    %c0_i32_1 = arith.constant 0 : i32
    return %c0_i32, %c0_i32_0 : i32, i32
  }
  func.func @transform_3(%arg0: i32) -> (i32, i32) {
    %c0_i32 = arith.constant 0 : i32
    %c0_i32_0 = arith.constant 0 : i32
    %c0_i32_1 = arith.constant 0 : i32
    return %c0_i32, %c0_i32_0 : i32, i32
  }
  func.func @transform_4(%arg0: i32) -> (i32, i32, i32) {
    %c0_i32 = arith.constant 0 : i32
    %c0_i32_0 = arith.constant 0 : i32
    %c0_i32_1 = arith.constant 0 : i32
    %c0_i32_2 = arith.constant 0 : i32
    return %c0_i32, %c0_i32_0, %c0_i32_1 : i32, i32, i32
  }
  func.func @transform_5(%arg0: i32) -> (i32, i32) {
    %c0_i32 = arith.constant 0 : i32
    %c0_i32_0 = arith.constant 0 : i32
    %c0_i32_1 = arith.constant 0 : i32
    return %c0_i32, %c0_i32_0 : i32, i32
  }
  func.func @transform_6(%arg0: i32) -> (i32, i32, i32, i32) {
    %c0_i32 = arith.constant 0 : i32
    %c0_i32_0 = arith.constant 0 : i32
    %c0_i32_1 = arith.constant 0 : i32
    %c0_i32_2 = arith.constant 0 : i32
    return %arg0, %c0_i32, %c0_i32_0, %c0_i32_1 : i32, i32, i32, i32
  }
}

module attributes {stable_mosaic.version = 11 : i64} {
  func.func @_conv3x3_stats_kernel(%arg0: i32, %arg1: memref<1x64x8xf32, #tpu.memory_space<vmem>>, %arg2: memref<1x64x32xf32, #tpu.memory_space<vmem>>, %arg3: memref<64x2xf32, #tpu.memory_space<vmem>>, %arg4: memref<360x8xf32, #tpu.memory_space<vmem>>, %arg5: memref<1x64x8xf32, #tpu.memory_space<vmem>>, %arg6: memref<1x2x8xf32, #tpu.memory_space<vmem>>, %arg7: memref<82x40xf32, #tpu.memory_space<vmem>>) attributes {dimension_semantics = [#tpu.dimension_semantics<parallel>], iteration_bounds = array<i64: 2>, scalar_prefetch = 0 : i64, scratch_operands = 1 : i64, tpu.core_type = #tpu.core_type<tc>, window_params = [{transform_indices = @transform_0, window_bounds = array<i64: 1, 64, 8>}, {transform_indices = @transform_1, window_bounds = array<i64: 1, 64, 32>}, {pipeline_mode = #tpu.pipeline_mode<synchronous>, transform_indices = @transform_2, window_bounds = array<i64: 64, 2>}, {pipeline_mode = #tpu.pipeline_mode<synchronous>, transform_indices = @transform_3, window_bounds = array<i64: 360, 8>}, {transform_indices = @transform_4, window_bounds = array<i64: 1, 64, 8>}, {transform_indices = @transform_5, window_bounds = array<i64: 1, 2, 8>}]} {
    %c0 = arith.constant 0 : index
    %c0_0 = arith.constant 0 : index
    %c0_1 = arith.constant 0 : index
    %0 = vector.load %arg1[%c0, %c0_0, %c0_1] : memref<1x64x8xf32, #tpu.memory_space<vmem>>, vector<1x64x8xf32>
    %1 = vector.shape_cast %0 : vector<1x64x8xf32> to vector<64x8xf32>
    %c0_2 = arith.constant 0 : index
    %c0_3 = arith.constant 0 : index
    %c0_4 = arith.constant 0 : index
    %2 = vector.load %arg2[%c0_2, %c0_3, %c0_4] : memref<1x64x32xf32, #tpu.memory_space<vmem>>, vector<1x64x32xf32>
    %3 = vector.shape_cast %2 : vector<1x64x32xf32> to vector<64x32xf32>
    %4 = tpu.concatenate %1, %3 in 1 : vector<64x8xf32>, vector<64x32xf32> -> vector<64x40xf32>
    %cst = arith.constant 0.000000e+00 : f32
    %5 = vector.broadcast %cst : f32 to vector<9x40xf32>
    %c0_5 = arith.constant 0 : index
    %c0_6 = arith.constant 0 : index
    %6 = vector.load %arg7[%c0_5, %c0_6] : memref<82x40xf32, #tpu.memory_space<vmem>>, vector<9x40xf32>
    tpu.vector_store %arg7[%c0_5, %c0_6], %5 {strides = array<i32>} : memref<82x40xf32, #tpu.memory_space<vmem>>, vector<9x40xf32>,
    %cst_7 = arith.constant 0.000000e+00 : f32
    %7 = vector.broadcast %cst_7 : f32 to vector<9x40xf32>
    %c73 = arith.constant 73 : index
    %c0_8 = arith.constant 0 : index
    %8 = vector.load %arg7[%c73, %c0_8] : memref<82x40xf32, #tpu.memory_space<vmem>>, vector<9x40xf32>
    tpu.vector_store %arg7[%c73, %c0_8], %7 {strides = array<i32>} : memref<82x40xf32, #tpu.memory_space<vmem>>, vector<9x40xf32>,
    %c9 = arith.constant 9 : index
    %c0_9 = arith.constant 0 : index
    %9 = vector.load %arg7[%c9, %c0_9] : memref<82x40xf32, #tpu.memory_space<vmem>>, vector<64x40xf32>
    tpu.vector_store %arg7[%c9, %c0_9], %4 {strides = array<i32>} : memref<82x40xf32, #tpu.memory_space<vmem>>, vector<64x40xf32>,
    %c0_10 = arith.constant 0 : index
    %c0_11 = arith.constant 0 : index
    %10 = vector.load %arg3[%c0_10, %c0_11] : memref<64x2xf32, #tpu.memory_space<vmem>>, vector<64x1xf32>
    %c0_12 = arith.constant 0 : index
    %c1 = arith.constant 1 : index
    %11 = vector.load %arg3[%c0_12, %c1] : memref<64x2xf32, #tpu.memory_space<vmem>>, vector<64x1xf32>
    %c0_13 = arith.constant 0 : index
    %c0_14 = arith.constant 0 : index
    %12 = vector.load %arg7[%c0_13, %c0_14] : memref<82x40xf32, #tpu.memory_space<vmem>>, vector<64x40xf32>
    %13 = vector.broadcast %10 : vector<64x1xf32> to vector<64x40xf32>
    %14 = arith.mulf %12, %13 : vector<64x40xf32>
    %c1_15 = arith.constant 1 : index
    %c0_16 = arith.constant 0 : index
    %15 = vector.load %arg7[%c1_15, %c0_16] : memref<82x40xf32, #tpu.memory_space<vmem>>, vector<64x40xf32>
    %c2 = arith.constant 2 : index
    %c0_17 = arith.constant 0 : index
    %16 = vector.load %arg7[%c2, %c0_17] : memref<82x40xf32, #tpu.memory_space<vmem>>, vector<64x40xf32>
    %17 = vector.broadcast %11 : vector<64x1xf32> to vector<64x40xf32>
    %18 = arith.mulf %16, %17 : vector<64x40xf32>
    %c8 = arith.constant 8 : index
    %c0_18 = arith.constant 0 : index
    %19 = vector.load %arg7[%c8, %c0_18] : memref<82x40xf32, #tpu.memory_space<vmem>>, vector<64x40xf32>
    %20 = vector.broadcast %10 : vector<64x1xf32> to vector<64x40xf32>
    %21 = arith.mulf %19, %20 : vector<64x40xf32>
    %c9_19 = arith.constant 9 : index
    %c0_20 = arith.constant 0 : index
    %22 = vector.load %arg7[%c9_19, %c0_20] : memref<82x40xf32, #tpu.memory_space<vmem>>, vector<64x40xf32>
    %c10 = arith.constant 10 : index
    %c0_21 = arith.constant 0 : index
    %23 = vector.load %arg7[%c10, %c0_21] : memref<82x40xf32, #tpu.memory_space<vmem>>, vector<64x40xf32>
    %24 = vector.broadcast %11 : vector<64x1xf32> to vector<64x40xf32>
    %25 = arith.mulf %23, %24 : vector<64x40xf32>
    %c16 = arith.constant 16 : index
    %c0_22 = arith.constant 0 : index
    %26 = vector.load %arg7[%c16, %c0_22] : memref<82x40xf32, #tpu.memory_space<vmem>>, vector<64x40xf32>
    %27 = vector.broadcast %10 : vector<64x1xf32> to vector<64x40xf32>
    %28 = arith.mulf %26, %27 : vector<64x40xf32>
    %c17 = arith.constant 17 : index
    %c0_23 = arith.constant 0 : index
    %29 = vector.load %arg7[%c17, %c0_23] : memref<82x40xf32, #tpu.memory_space<vmem>>, vector<64x40xf32>
    %c18 = arith.constant 18 : index
    %c0_24 = arith.constant 0 : index
    %30 = vector.load %arg7[%c18, %c0_24] : memref<82x40xf32, #tpu.memory_space<vmem>>, vector<64x40xf32>
    %31 = vector.broadcast %11 : vector<64x1xf32> to vector<64x40xf32>
    %32 = arith.mulf %30, %31 : vector<64x40xf32>
    %33 = tpu.concatenate %14, %15, %18, %21, %22, %25, %28, %29, %32 in 1 : vector<64x40xf32>, vector<64x40xf32>, vector<64x40xf32>, vector<64x40xf32>, vector<64x40xf32>, vector<64x40xf32>, vector<64x40xf32>, vector<64x40xf32>, vector<64x40xf32> -> vector<64x360xf32>
    %34 = arith.truncf %33 : vector<64x360xf32> to vector<64x360xbf16>
    %c0_25 = arith.constant 0 : index
    %c0_26 = arith.constant 0 : index
    %35 = vector.load %arg4[%c0_25, %c0_26] : memref<360x8xf32, #tpu.memory_space<vmem>>, vector<360x8xf32>
    %36 = arith.truncf %35 : vector<360x8xf32> to vector<360x8xbf16>
    %cst_27 = arith.constant dense<0.000000e+00> : vector<64x8xf32>
    %37 = tpu.matmul %34, %36, %cst_27 {dimension_numbers = #tpu.dot_dimension_numbers<[1], [0], [0], [1], [0, 0, 1, 1], [], []>} : vector<64x360xbf16>, vector<360x8xbf16>, vector<64x8xf32> -> vector<64x8xf32>
    %c0_28 = arith.constant 0 : index
    %c0_29 = arith.constant 0 : index
    %c0_30 = arith.constant 0 : index
    %38 = vector.load %arg5[%c0_28, %c0_29, %c0_30] : memref<1x64x8xf32, #tpu.memory_space<vmem>>, vector<1x64x8xf32>
    %39 = vector.shape_cast %38 : vector<1x64x8xf32> to vector<64x8xf32>
    %40 = vector.shape_cast %37 : vector<64x8xf32> to vector<1x64x8xf32>
    tpu.vector_store %arg5[%c0_28, %c0_29, %c0_30], %40 {strides = array<i32>} : memref<1x64x8xf32, #tpu.memory_space<vmem>>, vector<1x64x8xf32>,
    %cst_31 = arith.constant dense<0.000000e+00> : vector<8xf32>
    %41 = vector.multi_reduction <add>, %37, %cst_31 [0] : vector<64x8xf32> to vector<8xf32>
    %42 = vector.shape_cast %41 : vector<8xf32> to vector<1x8xf32>
    %c0_32 = arith.constant 0 : index
    %c0_33 = arith.constant 0 : index
    %c0_34 = arith.constant 0 : index
    %43 = vector.load %arg6[%c0_32, %c0_33, %c0_34] : memref<1x2x8xf32, #tpu.memory_space<vmem>>, vector<1x1x8xf32>
    %44 = vector.shape_cast %43 : vector<1x1x8xf32> to vector<1x8xf32>
    %45 = vector.shape_cast %42 : vector<1x8xf32> to vector<1x1x8xf32>
    tpu.vector_store %arg6[%c0_32, %c0_33, %c0_34], %45 {strides = array<i32>} : memref<1x2x8xf32, #tpu.memory_space<vmem>>, vector<1x1x8xf32>,
    %46 = arith.mulf %37, %37 : vector<64x8xf32>
    %cst_35 = arith.constant dense<0.000000e+00> : vector<8xf32>
    %47 = vector.multi_reduction <add>, %46, %cst_35 [0] : vector<64x8xf32> to vector<8xf32>
    %48 = vector.shape_cast %47 : vector<8xf32> to vector<1x8xf32>
    %c0_36 = arith.constant 0 : index
    %c1_37 = arith.constant 1 : index
    %c0_38 = arith.constant 0 : index
    %49 = vector.load %arg6[%c0_36, %c1_37, %c0_38] : memref<1x2x8xf32, #tpu.memory_space<vmem>>, vector<1x1x8xf32>
    %50 = vector.shape_cast %49 : vector<1x1x8xf32> to vector<1x8xf32>
    %51 = vector.shape_cast %48 : vector<1x8xf32> to vector<1x1x8xf32>
    tpu.vector_store %arg6[%c0_36, %c1_37, %c0_38], %51 {strides = array<i32>} : memref<1x2x8xf32, #tpu.memory_space<vmem>>, vector<1x1x8xf32>,
    return
  }
  func.func @transform_0(%arg0: i32) -> (i32, i32, i32) {
    %c0_i32 = arith.constant 0 : i32
    %c0_i32_0 = arith.constant 0 : i32
    %c0_i32_1 = arith.constant 0 : i32
    return %arg0, %c0_i32, %c0_i32_0 : i32, i32, i32
  }
  func.func @transform_1(%arg0: i32) -> (i32, i32, i32) {
    %c0_i32 = arith.constant 0 : i32
    %c0_i32_0 = arith.constant 0 : i32
    %c0_i32_1 = arith.constant 0 : i32
    return %arg0, %c0_i32, %c0_i32_0 : i32, i32, i32
  }
  func.func @transform_2(%arg0: i32) -> (i32, i32) {
    %c0_i32 = arith.constant 0 : i32
    %c0_i32_0 = arith.constant 0 : i32
    %c0_i32_1 = arith.constant 0 : i32
    return %c0_i32, %c0_i32_0 : i32, i32
  }
  func.func @transform_3(%arg0: i32) -> (i32, i32) {
    %c0_i32 = arith.constant 0 : i32
    %c0_i32_0 = arith.constant 0 : i32
    %c0_i32_1 = arith.constant 0 : i32
    return %c0_i32, %c0_i32_0 : i32, i32
  }
  func.func @transform_4(%arg0: i32) -> (i32, i32, i32) {
    %c0_i32 = arith.constant 0 : i32
    %c0_i32_0 = arith.constant 0 : i32
    %c0_i32_1 = arith.constant 0 : i32
    return %arg0, %c0_i32, %c0_i32_0 : i32, i32, i32
  }
  func.func @transform_5(%arg0: i32) -> (i32, i32, i32) {
    %c0_i32 = arith.constant 0 : i32
    %c0_i32_0 = arith.constant 0 : i32
    %c0_i32_1 = arith.constant 0 : i32
    return %arg0, %c0_i32, %c0_i32_0 : i32, i32, i32
  }
}

</mosaic_0001>

<llo_original>
// kernel: run.14
$region0: #{run.14}
  #allocation0 [shape = 'u32[]', space=smem, size = 0x4, offset = 0x4, fixed_abs, tag = 'smem constant byte address 0x4 - core index']
  #allocation1 [shape = 'u32[144,128]{1,0:T(1,128)}', space=vmem, size = 0x12000, scoped, tag = 'internal scratch']
  %s0 = inlined_call_operand.vmem [shape: f32[2,64,8], index: 0, kind: input, shape index: {}]
  %s1 = inlined_call_operand.vmem [shape: f32[2,2,8], index: 1, kind: input, shape index: {}]
  %s2 = inlined_call_operand.vmem [shape: f32[1,8], index: 2, kind: input, shape index: {}]
  %s3 = inlined_call_operand.vmem [shape: f32[1,8], index: 3, kind: input, shape index: {}]
  %s4 = inlined_call_operand.vmem [shape: f32[2,64,8], index: 4, kind: output, shape index: {}]
  %s5 = sld [smem:[#allocation0]]
  $region49: #{run.14} parent=0
    _
  %s7 = ssub.s32 1, %s5
  %s8 = scalar_select 0, %s7, %s5
  loop: start=0, step=1, limit=4
  $region2: #{run.14} parent=0 // loop_pre_header
    _
  $region3: #{run.14} parent=0 // loop_header
    %s10 = sphi 0, %s14
    %p11 = scmp.ge.s32.totalorder %s10, 4
    %s20 = sphi 0, %s22
    %s23 = sphi 0, %s20
    %s24 = sphi 0, %s23
    %s40 = sphi 0, %s24
    %s44 = sphi 0, %s44
    %s46 = sphi 0, %s44
    %s47 = sphi 0, %s46
    %s61 = sphi 0, %s47
    %s65 = sphi 0, %s65
    %s67 = sphi 0, %s65
    %s68 = sphi 0, %s67
    %s82 = sphi 0, %s68
    %s86 = sphi 0, %s86
    %s88 = sphi 0, %s86
    %s89 = sphi 0, %s88
    %s103 = sphi 0, %s89
    %s109 = sphi 0, %s111
    %s112 = sphi 0, %s109
    %s113 = sphi 0, %s112
    %s129 = sphi 0, %s113
  $region4: #{run.14} parent=0 // loop_header_branch
    %13 = sbr.rel (%p11) target = $region8
  $region5: #{run.14} parent=0 // loop_body
    %s15 = ssub.s32 %s10, 1
    %s16 = ssub.s32 %s10, 2
    %s17 = sadd.s32 %s10, 1
    %s18 = ssub.s32 %s10, %s17
    %p19 = scmp.eq.s32.totalorder %s18, 0
    %s21 = sadd.s32 %s20, 1
    %s22 = scalar_select %p19, %s20, %s21
    %p25 = pneg %p19
    %p26 = scmp.eq.s32.totalorder %s10, 1
    %p27 = por %p25, %p26
    %p28 = scmp.ne.s32.totalorder %s20, %s23
    %p29 = scmp.eq.s32.totalorder %s10, 0
    %p30 = por %p28, %p29
    %p31 = scmp.ne.s32.totalorder %s20, %s23
    %p32 = scmp.eq.s32.totalorder %s15, 1
    %p33 = por %p31, %p32
    %p34 = scmp.ne.s32.totalorder %s23, %s24
    %p35 = scmp.eq.s32.totalorder %s15, 0
    %p36 = por %p34, %p35
    %p37 = scmp.ne.s32.totalorder %s23, %s24
    %p38 = scmp.eq.s32.totalorder %s16, 1
    %p39 = por %p37, %p38
    %p41 = scmp.ne.s32.totalorder %s24, %s40
    %p42 = scmp.eq.s32.totalorder %s16, 0
    %p43 = por %p41, %p42
    %s45 = sadd.s32 %s44, 1
    %p48 = scmp.eq.s32.totalorder %s10, 1
    %p49 = scmp.ne.s32.totalorder %s44, %s46
    %p50 = scmp.eq.s32.totalorder %s10, 0
    %p51 = por %p49, %p50
    %p52 = scmp.ne.s32.totalorder %s44, %s46
    %p53 = scmp.eq.s32.totalorder %s15, 1
    %p54 = por %p52, %p53
    %p55 = scmp.ne.s32.totalorder %s46, %s47
    %p56 = scmp.eq.s32.totalorder %s15, 0
    %p57 = por %p55, %p56
    %p58 = scmp.ne.s32.totalorder %s46, %s47
    %p59 = scmp.eq.s32.totalorder %s16, 1
    %p60 = por %p58, %p59
    %p62 = scmp.ne.s32.totalorder %s47, %s61
    %p63 = scmp.eq.s32.totalorder %s16, 0
    %p64 = por %p62, %p63
    %s66 = sadd.s32 %s65, 1
    %p69 = scmp.eq.s32.totalorder %s10, 1
    %p70 = scmp.ne.s32.totalorder %s65, %s67
    %p71 = scmp.eq.s32.totalorder %s10, 0
    %p72 = por %p70, %p71
    %p73 = scmp.ne.s32.totalorder %s65, %s67
    %p74 = scmp.eq.s32.totalorder %s15, 1
    %p75 = por %p73, %p74
    %p76 = scmp.ne.s32.totalorder %s67, %s68
    %p77 = scmp.eq.s32.totalorder %s15, 0
    %p78 = por %p76, %p77
    %p79 = scmp.ne.s32.totalorder %s67, %s68
    %p80 = scmp.eq.s32.totalorder %s16, 1
    %p81 = por %p79, %p80
    %p83 = scmp.ne.s32.totalorder %s68, %s82
    %p84 = scmp.eq.s32.totalorder %s16, 0
    %p85 = por %p83, %p84
    %s87 = sadd.s32 %s86, 1
    %p90 = scmp.eq.s32.totalorder %s10, 1
    %p91 = scmp.ne.s32.totalorder %s86, %s88
    %p92 = scmp.eq.s32.totalorder %s10, 0
    %p93 = por %p91, %p92
    %p94 = scmp.ne.s32.totalorder %s86, %s88
    %p95 = scmp.eq.s32.totalorder %s15, 1
    %p96 = por %p94, %p95
    %p97 = scmp.ne.s32.totalorder %s88, %s89
    %p98 = scmp.eq.s32.totalorder %s15, 0
    %p99 = por %p97, %p98
    %p100 = scmp.ne.s32.totalorder %s88, %s89
    %p101 = scmp.eq.s32.totalorder %s16, 1
    %p102 = por %p100, %p101
    %p104 = scmp.ne.s32.totalorder %s89, %s103
    %p105 = scmp.eq.s32.totalorder %s16, 0
    %p106 = por %p104, %p105
    %s107 = ssub.s32 %s10, %s17
    %p108 = scmp.eq.s32.totalorder %s107, 0
    %s110 = sadd.s32 %s109, 1
    %s111 = scalar_select %p108, %s109, %s110
    %p114 = pneg %p108
    %p115 = scmp.eq.s32.totalorder %s10, 1
    %p116 = por %p114, %p115
    %p117 = scmp.ne.s32.totalorder %s109, %s112
    %p118 = scmp.eq.s32.totalorder %s10, 0
    %p119 = por %p117, %p118
    %p120 = scmp.ne.s32.totalorder %s109, %s112
    %p121 = scmp.eq.s32.totalorder %s15, 1
    %p122 = por %p120, %p121
    %p123 = scmp.ne.s32.totalorder %s112, %s113
    %p124 = scmp.eq.s32.totalorder %s15, 0
    %p125 = por %p123, %p124
    %p126 = scmp.ne.s32.totalorder %s112, %s113
    %p127 = scmp.eq.s32.totalorder %s16, 1
    %p128 = por %p126, %p127
    %p130 = scmp.ne.s32.totalorder %s113, %s129
    %p131 = scmp.eq.s32.totalorder %s16, 0
    %p132 = por %p130, %p131
    %p133 = scmp.le.s32.totalorder 1, %s10
    %p134 = scmp.lt.s32.totalorder %s10, 3
    %p135 = pnand %p133, %p134
    %p136 = pneg %p135
    // Predicated region
    $region9: #{run.14} parent=5 // pred_check
      _
    $region10: #{run.14} parent=5 // pred_check_branch
      %138 = sbr.rel (%p135) target = $region12
    $region11: #{run.14} parent=5 // pred_region
      %s139 = ssub.s32 %s10, 1
      // Predicated region
      $region13: #{run.14} parent=11 // pred_check
        %p140 = pneg %p57
      $region14: #{run.14} parent=11 // pred_check_branch
        %142 = sbr.rel (%p140) target = $region16
      $region15: #{run.14} parent=11 // pred_region
        _
      $region16: #{run.14} parent=11 // pred_fallthru
        _
      // Predicated region
      $region17: #{run.14} parent=11 // pred_check
        %p143 = pneg %p78
      $region18: #{run.14} parent=11 // pred_check_branch
        %145 = sbr.rel (%p143) target = $region20
      $region19: #{run.14} parent=11 // pred_region
        _
      $region20: #{run.14} parent=11 // pred_fallthru
        _
      // Predicated region
      $region21: #{run.14} parent=11 // pred_check
        %p146 = pneg %p99
      $region22: #{run.14} parent=11 // pred_check_branch
        %148 = sbr.rel (%p146) target = $region24
      $region23: #{run.14} parent=11 // pred_region
        _
      $region24: #{run.14} parent=11 // pred_fallthru
        _
    $region12: #{run.14} parent=5 // pred_fallthru
      _
    %p149 = scmp.lt.s32.totalorder %s10, 2
    // Predicated region
    $region25: #{run.14} parent=5 // pred_check
      %p150 = pneg %p149
    $region26: #{run.14} parent=5 // pred_check_branch
      %152 = sbr.rel (%p150) target = $region28
    $region27: #{run.14} parent=5 // pred_region
      // Predicated region
      $region29: #{run.14} parent=27 // pred_check
        %p153 = pneg %p30
      $region30: #{run.14} parent=27 // pred_check_branch
        %155 = sbr.rel (%p153) target = $region32
      $region31: #{run.14} parent=27 // pred_region
        %p156 = scmp.lt.s32.totalorder %s10, 1
        %s157 = scalar_select %p156, %s10, 1
        %s158 = smul.addr %s157, 8
        %s159 = smul.addr %s158, 8
        %s160 = scalar_lea.vmem %s0, %s159
      $region32: #{run.14} parent=27 // pred_fallthru
        _
    $region28: #{run.14} parent=5 // pred_fallthru
      _
    %p161 = scmp.le.s32.totalorder 1, %s10
    %p162 = scmp.lt.s32.totalorder %s10, 3
    %p163 = pnand %p161, %p162
    %p164 = pneg %p163
    // Predicated region
    $region33: #{run.14} parent=5 // pred_check
      _
    $region34: #{run.14} parent=5 // pred_check_branch
      %166 = sbr.rel (%p163) target = $region36
    $region35: #{run.14} parent=5 // pred_region
      %s167 = ssub.s32 %s10, 1
      %p168 = scmp.lt.s32.totalorder %s15, 1
      %s169 = scalar_select %p168, %s15, 1
      %s170 = smul.addr %s169, 8
      %s171 = smul.addr %s170, 8
      %s172 = scalar_lea.vmem %s0, %s171
      %p173 = pneg %p36
      %p174 = pneg %p33
      %p175 = pneg %p57
      %p176 = pneg %p54
      %p177 = pneg %p78
      %p178 = pneg %p75
      %p179 = pneg %p99
      %p180 = pneg %p96
      %p181 = pneg %p125
      %p182 = pneg %p122
      %p183 = scmp.lt.s32.totalorder %s15, 1
      %s184 = scalar_select %p183, %s15, 1
      %s185 = smul.addr %s184, 8
      %s186 = smul.addr %s185, 8
      %s187 = scalar_lea.vmem %s4, %s186
      %p188 = scmp.lt.s32.totalorder %s15, 1
      %s189 = scalar_select %p188, %s15, 1
      %s190 = smul.addr %s189, 8
      %s191 = smul.addr %s190, 8
      %s192 = scalar_lea.vmem %s0, %s191
      %p193 = scmp.lt.s32.totalorder %s15, 1
      %s194 = scalar_select %p193, %s15, 1
      %s195 = smul.addr %s194, 8
      %s196 = smul.addr %s195, 8
      %s197 = scalar_lea.vmem %s4, %s196
      %v198 = vld [vmem:[%s192] sm:$0xff]
      %v199 = vld [vmem:[%s192 + $0x8] sm:$0xff]
      %v200 = vld [vmem:[%s192 + $0x10] sm:$0xff]
      %v201 = vld [vmem:[%s192 + $0x18] sm:$0xff]
      %v202 = vld [vmem:[%s192 + $0x20] sm:$0xff]
      %v203 = vld [vmem:[%s192 + $0x28] sm:$0xff]
      %v204 = vld [vmem:[%s192 + $0x30] sm:$0xff]
      %v205 = vld [vmem:[%s192 + $0x38] sm:$0xff]
      %v206 = vld [vmem:[%s1] sm:$0x3]
      %v207 = vld [vmem:[%s1 + $0x2] sm:$0x3]
      %vm208 = vcmask 58368
      %v209 = vsel %vm208, %v206, 0.0
      %v210 = vsel %vm208, %v207, 0.0
      %v211 = vadd.f32 %v209, %v210
      %v212 = vmul.f32 %v211, 0.0078125
      %v213 = vmul.f32 %v212, %v212
      %v215 = vrot.slane %v213, 7
      %v217 = vsub.f32 %v212, %v215
      %v218 = vadd.f32 %v217, 1e-05
      %v219 = vrsqrt.pop %v218
      %v220 = vlaneseq
      %v221 = vshrl.u32 %v220, 7
      %v222 = vsub.s32 0, %v221
      %v223 = vrot.slane %v212, %v222
      %v224 = vsub.f32 %v198, %v223
      %v225 = vsub.f32 %v199, %v223
      %v226 = vsub.f32 %v200, %v223
      %v227 = vsub.f32 %v201, %v223
      %v228 = vsub.f32 %v202, %v223
      %v229 = vsub.f32 %v203, %v223
      %v230 = vsub.f32 %v204, %v223
      %v231 = vsub.f32 %v205, %v223
      %v232 = vld [vmem:[%s2] sm:$0x1]
      %v234 = vlaneseq
      %v235 = vshrl.u32 %v234, 7
      %v236 = vsub.s32 0, %v235
      %v237 = vrot.slane %v232, %v236
      %v239 = vmul.f32 %v219, %v237
      %v240 = vlaneseq
      %v241 = vshrl.u32 %v240, 7
      %v242 = vsub.s32 1, %v241
      %v243 = vrot.slane %v239, %v242
      %v244 = vmul.f32 %v224, %v243
      %v245 = vmul.f32 %v225, %v243
      %v246 = vmul.f32 %v226, %v243
      %v247 = vmul.f32 %v227, %v243
      %v248 = vmul.f32 %v228, %v243
      %v249 = vmul.f32 %v229, %v243
      %v250 = vmul.f32 %v230, %v243
      %v251 = vmul.f32 %v231, %v243
      %v252 = vld [vmem:[%s3] sm:$0x1]
      %v254 = vlaneseq
      %v255 = vshrl.u32 %v254, 7
      %v256 = vsub.s32 0, %v255
      %v257 = vrot.slane %v252, %v256
      %v259 = vadd.f32 %v244, %v257
      %v260 = vadd.f32 %v245, %v257
      %v261 = vadd.f32 %v246, %v257
      %v262 = vadd.f32 %v247, %v257
      %v263 = vadd.f32 %v248, %v257
      %v264 = vadd.f32 %v249, %v257
      %v265 = vadd.f32 %v250, %v257
      %v266 = vadd.f32 %v251, %v257
      %v267 = vmax.f32 %v259, 0.0
      %v268 = vmax.f32 %v260, 0.0
      %v269 = vmax.f32 %v261, 0.0
      %v270 = vmax.f32 %v262, 0.0
      %v271 = vmax.f32 %v263, 0.0
      %v272 = vmax.f32 %v264, 0.0
      %v273 = vmax.f32 %v265, 0.0
      %v274 = vmax.f32 %v266, 0.0
      %vm275 = vcmask 64512
      %276 = vst.msk [vmem:[%s197] sm:$0xff] %vm275, %v267
      %277 = vst.msk [vmem:[%s197 + $0x8] sm:$0xff] %vm275, %v268
      %278 = vst.msk [vmem:[%s197 + $0x10] sm:$0xff] %vm275, %v269
      %279 = vst.msk [vmem:[%s197 + $0x18] sm:$0xff] %vm275, %v270
      %280 = vst.msk [vmem:[%s197 + $0x20] sm:$0xff] %vm275, %v271
      %281 = vst.msk [vmem:[%s197 + $0x28] sm:$0xff] %vm275, %v272
      %282 = vst.msk [vmem:[%s197 + $0x30] sm:$0xff] %vm275, %v273
      %283 = vst.msk [vmem:[%s197 + $0x38] sm:$0xff] %vm275, %v274
      %p284 = scmp.lt.s32.totalorder %s15, 1
      %s285 = scalar_select %p284, %s15, 1
      %s286 = smul.addr %s285, 8
      %s287 = smul.addr %s286, 8
      %s288 = scalar_lea.vmem %s4, %s287
      // Predicated region
      $region37: #{run.14} parent=35 // pred_check
        %p289 = pneg %p122
      $region38: #{run.14} parent=35 // pred_check_branch
        %291 = sbr.rel (%p289) target = $region40
      $region39: #{run.14} parent=35 // pred_region
        _
      $region40: #{run.14} parent=35 // pred_fallthru
        _
    $region36: #{run.14} parent=5 // pred_fallthru
      _
    %p292 = scmp.le.s32.totalorder 2, %s10
    // Predicated region
    $region41: #{run.14} parent=5 // pred_check
      %p293 = pneg %p292
    $region42: #{run.14} parent=5 // pred_check_branch
      %295 = sbr.rel (%p293) target = $region44
    $region43: #{run.14} parent=5 // pred_region
      %s296 = ssub.s32 %s10, 2
      // Predicated region
      $region45: #{run.14} parent=43 // pred_check
        %p297 = pneg %p128
      $region46: #{run.14} parent=43 // pred_check_branch
        %299 = sbr.rel (%p297) target = $region48
      $region47: #{run.14} parent=43 // pred_region
        %p300 = scmp.lt.s32.totalorder %s16, 1
        %s301 = scalar_select %p300, %s16, 1
        %s302 = smul.addr %s301, 8
        %s303 = smul.addr %s302, 8
        %s304 = scalar_lea.vmem %s4, %s303
      $region48: #{run.14} parent=43 // pred_fallthru
        _
    $region44: #{run.14} parent=5 // pred_fallthru
      _
  $region6: #{run.14} parent=0 // loop_footer
    %s14 = sadd.s32 1, %s10
  $region7: #{run.14} parent=0 // loop_footer_branch
    %9 = sbr.rel target = $region3
  $region8: #{run.14} parent=0 // loop_exit
    _

// kernel: run.13
$region0: #{run.13}
  #allocation0 [shape = 'u32[]', space=smem, size = 0x4, offset = 0x4, fixed_abs, tag = 'smem constant byte address 0x4 - core index']
  #allocation1 [shape = 'u32[144,128]{1,0:T(1,128)}', space=vmem, size = 0x12000, scoped, tag = 'internal scratch']
  #allocation2 [shape = 'f32[82,36]{1,0:T(8,128)}', space=vmem, size = 0xb000, scoped, tag = 'scratch operand']
  %s0 = inlined_call_operand.vmem [shape: f32[2,64,4], index: 0, kind: input, shape index: {}]
  %s1 = inlined_call_operand.vmem [shape: f32[2,64,32], index: 1, kind: input, shape index: {}]
  %s2 = inlined_call_operand.vmem [shape: f32[64,2], index: 2, kind: input, shape index: {}]
  %s3 = inlined_call_operand.vmem [shape: f32[324,8], index: 3, kind: input, shape index: {}]
  %s4 = inlined_call_operand.vmem [shape: f32[2,64,8], index: 4, kind: output, shape index: {0}]
  %s5 = inlined_call_operand.vmem [shape: f32[2,2,8], index: 5, kind: output, shape index: {1}]
  %6 = xla_tuple %s4, %s5
  %s7 = sld [smem:[#allocation0]]
  $region57: #{run.13} parent=0
    _
  %s9 = ssub.s32 1, %s7
  %s10 = scalar_select 0, %s9, %s7
  loop: start=0, step=1, limit=4
  $region2: #{run.13} parent=0 // loop_pre_header
    _
  $region3: #{run.13} parent=0 // loop_header
    %s12 = sphi 0, %s16
    %p13 = scmp.ge.s32.totalorder %s12, 4
    %s22 = sphi 0, %s24
    %s25 = sphi 0, %s22
    %s26 = sphi 0, %s25
    %s42 = sphi 0, %s26
    %s48 = sphi 0, %s50
    %s51 = sphi 0, %s48
    %s52 = sphi 0, %s51
    %s68 = sphi 0, %s52
    %s72 = sphi 0, %s72
    %s74 = sphi 0, %s72
    %s75 = sphi 0, %s74
    %s89 = sphi 0, %s75
    %s93 = sphi 0, %s93
    %s95 = sphi 0, %s93
    %s96 = sphi 0, %s95
    %s110 = sphi 0, %s96
    %s116 = sphi 0, %s118
    %s119 = sphi 0, %s116
    %s120 = sphi 0, %s119
    %s136 = sphi 0, %s120
    %s142 = sphi 0, %s144
    %s145 = sphi 0, %s142
    %s146 = sphi 0, %s145
    %s162 = sphi 0, %s146
  $region4: #{run.13} parent=0 // loop_header_branch
    %15 = sbr.rel (%p13) target = $region8
  $region5: #{run.13} parent=0 // loop_body
    %s17 = ssub.s32 %s12, 1
    %s18 = ssub.s32 %s12, 2
    %s19 = sadd.s32 %s12, 1
    %s20 = ssub.s32 %s12, %s19
    %p21 = scmp.eq.s32.totalorder %s20, 0
    %s23 = sadd.s32 %s22, 1
    %s24 = scalar_select %p21, %s22, %s23
    %p27 = pneg %p21
    %p28 = scmp.eq.s32.totalorder %s12, 1
    %p29 = por %p27, %p28
    %p30 = scmp.ne.s32.totalorder %s22, %s25
    %p31 = scmp.eq.s32.totalorder %s12, 0
    %p32 = por %p30, %p31
    %p33 = scmp.ne.s32.totalorder %s22, %s25
    %p34 = scmp.eq.s32.totalorder %s17, 1
    %p35 = por %p33, %p34
    %p36 = scmp.ne.s32.totalorder %s25, %s26
    %p37 = scmp.eq.s32.totalorder %s17, 0
    %p38 = por %p36, %p37
    %p39 = scmp.ne.s32.totalorder %s25, %s26
    %p40 = scmp.eq.s32.totalorder %s18, 1
    %p41 = por %p39, %p40
    %p43 = scmp.ne.s32.totalorder %s26, %s42
    %p44 = scmp.eq.s32.totalorder %s18, 0
    %p45 = por %p43, %p44
    %s46 = ssub.s32 %s12, %s19
    %p47 = scmp.eq.s32.totalorder %s46, 0
    %s49 = sadd.s32 %s48, 1
    %s50 = scalar_select %p47, %s48, %s49
    %p53 = pneg %p47
    %p54 = scmp.eq.s32.totalorder %s12, 1
    %p55 = por %p53, %p54
    %p56 = scmp.ne.s32.totalorder %s48, %s51
    %p57 = scmp.eq.s32.totalorder %s12, 0
    %p58 = por %p56, %p57
    %p59 = scmp.ne.s32.totalorder %s48, %s51
    %p60 = scmp.eq.s32.totalorder %s17, 1
    %p61 = por %p59, %p60
    %p62 = scmp.ne.s32.totalorder %s51, %s52
    %p63 = scmp.eq.s32.totalorder %s17, 0
    %p64 = por %p62, %p63
    %p65 = scmp.ne.s32.totalorder %s51, %s52
    %p66 = scmp.eq.s32.totalorder %s18, 1
    %p67 = por %p65, %p66
    %p69 = scmp.ne.s32.totalorder %s52, %s68
    %p70 = scmp.eq.s32.totalorder %s18, 0
    %p71 = por %p69, %p70
    %s73 = sadd.s32 %s72, 1
    %p76 = scmp.eq.s32.totalorder %s12, 1
    %p77 = scmp.ne.s32.totalorder %s72, %s74
    %p78 = scmp.eq.s32.totalorder %s12, 0
    %p79 = por %p77, %p78
    %p80 = scmp.ne.s32.totalorder %s72, %s74
    %p81 = scmp.eq.s32.totalorder %s17, 1
    %p82 = por %p80, %p81
    %p83 = scmp.ne.s32.totalorder %s74, %s75
    %p84 = scmp.eq.s32.totalorder %s17, 0
    %p85 = por %p83, %p84
    %p86 = scmp.ne.s32.totalorder %s74, %s75
    %p87 = scmp.eq.s32.totalorder %s18, 1
    %p88 = por %p86, %p87
    %p90 = scmp.ne.s32.totalorder %s75, %s89
    %p91 = scmp.eq.s32.totalorder %s18, 0
    %p92 = por %p90, %p91
    %s94 = sadd.s32 %s93, 1
    %p97 = scmp.eq.s32.totalorder %s12, 1
    %p98 = scmp.ne.s32.totalorder %s93, %s95
    %p99 = scmp.eq.s32.totalorder %s12, 0
    %p100 = por %p98, %p99
    %p101 = scmp.ne.s32.totalorder %s93, %s95
    %p102 = scmp.eq.s32.totalorder %s17, 1
    %p103 = por %p101, %p102
    %p104 = scmp.ne.s32.totalorder %s95, %s96
    %p105 = scmp.eq.s32.totalorder %s17, 0
    %p106 = por %p104, %p105
    %p107 = scmp.ne.s32.totalorder %s95, %s96
    %p108 = scmp.eq.s32.totalorder %s18, 1
    %p109 = por %p107, %p108
    %p111 = scmp.ne.s32.totalorder %s96, %s110
    %p112 = scmp.eq.s32.totalorder %s18, 0
    %p113 = por %p111, %p112
    %s114 = ssub.s32 %s12, %s19
    %p115 = scmp.eq.s32.totalorder %s114, 0
    %s117 = sadd.s32 %s116, 1
    %s118 = scalar_select %p115, %s116, %s117
    %p121 = pneg %p115
    %p122 = scmp.eq.s32.totalorder %s12, 1
    %p123 = por %p121, %p122
    %p124 = scmp.ne.s32.totalorder %s116, %s119
    %p125 = scmp.eq.s32.totalorder %s12, 0
    %p126 = por %p124, %p125
    %p127 = scmp.ne.s32.totalorder %s116, %s119
    %p128 = scmp.eq.s32.totalorder %s17, 1
    %p129 = por %p127, %p128
    %p130 = scmp.ne.s32.totalorder %s119, %s120
    %p131 = scmp.eq.s32.totalorder %s17, 0
    %p132 = por %p130, %p131
    %p133 = scmp.ne.s32.totalorder %s119, %s120
    %p134 = scmp.eq.s32.totalorder %s18, 1
    %p135 = por %p133, %p134
    %p137 = scmp.ne.s32.totalorder %s120, %s136
    %p138 = scmp.eq.s32.totalorder %s18, 0
    %p139 = por %p137, %p138
    %s140 = ssub.s32 %s12, %s19
    %p141 = scmp.eq.s32.totalorder %s140, 0
    %s143 = sadd.s32 %s142, 1
    %s144 = scalar_select %p141, %s142, %s143
    %p147 = pneg %p141
    %p148 = scmp.eq.s32.totalorder %s12, 1
    %p149 = por %p147, %p148
    %p150 = scmp.ne.s32.totalorder %s142, %s145
    %p151 = scmp.eq.s32.totalorder %s12, 0
    %p152 = por %p150, %p151
    %p153 = scmp.ne.s32.totalorder %s142, %s145
    %p154 = scmp.eq.s32.totalorder %s17, 1
    %p155 = por %p153, %p154
    %p156 = scmp.ne.s32.totalorder %s145, %s146
    %p157 = scmp.eq.s32.totalorder %s17, 0
    %p158 = por %p156, %p157
    %p159 = scmp.ne.s32.totalorder %s145, %s146
    %p160 = scmp.eq.s32.totalorder %s18, 1
    %p161 = por %p159, %p160
    %p163 = scmp.ne.s32.totalorder %s146, %s162
    %p164 = scmp.eq.s32.totalorder %s18, 0
    %p165 = por %p163, %p164
    %p166 = scmp.le.s32.totalorder 1, %s12
    %p167 = scmp.lt.s32.totalorder %s12, 3
    %p168 = pnand %p166, %p167
    %p169 = pneg %p168
    // Predicated region
    $region9: #{run.13} parent=5 // pred_check
      _
    $region10: #{run.13} parent=5 // pred_check_branch
      %171 = sbr.rel (%p168) target = $region12
    $region11: #{run.13} parent=5 // pred_region
      %s172 = ssub.s32 %s12, 1
      // Predicated region
      $region13: #{run.13} parent=11 // pred_check
        %p173 = pneg %p85
      $region14: #{run.13} parent=11 // pred_check_branch
        %175 = sbr.rel (%p173) target = $region16
      $region15: #{run.13} parent=11 // pred_region
        _
      $region16: #{run.13} parent=11 // pred_fallthru
        _
      // Predicated region
      $region17: #{run.13} parent=11 // pred_check
        %p176 = pneg %p106
      $region18: #{run.13} parent=11 // pred_check_branch
        %178 = sbr.rel (%p176) target = $region20
      $region19: #{run.13} parent=11 // pred_region
        _
      $region20: #{run.13} parent=11 // pred_fallthru
        _
    $region12: #{run.13} parent=5 // pred_fallthru
      _
    %p179 = scmp.lt.s32.totalorder %s12, 2
    // Predicated region
    $region21: #{run.13} parent=5 // pred_check
      %p180 = pneg %p179
    $region22: #{run.13} parent=5 // pred_check_branch
      %182 = sbr.rel (%p180) target = $region24
    $region23: #{run.13} parent=5 // pred_region
      // Predicated region
      $region25: #{run.13} parent=23 // pred_check
        %p183 = pneg %p32
      $region26: #{run.13} parent=23 // pred_check_branch
        %185 = sbr.rel (%p183) target = $region28
      $region27: #{run.13} parent=23 // pred_region
        %p186 = scmp.lt.s32.totalorder %s12, 1
        %s187 = scalar_select %p186, %s12, 1
        %s188 = smul.addr %s187, 8
        %s189 = smul.addr %s188, 8
        %s190 = scalar_lea.vmem %s0, %s189
      $region28: #{run.13} parent=23 // pred_fallthru
        _
      // Predicated region
      $region29: #{run.13} parent=23 // pred_check
        %p191 = pneg %p58
      $region30: #{run.13} parent=23 // pred_check_branch
        %193 = sbr.rel (%p191) target = $region32
      $region31: #{run.13} parent=23 // pred_region
        %p194 = scmp.lt.s32.totalorder %s12, 1
        %s195 = scalar_select %p194, %s12, 1
        %s196 = smul.addr %s195, 8
        %s197 = smul.addr %s196, 8
        %s198 = scalar_lea.vmem %s1, %s197
      $region32: #{run.13} parent=23 // pred_fallthru
        _
    $region24: #{run.13} parent=5 // pred_fallthru
      _
    %p199 = scmp.le.s32.totalorder 1, %s12
    %p200 = scmp.lt.s32.totalorder %s12, 3
    %p201 = pnand %p199, %p200
    %p202 = pneg %p201
    // Predicated region
    $region33: #{run.13} parent=5 // pred_check
      _
    $region34: #{run.13} parent=5 // pred_check_branch
      %204 = sbr.rel (%p201) target = $region36
    $region35: #{run.13} parent=5 // pred_region
      %s205 = ssub.s32 %s12, 1
      %p206 = scmp.lt.s32.totalorder %s17, 1
      %s207 = scalar_select %p206, %s17, 1
      %s208 = smul.addr %s207, 8
      %s209 = smul.addr %s208, 8
      %s210 = scalar_lea.vmem %s0, %s209
      %p211 = pneg %p38
      %p212 = pneg %p35
      %p213 = scmp.lt.s32.totalorder %s17, 1
      %s214 = scalar_select %p213, %s17, 1
      %s215 = smul.addr %s214, 8
      %s216 = smul.addr %s215, 8
      %s217 = scalar_lea.vmem %s1, %s216
      %p218 = pneg %p64
      %p219 = pneg %p61
      %p220 = pneg %p85
      %p221 = pneg %p82
      %p222 = pneg %p106
      %p223 = pneg %p103
      %p224 = pneg %p132
      %p225 = pneg %p129
      %p226 = scmp.lt.s32.totalorder %s17, 1
      %s227 = scalar_select %p226, %s17, 1
      %s228 = smul.addr %s227, 8
      %s229 = smul.addr %s228, 8
      %s230 = scalar_lea.vmem %s4, %s229
      %p231 = pneg %p158
      %p232 = pneg %p155
      %p233 = scmp.lt.s32.totalorder %s17, 1
      %s234 = scalar_select %p233, %s17, 1
      %s235 = smul.addr %s234, 2
      %s236 = scalar_lea.vmem %s5, %s235
      %p237 = scmp.lt.s32.totalorder %s17, 1
      %s238 = scalar_select %p237, %s17, 1
      %s239 = smul.addr %s238, 8
      %s240 = smul.addr %s239, 8
      %s241 = scalar_lea.vmem %s0, %s240
      %p242 = scmp.lt.s32.totalorder %s17, 1
      %s243 = scalar_select %p242, %s17, 1
      %s244 = smul.addr %s243, 8
      %s245 = smul.addr %s244, 8
      %s246 = scalar_lea.vmem %s1, %s245
      %p247 = scmp.lt.s32.totalorder %s17, 1
      %s248 = scalar_select %p247, %s17, 1
      %s249 = smul.addr %s248, 8
      %s250 = smul.addr %s249, 8
      %s251 = scalar_lea.vmem %s4, %s250
      %p252 = scmp.lt.s32.totalorder %s17, 1
      %s253 = scalar_select %p252, %s17, 1
      %s254 = smul.addr %s253, 2
      %s255 = scalar_lea.vmem %s5, %s254
      %v257 = vld [vmem:[%s241] sm:$0xff]
      %v258 = vld [vmem:[%s241 + $0x8] sm:$0xff]
      %v259 = vld [vmem:[%s241 + $0x10] sm:$0xff]
      %v260 = vld [vmem:[%s241 + $0x18] sm:$0xff]
      %v261 = vld [vmem:[%s241 + $0x20] sm:$0xff]
      %v262 = vld [vmem:[%s241 + $0x28] sm:$0xff]
      %v263 = vld [vmem:[%s241 + $0x30] sm:$0xff]
      %v264 = vld [vmem:[%s241 + $0x38] sm:$0xff]
      %v265 = vld [vmem:[%s246] sm:$0xff]
      %v266 = vld [vmem:[%s246 + $0x8] sm:$0xff]
      %v267 = vld [vmem:[%s246 + $0x10] sm:$0xff]
      %v268 = vld [vmem:[%s246 + $0x18] sm:$0xff]
      %v269 = vld [vmem:[%s246 + $0x20] sm:$0xff]
      %v270 = vld [vmem:[%s246 + $0x28] sm:$0xff]
      %v271 = vld [vmem:[%s246 + $0x30] sm:$0xff]
      %v272 = vld [vmem:[%s246 + $0x38] sm:$0xff]
      %281 = vrot.lane.b32.xlu0 %v265, 4
      %v282 = vpop.permute.xlu0 %281
      %283 = vrot.lane.b32.xlu0 %v266, 4
      %v284 = vpop.permute.xlu0 %283
      %285 = vrot.lane.b32.xlu0 %v267, 4
      %v286 = vpop.permute.xlu0 %285
      %287 = vrot.lane.b32.xlu0 %v268, 4
      %v288 = vpop.permute.xlu0 %287
      %289 = vrot.lane.b32.xlu0 %v269, 4
      %v290 = vpop.permute.xlu0 %289
      %291 = vrot.lane.b32.xlu0 %v270, 4
      %v292 = vpop.permute.xlu0 %291
      %293 = vrot.lane.b32.xlu0 %v271, 4
      %v294 = vpop.permute.xlu0 %293
      %295 = vrot.lane.b32.xlu0 %v272, 4
      %v296 = vpop.permute.xlu0 %295
      %vm305 = vcmask 31744
      %v306 = vsel %vm305, %v257, %v282
      %v307 = vsel %vm305, %v258, %v284
      %v308 = vsel %vm305, %v259, %v286
      %v309 = vsel %vm305, %v260, %v288
      %v310 = vsel %vm305, %v261, %v290
      %v311 = vsel %vm305, %v262, %v292
      %v312 = vsel %vm305, %v263, %v294
      %v313 = vsel %vm305, %v264, %v296
      %vm314 = vcmask 293888
      %315 = vst.msk [vmem:[#allocation2] sm:$0xff] %vm314, 0.0
      %vm316 = vcmask 286720
      %317 = vst.msk [vmem:[#allocation2 + $0x8] sm:$0x1] %vm316, 0.0
      %318 = vst.msk [vmem:[#allocation2 + $0x49] sm:$0xff] %vm314, 0.0
      %319 = vst.msk [vmem:[#allocation2 + $0x51] sm:$0x1] %vm316, 0.0
      %320 = vst.msk [vmem:[#allocation2 + $0x9] sm:$0xff] %vm314, %v306
      %321 = vst.msk [vmem:[#allocation2 + $0x11] sm:$0xff] %vm314, %v307
      %322 = vst.msk [vmem:[#allocation2 + $0x19] sm:$0xff] %vm314, %v308
      %323 = vst.msk [vmem:[#allocation2 + $0x21] sm:$0xff] %vm314, %v309
      %324 = vst.msk [vmem:[#allocation2 + $0x29] sm:$0xff] %vm314, %v310
      %325 = vst.msk [vmem:[#allocation2 + $0x31] sm:$0xff] %vm314, %v311
      %326 = vst.msk [vmem:[#allocation2 + $0x39] sm:$0xff] %vm314, %v312
      %327 = vst.msk [vmem:[#allocation2 + $0x41] sm:$0xff] %vm314, %v313
      %v328 = vld [vmem:[%s2] sm:$0xff]
      %v329 = vld [vmem:[%s2 + $0x8] sm:$0xff]
      %v330 = vld [vmem:[%s2 + $0x10] sm:$0xff]
      %v331 = vld [vmem:[%s2 + $0x18] sm:$0xff]
      %v332 = vld [vmem:[%s2 + $0x20] sm:$0xff]
      %v333 = vld [vmem:[%s2 + $0x28] sm:$0xff]
      %v334 = vld [vmem:[%s2 + $0x30] sm:$0xff]
      %v335 = vld [vmem:[%s2 + $0x38] sm:$0xff]
      %v336 = vld [vmem:[#allocation2] sm:$0xff]
      %v337 = vld [vmem:[#allocation2 + $0x8] sm:$0xff]
      %v338 = vld [vmem:[#allocation2 + $0x10] sm:$0xff]
      %v339 = vld [vmem:[#allocation2 + $0x18] sm:$0xff]
      %v340 = vld [vmem:[#allocation2 + $0x20] sm:$0xff]
      %v341 = vld [vmem:[#allocation2 + $0x28] sm:$0xff]
      %v342 = vld [vmem:[#allocation2 + $0x30] sm:$0xff]
      %v343 = vld [vmem:[#allocation2 + $0x38] sm:$0xff]
      %345 = vset.pattern.permute.xlu0 0
      %346 = vperm.xlu0 %345, %v328
      %v347 = vpop.permute.xlu0 %346
      %350 = vset.pattern.permute.xlu0 0
      %351 = vperm.xlu0 %350, %v329
      %v352 = vpop.permute.xlu0 %351
      %355 = vset.pattern.permute.xlu0 0
      %356 = vperm.xlu0 %355, %v330
      %v357 = vpop.permute.xlu0 %356
      %360 = vset.pattern.permute.xlu0 0
      %361 = vperm.xlu0 %360, %v331
      %v362 = vpop.permute.xlu0 %361
      %365 = vset.pattern.permute.xlu0 0
      %366 = vperm.xlu0 %365, %v332
      %v367 = vpop.permute.xlu0 %366
      %370 = vset.pattern.permute.xlu0 0
      %371 = vperm.xlu0 %370, %v333
      %v372 = vpop.permute.xlu0 %371
      %375 = vset.pattern.permute.xlu0 0
      %376 = vperm.xlu0 %375, %v334
      %v377 = vpop.permute.xlu0 %376
      %380 = vset.pattern.permute.xlu0 0
      %381 = vperm.xlu0 %380, %v335
      %v382 = vpop.permute.xlu0 %381
      %v384 = vmul.f32 %v336, %v347
      %v385 = vmul.f32 %v337, %v352
      %v386 = vmul.f32 %v338, %v357
      %v387 = vmul.f32 %v339, %v362
      %v388 = vmul.f32 %v340, %v367
      %v389 = vmul.f32 %v341, %v372
      %v390 = vmul.f32 %v342, %v377
      %v391 = vmul.f32 %v343, %v382
      %v392 = vld [vmem:[#allocation2 + $0x1] sm:$0xff]
      %v393 = vld [vmem:[#allocation2 + $0x9] sm:$0xff]
      %v394 = vld [vmem:[#allocation2 + $0x11] sm:$0xff]
      %v395 = vld [vmem:[#allocation2 + $0x19] sm:$0xff]
      %v396 = vld [vmem:[#allocation2 + $0x21] sm:$0xff]
      %v397 = vld [vmem:[#allocation2 + $0x29] sm:$0xff]
      %v398 = vld [vmem:[#allocation2 + $0x31] sm:$0xff]
      %v399 = vld [vmem:[#allocation2 + $0x39] sm:$0xff]
      %v400 = vld [vmem:[#allocation2 + $0x2] sm:$0xff]
      %v401 = vld [vmem:[#allocation2 + $0xa] sm:$0xff]
      %v402 = vld [vmem:[#allocation2 + $0x12] sm:$0xff]
      %v403 = vld [vmem:[#allocation2 + $0x1a] sm:$0xff]
      %v404 = vld [vmem:[#allocation2 + $0x22] sm:$0xff]
      %v405 = vld [vmem:[#allocation2 + $0x2a] sm:$0xff]
      %v406 = vld [vmem:[#allocation2 + $0x32] sm:$0xff]
      %v407 = vld [vmem:[#allocation2 + $0x3a] sm:$0xff]
      %408 = vset.pattern.permute.xlu0 1
      %409 = vperm.xlu0 %408, %v328
      %v410 = vpop.permute.xlu0 %409
      %412 = vset.pattern.permute.xlu0 1
      %413 = vperm.xlu0 %412, %v329
      %v414 = vpop.permute.xlu0 %413
      %416 = vset.pattern.permute.xlu0 1
      %417 = vperm.xlu0 %416, %v330
      %v418 = vpop.permute.xlu0 %417
      %420 = vset.pattern.permute.xlu0 1
      %421 = vperm.xlu0 %420, %v331
      %v422 = vpop.permute.xlu0 %421
      %424 = vset.pattern.permute.xlu0 1
      %425 = vperm.xlu0 %424, %v332
      %v426 = vpop.permute.xlu0 %425
      %428 = vset.pattern.permute.xlu0 1
      %429 = vperm.xlu0 %428, %v333
      %v430 = vpop.permute.xlu0 %429
      %432 = vset.pattern.permute.xlu0 1
      %433 = vperm.xlu0 %432, %v334
      %v434 = vpop.permute.xlu0 %433
      %436 = vset.pattern.permute.xlu0 1
      %437 = vperm.xlu0 %436, %v335
      %v438 = vpop.permute.xlu0 %437
      %v440 = vmul.f32 %v400, %v410
      %v441 = vmul.f32 %v401, %v414
      %v442 = vmul.f32 %v402, %v418
      %v443 = vmul.f32 %v403, %v422
      %v444 = vmul.f32 %v404, %v426
      %v445 = vmul.f32 %v405, %v430
      %v446 = vmul.f32 %v406, %v434
      %v447 = vmul.f32 %v407, %v438
      %v448 = vld [vmem:[#allocation2 + $0x8] sm:$0xff]
      %v449 = vld [vmem:[#allocation2 + $0x10] sm:$0xff]
      %v450 = vld [vmem:[#allocation2 + $0x18] sm:$0xff]
      %v451 = vld [vmem:[#allocation2 + $0x20] sm:$0xff]
      %v452 = vld [vmem:[#allocation2 + $0x28] sm:$0xff]
      %v453 = vld [vmem:[#allocation2 + $0x30] sm:$0xff]
      %v454 = vld [vmem:[#allocation2 + $0x38] sm:$0xff]
      %v455 = vld [vmem:[#allocation2 + $0x40] sm:$0xff]
      %v456 = vmul.f32 %v448, %v347
      %v457 = vmul.f32 %v449, %v352
      %v458 = vmul.f32 %v450, %v357
      %v459 = vmul.f32 %v451, %v362
      %v460 = vmul.f32 %v452, %v367
      %v461 = vmul.f32 %v453, %v372
      %v462 = vmul.f32 %v454, %v377
      %v463 = vmul.f32 %v455, %v382
      %v464 = vld [vmem:[#allocation2 + $0x9] sm:$0xff]
      %v465 = vld [vmem:[#allocation2 + $0x11] sm:$0xff]
      %v466 = vld [vmem:[#allocation2 + $0x19] sm:$0xff]
      %v467 = vld [vmem:[#allocation2 + $0x21] sm:$0xff]
      %v468 = vld [vmem:[#allocation2 + $0x29] sm:$0xff]
      %v469 = vld [vmem:[#allocation2 + $0x31] sm:$0xff]
      %v470 = vld [vmem:[#allocation2 + $0x39] sm:$0xff]
      %v471 = vld [vmem:[#allocation2 + $0x41] sm:$0xff]
      %v472 = vld [vmem:[#allocation2 + $0xa] sm:$0xff]
      %v473 = vld [vmem:[#allocation2 + $0x12] sm:$0xff]
      %v474 = vld [vmem:[#allocation2 + $0x1a] sm:$0xff]
      %v475 = vld [vmem:[#allocation2 + $0x22] sm:$0xff]
      %v476 = vld [vmem:[#allocation2 + $0x2a] sm:$0xff]
      %v477 = vld [vmem:[#allocation2 + $0x32] sm:$0xff]
      %v478 = vld [vmem:[#allocation2 + $0x3a] sm:$0xff]
      %v479 = vld [vmem:[#allocation2 + $0x42] sm:$0xff]
      %v480 = vmul.f32 %v472, %v410
      %v481 = vmul.f32 %v473, %v414
      %v482 = vmul.f32 %v474, %v418
      %v483 = vmul.f32 %v475, %v422
      %v484 = vmul.f32 %v476, %v426
      %v485 = vmul.f32 %v477, %v430
      %v486 = vmul.f32 %v478, %v434
      %v487 = vmul.f32 %v479, %v438
      %v488 = vld [vmem:[#allocation2 + $0x48] sm:$0xff]
      %v489 = vmul.f32 %v449, %v347
      %v490 = vmul.f32 %v450, %v352
      %v491 = vmul.f32 %v451, %v357
      %v492 = vmul.f32 %v452, %v362
      %v493 = vmul.f32 %v453, %v367
      %v494 = vmul.f32 %v454, %v372
      %v495 = vmul.f32 %v455, %v377
      %v496 = vmul.f32 %v488, %v382
      %v497 = vld [vmem:[#allocation2 + $0x49] sm:$0xff]
      %v498 = vld [vmem:[#allocation2 + $0x4a] sm:$0xff]
      %v499 = vmul.f32 %v473, %v410
      %v500 = vmul.f32 %v474, %v414
      %v501 = vmul.f32 %v475, %v418
      %v502 = vmul.f32 %v476, %v422
      %v503 = vmul.f32 %v477, %v426
      %v504 = vmul.f32 %v478, %v430
      %v505 = vmul.f32 %v479, %v434
      %v506 = vmul.f32 %v498, %v438
      %515 = vrot.lane.b32.xlu0 %v392, 36
      %v516 = vpop.permute.xlu0 %515
      %517 = vrot.lane.b32.xlu0 %v393, 36
      %v518 = vpop.permute.xlu0 %517
      %519 = vrot.lane.b32.xlu0 %v394, 36
      %v520 = vpop.permute.xlu0 %519
      %521 = vrot.lane.b32.xlu0 %v395, 36
      %v522 = vpop.permute.xlu0 %521
      %523 = vrot.lane.b32.xlu0 %v396, 36
      %v524 = vpop.permute.xlu0 %523
      %525 = vrot.lane.b32.xlu0 %v397, 36
      %v526 = vpop.permute.xlu0 %525
      %527 = vrot.lane.b32.xlu0 %v398, 36
      %v528 = vpop.permute.xlu0 %527
      %529 = vrot.lane.b32.xlu0 %v399, 36
      %v530 = vpop.permute.xlu0 %529
      %547 = vrot.lane.b32.xlu0 %v440, 72
      %v548 = vpop.permute.xlu0 %547
      %549 = vrot.lane.b32.xlu0 %v441, 72
      %v550 = vpop.permute.xlu0 %549
      %551 = vrot.lane.b32.xlu0 %v442, 72
      %v552 = vpop.permute.xlu0 %551
      %553 = vrot.lane.b32.xlu0 %v443, 72
      %v554 = vpop.permute.xlu0 %553
      %555 = vrot.lane.b32.xlu0 %v444, 72
      %v556 = vpop.permute.xlu0 %555
      %557 = vrot.lane.b32.xlu0 %v445, 72
      %v558 = vpop.permute.xlu0 %557
      %559 = vrot.lane.b32.xlu0 %v446, 72
      %v560 = vpop.permute.xlu0 %559
      %561 = vrot.lane.b32.xlu0 %v447, 72
      %v562 = vpop.permute.xlu0 %561
      %579 = vrot.lane.b32.xlu0 %v456, 108
      %v580 = vpop.permute.xlu0 %579
      %581 = vrot.lane.b32.xlu0 %v457, 108
      %v582 = vpop.permute.xlu0 %581
      %583 = vrot.lane.b32.xlu0 %v458, 108
      %v584 = vpop.permute.xlu0 %583
      %585 = vrot.lane.b32.xlu0 %v459, 108
      %v586 = vpop.permute.xlu0 %585
      %587 = vrot.lane.b32.xlu0 %v460, 108
      %v588 = vpop.permute.xlu0 %587
      %589 = vrot.lane.b32.xlu0 %v461, 108
      %v590 = vpop.permute.xlu0 %589
      %591 = vrot.lane.b32.xlu0 %v462, 108
      %v592 = vpop.permute.xlu0 %591
      %593 = vrot.lane.b32.xlu0 %v463, 108
      %v594 = vpop.permute.xlu0 %593
      %611 = vrot.lane.b32.xlu0 %v464, 16
      %v612 = vpop.permute.xlu0 %611
      %613 = vrot.lane.b32.xlu0 %v465, 16
      %v614 = vpop.permute.xlu0 %613
      %615 = vrot.lane.b32.xlu0 %v466, 16
      %v616 = vpop.permute.xlu0 %615
      %617 = vrot.lane.b32.xlu0 %v467, 16
      %v618 = vpop.permute.xlu0 %617
      %619 = vrot.lane.b32.xlu0 %v468, 16
      %v620 = vpop.permute.xlu0 %619
      %621 = vrot.lane.b32.xlu0 %v469, 16
      %v622 = vpop.permute.xlu0 %621
      %623 = vrot.lane.b32.xlu0 %v470, 16
      %v624 = vpop.permute.xlu0 %623
      %625 = vrot.lane.b32.xlu0 %v471, 16
      %v626 = vpop.permute.xlu0 %625
      %643 = vrot.lane.b32.xlu0 %v480, 52
      %v644 = vpop.permute.xlu0 %643
      %645 = vrot.lane.b32.xlu0 %v481, 52
      %v646 = vpop.permute.xlu0 %645
      %647 = vrot.lane.b32.xlu0 %v482, 52
      %v648 = vpop.permute.xlu0 %647
      %649 = vrot.lane.b32.xlu0 %v483, 52
      %v650 = vpop.permute.xlu0 %649
      %651 = vrot.lane.b32.xlu0 %v484, 52
      %v652 = vpop.permute.xlu0 %651
      %653 = vrot.lane.b32.xlu0 %v485, 52
      %v654 = vpop.permute.xlu0 %653
      %655 = vrot.lane.b32.xlu0 %v486, 52
      %v656 = vpop.permute.xlu0 %655
      %657 = vrot.lane.b32.xlu0 %v487, 52
      %v658 = vpop.permute.xlu0 %657
      %675 = vrot.lane.b32.xlu0 %v489, 88
      %v676 = vpop.permute.xlu0 %675
      %677 = vrot.lane.b32.xlu0 %v490, 88
      %v678 = vpop.permute.xlu0 %677
      %679 = vrot.lane.b32.xlu0 %v491, 88
      %v680 = vpop.permute.xlu0 %679
      %681 = vrot.lane.b32.xlu0 %v492, 88
      %v682 = vpop.permute.xlu0 %681
      %683 = vrot.lane.b32.xlu0 %v493, 88
      %v684 = vpop.permute.xlu0 %683
      %685 = vrot.lane.b32.xlu0 %v494, 88
      %v686 = vpop.permute.xlu0 %685
      %687 = vrot.lane.b32.xlu0 %v495, 88
      %v688 = vpop.permute.xlu0 %687
      %689 = vrot.lane.b32.xlu0 %v496, 88
      %v690 = vpop.permute.xlu0 %689
      %700 = vrot.lane.b32.xlu0 %v465, 124
      %v701 = vpop.permute.xlu0 %700
      %702 = vrot.lane.b32.xlu0 %v466, 124
      %v703 = vpop.permute.xlu0 %702
      %704 = vrot.lane.b32.xlu0 %v467, 124
      %v705 = vpop.permute.xlu0 %704
      %706 = vrot.lane.b32.xlu0 %v468, 124
      %v707 = vpop.permute.xlu0 %706
      %708 = vrot.lane.b32.xlu0 %v469, 124
      %v709 = vpop.permute.xlu0 %708
      %710 = vrot.lane.b32.xlu0 %v470, 124
      %v711 = vpop.permute.xlu0 %710
      %712 = vrot.lane.b32.xlu0 %v471, 124
      %v713 = vpop.permute.xlu0 %712
      %714 = vrot.lane.b32.xlu0 %v497, 124
      %v715 = vpop.permute.xlu0 %714
      %732 = vrot.lane.b32.xlu0 %v499, 32
      %v733 = vpop.permute.xlu0 %732
      %734 = vrot.lane.b32.xlu0 %v500, 32
      %v735 = vpop.permute.xlu0 %734
      %736 = vrot.lane.b32.xlu0 %v501, 32
      %v737 = vpop.permute.xlu0 %736
      %738 = vrot.lane.b32.xlu0 %v502, 32
      %v739 = vpop.permute.xlu0 %738
      %740 = vrot.lane.b32.xlu0 %v503, 32
      %v741 = vpop.permute.xlu0 %740
      %742 = vrot.lane.b32.xlu0 %v504, 32
      %v743 = vpop.permute.xlu0 %742
      %744 = vrot.lane.b32.xlu0 %v505, 32
      %v745 = vpop.permute.xlu0 %744
      %746 = vrot.lane.b32.xlu0 %v506, 32
      %v747 = vpop.permute.xlu0 %746
      %v756 = vsel %vm314, %v384, %v516
      %v757 = vsel %vm314, %v385, %v518
      %v758 = vsel %vm314, %v386, %v520
      %v759 = vsel %vm314, %v387, %v522
      %v760 = vsel %vm314, %v388, %v524
      %v761 = vsel %vm314, %v389, %v526
      %v762 = vsel %vm314, %v390, %v528
      %v763 = vsel %vm314, %v391, %v530
      %vm764 = vcmask 588800
      %v765 = vsel %vm764, %v756, %v548
      %v766 = vsel %vm764, %v757, %v550
      %v767 = vsel %vm764, %v758, %v552
      %v768 = vsel %vm764, %v759, %v554
      %v769 = vsel %vm764, %v760, %v556
      %v770 = vsel %vm764, %v761, %v558
      %v771 = vsel %vm764, %v762, %v560
      %v772 = vsel %vm764, %v763, %v562
      %vm773 = vcmask 883712
      %v774 = vsel %vm773, %v765, %v580
      %v775 = vsel %vm773, %v766, %v582
      %v776 = vsel %vm773, %v767, %v584
      %v777 = vsel %vm773, %v768, %v586
      %v778 = vsel %vm773, %v769, %v588
      %v779 = vsel %vm773, %v770, %v590
      %v780 = vsel %vm773, %v771, %v592
      %v781 = vsel %vm773, %v772, %v594
      %vm782 = vcmask 130048
      %v783 = vsel %vm782, %v580, %v612
      %v784 = vsel %vm782, %v582, %v614
      %v785 = vsel %vm782, %v584, %v616
      %v786 = vsel %vm782, %v586, %v618
      %v787 = vsel %vm782, %v588, %v620
      %v788 = vsel %vm782, %v590, %v622
      %v789 = vsel %vm782, %v592, %v624
      %v790 = vsel %vm782, %v594, %v626
      %vm791 = vcmask 424960
      %v792 = vsel %vm791, %v783, %v644
      %v793 = vsel %vm791, %v784, %v646
      %v794 = vsel %vm791, %v785, %v648
      %v795 = vsel %vm791, %v786, %v650
      %v796 = vsel %vm791, %v787, %v652
      %v797 = vsel %vm791, %v788, %v654
      %v798 = vsel %vm791, %v789, %v656
      %v799 = vsel %vm791, %v790, %v658
      %vm800 = vcmask 719872
      %v801 = vsel %vm800, %v792, %v676
      %v802 = vsel %vm800, %v793, %v678
      %v803 = vsel %vm800, %v794, %v680
      %v804 = vsel %vm800, %v795, %v682
      %v805 = vsel %vm800, %v796, %v684
      %v806 = vsel %vm800, %v797, %v686
      %v807 = vsel %vm800, %v798, %v688
      %v808 = vsel %vm800, %v799, %v690
      %vm809 = vcmask 1014784
      %v810 = vsel %vm809, %v801, %v701
      %v811 = vsel %vm809, %v802, %v703
      %v812 = vsel %vm809, %v803, %v705
      %v813 = vsel %vm809, %v804, %v707
      %v814 = vsel %vm809, %v805, %v709
      %v815 = vsel %vm809, %v806, %v711
      %v816 = vsel %vm809, %v807, %v713
      %v817 = vsel %vm809, %v808, %v715
      %vm818 = vcmask 261120
      %v819 = vsel %vm818, %v701, %v733
      %v820 = vsel %vm818, %v703, %v735
      %v821 = vsel %vm818, %v705, %v737
      %v822 = vsel %vm818, %v707, %v739
      %v823 = vsel %vm818, %v709, %v741
      %v824 = vsel %vm818, %v711, %v743
      %v825 = vsel %vm818, %v713, %v745
      %v826 = vsel %vm818, %v715, %v747
      %v827 = vpack.c.bf16 %v775, %v774
      %v828 = vpack.c.bf16 %v811, %v810
      %v829 = vpack.c.bf16 %v820, %v819
      %v830 = vpack.c.bf16 %v777, %v776
      %v831 = vpack.c.bf16 %v813, %v812
      %v832 = vpack.c.bf16 %v822, %v821
      %v833 = vpack.c.bf16 %v779, %v778
      %v834 = vpack.c.bf16 %v815, %v814
      %v835 = vpack.c.bf16 %v824, %v823
      %v836 = vpack.c.bf16 %v781, %v780
      %v837 = vpack.c.bf16 %v817, %v816
      %v838 = vpack.c.bf16 %v826, %v825
      %v839 = vld [vmem:[%s3] sm:$0xff]
      %v840 = vld [vmem:[%s3 + $0x8] sm:$0xff]
      %v841 = vld [vmem:[%s3 + $0x10] sm:$0xff]
      %v842 = vld [vmem:[%s3 + $0x18] sm:$0xff]
      %v843 = vld [vmem:[%s3 + $0x20] sm:$0xff]
      %v844 = vld [vmem:[%s3 + $0x28] sm:$0xff]
      %v845 = vld [vmem:[%s3 + $0x30] sm:$0xff]
      %v846 = vld [vmem:[%s3 + $0x38] sm:$0xff]
      %v847 = vld [vmem:[%s3 + $0x40] sm:$0xff]
      %v848 = vld [vmem:[%s3 + $0x48] sm:$0xff]
      %v849 = vld [vmem:[%s3 + $0x50] sm:$0xff]
      %v850 = vld [vmem:[%s3 + $0x58] sm:$0xff]
      %v851 = vld [vmem:[%s3 + $0x60] sm:$0xff]
      %v852 = vld [vmem:[%s3 + $0x68] sm:$0xff]
      %v853 = vld [vmem:[%s3 + $0x70] sm:$0xff]
      %v854 = vld [vmem:[%s3 + $0x78] sm:$0xff]
      %v855 = vld [vmem:[%s3 + $0x80] sm:$0xff]
      %v856 = vld [vmem:[%s3 + $0x88] sm:$0xff]
      %v857 = vld [vmem:[%s3 + $0x90] sm:$0xff]
      %v858 = vld [vmem:[%s3 + $0x98] sm:$0xff]
      %v859 = vld [vmem:[%s3 + $0xa0] sm:$0xff]
      %v860 = vld [vmem:[%s3 + $0xa8] sm:$0xff]
      %v861 = vld [vmem:[%s3 + $0xb0] sm:$0xff]
      %v862 = vld [vmem:[%s3 + $0xb8] sm:$0xff]
      %v863 = vld [vmem:[%s3 + $0xc0] sm:$0xff]
      %v864 = vld [vmem:[%s3 + $0xc8] sm:$0xff]
      %v865 = vld [vmem:[%s3 + $0xd0] sm:$0xff]
      %v866 = vld [vmem:[%s3 + $0xd8] sm:$0xff]
      %v867 = vld [vmem:[%s3 + $0xe0] sm:$0xff]
      %v868 = vld [vmem:[%s3 + $0xe8] sm:$0xff]
      %v869 = vld [vmem:[%s3 + $0xf0] sm:$0xff]
      %v870 = vld [vmem:[%s3 + $0xf8] sm:$0xff]
      %v871 = vld [vmem:[%s3 + $0x100] sm:$0xff]
      %v872 = vld [vmem:[%s3 + $0x108] sm:$0xff]
      %v873 = vld [vmem:[%s3 + $0x110] sm:$0xff]
      %v874 = vld [vmem:[%s3 + $0x118] sm:$0xff]
      %v875 = vld [vmem:[%s3 + $0x120] sm:$0xff]
      %v876 = vld [vmem:[%s3 + $0x128] sm:$0xff]
      %v877 = vld [vmem:[%s3 + $0x130] sm:$0xff]
      %v878 = vld [vmem:[%s3 + $0x138] sm:$0xff]
      %v879 = vld [vmem:[%s3 + $0x140] sm:$0xf]
      %v880 = vpack.c.bf16 %v840, %v839
      %v881 = vpack.c.bf16 %v842, %v841
      %v882 = vpack.c.bf16 %v844, %v843
      %v883 = vpack.c.bf16 %v846, %v845
      %v884 = vpack.c.bf16 %v848, %v847
      %v885 = vpack.c.bf16 %v850, %v849
      %v886 = vpack.c.bf16 %v852, %v851
      %v887 = vpack.c.bf16 %v854, %v853
      %v888 = vpack.c.bf16 %v856, %v855
      %v889 = vpack.c.bf16 %v858, %v857
      %v890 = vpack.c.bf16 %v860, %v859
      %v891 = vpack.c.bf16 %v862, %v861
      %v892 = vpack.c.bf16 %v864, %v863
      %v893 = vpack.c.bf16 %v866, %v865
      %v894 = vpack.c.bf16 %v868, %v867
      %v895 = vpack.c.bf16 %v870, %v869
      %v896 = vpack.c.bf16 %v872, %v871
      %v897 = vpack.c.bf16 %v874, %v873
      %v898 = vpack.c.bf16 %v876, %v875
      %v899 = vpack.c.bf16 %v878, %v877
      %v900 = vpack.c.bf16 %v879, %v879
      %vm901 = vcmask 556032
      %v903 = vsel %vm901, %v829, 0
      %v906 = vsel %vm901, %v832, 0
      %v909 = vsel %vm901, %v835, 0
      %v912 = vsel %vm901, %v838, 0
      %vm914 = vcmask 1041408
      %v916 = vsel %vm914, %v900, 0
      %918 = vmatprep.subr.bf16.mxu0 0
      %919 = vmatpush1.bf16.msra.mxu0 %v887
      %920 = vmatprep.subr.bf16.mxu0 0
      %921 = vmatpush1.bf16.msra.mxu0 %v886
      %922 = vmatprep.subr.bf16.mxu0 0
      %923 = vmatpush1.bf16.msra.mxu0 %v885
      %924 = vmatprep.subr.bf16.mxu0 0
      %925 = vmatpush1.bf16.msra.mxu0 %v884
      %926 = vmatprep.subr.bf16.mxu0 0
      %927 = vmatpush1.bf16.msra.mxu0 %v883
      %928 = vmatprep.subr.bf16.mxu0 0
      %929 = vmatpush1.bf16.msra.mxu0 %v882
      %930 = vmatprep.subr.bf16.mxu0 0
      %931 = vmatpush1.bf16.msra.mxu0 %v881
      %932 = vmatprep.subr.bf16.mxu0 0
      %933 = vmatpush1.bf16.msra.mxu0 %v880
      %934 = vmatprep.subr.bf16.mxu0 0
      %935 = vmatpush2.bf16.msra.mxu0 %v895
      %936 = vmatprep.subr.bf16.mxu0 0
      %937 = vmatpush2.bf16.msra.mxu0 %v894
      %938 = vmatprep.subr.bf16.mxu0 0
      %939 = vmatpush2.bf16.msra.mxu0 %v893
      %940 = vmatprep.subr.bf16.mxu0 0
      %941 = vmatpush2.bf16.msra.mxu0 %v892
      %942 = vmatprep.subr.bf16.mxu0 0
      %943 = vmatpush2.bf16.msra.mxu0 %v891
      %944 = vmatprep.subr.bf16.mxu0 0
      %945 = vmatpush2.bf16.msra.mxu0 %v890
      %946 = vmatprep.subr.bf16.mxu0 0
      %947 = vmatpush2.bf16.msra.mxu0 %v889
      %948 = vmatprep.subr.bf16.mxu0 0
      %949 = vmatpush2.bf16.msra.mxu0 %v888
      %950 = vmatprep.mubr.bf16.mxu0 %v828
      %951 = vmatmul.mubr.bf16.gmra.mxu0 %v827
      %v952 = vpop.f32.mrf.mxu0
      %v953 = vadd.f32 0.0, %v952
      %v954 = vpop.f32.mrf.mxu0
      %v955 = vpop.f32.mrf.mxu0
      %v956 = vadd.f32 0.0, %v955
      %v957 = vpop.f32.mrf.mxu0
      %958 = vmatprep.mubr.bf16.mxu0 %v831
      %959 = vmatmul.mubr.bf16.gmra.mxu0 %v830
      %v960 = vpop.f32.mrf.mxu0
      %v961 = vadd.f32 0.0, %v960
      %v962 = vpop.f32.mrf.mxu0
      %v963 = vpop.f32.mrf.mxu0
      %v964 = vadd.f32 0.0, %v963
      %v965 = vpop.f32.mrf.mxu0
      %966 = vmatprep.mubr.bf16.mxu0 %v834
      %967 = vmatmul.mubr.bf16.gmra.mxu0 %v833
      %v968 = vpop.f32.mrf.mxu0
      %v969 = vadd.f32 0.0, %v968
      %v970 = vpop.f32.mrf.mxu0
      %v971 = vpop.f32.mrf.mxu0
      %v972 = vadd.f32 0.0, %v971
      %v973 = vpop.f32.mrf.mxu0
      %974 = vmatprep.mubr.bf16.mxu0 %v837
      %975 = vmatmul.mubr.bf16.gmra.mxu0 %v836
      %v976 = vpop.f32.mrf.mxu0
      %v977 = vadd.f32 0.0, %v976
      %v978 = vpop.f32.mrf.mxu0
      %v979 = vpop.f32.mrf.mxu0
      %v980 = vadd.f32 0.0, %v979
      %v981 = vpop.f32.mrf.mxu0
      %982 = vdwg.mxu0
      %983 = vmatprep.subr.bf16.mxu0 0
      %984 = vmatpush1.bf16.msra.mxu0 0
      %985 = vmatprep.subr.bf16.mxu0 0
      %986 = vmatpush1.bf16.msra.mxu0 0
      %987 = vmatprep.subr.bf16.mxu0 0
      %988 = vmatpush1.bf16.msra.mxu0 0
      %989 = vmatprep.subr.bf16.mxu0 0
      %990 = vmatpush1.bf16.msra.mxu0 %v916
      %991 = vmatprep.subr.bf16.mxu0 0
      %992 = vmatpush1.bf16.msra.mxu0 %v899
      %993 = vmatprep.subr.bf16.mxu0 0
      %994 = vmatpush1.bf16.msra.mxu0 %v898
      %995 = vmatprep.subr.bf16.mxu0 0
      %996 = vmatpush1.bf16.msra.mxu0 %v897
      %997 = vmatprep.subr.bf16.mxu0 0
      %998 = vmatpush1.bf16.msra.mxu0 %v896
      %999 = vmatprep.subr.bf16.mxu0 0
      %1000 = vmatpush2.bf16.msra.mxu0 0
      %1001 = vmatprep.subr.bf16.mxu0 0
      %1002 = vmatpush2.bf16.msra.mxu0 0
      %1003 = vmatprep.subr.bf16.mxu0 0
      %1004 = vmatpush2.bf16.msra.mxu0 0
      %1005 = vmatprep.subr.bf16.mxu0 0
      %1006 = vmatpush2.bf16.msra.mxu0 0
      %1007 = vmatprep.subr.bf16.mxu0 0
      %1008 = vmatpush2.bf16.msra.mxu0 0
      %1009 = vmatprep.subr.bf16.mxu0 0
      %1010 = vmatpush2.bf16.msra.mxu0 0
      %1011 = vmatprep.subr.bf16.mxu0 0
      %1012 = vmatpush2.bf16.msra.mxu0 0
      %1013 = vmatprep.subr.bf16.mxu0 0
      %1014 = vmatpush2.bf16.msra.mxu0 0
      %1015 = vmatprep.mubr.bf16.mxu0 0
      %1016 = vmatmul.mubr.bf16.gmra.mxu0 %v903
      %v1017 = vpop.f32.mrf.mxu0
      %v1018 = vadd.f32 %v953, %v1017
      %v1019 = vpop.f32.mrf.mxu0
      %v1020 = vpop.f32.mrf.mxu0
      %v1021 = vadd.f32 %v956, %v1020
      %v1022 = vpop.f32.mrf.mxu0
      %1023 = vmatprep.mubr.bf16.mxu0 0
      %1024 = vmatmul.mubr.bf16.gmra.mxu0 %v906
      %v1025 = vpop.f32.mrf.mxu0
      %v1026 = vadd.f32 %v961, %v1025
      %v1027 = vpop.f32.mrf.mxu0
      %v1028 = vpop.f32.mrf.mxu0
      %v1029 = vadd.f32 %v964, %v1028
      %v1030 = vpop.f32.mrf.mxu0
      %1031 = vmatprep.mubr.bf16.mxu0 0
      %1032 = vmatmul.mubr.bf16.gmra.mxu0 %v909
      %v1033 = vpop.f32.mrf.mxu0
      %v1034 = vadd.f32 %v969, %v1033
      %v1035 = vpop.f32.mrf.mxu0
      %v1036 = vpop.f32.mrf.mxu0
      %v1037 = vadd.f32 %v972, %v1036
      %v1038 = vpop.f32.mrf.mxu0
      %1039 = vmatprep.mubr.bf16.mxu0 0
      %1040 = vmatmul.mubr.bf16.gmra.mxu0 %v912
      %v1041 = vpop.f32.mrf.mxu0
      %v1042 = vadd.f32 %v977, %v1041
      %v1043 = vpop.f32.mrf.mxu0
      %v1044 = vpop.f32.mrf.mxu0
      %v1045 = vadd.f32 %v980, %v1044
      %v1046 = vpop.f32.mrf.mxu0
      %1047 = vdwg.mxu0
      %vm1048 = vcmask 64512
      %1049 = vst.msk [vmem:[%s251] sm:$0xff] %vm1048, %v1018
      %1050 = vst.msk [vmem:[%s251 + $0x8] sm:$0xff] %vm1048, %v1021
      %1051 = vst.msk [vmem:[%s251 + $0x10] sm:$0xff] %vm1048, %v1026
      %1052 = vst.msk [vmem:[%s251 + $0x18] sm:$0xff] %vm1048, %v1029
      %1053 = vst.msk [vmem:[%s251 + $0x20] sm:$0xff] %vm1048, %v1034
      %1054 = vst.msk [vmem:[%s251 + $0x28] sm:$0xff] %vm1048, %v1037
      %1055 = vst.msk [vmem:[%s251 + $0x30] sm:$0xff] %vm1048, %v1042
      %1056 = vst.msk [vmem:[%s251 + $0x38] sm:$0xff] %vm1048, %v1045
      %v1057 = vsel %vm1048, %v1018, 0.0
      %v1058 = vsel %vm1048, %v1021, 0.0
      %v1059 = vadd.f32 %v1057, %v1058
      %v1060 = vsel %vm1048, %v1026, 0.0
      %v1061 = vadd.f32 %v1059, %v1060
      %v1062 = vsel %vm1048, %v1029, 0.0
      %v1063 = vadd.f32 %v1061, %v1062
      %v1064 = vsel %vm1048, %v1034, 0.0
      %v1065 = vadd.f32 %v1063, %v1064
      %v1066 = vsel %vm1048, %v1037, 0.0
      %v1067 = vadd.f32 %v1065, %v1066
      %v1068 = vsel %vm1048, %v1042, 0.0
      %v1069 = vadd.f32 %v1067, %v1068
      %v1070 = vsel %vm1048, %v1045, 0.0
      %v1071 = vadd.f32 %v1069, %v1070
      %v1072 = vrot.slane %v1071, 4
      %v1073 = vadd.f32 %v1071, %v1072
      %v1074 = vrot.slane %v1073, 2
      %v1075 = vadd.f32 %v1073, %v1074
      %v1076 = vrot.slane %v1075, 1
      %v1077 = vadd.f32 %v1075, %v1076
      %vm1078 = vcmask 57344
      %1079 = vst.msk [vmem:[%s255] sm:$0x1] %vm1078, %v1077
      %v1080 = vmul.f32 %v1018, %v1018
      %v1081 = vmul.f32 %v1021, %v1021
      %v1082 = vmul.f32 %v1026, %v1026
      %v1083 = vmul.f32 %v1029, %v1029
      %v1084 = vmul.f32 %v1034, %v1034
      %v1085 = vmul.f32 %v1037, %v1037
      %v1086 = vmul.f32 %v1042, %v1042
      %v1087 = vmul.f32 %v1045, %v1045
      %v1088 = vsel %vm1048, %v1080, 0.0
      %v1089 = vsel %vm1048, %v1081, 0.0
      %v1090 = vadd.f32 %v1088, %v1089
      %v1091 = vsel %vm1048, %v1082, 0.0
      %v1092 = vadd.f32 %v1090, %v1091
      %v1093 = vsel %vm1048, %v1083, 0.0
      %v1094 = vadd.f32 %v1092, %v1093
      %v1095 = vsel %vm1048, %v1084, 0.0
      %v1096 = vadd.f32 %v1094, %v1095
      %v1097 = vsel %vm1048, %v1085, 0.0
      %v1098 = vadd.f32 %v1096, %v1097
      %v1099 = vsel %vm1048, %v1086, 0.0
      %v1100 = vadd.f32 %v1098, %v1099
      %v1101 = vsel %vm1048, %v1087, 0.0
      %v1102 = vadd.f32 %v1100, %v1101
      %v1103 = vrot.slane %v1102, 4
      %v1104 = vadd.f32 %v1102, %v1103
      %v1105 = vrot.slane %v1104, 2
      %v1106 = vadd.f32 %v1104, %v1105
      %v1107 = vrot.slane %v1106, 1
      %v1108 = vadd.f32 %v1106, %v1107
      %1109 = vst.msk [vmem:[%s255 + $0x1] sm:$0x1] %vm1078, %v1108
      %p1110 = scmp.lt.s32.totalorder %s17, 1
      %s1111 = scalar_select %p1110, %s17, 1
      %s1112 = smul.addr %s1111, 8
      %s1113 = smul.addr %s1112, 8
      %s1114 = scalar_lea.vmem %s4, %s1113
      %p1115 = scmp.lt.s32.totalorder %s17, 1
      %s1116 = scalar_select %p1115, %s17, 1
      %s1117 = smul.addr %s1116, 2
      %s1118 = scalar_lea.vmem %s5, %s1117
      // Predicated region
      $region37: #{run.13} parent=35 // pred_check
        %p1119 = pneg %p129
      $region38: #{run.13} parent=35 // pred_check_branch
        %1121 = sbr.rel (%p1119) target = $region40
      $region39: #{run.13} parent=35 // pred_region
        _
      $region40: #{run.13} parent=35 // pred_fallthru
        _
      // Predicated region
      $region41: #{run.13} parent=35 // pred_check
        %p1122 = pneg %p155
      $region42: #{run.13} parent=35 // pred_check_branch
        %1124 = sbr.rel (%p1122) target = $region44
      $region43: #{run.13} parent=35 // pred_region
        _
      $region44: #{run.13} parent=35 // pred_fallthru
        _
    $region36: #{run.13} parent=5 // pred_fallthru
      _
    %p1125 = scmp.le.s32.totalorder 2, %s12
    // Predicated region
    $region45: #{run.13} parent=5 // pred_check
      %p1126 = pneg %p1125
    $region46: #{run.13} parent=5 // pred_check_branch
      %1128 = sbr.rel (%p1126) target = $region48
    $region47: #{run.13} parent=5 // pred_region
      %s1129 = ssub.s32 %s12, 2
      // Predicated region
      $region49: #{run.13} parent=47 // pred_check
        %p1130 = pneg %p135
      $region50: #{run.13} parent=47 // pred_check_branch
        %1132 = sbr.rel (%p1130) target = $region52
      $region51: #{run.13} parent=47 // pred_region
        %p1133 = scmp.lt.s32.totalorder %s18, 1
        %s1134 = scalar_select %p1133, %s18, 1
        %s1135 = smul.addr %s1134, 8
        %s1136 = smul.addr %s1135, 8
        %s1137 = scalar_lea.vmem %s4, %s1136
      $region52: #{run.13} parent=47 // pred_fallthru
        _
      // Predicated region
      $region53: #{run.13} parent=47 // pred_check
        %p1138 = pneg %p161
      $region54: #{run.13} parent=47 // pred_check_branch
        %1140 = sbr.rel (%p1138) target = $region56
      $region55: #{run.13} parent=47 // pred_region
        %p1141 = scmp.lt.s32.totalorder %s18, 1
        %s1142 = scalar_select %p1141, %s18, 1
        %s1143 = smul.addr %s1142, 2
        %s1144 = scalar_lea.vmem %s5, %s1143
      $region56: #{run.13} parent=47 // pred_fallthru
        _
    $region48: #{run.13} parent=5 // pred_fallthru
      _
  $region6: #{run.13} parent=0 // loop_footer
    %s16 = sadd.s32 1, %s12
  $region7: #{run.13} parent=0 // loop_footer_branch
    %11 = sbr.rel target = $region3
  $region8: #{run.13} parent=0 // loop_exit
    _

// kernel: run.12
$region0: #{run.12}
  #allocation0 [shape = 'u32[]', space=smem, size = 0x4, offset = 0x4, fixed_abs, tag = 'smem constant byte address 0x4 - core index']
  #allocation1 [shape = 'u32[144,128]{1,0:T(1,128)}', space=vmem, size = 0x12000, scoped, tag = 'internal scratch']
  %s0 = inlined_call_operand.vmem [shape: f32[2,16,16,32], index: 0, kind: input, shape index: {}]
  %s1 = inlined_call_operand.vmem [shape: f32[16,8], index: 1, kind: input, shape index: {}]
  %s2 = inlined_call_operand.vmem [shape: f32[2,8,8,32], index: 2, kind: output, shape index: {}]
  %s3 = sld [smem:[#allocation0]]
  $region41: #{run.12} parent=0
    _
  %s5 = ssub.s32 1, %s3
  %s6 = scalar_select 0, %s5, %s3
  loop: start=0, step=1, limit=4
  $region2: #{run.12} parent=0 // loop_pre_header
    _
  $region3: #{run.12} parent=0 // loop_header
    %s8 = sphi 0, %s12
    %p9 = scmp.ge.s32.totalorder %s8, 4
    %s18 = sphi 0, %s20
    %s21 = sphi 0, %s18
    %s22 = sphi 0, %s21
    %s38 = sphi 0, %s22
    %s42 = sphi 0, %s42
    %s44 = sphi 0, %s42
    %s45 = sphi 0, %s44
    %s59 = sphi 0, %s45
    %s65 = sphi 0, %s67
    %s68 = sphi 0, %s65
    %s69 = sphi 0, %s68
    %s85 = sphi 0, %s69
  $region4: #{run.12} parent=0 // loop_header_branch
    %11 = sbr.rel (%p9) target = $region8
  $region5: #{run.12} parent=0 // loop_body
    %s13 = ssub.s32 %s8, 1
    %s14 = ssub.s32 %s8, 2
    %s15 = sadd.s32 %s8, 1
    %s16 = ssub.s32 %s8, %s15
    %p17 = scmp.eq.s32.totalorder %s16, 0
    %s19 = sadd.s32 %s18, 1
    %s20 = scalar_select %p17, %s18, %s19
    %p23 = pneg %p17
    %p24 = scmp.eq.s32.totalorder %s8, 1
    %p25 = por %p23, %p24
    %p26 = scmp.ne.s32.totalorder %s18, %s21
    %p27 = scmp.eq.s32.totalorder %s8, 0
    %p28 = por %p26, %p27
    %p29 = scmp.ne.s32.totalorder %s18, %s21
    %p30 = scmp.eq.s32.totalorder %s13, 1
    %p31 = por %p29, %p30
    %p32 = scmp.ne.s32.totalorder %s21, %s22
    %p33 = scmp.eq.s32.totalorder %s13, 0
    %p34 = por %p32, %p33
    %p35 = scmp.ne.s32.totalorder %s21, %s22
    %p36 = scmp.eq.s32.totalorder %s14, 1
    %p37 = por %p35, %p36
    %p39 = scmp.ne.s32.totalorder %s22, %s38
    %p40 = scmp.eq.s32.totalorder %s14, 0
    %p41 = por %p39, %p40
    %s43 = sadd.s32 %s42, 1
    %p46 = scmp.eq.s32.totalorder %s8, 1
    %p47 = scmp.ne.s32.totalorder %s42, %s44
    %p48 = scmp.eq.s32.totalorder %s8, 0
    %p49 = por %p47, %p48
    %p50 = scmp.ne.s32.totalorder %s42, %s44
    %p51 = scmp.eq.s32.totalorder %s13, 1
    %p52 = por %p50, %p51
    %p53 = scmp.ne.s32.totalorder %s44, %s45
    %p54 = scmp.eq.s32.totalorder %s13, 0
    %p55 = por %p53, %p54
    %p56 = scmp.ne.s32.totalorder %s44, %s45
    %p57 = scmp.eq.s32.totalorder %s14, 1
    %p58 = por %p56, %p57
    %p60 = scmp.ne.s32.totalorder %s45, %s59
    %p61 = scmp.eq.s32.totalorder %s14, 0
    %p62 = por %p60, %p61
    %s63 = ssub.s32 %s8, %s15
    %p64 = scmp.eq.s32.totalorder %s63, 0
    %s66 = sadd.s32 %s65, 1
    %s67 = scalar_select %p64, %s65, %s66
    %p70 = pneg %p64
    %p71 = scmp.eq.s32.totalorder %s8, 1
    %p72 = por %p70, %p71
    %p73 = scmp.ne.s32.totalorder %s65, %s68
    %p74 = scmp.eq.s32.totalorder %s8, 0
    %p75 = por %p73, %p74
    %p76 = scmp.ne.s32.totalorder %s65, %s68
    %p77 = scmp.eq.s32.totalorder %s13, 1
    %p78 = por %p76, %p77
    %p79 = scmp.ne.s32.totalorder %s68, %s69
    %p80 = scmp.eq.s32.totalorder %s13, 0
    %p81 = por %p79, %p80
    %p82 = scmp.ne.s32.totalorder %s68, %s69
    %p83 = scmp.eq.s32.totalorder %s14, 1
    %p84 = por %p82, %p83
    %p86 = scmp.ne.s32.totalorder %s69, %s85
    %p87 = scmp.eq.s32.totalorder %s14, 0
    %p88 = por %p86, %p87
    %p89 = scmp.le.s32.totalorder 1, %s8
    %p90 = scmp.lt.s32.totalorder %s8, 3
    %p91 = pnand %p89, %p90
    %p92 = pneg %p91
    // Predicated region
    $region9: #{run.12} parent=5 // pred_check
      _
    $region10: #{run.12} parent=5 // pred_check_branch
      %94 = sbr.rel (%p91) target = $region12
    $region11: #{run.12} parent=5 // pred_region
      %s95 = ssub.s32 %s8, 1
      // Predicated region
      $region13: #{run.12} parent=11 // pred_check
        %p96 = pneg %p55
      $region14: #{run.12} parent=11 // pred_check_branch
        %98 = sbr.rel (%p96) target = $region16
      $region15: #{run.12} parent=11 // pred_region
        _
      $region16: #{run.12} parent=11 // pred_fallthru
        _
    $region12: #{run.12} parent=5 // pred_fallthru
      _
    %p99 = scmp.lt.s32.totalorder %s8, 2
    // Predicated region
    $region17: #{run.12} parent=5 // pred_check
      %p100 = pneg %p99
    $region18: #{run.12} parent=5 // pred_check_branch
      %102 = sbr.rel (%p100) target = $region20
    $region19: #{run.12} parent=5 // pred_region
      // Predicated region
      $region21: #{run.12} parent=19 // pred_check
        %p103 = pneg %p28
      $region22: #{run.12} parent=19 // pred_check_branch
        %105 = sbr.rel (%p103) target = $region24
      $region23: #{run.12} parent=19 // pred_region
        %p106 = scmp.lt.s32.totalorder %s8, 1
        %s107 = scalar_select %p106, %s8, 1
        %s108 = smul.addr %s107, 32
        %s109 = smul.addr %s108, 8
        %s110 = scalar_lea.vmem %s0, %s109
      $region24: #{run.12} parent=19 // pred_fallthru
        _
    $region20: #{run.12} parent=5 // pred_fallthru
      _
    %p111 = scmp.le.s32.totalorder 1, %s8
    %p112 = scmp.lt.s32.totalorder %s8, 3
    %p113 = pnand %p111, %p112
    %p114 = pneg %p113
    // Predicated region
    $region25: #{run.12} parent=5 // pred_check
      _
    $region26: #{run.12} parent=5 // pred_check_branch
      %116 = sbr.rel (%p113) target = $region28
    $region27: #{run.12} parent=5 // pred_region
      %s117 = ssub.s32 %s8, 1
      %p118 = scmp.lt.s32.totalorder %s13, 1
      %s119 = scalar_select %p118, %s13, 1
      %s120 = smul.addr %s119, 32
      %s121 = smul.addr %s120, 8
      %s122 = scalar_lea.vmem %s0, %s121
      %p123 = pneg %p34
      %p124 = pneg %p31
      %p125 = pneg %p55
      %p126 = pneg %p52
      %p127 = pneg %p81
      %p128 = pneg %p78
      %p129 = scmp.lt.s32.totalorder %s13, 1
      %s130 = scalar_select %p129, %s13, 1
      %s131 = smul.addr %s130, 8
      %s132 = smul.addr %s131, 8
      %s133 = scalar_lea.vmem %s2, %s132
      %p134 = scmp.lt.s32.totalorder %s13, 1
      %s135 = scalar_select %p134, %s13, 1
      %s136 = smul.addr %s135, 32
      %s137 = smul.addr %s136, 8
      %s138 = scalar_lea.vmem %s0, %s137
      %p139 = scmp.lt.s32.totalorder %s13, 1
      %s140 = scalar_select %p139, %s13, 1
      %s141 = smul.addr %s140, 8
      %s142 = smul.addr %s141, 8
      %s143 = scalar_lea.vmem %s2, %s142
      %v144 = vld [vmem:[%s138] sm:$0xff]
      %v145 = vld [vmem:[%s138 + $0x8] sm:$0xff]
      %v146 = vld [vmem:[%s138 + $0x10] sm:$0xff]
      %v147 = vld [vmem:[%s138 + $0x18] sm:$0xff]
      %v148 = vld [vmem:[%s138 + $0x20] sm:$0xff]
      %v149 = vld [vmem:[%s138 + $0x28] sm:$0xff]
      %v150 = vld [vmem:[%s138 + $0x30] sm:$0xff]
      %v151 = vld [vmem:[%s138 + $0x38] sm:$0xff]
      %v152 = vld [vmem:[%s138 + $0x40] sm:$0xff]
      %v153 = vld [vmem:[%s138 + $0x48] sm:$0xff]
      %v154 = vld [vmem:[%s138 + $0x50] sm:$0xff]
      %v155 = vld [vmem:[%s138 + $0x58] sm:$0xff]
      %v156 = vld [vmem:[%s138 + $0x60] sm:$0xff]
      %v157 = vld [vmem:[%s138 + $0x68] sm:$0xff]
      %v158 = vld [vmem:[%s138 + $0x70] sm:$0xff]
      %v159 = vld [vmem:[%s138 + $0x78] sm:$0xff]
      %v160 = vld [vmem:[%s138 + $0x80] sm:$0xff]
      %v161 = vld [vmem:[%s138 + $0x88] sm:$0xff]
      %v162 = vld [vmem:[%s138 + $0x90] sm:$0xff]
      %v163 = vld [vmem:[%s138 + $0x98] sm:$0xff]
      %v164 = vld [vmem:[%s138 + $0xa0] sm:$0xff]
      %v165 = vld [vmem:[%s138 + $0xa8] sm:$0xff]
      %v166 = vld [vmem:[%s138 + $0xb0] sm:$0xff]
      %v167 = vld [vmem:[%s138 + $0xb8] sm:$0xff]
      %v168 = vld [vmem:[%s138 + $0xc0] sm:$0xff]
      %v169 = vld [vmem:[%s138 + $0xc8] sm:$0xff]
      %v170 = vld [vmem:[%s138 + $0xd0] sm:$0xff]
      %v171 = vld [vmem:[%s138 + $0xd8] sm:$0xff]
      %v172 = vld [vmem:[%s138 + $0xe0] sm:$0xff]
      %v173 = vld [vmem:[%s138 + $0xe8] sm:$0xff]
      %v174 = vld [vmem:[%s138 + $0xf0] sm:$0xff]
      %v175 = vld [vmem:[%s138 + $0xf8] sm:$0xff]
      %v176 = vmax.f32 %v146, %v148
      %v177 = vmax.f32 %v147, %v149
      %v178 = vmax.f32 %v150, %v152
      %v179 = vmax.f32 %v151, %v153
      %v180 = vmax.f32 %v154, %v156
      %v181 = vmax.f32 %v155, %v157
      %v182 = vmax.f32 %v158, %v160
      %v183 = vmax.f32 %v159, %v161
      %v184 = vmax.f32 %v162, %v164
      %v185 = vmax.f32 %v163, %v165
      %v186 = vmax.f32 %v166, %v168
      %v187 = vmax.f32 %v167, %v169
      %v188 = vmax.f32 %v170, %v172
      %v189 = vmax.f32 %v171, %v173
      %v190 = vmax.f32 %v144, %v146
      %v191 = vmax.f32 %v145, %v147
      %v192 = vmax.f32 %v176, %v150
      %v193 = vmax.f32 %v177, %v151
      %v194 = vmax.f32 %v178, %v154
      %v195 = vmax.f32 %v179, %v155
      %v196 = vmax.f32 %v180, %v158
      %v197 = vmax.f32 %v181, %v159
      %v198 = vmax.f32 %v182, %v162
      %v199 = vmax.f32 %v183, %v163
      %v200 = vmax.f32 %v184, %v166
      %v201 = vmax.f32 %v185, %v167
      %v202 = vmax.f32 %v186, %v170
      %v203 = vmax.f32 %v187, %v171
      %v204 = vmax.f32 %v188, %v174
      %v205 = vmax.f32 %v189, %v175
      %206 = vxpose.xlu0.b32.start [1/16] %v190, 128
      %207 = vxpose.xlu0.b32.cont [2/16] %v191, 128
      %208 = vxpose.xlu0.b32.cont [3/16] 0.0, 128
      %209 = vxpose.xlu0.b32.cont [4/16] 0.0, 128
      %210 = vxpose.xlu0.b32.cont [5/16] 0.0, 128
      %211 = vxpose.xlu0.b32.cont [6/16] 0.0, 128
      %212 = vxpose.xlu0.b32.cont [7/16] 0.0, 128
      %213 = vxpose.xlu0.b32.cont [8/16] 0.0, 128
      %214 = vxpose.xlu0.b32.cont [9/16] 0.0, 128
      %215 = vxpose.xlu0.b32.cont [10/16] 0.0, 128
      %216 = vxpose.xlu0.b32.cont [11/16] 0.0, 128
      %217 = vxpose.xlu0.b32.cont [12/16] 0.0, 128
      %218 = vxpose.xlu0.b32.cont [13/16] 0.0, 128
      %219 = vxpose.xlu0.b32.cont [14/16] 0.0, 128
      %220 = vxpose.xlu0.b32.cont [15/16] 0.0, 128
      %221 = vxpose.xlu0.b32.end [16/16] 0.0, 128
      %v222 = vpop.trf.xlu0
      %v223 = vpop.trf.xlu0
      %v224 = vpop.trf.xlu0
      %v225 = vpop.trf.xlu0
      %v226 = vpop.trf.xlu0
      %v227 = vpop.trf.xlu0
      %v228 = vpop.trf.xlu0
      %v229 = vpop.trf.xlu0
      %v230 = vpop.trf.xlu0
      %v231 = vpop.trf.xlu0
      %v232 = vpop.trf.xlu0
      %v233 = vpop.trf.xlu0
      %v234 = vpop.trf.xlu0
      %v235 = vpop.trf.xlu0
      %v236 = vpop.trf.xlu0
      %v237 = vpop.trf.xlu0
      %238 = vxpose.xlu0.b32.start [1/16] %v192, 128
      %239 = vxpose.xlu0.b32.cont [2/16] %v193, 128
      %240 = vxpose.xlu0.b32.cont [3/16] 0.0, 128
      %241 = vxpose.xlu0.b32.cont [4/16] 0.0, 128
      %242 = vxpose.xlu0.b32.cont [5/16] 0.0, 128
      %243 = vxpose.xlu0.b32.cont [6/16] 0.0, 128
      %244 = vxpose.xlu0.b32.cont [7/16] 0.0, 128
      %245 = vxpose.xlu0.b32.cont [8/16] 0.0, 128
      %246 = vxpose.xlu0.b32.cont [9/16] 0.0, 128
      %247 = vxpose.xlu0.b32.cont [10/16] 0.0, 128
      %248 = vxpose.xlu0.b32.cont [11/16] 0.0, 128
      %249 = vxpose.xlu0.b32.cont [12/16] 0.0, 128
      %250 = vxpose.xlu0.b32.cont [13/16] 0.0, 128
      %251 = vxpose.xlu0.b32.cont [14/16] 0.0, 128
      %252 = vxpose.xlu0.b32.cont [15/16] 0.0, 128
      %253 = vxpose.xlu0.b32.end [16/16] 0.0, 128
      %v254 = vpop.trf.xlu0
      %v255 = vpop.trf.xlu0
      %v256 = vpop.trf.xlu0
      %v257 = vpop.trf.xlu0
      %v258 = vpop.trf.xlu0
      %v259 = vpop.trf.xlu0
      %v260 = vpop.trf.xlu0
      %v261 = vpop.trf.xlu0
      %v262 = vpop.trf.xlu0
      %v263 = vpop.trf.xlu0
      %v264 = vpop.trf.xlu0
      %v265 = vpop.trf.xlu0
      %v266 = vpop.trf.xlu0
      %v267 = vpop.trf.xlu0
      %v268 = vpop.trf.xlu0
      %v269 = vpop.trf.xlu0
      %270 = vxpose.xlu0.b32.start [1/16] %v194, 128
      %271 = vxpose.xlu0.b32.cont [2/16] %v195, 128
      %272 = vxpose.xlu0.b32.cont [3/16] 0.0, 128
      %273 = vxpose.xlu0.b32.cont [4/16] 0.0, 128
      %274 = vxpose.xlu0.b32.cont [5/16] 0.0, 128
      %275 = vxpose.xlu0.b32.cont [6/16] 0.0, 128
      %276 = vxpose.xlu0.b32.cont [7/16] 0.0, 128
      %277 = vxpose.xlu0.b32.cont [8/16] 0.0, 128
      %278 = vxpose.xlu0.b32.cont [9/16] 0.0, 128
      %279 = vxpose.xlu0.b32.cont [10/16] 0.0, 128
      %280 = vxpose.xlu0.b32.cont [11/16] 0.0, 128
      %281 = vxpose.xlu0.b32.cont [12/16] 0.0, 128
      %282 = vxpose.xlu0.b32.cont [13/16] 0.0, 128
      %283 = vxpose.xlu0.b32.cont [14/16] 0.0, 128
      %284 = vxpose.xlu0.b32.cont [15/16] 0.0, 128
      %285 = vxpose.xlu0.b32.end [16/16] 0.0, 128
      %v286 = vpop.trf.xlu0
      %v287 = vpop.trf.xlu0
      %v288 = vpop.trf.xlu0
      %v289 = vpop.trf.xlu0
      %v290 = vpop.trf.xlu0
      %v291 = vpop.trf.xlu0
      %v292 = vpop.trf.xlu0
      %v293 = vpop.trf.xlu0
      %v294 = vpop.trf.xlu0
      %v295 = vpop.trf.xlu0
      %v296 = vpop.trf.xlu0
      %v297 = vpop.trf.xlu0
      %v298 = vpop.trf.xlu0
      %v299 = vpop.trf.xlu0
      %v300 = vpop.trf.xlu0
      %v301 = vpop.trf.xlu0
      %302 = vxpose.xlu0.b32.start [1/16] %v196, 128
      %303 = vxpose.xlu0.b32.cont [2/16] %v197, 128
      %304 = vxpose.xlu0.b32.cont [3/16] 0.0, 128
      %305 = vxpose.xlu0.b32.cont [4/16] 0.0, 128
      %306 = vxpose.xlu0.b32.cont [5/16] 0.0, 128
      %307 = vxpose.xlu0.b32.cont [6/16] 0.0, 128
      %308 = vxpose.xlu0.b32.cont [7/16] 0.0, 128
      %309 = vxpose.xlu0.b32.cont [8/16] 0.0, 128
      %310 = vxpose.xlu0.b32.cont [9/16] 0.0, 128
      %311 = vxpose.xlu0.b32.cont [10/16] 0.0, 128
      %312 = vxpose.xlu0.b32.cont [11/16] 0.0, 128
      %313 = vxpose.xlu0.b32.cont [12/16] 0.0, 128
      %314 = vxpose.xlu0.b32.cont [13/16] 0.0, 128
      %315 = vxpose.xlu0.b32.cont [14/16] 0.0, 128
      %316 = vxpose.xlu0.b32.cont [15/16] 0.0, 128
      %317 = vxpose.xlu0.b32.end [16/16] 0.0, 128
      %v318 = vpop.trf.xlu0
      %v319 = vpop.trf.xlu0
      %v320 = vpop.trf.xlu0
      %v321 = vpop.trf.xlu0
      %v322 = vpop.trf.xlu0
      %v323 = vpop.trf.xlu0
      %v324 = vpop.trf.xlu0
      %v325 = vpop.trf.xlu0
      %v326 = vpop.trf.xlu0
      %v327 = vpop.trf.xlu0
      %v328 = vpop.trf.xlu0
      %v329 = vpop.trf.xlu0
      %v330 = vpop.trf.xlu0
      %v331 = vpop.trf.xlu0
      %v332 = vpop.trf.xlu0
      %v333 = vpop.trf.xlu0
      %334 = vxpose.xlu0.b32.start [1/16] %v198, 128
      %335 = vxpose.xlu0.b32.cont [2/16] %v199, 128
      %336 = vxpose.xlu0.b32.cont [3/16] 0.0, 128
      %337 = vxpose.xlu0.b32.cont [4/16] 0.0, 128
      %338 = vxpose.xlu0.b32.cont [5/16] 0.0, 128
      %339 = vxpose.xlu0.b32.cont [6/16] 0.0, 128
      %340 = vxpose.xlu0.b32.cont [7/16] 0.0, 128
      %341 = vxpose.xlu0.b32.cont [8/16] 0.0, 128
      %342 = vxpose.xlu0.b32.cont [9/16] 0.0, 128
      %343 = vxpose.xlu0.b32.cont [10/16] 0.0, 128
      %344 = vxpose.xlu0.b32.cont [11/16] 0.0, 128
      %345 = vxpose.xlu0.b32.cont [12/16] 0.0, 128
      %346 = vxpose.xlu0.b32.cont [13/16] 0.0, 128
      %347 = vxpose.xlu0.b32.cont [14/16] 0.0, 128
      %348 = vxpose.xlu0.b32.cont [15/16] 0.0, 128
      %349 = vxpose.xlu0.b32.end [16/16] 0.0, 128
      %v350 = vpop.trf.xlu0
      %v351 = vpop.trf.xlu0
      %v352 = vpop.trf.xlu0
      %v353 = vpop.trf.xlu0
      %v354 = vpop.trf.xlu0
      %v355 = vpop.trf.xlu0
      %v356 = vpop.trf.xlu0
      %v357 = vpop.trf.xlu0
      %v358 = vpop.trf.xlu0
      %v359 = vpop.trf.xlu0
      %v360 = vpop.trf.xlu0
      %v361 = vpop.trf.xlu0
      %v362 = vpop.trf.xlu0
      %v363 = vpop.trf.xlu0
      %v364 = vpop.trf.xlu0
      %v365 = vpop.trf.xlu0
      %366 = vxpose.xlu0.b32.start [1/16] %v200, 128
      %367 = vxpose.xlu0.b32.cont [2/16] %v201, 128
      %368 = vxpose.xlu0.b32.cont [3/16] 0.0, 128
      %369 = vxpose.xlu0.b32.cont [4/16] 0.0, 128
      %370 = vxpose.xlu0.b32.cont [5/16] 0.0, 128
      %371 = vxpose.xlu0.b32.cont [6/16] 0.0, 128
      %372 = vxpose.xlu0.b32.cont [7/16] 0.0, 128
      %373 = vxpose.xlu0.b32.cont [8/16] 0.0, 128
      %374 = vxpose.xlu0.b32.cont [9/16] 0.0, 128
      %375 = vxpose.xlu0.b32.cont [10/16] 0.0, 128
      %376 = vxpose.xlu0.b32.cont [11/16] 0.0, 128
      %377 = vxpose.xlu0.b32.cont [12/16] 0.0, 128
      %378 = vxpose.xlu0.b32.cont [13/16] 0.0, 128
      %379 = vxpose.xlu0.b32.cont [14/16] 0.0, 128
      %380 = vxpose.xlu0.b32.cont [15/16] 0.0, 128
      %381 = vxpose.xlu0.b32.end [16/16] 0.0, 128
      %v382 = vpop.trf.xlu0
      %v383 = vpop.trf.xlu0
      %v384 = vpop.trf.xlu0
      %v385 = vpop.trf.xlu0
      %v386 = vpop.trf.xlu0
      %v387 = vpop.trf.xlu0
      %v388 = vpop.trf.xlu0
      %v389 = vpop.trf.xlu0
      %v390 = vpop.trf.xlu0
      %v391 = vpop.trf.xlu0
      %v392 = vpop.trf.xlu0
      %v393 = vpop.trf.xlu0
      %v394 = vpop.trf.xlu0
      %v395 = vpop.trf.xlu0
      %v396 = vpop.trf.xlu0
      %v397 = vpop.trf.xlu0
      %398 = vxpose.xlu0.b32.start [1/16] %v202, 128
      %399 = vxpose.xlu0.b32.cont [2/16] %v203, 128
      %400 = vxpose.xlu0.b32.cont [3/16] 0.0, 128
      %401 = vxpose.xlu0.b32.cont [4/16] 0.0, 128
      %402 = vxpose.xlu0.b32.cont [5/16] 0.0, 128
      %403 = vxpose.xlu0.b32.cont [6/16] 0.0, 128
      %404 = vxpose.xlu0.b32.cont [7/16] 0.0, 128
      %405 = vxpose.xlu0.b32.cont [8/16] 0.0, 128
      %406 = vxpose.xlu0.b32.cont [9/16] 0.0, 128
      %407 = vxpose.xlu0.b32.cont [10/16] 0.0, 128
      %408 = vxpose.xlu0.b32.cont [11/16] 0.0, 128
      %409 = vxpose.xlu0.b32.cont [12/16] 0.0, 128
      %410 = vxpose.xlu0.b32.cont [13/16] 0.0, 128
      %411 = vxpose.xlu0.b32.cont [14/16] 0.0, 128
      %412 = vxpose.xlu0.b32.cont [15/16] 0.0, 128
      %413 = vxpose.xlu0.b32.end [16/16] 0.0, 128
      %v414 = vpop.trf.xlu0
      %v415 = vpop.trf.xlu0
      %v416 = vpop.trf.xlu0
      %v417 = vpop.trf.xlu0
      %v418 = vpop.trf.xlu0
      %v419 = vpop.trf.xlu0
      %v420 = vpop.trf.xlu0
      %v421 = vpop.trf.xlu0
      %v422 = vpop.trf.xlu0
      %v423 = vpop.trf.xlu0
      %v424 = vpop.trf.xlu0
      %v425 = vpop.trf.xlu0
      %v426 = vpop.trf.xlu0
      %v427 = vpop.trf.xlu0
      %v428 = vpop.trf.xlu0
      %v429 = vpop.trf.xlu0
      %430 = vxpose.xlu0.b32.start [1/16] %v204, 128
      %431 = vxpose.xlu0.b32.cont [2/16] %v205, 128
      %432 = vxpose.xlu0.b32.cont [3/16] 0.0, 128
      %433 = vxpose.xlu0.b32.cont [4/16] 0.0, 128
      %434 = vxpose.xlu0.b32.cont [5/16] 0.0, 128
      %435 = vxpose.xlu0.b32.cont [6/16] 0.0, 128
      %436 = vxpose.xlu0.b32.cont [7/16] 0.0, 128
      %437 = vxpose.xlu0.b32.cont [8/16] 0.0, 128
      %438 = vxpose.xlu0.b32.cont [9/16] 0.0, 128
      %439 = vxpose.xlu0.b32.cont [10/16] 0.0, 128
      %440 = vxpose.xlu0.b32.cont [11/16] 0.0, 128
      %441 = vxpose.xlu0.b32.cont [12/16] 0.0, 128
      %442 = vxpose.xlu0.b32.cont [13/16] 0.0, 128
      %443 = vxpose.xlu0.b32.cont [14/16] 0.0, 128
      %444 = vxpose.xlu0.b32.cont [15/16] 0.0, 128
      %445 = vxpose.xlu0.b32.end [16/16] 0.0, 128
      %v446 = vpop.trf.xlu0
      %v447 = vpop.trf.xlu0
      %v448 = vpop.trf.xlu0
      %v449 = vpop.trf.xlu0
      %v450 = vpop.trf.xlu0
      %v451 = vpop.trf.xlu0
      %v452 = vpop.trf.xlu0
      %v453 = vpop.trf.xlu0
      %v454 = vpop.trf.xlu0
      %v455 = vpop.trf.xlu0
      %v456 = vpop.trf.xlu0
      %v457 = vpop.trf.xlu0
      %v458 = vpop.trf.xlu0
      %v459 = vpop.trf.xlu0
      %v460 = vpop.trf.xlu0
      %v461 = vpop.trf.xlu0
      %494 = vrot.lane.b32.xlu0 %v222, 1
      %v495 = vpop.permute.xlu0 %494
      %496 = vrot.lane.b32.xlu0 %v223, 1
      %v497 = vpop.permute.xlu0 %496
      %498 = vrot.lane.b32.xlu0 %v224, 1
      %v499 = vpop.permute.xlu0 %498
      %500 = vrot.lane.b32.xlu0 %v225, 1
      %v501 = vpop.permute.xlu0 %500
      %502 = vrot.lane.b32.xlu0 %v254, 1
      %v503 = vpop.permute.xlu0 %502
      %504 = vrot.lane.b32.xlu0 %v255, 1
      %v505 = vpop.permute.xlu0 %504
      %506 = vrot.lane.b32.xlu0 %v256, 1
      %v507 = vpop.permute.xlu0 %506
      %508 = vrot.lane.b32.xlu0 %v257, 1
      %v509 = vpop.permute.xlu0 %508
      %510 = vrot.lane.b32.xlu0 %v286, 1
      %v511 = vpop.permute.xlu0 %510
      %512 = vrot.lane.b32.xlu0 %v287, 1
      %v513 = vpop.permute.xlu0 %512
      %514 = vrot.lane.b32.xlu0 %v288, 1
      %v515 = vpop.permute.xlu0 %514
      %516 = vrot.lane.b32.xlu0 %v289, 1
      %v517 = vpop.permute.xlu0 %516
      %518 = vrot.lane.b32.xlu0 %v318, 1
      %v519 = vpop.permute.xlu0 %518
      %520 = vrot.lane.b32.xlu0 %v319, 1
      %v521 = vpop.permute.xlu0 %520
      %522 = vrot.lane.b32.xlu0 %v320, 1
      %v523 = vpop.permute.xlu0 %522
      %524 = vrot.lane.b32.xlu0 %v321, 1
      %v525 = vpop.permute.xlu0 %524
      %526 = vrot.lane.b32.xlu0 %v350, 1
      %v527 = vpop.permute.xlu0 %526
      %528 = vrot.lane.b32.xlu0 %v351, 1
      %v529 = vpop.permute.xlu0 %528
      %530 = vrot.lane.b32.xlu0 %v352, 1
      %v531 = vpop.permute.xlu0 %530
      %532 = vrot.lane.b32.xlu0 %v353, 1
      %v533 = vpop.permute.xlu0 %532
      %534 = vrot.lane.b32.xlu0 %v382, 1
      %v535 = vpop.permute.xlu0 %534
      %536 = vrot.lane.b32.xlu0 %v383, 1
      %v537 = vpop.permute.xlu0 %536
      %538 = vrot.lane.b32.xlu0 %v384, 1
      %v539 = vpop.permute.xlu0 %538
      %540 = vrot.lane.b32.xlu0 %v385, 1
      %v541 = vpop.permute.xlu0 %540
      %542 = vrot.lane.b32.xlu0 %v414, 1
      %v543 = vpop.permute.xlu0 %542
      %544 = vrot.lane.b32.xlu0 %v415, 1
      %v545 = vpop.permute.xlu0 %544
      %546 = vrot.lane.b32.xlu0 %v416, 1
      %v547 = vpop.permute.xlu0 %546
      %548 = vrot.lane.b32.xlu0 %v417, 1
      %v549 = vpop.permute.xlu0 %548
      %550 = vrot.lane.b32.xlu0 %v446, 1
      %v551 = vpop.permute.xlu0 %550
      %552 = vrot.lane.b32.xlu0 %v447, 1
      %v553 = vpop.permute.xlu0 %552
      %554 = vrot.lane.b32.xlu0 %v448, 1
      %v555 = vpop.permute.xlu0 %554
      %556 = vrot.lane.b32.xlu0 %v449, 1
      %v557 = vpop.permute.xlu0 %556
      %vm590 = vcmask 7168
      %v591 = vsel %vm590, %v222, %v495
      %v592 = vsel %vm590, %v223, %v497
      %v593 = vsel %vm590, %v224, %v499
      %v594 = vsel %vm590, %v225, %v501
      %v595 = vsel %vm590, %v254, %v503
      %v596 = vsel %vm590, %v255, %v505
      %v597 = vsel %vm590, %v256, %v507
      %v598 = vsel %vm590, %v257, %v509
      %v599 = vsel %vm590, %v286, %v511
      %v600 = vsel %vm590, %v287, %v513
      %v601 = vsel %vm590, %v288, %v515
      %v602 = vsel %vm590, %v289, %v517
      %v603 = vsel %vm590, %v318, %v519
      %v604 = vsel %vm590, %v319, %v521
      %v605 = vsel %vm590, %v320, %v523
      %v606 = vsel %vm590, %v321, %v525
      %v607 = vsel %vm590, %v350, %v527
      %v608 = vsel %vm590, %v351, %v529
      %v609 = vsel %vm590, %v352, %v531
      %v610 = vsel %vm590, %v353, %v533
      %v611 = vsel %vm590, %v382, %v535
      %v612 = vsel %vm590, %v383, %v537
      %v613 = vsel %vm590, %v384, %v539
      %v614 = vsel %vm590, %v385, %v541
      %v615 = vsel %vm590, %v414, %v543
      %v616 = vsel %vm590, %v415, %v545
      %v617 = vsel %vm590, %v416, %v547
      %v618 = vsel %vm590, %v417, %v549
      %v619 = vsel %vm590, %v446, %v551
      %v620 = vsel %vm590, %v447, %v553
      %v621 = vsel %vm590, %v448, %v555
      %v622 = vsel %vm590, %v449, %v557
      %623 = vrot.lane.b32.xlu0 %v222, 127
      %v624 = vpop.permute.xlu0 %623
      %625 = vrot.lane.b32.xlu0 %v223, 127
      %v626 = vpop.permute.xlu0 %625
      %627 = vrot.lane.b32.xlu0 %v224, 127
      %v628 = vpop.permute.xlu0 %627
      %629 = vrot.lane.b32.xlu0 %v225, 127
      %v630 = vpop.permute.xlu0 %629
      %631 = vrot.lane.b32.xlu0 %v254, 127
      %v632 = vpop.permute.xlu0 %631
      %633 = vrot.lane.b32.xlu0 %v255, 127
      %v634 = vpop.permute.xlu0 %633
      %635 = vrot.lane.b32.xlu0 %v256, 127
      %v636 = vpop.permute.xlu0 %635
      %637 = vrot.lane.b32.xlu0 %v257, 127
      %v638 = vpop.permute.xlu0 %637
      %639 = vrot.lane.b32.xlu0 %v286, 127
      %v640 = vpop.permute.xlu0 %639
      %641 = vrot.lane.b32.xlu0 %v287, 127
      %v642 = vpop.permute.xlu0 %641
      %643 = vrot.lane.b32.xlu0 %v288, 127
      %v644 = vpop.permute.xlu0 %643
      %645 = vrot.lane.b32.xlu0 %v289, 127
      %v646 = vpop.permute.xlu0 %645
      %647 = vrot.lane.b32.xlu0 %v318, 127
      %v648 = vpop.permute.xlu0 %647
      %649 = vrot.lane.b32.xlu0 %v319, 127
      %v650 = vpop.permute.xlu0 %649
      %651 = vrot.lane.b32.xlu0 %v320, 127
      %v652 = vpop.permute.xlu0 %651
      %653 = vrot.lane.b32.xlu0 %v321, 127
      %v654 = vpop.permute.xlu0 %653
      %655 = vrot.lane.b32.xlu0 %v350, 127
      %v656 = vpop.permute.xlu0 %655
      %657 = vrot.lane.b32.xlu0 %v351, 127
      %v658 = vpop.permute.xlu0 %657
      %659 = vrot.lane.b32.xlu0 %v352, 127
      %v660 = vpop.permute.xlu0 %659
      %661 = vrot.lane.b32.xlu0 %v353, 127
      %v662 = vpop.permute.xlu0 %661
      %663 = vrot.lane.b32.xlu0 %v382, 127
      %v664 = vpop.permute.xlu0 %663
      %665 = vrot.lane.b32.xlu0 %v383, 127
      %v666 = vpop.permute.xlu0 %665
      %667 = vrot.lane.b32.xlu0 %v384, 127
      %v668 = vpop.permute.xlu0 %667
      %669 = vrot.lane.b32.xlu0 %v385, 127
      %v670 = vpop.permute.xlu0 %669
      %671 = vrot.lane.b32.xlu0 %v414, 127
      %v672 = vpop.permute.xlu0 %671
      %673 = vrot.lane.b32.xlu0 %v415, 127
      %v674 = vpop.permute.xlu0 %673
      %675 = vrot.lane.b32.xlu0 %v416, 127
      %v676 = vpop.permute.xlu0 %675
      %677 = vrot.lane.b32.xlu0 %v417, 127
      %v678 = vpop.permute.xlu0 %677
      %679 = vrot.lane.b32.xlu0 %v446, 127
      %v680 = vpop.permute.xlu0 %679
      %681 = vrot.lane.b32.xlu0 %v447, 127
      %v682 = vpop.permute.xlu0 %681
      %683 = vrot.lane.b32.xlu0 %v448, 127
      %v684 = vpop.permute.xlu0 %683
      %685 = vrot.lane.b32.xlu0 %v449, 127
      %v686 = vpop.permute.xlu0 %685
      %vm719 = vcmask 121856
      %v720 = vsel %vm719, %v624, %v222
      %v721 = vsel %vm719, %v626, %v223
      %v722 = vsel %vm719, %v628, %v224
      %v723 = vsel %vm719, %v630, %v225
      %v724 = vsel %vm719, %v632, %v254
      %v725 = vsel %vm719, %v634, %v255
      %v726 = vsel %vm719, %v636, %v256
      %v727 = vsel %vm719, %v638, %v257
      %v728 = vsel %vm719, %v640, %v286
      %v729 = vsel %vm719, %v642, %v287
      %v730 = vsel %vm719, %v644, %v288
      %v731 = vsel %vm719, %v646, %v289
      %v732 = vsel %vm719, %v648, %v318
      %v733 = vsel %vm719, %v650, %v319
      %v734 = vsel %vm719, %v652, %v320
      %v735 = vsel %vm719, %v654, %v321
      %v736 = vsel %vm719, %v656, %v350
      %v737 = vsel %vm719, %v658, %v351
      %v738 = vsel %vm719, %v660, %v352
      %v739 = vsel %vm719, %v662, %v353
      %v740 = vsel %vm719, %v664, %v382
      %v741 = vsel %vm719, %v666, %v383
      %v742 = vsel %vm719, %v668, %v384
      %v743 = vsel %vm719, %v670, %v385
      %v744 = vsel %vm719, %v672, %v414
      %v745 = vsel %vm719, %v674, %v415
      %v746 = vsel %vm719, %v676, %v416
      %v747 = vsel %vm719, %v678, %v417
      %v748 = vsel %vm719, %v680, %v446
      %v749 = vsel %vm719, %v682, %v447
      %v750 = vsel %vm719, %v684, %v448
      %v751 = vsel %vm719, %v686, %v449
      %v752 = vmax.f32 %v591, %v222
      %v753 = vmax.f32 %v592, %v223
      %v754 = vmax.f32 %v593, %v224
      %v755 = vmax.f32 %v594, %v225
      %v756 = vmax.f32 %v595, %v254
      %v757 = vmax.f32 %v596, %v255
      %v758 = vmax.f32 %v597, %v256
      %v759 = vmax.f32 %v598, %v257
      %v760 = vmax.f32 %v599, %v286
      %v761 = vmax.f32 %v600, %v287
      %v762 = vmax.f32 %v601, %v288
      %v763 = vmax.f32 %v602, %v289
      %v764 = vmax.f32 %v603, %v318
      %v765 = vmax.f32 %v604, %v319
      %v766 = vmax.f32 %v605, %v320
      %v767 = vmax.f32 %v606, %v321
      %v768 = vmax.f32 %v607, %v350
      %v769 = vmax.f32 %v608, %v351
      %v770 = vmax.f32 %v609, %v352
      %v771 = vmax.f32 %v610, %v353
      %v772 = vmax.f32 %v611, %v382
      %v773 = vmax.f32 %v612, %v383
      %v774 = vmax.f32 %v613, %v384
      %v775 = vmax.f32 %v614, %v385
      %v776 = vmax.f32 %v615, %v414
      %v777 = vmax.f32 %v616, %v415
      %v778 = vmax.f32 %v617, %v416
      %v779 = vmax.f32 %v618, %v417
      %v780 = vmax.f32 %v619, %v446
      %v781 = vmax.f32 %v620, %v447
      %v782 = vmax.f32 %v621, %v448
      %v783 = vmax.f32 %v622, %v449
      %v784 = vmax.f32 %v752, %v720
      %v785 = vmax.f32 %v753, %v721
      %v786 = vmax.f32 %v754, %v722
      %v787 = vmax.f32 %v755, %v723
      %v788 = vmax.f32 %v756, %v724
      %v789 = vmax.f32 %v757, %v725
      %v790 = vmax.f32 %v758, %v726
      %v791 = vmax.f32 %v759, %v727
      %v792 = vmax.f32 %v760, %v728
      %v793 = vmax.f32 %v761, %v729
      %v794 = vmax.f32 %v762, %v730
      %v795 = vmax.f32 %v763, %v731
      %v796 = vmax.f32 %v764, %v732
      %v797 = vmax.f32 %v765, %v733
      %v798 = vmax.f32 %v766, %v734
      %v799 = vmax.f32 %v767, %v735
      %v800 = vmax.f32 %v768, %v736
      %v801 = vmax.f32 %v769, %v737
      %v802 = vmax.f32 %v770, %v738
      %v803 = vmax.f32 %v771, %v739
      %v804 = vmax.f32 %v772, %v740
      %v805 = vmax.f32 %v773, %v741
      %v806 = vmax.f32 %v774, %v742
      %v807 = vmax.f32 %v775, %v743
      %v808 = vmax.f32 %v776, %v744
      %v809 = vmax.f32 %v777, %v745
      %v810 = vmax.f32 %v778, %v746
      %v811 = vmax.f32 %v779, %v747
      %v812 = vmax.f32 %v780, %v748
      %v813 = vmax.f32 %v781, %v749
      %v814 = vmax.f32 %v782, %v750
      %v815 = vmax.f32 %v783, %v751
      %v816 = vld [vmem:[%s1] sm:$0xff]
      %v817 = vld [vmem:[%s1 + $0x8] sm:$0xff]
      %vm818 = vcmask 130048
      %v820 = vsel %vm818, %v784, 0
      %v823 = vsel %vm818, %v785, 0
      %v826 = vsel %vm818, %v786, 0
      %v829 = vsel %vm818, %v787, 0
      %v832 = vsel %vm818, %v788, 0
      %v835 = vsel %vm818, %v789, 0
      %v838 = vsel %vm818, %v790, 0
      %v841 = vsel %vm818, %v791, 0
      %v844 = vsel %vm818, %v792, 0
      %v847 = vsel %vm818, %v793, 0
      %v850 = vsel %vm818, %v794, 0
      %v853 = vsel %vm818, %v795, 0
      %v856 = vsel %vm818, %v796, 0
      %v859 = vsel %vm818, %v797, 0
      %v862 = vsel %vm818, %v798, 0
      %v865 = vsel %vm818, %v799, 0
      %v868 = vsel %vm818, %v800, 0
      %v871 = vsel %vm818, %v801, 0
      %v874 = vsel %vm818, %v802, 0
      %v877 = vsel %vm818, %v803, 0
      %v880 = vsel %vm818, %v804, 0
      %v883 = vsel %vm818, %v805, 0
      %v886 = vsel %vm818, %v806, 0
      %v889 = vsel %vm818, %v807, 0
      %v892 = vsel %vm818, %v808, 0
      %v895 = vsel %vm818, %v809, 0
      %v898 = vsel %vm818, %v810, 0
      %v901 = vsel %vm818, %v811, 0
      %v904 = vsel %vm818, %v812, 0
      %v907 = vsel %vm818, %v813, 0
      %v910 = vsel %vm818, %v814, 0
      %v913 = vsel %vm818, %v815, 0
      %915 = vmatprep.subr.mxu0 0.0
      %916 = vmatpush1.msra.mxu0 0.0
      %917 = vmatprep.subr.mxu0 0.0
      %918 = vmatpush1.msra.mxu0 0.0
      %919 = vmatprep.subr.mxu0 0.0
      %920 = vmatpush1.msra.mxu0 0.0
      %921 = vmatprep.subr.mxu0 0.0
      %922 = vmatpush1.msra.mxu0 0.0
      %923 = vmatprep.subr.mxu0 0.0
      %924 = vmatpush1.msra.mxu0 0.0
      %925 = vmatprep.subr.mxu0 0.0
      %926 = vmatpush1.msra.mxu0 0.0
      %927 = vmatprep.subr.mxu0 0.0
      %928 = vmatpush1.msra.mxu0 0.0
      %929 = vmatprep.subr.mxu0 0.0
      %930 = vmatpush1.msra.mxu0 0.0
      %931 = vmatprep.subr.mxu0 0.0
      %932 = vmatpush1.msra.mxu0 0.0
      %933 = vmatprep.subr.mxu0 0.0
      %934 = vmatpush1.msra.mxu0 0.0
      %935 = vmatprep.subr.mxu0 0.0
      %936 = vmatpush1.msra.mxu0 0.0
      %937 = vmatprep.subr.mxu0 0.0
      %938 = vmatpush1.msra.mxu0 0.0
      %939 = vmatprep.subr.mxu0 0.0
      %940 = vmatpush1.msra.mxu0 0.0
      %941 = vmatprep.subr.mxu0 0.0
      %942 = vmatpush1.msra.mxu0 0.0
      %943 = vmatprep.subr.mxu0 0.0
      %944 = vmatpush1.msra.mxu0 %v817
      %945 = vmatprep.subr.mxu0 0.0
      %946 = vmatpush1.msra.mxu0 %v816
      %947 = vmatprep.subr.mxu0 0.0
      %948 = vmatpush2.msra.mxu0 0.0
      %949 = vmatprep.subr.mxu0 0.0
      %950 = vmatpush2.msra.mxu0 0.0
      %951 = vmatprep.subr.mxu0 0.0
      %952 = vmatpush2.msra.mxu0 0.0
      %953 = vmatprep.subr.mxu0 0.0
      %954 = vmatpush2.msra.mxu0 0.0
      %955 = vmatprep.subr.mxu0 0.0
      %956 = vmatpush2.msra.mxu0 0.0
      %957 = vmatprep.subr.mxu0 0.0
      %958 = vmatpush2.msra.mxu0 0.0
      %959 = vmatprep.subr.mxu0 0.0
      %960 = vmatpush2.msra.mxu0 0.0
      %961 = vmatprep.subr.mxu0 0.0
      %962 = vmatpush2.msra.mxu0 0.0
      %963 = vmatprep.subr.mxu0 0.0
      %964 = vmatpush2.msra.mxu0 0.0
      %965 = vmatprep.subr.mxu0 0.0
      %966 = vmatpush2.msra.mxu0 0.0
      %967 = vmatprep.subr.mxu0 0.0
      %968 = vmatpush2.msra.mxu0 0.0
      %969 = vmatprep.subr.mxu0 0.0
      %970 = vmatpush2.msra.mxu0 0.0
      %971 = vmatprep.subr.mxu0 0.0
      %972 = vmatpush2.msra.mxu0 0.0
      %973 = vmatprep.subr.mxu0 0.0
      %974 = vmatpush2.msra.mxu0 0.0
      %975 = vmatprep.subr.mxu0 0.0
      %976 = vmatpush2.msra.mxu0 0.0
      %977 = vmatprep.subr.mxu0 0.0
      %978 = vmatpush2.msra.mxu0 0.0
      %979 = vmatprep.mubr.f32.mxu0 0.0
      %980 = vmatmul.mubr.f32.gmra.mxu0 %v820
      %v981 = vpop.f32.mrf.mxu0
      %v982 = vadd.f32 0.0, %v981
      %v983 = vpop.f32.mrf.mxu0
      %984 = vmatprep.mubr.f32.mxu0 0.0
      %985 = vmatmul.mubr.f32.gmra.mxu0 %v823
      %v986 = vpop.f32.mrf.mxu0
      %v987 = vadd.f32 0.0, %v986
      %v988 = vpop.f32.mrf.mxu0
      %989 = vmatprep.mubr.f32.mxu0 0.0
      %990 = vmatmul.mubr.f32.gmra.mxu0 %v826
      %v991 = vpop.f32.mrf.mxu0
      %v992 = vadd.f32 0.0, %v991
      %v993 = vpop.f32.mrf.mxu0
      %994 = vmatprep.mubr.f32.mxu0 0.0
      %995 = vmatmul.mubr.f32.gmra.mxu0 %v829
      %v996 = vpop.f32.mrf.mxu0
      %v997 = vadd.f32 0.0, %v996
      %v998 = vpop.f32.mrf.mxu0
      %999 = vmatprep.mubr.f32.mxu0 0.0
      %1000 = vmatmul.mubr.f32.gmra.mxu0 %v832
      %v1001 = vpop.f32.mrf.mxu0
      %v1002 = vadd.f32 0.0, %v1001
      %v1003 = vpop.f32.mrf.mxu0
      %1004 = vmatprep.mubr.f32.mxu0 0.0
      %1005 = vmatmul.mubr.f32.gmra.mxu0 %v835
      %v1006 = vpop.f32.mrf.mxu0
      %v1007 = vadd.f32 0.0, %v1006
      %v1008 = vpop.f32.mrf.mxu0
      %1009 = vmatprep.mubr.f32.mxu0 0.0
      %1010 = vmatmul.mubr.f32.gmra.mxu0 %v838
      %v1011 = vpop.f32.mrf.mxu0
      %v1012 = vadd.f32 0.0, %v1011
      %v1013 = vpop.f32.mrf.mxu0
      %1014 = vmatprep.mubr.f32.mxu0 0.0
      %1015 = vmatmul.mubr.f32.gmra.mxu0 %v841
      %v1016 = vpop.f32.mrf.mxu0
      %v1017 = vadd.f32 0.0, %v1016
      %v1018 = vpop.f32.mrf.mxu0
      %1019 = vmatprep.mubr.f32.mxu0 0.0
      %1020 = vmatmul.mubr.f32.gmra.mxu0 %v844
      %v1021 = vpop.f32.mrf.mxu0
      %v1022 = vadd.f32 0.0, %v1021
      %v1023 = vpop.f32.mrf.mxu0
      %1024 = vmatprep.mubr.f32.mxu0 0.0
      %1025 = vmatmul.mubr.f32.gmra.mxu0 %v847
      %v1026 = vpop.f32.mrf.mxu0
      %v1027 = vadd.f32 0.0, %v1026
      %v1028 = vpop.f32.mrf.mxu0
      %1029 = vmatprep.mubr.f32.mxu0 0.0
      %1030 = vmatmul.mubr.f32.gmra.mxu0 %v850
      %v1031 = vpop.f32.mrf.mxu0
      %v1032 = vadd.f32 0.0, %v1031
      %v1033 = vpop.f32.mrf.mxu0
      %1034 = vmatprep.mubr.f32.mxu0 0.0
      %1035 = vmatmul.mubr.f32.gmra.mxu0 %v853
      %v1036 = vpop.f32.mrf.mxu0
      %v1037 = vadd.f32 0.0, %v1036
      %v1038 = vpop.f32.mrf.mxu0
      %1039 = vmatprep.mubr.f32.mxu0 0.0
      %1040 = vmatmul.mubr.f32.gmra.mxu0 %v856
      %v1041 = vpop.f32.mrf.mxu0
      %v1042 = vadd.f32 0.0, %v1041
      %v1043 = vpop.f32.mrf.mxu0
      %1044 = vmatprep.mubr.f32.mxu0 0.0
      %1045 = vmatmul.mubr.f32.gmra.mxu0 %v859
      %v1046 = vpop.f32.mrf.mxu0
      %v1047 = vadd.f32 0.0, %v1046
      %v1048 = vpop.f32.mrf.mxu0
      %1049 = vmatprep.mubr.f32.mxu0 0.0
      %1050 = vmatmul.mubr.f32.gmra.mxu0 %v862
      %v1051 = vpop.f32.mrf.mxu0
      %v1052 = vadd.f32 0.0, %v1051
      %v1053 = vpop.f32.mrf.mxu0
      %1054 = vmatprep.mubr.f32.mxu0 0.0
      %1055 = vmatmul.mubr.f32.gmra.mxu0 %v865
      %v1056 = vpop.f32.mrf.mxu0
      %v1057 = vadd.f32 0.0, %v1056
      %v1058 = vpop.f32.mrf.mxu0
      %1059 = vmatprep.mubr.f32.mxu0 0.0
      %1060 = vmatmul.mubr.f32.gmra.mxu0 %v868
      %v1061 = vpop.f32.mrf.mxu0
      %v1062 = vadd.f32 0.0, %v1061
      %v1063 = vpop.f32.mrf.mxu0
      %1064 = vmatprep.mubr.f32.mxu0 0.0
      %1065 = vmatmul.mubr.f32.gmra.mxu0 %v871
      %v1066 = vpop.f32.mrf.mxu0
      %v1067 = vadd.f32 0.0, %v1066
      %v1068 = vpop.f32.mrf.mxu0
      %1069 = vmatprep.mubr.f32.mxu0 0.0
      %1070 = vmatmul.mubr.f32.gmra.mxu0 %v874
      %v1071 = vpop.f32.mrf.mxu0
      %v1072 = vadd.f32 0.0, %v1071
      %v1073 = vpop.f32.mrf.mxu0
      %1074 = vmatprep.mubr.f32.mxu0 0.0
      %1075 = vmatmul.mubr.f32.gmra.mxu0 %v877
      %v1076 = vpop.f32.mrf.mxu0
      %v1077 = vadd.f32 0.0, %v1076
      %v1078 = vpop.f32.mrf.mxu0
      %1079 = vmatprep.mubr.f32.mxu0 0.0
      %1080 = vmatmul.mubr.f32.gmra.mxu0 %v880
      %v1081 = vpop.f32.mrf.mxu0
      %v1082 = vadd.f32 0.0, %v1081
      %v1083 = vpop.f32.mrf.mxu0
      %1084 = vmatprep.mubr.f32.mxu0 0.0
      %1085 = vmatmul.mubr.f32.gmra.mxu0 %v883
      %v1086 = vpop.f32.mrf.mxu0
      %v1087 = vadd.f32 0.0, %v1086
      %v1088 = vpop.f32.mrf.mxu0
      %1089 = vmatprep.mubr.f32.mxu0 0.0
      %1090 = vmatmul.mubr.f32.gmra.mxu0 %v886
      %v1091 = vpop.f32.mrf.mxu0
      %v1092 = vadd.f32 0.0, %v1091
      %v1093 = vpop.f32.mrf.mxu0
      %1094 = vmatprep.mubr.f32.mxu0 0.0
      %1095 = vmatmul.mubr.f32.gmra.mxu0 %v889
      %v1096 = vpop.f32.mrf.mxu0
      %v1097 = vadd.f32 0.0, %v1096
      %v1098 = vpop.f32.mrf.mxu0
      %1099 = vmatprep.mubr.f32.mxu0 0.0
      %1100 = vmatmul.mubr.f32.gmra.mxu0 %v892
      %v1101 = vpop.f32.mrf.mxu0
      %v1102 = vadd.f32 0.0, %v1101
      %v1103 = vpop.f32.mrf.mxu0
      %1104 = vmatprep.mubr.f32.mxu0 0.0
      %1105 = vmatmul.mubr.f32.gmra.mxu0 %v895
      %v1106 = vpop.f32.mrf.mxu0
      %v1107 = vadd.f32 0.0, %v1106
      %v1108 = vpop.f32.mrf.mxu0
      %1109 = vmatprep.mubr.f32.mxu0 0.0
      %1110 = vmatmul.mubr.f32.gmra.mxu0 %v898
      %v1111 = vpop.f32.mrf.mxu0
      %v1112 = vadd.f32 0.0, %v1111
      %v1113 = vpop.f32.mrf.mxu0
      %1114 = vmatprep.mubr.f32.mxu0 0.0
      %1115 = vmatmul.mubr.f32.gmra.mxu0 %v901
      %v1116 = vpop.f32.mrf.mxu0
      %v1117 = vadd.f32 0.0, %v1116
      %v1118 = vpop.f32.mrf.mxu0
      %1119 = vmatprep.mubr.f32.mxu0 0.0
      %1120 = vmatmul.mubr.f32.gmra.mxu0 %v904
      %v1121 = vpop.f32.mrf.mxu0
      %v1122 = vadd.f32 0.0, %v1121
      %v1123 = vpop.f32.mrf.mxu0
      %1124 = vmatprep.mubr.f32.mxu0 0.0
      %1125 = vmatmul.mubr.f32.gmra.mxu0 %v907
      %v1126 = vpop.f32.mrf.mxu0
      %v1127 = vadd.f32 0.0, %v1126
      %v1128 = vpop.f32.mrf.mxu0
      %1129 = vmatprep.mubr.f32.mxu0 0.0
      %1130 = vmatmul.mubr.f32.gmra.mxu0 %v910
      %v1131 = vpop.f32.mrf.mxu0
      %v1132 = vadd.f32 0.0, %v1131
      %v1133 = vpop.f32.mrf.mxu0
      %1134 = vmatprep.mubr.f32.mxu0 0.0
      %1135 = vmatmul.mubr.f32.gmra.mxu0 %v913
      %v1136 = vpop.f32.mrf.mxu0
      %v1137 = vadd.f32 0.0, %v1136
      %v1138 = vpop.f32.mrf.mxu0
      %1139 = vdwg.mxu0
      %1140 = vxpose.xlu0.b32.start [1/16] %v982, 128
      %1141 = vxpose.xlu0.b32.cont [2/16] %v987, 128
      %1142 = vxpose.xlu0.b32.cont [3/16] %v992, 128
      %1143 = vxpose.xlu0.b32.cont [4/16] %v997, 128
      %1144 = vxpose.xlu0.b32.cont [5/16] 0.0, 128
      %1145 = vxpose.xlu0.b32.cont [6/16] 0.0, 128
      %1146 = vxpose.xlu0.b32.cont [7/16] 0.0, 128
      %1147 = vxpose.xlu0.b32.cont [8/16] 0.0, 128
      %1148 = vxpose.xlu0.b32.cont [9/16] 0.0, 128
      %1149 = vxpose.xlu0.b32.cont [10/16] 0.0, 128
      %1150 = vxpose.xlu0.b32.cont [11/16] 0.0, 128
      %1151 = vxpose.xlu0.b32.cont [12/16] 0.0, 128
      %1152 = vxpose.xlu0.b32.cont [13/16] 0.0, 128
      %1153 = vxpose.xlu0.b32.cont [14/16] 0.0, 128
      %1154 = vxpose.xlu0.b32.cont [15/16] 0.0, 128
      %1155 = vxpose.xlu0.b32.end [16/16] 0.0, 128
      %v1156 = vpop.trf.xlu0
      %v1157 = vpop.trf.xlu0
      %v1158 = vpop.trf.xlu0
      %v1159 = vpop.trf.xlu0
      %v1160 = vpop.trf.xlu0
      %v1161 = vpop.trf.xlu0
      %v1162 = vpop.trf.xlu0
      %v1163 = vpop.trf.xlu0
      %v1164 = vpop.trf.xlu0
      %v1165 = vpop.trf.xlu0
      %v1166 = vpop.trf.xlu0
      %v1167 = vpop.trf.xlu0
      %v1168 = vpop.trf.xlu0
      %v1169 = vpop.trf.xlu0
      %v1170 = vpop.trf.xlu0
      %v1171 = vpop.trf.xlu0
      %1172 = vxpose.xlu0.b32.start [1/16] %v1002, 128
      %1173 = vxpose.xlu0.b32.cont [2/16] %v1007, 128
      %1174 = vxpose.xlu0.b32.cont [3/16] %v1012, 128
      %1175 = vxpose.xlu0.b32.cont [4/16] %v1017, 128
      %1176 = vxpose.xlu0.b32.cont [5/16] 0.0, 128
      %1177 = vxpose.xlu0.b32.cont [6/16] 0.0, 128
      %1178 = vxpose.xlu0.b32.cont [7/16] 0.0, 128
      %1179 = vxpose.xlu0.b32.cont [8/16] 0.0, 128
      %1180 = vxpose.xlu0.b32.cont [9/16] 0.0, 128
      %1181 = vxpose.xlu0.b32.cont [10/16] 0.0, 128
      %1182 = vxpose.xlu0.b32.cont [11/16] 0.0, 128
      %1183 = vxpose.xlu0.b32.cont [12/16] 0.0, 128
      %1184 = vxpose.xlu0.b32.cont [13/16] 0.0, 128
      %1185 = vxpose.xlu0.b32.cont [14/16] 0.0, 128
      %1186 = vxpose.xlu0.b32.cont [15/16] 0.0, 128
      %1187 = vxpose.xlu0.b32.end [16/16] 0.0, 128
      %v1188 = vpop.trf.xlu0
      %v1189 = vpop.trf.xlu0
      %v1190 = vpop.trf.xlu0
      %v1191 = vpop.trf.xlu0
      %v1192 = vpop.trf.xlu0
      %v1193 = vpop.trf.xlu0
      %v1194 = vpop.trf.xlu0
      %v1195 = vpop.trf.xlu0
      %v1196 = vpop.trf.xlu0
      %v1197 = vpop.trf.xlu0
      %v1198 = vpop.trf.xlu0
      %v1199 = vpop.trf.xlu0
      %v1200 = vpop.trf.xlu0
      %v1201 = vpop.trf.xlu0
      %v1202 = vpop.trf.xlu0
      %v1203 = vpop.trf.xlu0
      %1204 = vxpose.xlu0.b32.start [1/16] %v1022, 128
      %1205 = vxpose.xlu0.b32.cont [2/16] %v1027, 128
      %1206 = vxpose.xlu0.b32.cont [3/16] %v1032, 128
      %1207 = vxpose.xlu0.b32.cont [4/16] %v1037, 128
      %1208 = vxpose.xlu0.b32.cont [5/16] 0.0, 128
      %1209 = vxpose.xlu0.b32.cont [6/16] 0.0, 128
      %1210 = vxpose.xlu0.b32.cont [7/16] 0.0, 128
      %1211 = vxpose.xlu0.b32.cont [8/16] 0.0, 128
      %1212 = vxpose.xlu0.b32.cont [9/16] 0.0, 128
      %1213 = vxpose.xlu0.b32.cont [10/16] 0.0, 128
      %1214 = vxpose.xlu0.b32.cont [11/16] 0.0, 128
      %1215 = vxpose.xlu0.b32.cont [12/16] 0.0, 128
      %1216 = vxpose.xlu0.b32.cont [13/16] 0.0, 128
      %1217 = vxpose.xlu0.b32.cont [14/16] 0.0, 128
      %1218 = vxpose.xlu0.b32.cont [15/16] 0.0, 128
      %1219 = vxpose.xlu0.b32.end [16/16] 0.0, 128
      %v1220 = vpop.trf.xlu0
      %v1221 = vpop.trf.xlu0
      %v1222 = vpop.trf.xlu0
      %v1223 = vpop.trf.xlu0
      %v1224 = vpop.trf.xlu0
      %v1225 = vpop.trf.xlu0
      %v1226 = vpop.trf.xlu0
      %v1227 = vpop.trf.xlu0
      %v1228 = vpop.trf.xlu0
      %v1229 = vpop.trf.xlu0
      %v1230 = vpop.trf.xlu0
      %v1231 = vpop.trf.xlu0
      %v1232 = vpop.trf.xlu0
      %v1233 = vpop.trf.xlu0
      %v1234 = vpop.trf.xlu0
      %v1235 = vpop.trf.xlu0
      %1236 = vxpose.xlu0.b32.start [1/16] %v1042, 128
      %1237 = vxpose.xlu0.b32.cont [2/16] %v1047, 128
      %1238 = vxpose.xlu0.b32.cont [3/16] %v1052, 128
      %1239 = vxpose.xlu0.b32.cont [4/16] %v1057, 128
      %1240 = vxpose.xlu0.b32.cont [5/16] 0.0, 128
      %1241 = vxpose.xlu0.b32.cont [6/16] 0.0, 128
      %1242 = vxpose.xlu0.b32.cont [7/16] 0.0, 128
      %1243 = vxpose.xlu0.b32.cont [8/16] 0.0, 128
      %1244 = vxpose.xlu0.b32.cont [9/16] 0.0, 128
      %1245 = vxpose.xlu0.b32.cont [10/16] 0.0, 128
      %1246 = vxpose.xlu0.b32.cont [11/16] 0.0, 128
      %1247 = vxpose.xlu0.b32.cont [12/16] 0.0, 128
      %1248 = vxpose.xlu0.b32.cont [13/16] 0.0, 128
      %1249 = vxpose.xlu0.b32.cont [14/16] 0.0, 128
      %1250 = vxpose.xlu0.b32.cont [15/16] 0.0, 128
      %1251 = vxpose.xlu0.b32.end [16/16] 0.0, 128
      %v1252 = vpop.trf.xlu0
      %v1253 = vpop.trf.xlu0
      %v1254 = vpop.trf.xlu0
      %v1255 = vpop.trf.xlu0
      %v1256 = vpop.trf.xlu0
      %v1257 = vpop.trf.xlu0
      %v1258 = vpop.trf.xlu0
      %v1259 = vpop.trf.xlu0
      %v1260 = vpop.trf.xlu0
      %v1261 = vpop.trf.xlu0
      %v1262 = vpop.trf.xlu0
      %v1263 = vpop.trf.xlu0
      %v1264 = vpop.trf.xlu0
      %v1265 = vpop.trf.xlu0
      %v1266 = vpop.trf.xlu0
      %v1267 = vpop.trf.xlu0
      %1268 = vxpose.xlu0.b32.start [1/16] %v1062, 128
      %1269 = vxpose.xlu0.b32.cont [2/16] %v1067, 128
      %1270 = vxpose.xlu0.b32.cont [3/16] %v1072, 128
      %1271 = vxpose.xlu0.b32.cont [4/16] %v1077, 128
      %1272 = vxpose.xlu0.b32.cont [5/16] 0.0, 128
      %1273 = vxpose.xlu0.b32.cont [6/16] 0.0, 128
      %1274 = vxpose.xlu0.b32.cont [7/16] 0.0, 128
      %1275 = vxpose.xlu0.b32.cont [8/16] 0.0, 128
      %1276 = vxpose.xlu0.b32.cont [9/16] 0.0, 128
      %1277 = vxpose.xlu0.b32.cont [10/16] 0.0, 128
      %1278 = vxpose.xlu0.b32.cont [11/16] 0.0, 128
      %1279 = vxpose.xlu0.b32.cont [12/16] 0.0, 128
      %1280 = vxpose.xlu0.b32.cont [13/16] 0.0, 128
      %1281 = vxpose.xlu0.b32.cont [14/16] 0.0, 128
      %1282 = vxpose.xlu0.b32.cont [15/16] 0.0, 128
      %1283 = vxpose.xlu0.b32.end [16/16] 0.0, 128
      %v1284 = vpop.trf.xlu0
      %v1285 = vpop.trf.xlu0
      %v1286 = vpop.trf.xlu0
      %v1287 = vpop.trf.xlu0
      %v1288 = vpop.trf.xlu0
      %v1289 = vpop.trf.xlu0
      %v1290 = vpop.trf.xlu0
      %v1291 = vpop.trf.xlu0
      %v1292 = vpop.trf.xlu0
      %v1293 = vpop.trf.xlu0
      %v1294 = vpop.trf.xlu0
      %v1295 = vpop.trf.xlu0
      %v1296 = vpop.trf.xlu0
      %v1297 = vpop.trf.xlu0
      %v1298 = vpop.trf.xlu0
      %v1299 = vpop.trf.xlu0
      %1300 = vxpose.xlu0.b32.start [1/16] %v1082, 128
      %1301 = vxpose.xlu0.b32.cont [2/16] %v1087, 128
      %1302 = vxpose.xlu0.b32.cont [3/16] %v1092, 128
      %1303 = vxpose.xlu0.b32.cont [4/16] %v1097, 128
      %1304 = vxpose.xlu0.b32.cont [5/16] 0.0, 128
      %1305 = vxpose.xlu0.b32.cont [6/16] 0.0, 128
      %1306 = vxpose.xlu0.b32.cont [7/16] 0.0, 128
      %1307 = vxpose.xlu0.b32.cont [8/16] 0.0, 128
      %1308 = vxpose.xlu0.b32.cont [9/16] 0.0, 128
      %1309 = vxpose.xlu0.b32.cont [10/16] 0.0, 128
      %1310 = vxpose.xlu0.b32.cont [11/16] 0.0, 128
      %1311 = vxpose.xlu0.b32.cont [12/16] 0.0, 128
      %1312 = vxpose.xlu0.b32.cont [13/16] 0.0, 128
      %1313 = vxpose.xlu0.b32.cont [14/16] 0.0, 128
      %1314 = vxpose.xlu0.b32.cont [15/16] 0.0, 128
      %1315 = vxpose.xlu0.b32.end [16/16] 0.0, 128
      %v1316 = vpop.trf.xlu0
      %v1317 = vpop.trf.xlu0
      %v1318 = vpop.trf.xlu0
      %v1319 = vpop.trf.xlu0
      %v1320 = vpop.trf.xlu0
      %v1321 = vpop.trf.xlu0
      %v1322 = vpop.trf.xlu0
      %v1323 = vpop.trf.xlu0
      %v1324 = vpop.trf.xlu0
      %v1325 = vpop.trf.xlu0
      %v1326 = vpop.trf.xlu0
      %v1327 = vpop.trf.xlu0
      %v1328 = vpop.trf.xlu0
      %v1329 = vpop.trf.xlu0
      %v1330 = vpop.trf.xlu0
      %v1331 = vpop.trf.xlu0
      %1332 = vxpose.xlu0.b32.start [1/16] %v1102, 128
      %1333 = vxpose.xlu0.b32.cont [2/16] %v1107, 128
      %1334 = vxpose.xlu0.b32.cont [3/16] %v1112, 128
      %1335 = vxpose.xlu0.b32.cont [4/16] %v1117, 128
      %1336 = vxpose.xlu0.b32.cont [5/16] 0.0, 128
      %1337 = vxpose.xlu0.b32.cont [6/16] 0.0, 128
      %1338 = vxpose.xlu0.b32.cont [7/16] 0.0, 128
      %1339 = vxpose.xlu0.b32.cont [8/16] 0.0, 128
      %1340 = vxpose.xlu0.b32.cont [9/16] 0.0, 128
      %1341 = vxpose.xlu0.b32.cont [10/16] 0.0, 128
      %1342 = vxpose.xlu0.b32.cont [11/16] 0.0, 128
      %1343 = vxpose.xlu0.b32.cont [12/16] 0.0, 128
      %1344 = vxpose.xlu0.b32.cont [13/16] 0.0, 128
      %1345 = vxpose.xlu0.b32.cont [14/16] 0.0, 128
      %1346 = vxpose.xlu0.b32.cont [15/16] 0.0, 128
      %1347 = vxpose.xlu0.b32.end [16/16] 0.0, 128
      %v1348 = vpop.trf.xlu0
      %v1349 = vpop.trf.xlu0
      %v1350 = vpop.trf.xlu0
      %v1351 = vpop.trf.xlu0
      %v1352 = vpop.trf.xlu0
      %v1353 = vpop.trf.xlu0
      %v1354 = vpop.trf.xlu0
      %v1355 = vpop.trf.xlu0
      %v1356 = vpop.trf.xlu0
      %v1357 = vpop.trf.xlu0
      %v1358 = vpop.trf.xlu0
      %v1359 = vpop.trf.xlu0
      %v1360 = vpop.trf.xlu0
      %v1361 = vpop.trf.xlu0
      %v1362 = vpop.trf.xlu0
      %v1363 = vpop.trf.xlu0
      %1364 = vxpose.xlu0.b32.start [1/16] %v1122, 128
      %1365 = vxpose.xlu0.b32.cont [2/16] %v1127, 128
      %1366 = vxpose.xlu0.b32.cont [3/16] %v1132, 128
      %1367 = vxpose.xlu0.b32.cont [4/16] %v1137, 128
      %1368 = vxpose.xlu0.b32.cont [5/16] 0.0, 128
      %1369 = vxpose.xlu0.b32.cont [6/16] 0.0, 128
      %1370 = vxpose.xlu0.b32.cont [7/16] 0.0, 128
      %1371 = vxpose.xlu0.b32.cont [8/16] 0.0, 128
      %1372 = vxpose.xlu0.b32.cont [9/16] 0.0, 128
      %1373 = vxpose.xlu0.b32.cont [10/16] 0.0, 128
      %1374 = vxpose.xlu0.b32.cont [11/16] 0.0, 128
      %1375 = vxpose.xlu0.b32.cont [12/16] 0.0, 128
      %1376 = vxpose.xlu0.b32.cont [13/16] 0.0, 128
      %1377 = vxpose.xlu0.b32.cont [14/16] 0.0, 128
      %1378 = vxpose.xlu0.b32.cont [15/16] 0.0, 128
      %1379 = vxpose.xlu0.b32.end [16/16] 0.0, 128
      %v1380 = vpop.trf.xlu0
      %v1381 = vpop.trf.xlu0
      %v1382 = vpop.trf.xlu0
      %v1383 = vpop.trf.xlu0
      %v1384 = vpop.trf.xlu0
      %v1385 = vpop.trf.xlu0
      %v1386 = vpop.trf.xlu0
      %v1387 = vpop.trf.xlu0
      %v1388 = vpop.trf.xlu0
      %v1389 = vpop.trf.xlu0
      %v1390 = vpop.trf.xlu0
      %v1391 = vpop.trf.xlu0
      %v1392 = vpop.trf.xlu0
      %v1393 = vpop.trf.xlu0
      %v1394 = vpop.trf.xlu0
      %v1395 = vpop.trf.xlu0
      %vm1396 = vcmask 261120
      %1397 = vst.msk [vmem:[%s143] sm:$0xff] %vm1396, %v1156
      %1398 = vst.msk [vmem:[%s143 + $0x8] sm:$0xff] %vm1396, %v1188
      %1399 = vst.msk [vmem:[%s143 + $0x10] sm:$0xff] %vm1396, %v1220
      %1400 = vst.msk [vmem:[%s143 + $0x18] sm:$0xff] %vm1396, %v1252
      %1401 = vst.msk [vmem:[%s143 + $0x20] sm:$0xff] %vm1396, %v1284
      %1402 = vst.msk [vmem:[%s143 + $0x28] sm:$0xff] %vm1396, %v1316
      %1403 = vst.msk [vmem:[%s143 + $0x30] sm:$0xff] %vm1396, %v1348
      %1404 = vst.msk [vmem:[%s143 + $0x38] sm:$0xff] %vm1396, %v1380
      %p1405 = scmp.lt.s32.totalorder %s13, 1
      %s1406 = scalar_select %p1405, %s13, 1
      %s1407 = smul.addr %s1406, 8
      %s1408 = smul.addr %s1407, 8
      %s1409 = scalar_lea.vmem %s2, %s1408
      // Predicated region
      $region29: #{run.12} parent=27 // pred_check
        %p1410 = pneg %p78
      $region30: #{run.12} parent=27 // pred_check_branch
        %1412 = sbr.rel (%p1410) target = $region32
      $region31: #{run.12} parent=27 // pred_region
        _
      $region32: #{run.12} parent=27 // pred_fallthru
        _
    $region28: #{run.12} parent=5 // pred_fallthru
      _
    %p1413 = scmp.le.s32.totalorder 2, %s8
    // Predicated region
    $region33: #{run.12} parent=5 // pred_check
      %p1414 = pneg %p1413
    $region34: #{run.12} parent=5 // pred_check_branch
      %1416 = sbr.rel (%p1414) target = $region36
    $region35: #{run.12} parent=5 // pred_region
      %s1417 = ssub.s32 %s8, 2
      // Predicated region
      $region37: #{run.12} parent=35 // pred_check
        %p1418 = pneg %p84
      $region38: #{run.12} parent=35 // pred_check_branch
        %1420 = sbr.rel (%p1418) target = $region40
      $region39: #{run.12} parent=35 // pred_region
        %p1421 = scmp.lt.s32.totalorder %s14, 1
        %s1422 = scalar_select %p1421, %s14, 1
        %s1423 = smul.addr %s1422, 8
        %s1424 = smul.addr %s1423, 8
        %s1425 = scalar_lea.vmem %s2, %s1424
      $region40: #{run.12} parent=35 // pred_fallthru
        _
    $region36: #{run.12} parent=5 // pred_fallthru
      _
  $region6: #{run.12} parent=0 // loop_footer
    %s12 = sadd.s32 1, %s8
  $region7: #{run.12} parent=0 // loop_footer_branch
    %7 = sbr.rel target = $region3
  $region8: #{run.12} parent=0 // loop_exit
    _

// kernel: run.15
$region0: #{run.15}
  #allocation0 [shape = 'u32[]', space=smem, size = 0x4, offset = 0x4, fixed_abs, tag = 'smem constant byte address 0x4 - core index']
  #allocation1 [shape = 'u32[144,128]{1,0:T(1,128)}', space=vmem, size = 0x12000, scoped, tag = 'internal scratch']
  #allocation2 [shape = 'f32[82,8]{1,0:T(8,128)}', space=vmem, size = 0xb000, scoped, tag = 'scratch operand']
  %s0 = inlined_call_operand.vmem [shape: f32[2,64,8], index: 0, kind: input, shape index: {}]
  %s1 = inlined_call_operand.vmem [shape: f32[64,2], index: 1, kind: input, shape index: {}]
  %s2 = inlined_call_operand.vmem [shape: f32[72,8], index: 2, kind: input, shape index: {}]
  %s3 = inlined_call_operand.vmem [shape: f32[2,64,8], index: 3, kind: output, shape index: {0}]
  %s4 = inlined_call_operand.vmem [shape: f32[2,2,8], index: 4, kind: output, shape index: {1}]
  %5 = xla_tuple %s3, %s4
  %s6 = sld [smem:[#allocation0]]
  $region53: #{run.15} parent=0
    _
  %s8 = ssub.s32 1, %s6
  %s9 = scalar_select 0, %s8, %s6
  loop: start=0, step=1, limit=4
  $region2: #{run.15} parent=0 // loop_pre_header
    _
  $region3: #{run.15} parent=0 // loop_header
    %s11 = sphi 0, %s15
    %p12 = scmp.ge.s32.totalorder %s11, 4
    %s21 = sphi 0, %s23
    %s24 = sphi 0, %s21
    %s25 = sphi 0, %s24
    %s41 = sphi 0, %s25
    %s45 = sphi 0, %s45
    %s47 = sphi 0, %s45
    %s48 = sphi 0, %s47
    %s62 = sphi 0, %s48
    %s66 = sphi 0, %s66
    %s68 = sphi 0, %s66
    %s69 = sphi 0, %s68
    %s83 = sphi 0, %s69
    %s89 = sphi 0, %s91
    %s92 = sphi 0, %s89
    %s93 = sphi 0, %s92
    %s109 = sphi 0, %s93
    %s115 = sphi 0, %s117
    %s118 = sphi 0, %s115
    %s119 = sphi 0, %s118
    %s135 = sphi 0, %s119
  $region4: #{run.15} parent=0 // loop_header_branch
    %14 = sbr.rel (%p12) target = $region8
  $region5: #{run.15} parent=0 // loop_body
    %s16 = ssub.s32 %s11, 1
    %s17 = ssub.s32 %s11, 2
    %s18 = sadd.s32 %s11, 1
    %s19 = ssub.s32 %s11, %s18
    %p20 = scmp.eq.s32.totalorder %s19, 0
    %s22 = sadd.s32 %s21, 1
    %s23 = scalar_select %p20, %s21, %s22
    %p26 = pneg %p20
    %p27 = scmp.eq.s32.totalorder %s11, 1
    %p28 = por %p26, %p27
    %p29 = scmp.ne.s32.totalorder %s21, %s24
    %p30 = scmp.eq.s32.totalorder %s11, 0
    %p31 = por %p29, %p30
    %p32 = scmp.ne.s32.totalorder %s21, %s24
    %p33 = scmp.eq.s32.totalorder %s16, 1
    %p34 = por %p32, %p33
    %p35 = scmp.ne.s32.totalorder %s24, %s25
    %p36 = scmp.eq.s32.totalorder %s16, 0
    %p37 = por %p35, %p36
    %p38 = scmp.ne.s32.totalorder %s24, %s25
    %p39 = scmp.eq.s32.totalorder %s17, 1
    %p40 = por %p38, %p39
    %p42 = scmp.ne.s32.totalorder %s25, %s41
    %p43 = scmp.eq.s32.totalorder %s17, 0
    %p44 = por %p42, %p43
    %s46 = sadd.s32 %s45, 1
    %p49 = scmp.eq.s32.totalorder %s11, 1
    %p50 = scmp.ne.s32.totalorder %s45, %s47
    %p51 = scmp.eq.s32.totalorder %s11, 0
    %p52 = por %p50, %p51
    %p53 = scmp.ne.s32.totalorder %s45, %s47
    %p54 = scmp.eq.s32.totalorder %s16, 1
    %p55 = por %p53, %p54
    %p56 = scmp.ne.s32.totalorder %s47, %s48
    %p57 = scmp.eq.s32.totalorder %s16, 0
    %p58 = por %p56, %p57
    %p59 = scmp.ne.s32.totalorder %s47, %s48
    %p60 = scmp.eq.s32.totalorder %s17, 1
    %p61 = por %p59, %p60
    %p63 = scmp.ne.s32.totalorder %s48, %s62
    %p64 = scmp.eq.s32.totalorder %s17, 0
    %p65 = por %p63, %p64
    %s67 = sadd.s32 %s66, 1
    %p70 = scmp.eq.s32.totalorder %s11, 1
    %p71 = scmp.ne.s32.totalorder %s66, %s68
    %p72 = scmp.eq.s32.totalorder %s11, 0
    %p73 = por %p71, %p72
    %p74 = scmp.ne.s32.totalorder %s66, %s68
    %p75 = scmp.eq.s32.totalorder %s16, 1
    %p76 = por %p74, %p75
    %p77 = scmp.ne.s32.totalorder %s68, %s69
    %p78 = scmp.eq.s32.totalorder %s16, 0
    %p79 = por %p77, %p78
    %p80 = scmp.ne.s32.totalorder %s68, %s69
    %p81 = scmp.eq.s32.totalorder %s17, 1
    %p82 = por %p80, %p81
    %p84 = scmp.ne.s32.totalorder %s69, %s83
    %p85 = scmp.eq.s32.totalorder %s17, 0
    %p86 = por %p84, %p85
    %s87 = ssub.s32 %s11, %s18
    %p88 = scmp.eq.s32.totalorder %s87, 0
    %s90 = sadd.s32 %s89, 1
    %s91 = scalar_select %p88, %s89, %s90
    %p94 = pneg %p88
    %p95 = scmp.eq.s32.totalorder %s11, 1
    %p96 = por %p94, %p95
    %p97 = scmp.ne.s32.totalorder %s89, %s92
    %p98 = scmp.eq.s32.totalorder %s11, 0
    %p99 = por %p97, %p98
    %p100 = scmp.ne.s32.totalorder %s89, %s92
    %p101 = scmp.eq.s32.totalorder %s16, 1
    %p102 = por %p100, %p101
    %p103 = scmp.ne.s32.totalorder %s92, %s93
    %p104 = scmp.eq.s32.totalorder %s16, 0
    %p105 = por %p103, %p104
    %p106 = scmp.ne.s32.totalorder %s92, %s93
    %p107 = scmp.eq.s32.totalorder %s17, 1
    %p108 = por %p106, %p107
    %p110 = scmp.ne.s32.totalorder %s93, %s109
    %p111 = scmp.eq.s32.totalorder %s17, 0
    %p112 = por %p110, %p111
    %s113 = ssub.s32 %s11, %s18
    %p114 = scmp.eq.s32.totalorder %s113, 0
    %s116 = sadd.s32 %s115, 1
    %s117 = scalar_select %p114, %s115, %s116
    %p120 = pneg %p114
    %p121 = scmp.eq.s32.totalorder %s11, 1
    %p122 = por %p120, %p121
    %p123 = scmp.ne.s32.totalorder %s115, %s118
    %p124 = scmp.eq.s32.totalorder %s11, 0
    %p125 = por %p123, %p124
    %p126 = scmp.ne.s32.totalorder %s115, %s118
    %p127 = scmp.eq.s32.totalorder %s16, 1
    %p128 = por %p126, %p127
    %p129 = scmp.ne.s32.totalorder %s118, %s119
    %p130 = scmp.eq.s32.totalorder %s16, 0
    %p131 = por %p129, %p130
    %p132 = scmp.ne.s32.totalorder %s118, %s119
    %p133 = scmp.eq.s32.totalorder %s17, 1
    %p134 = por %p132, %p133
    %p136 = scmp.ne.s32.totalorder %s119, %s135
    %p137 = scmp.eq.s32.totalorder %s17, 0
    %p138 = por %p136, %p137
    %p139 = scmp.le.s32.totalorder 1, %s11
    %p140 = scmp.lt.s32.totalorder %s11, 3
    %p141 = pnand %p139, %p140
    %p142 = pneg %p141
    // Predicated region
    $region9: #{run.15} parent=5 // pred_check
      _
    $region10: #{run.15} parent=5 // pred_check_branch
      %144 = sbr.rel (%p141) target = $region12
    $region11: #{run.15} parent=5 // pred_region
      %s145 = ssub.s32 %s11, 1
      // Predicated region
      $region13: #{run.15} parent=11 // pred_check
        %p146 = pneg %p58
      $region14: #{run.15} parent=11 // pred_check_branch
        %148 = sbr.rel (%p146) target = $region16
      $region15: #{run.15} parent=11 // pred_region
        _
      $region16: #{run.15} parent=11 // pred_fallthru
        _
      // Predicated region
      $region17: #{run.15} parent=11 // pred_check
        %p149 = pneg %p79
      $region18: #{run.15} parent=11 // pred_check_branch
        %151 = sbr.rel (%p149) target = $region20
      $region19: #{run.15} parent=11 // pred_region
        _
      $region20: #{run.15} parent=11 // pred_fallthru
        _
    $region12: #{run.15} parent=5 // pred_fallthru
      _
    %p152 = scmp.lt.s32.totalorder %s11, 2
    // Predicated region
    $region21: #{run.15} parent=5 // pred_check
      %p153 = pneg %p152
    $region22: #{run.15} parent=5 // pred_check_branch
      %155 = sbr.rel (%p153) target = $region24
    $region23: #{run.15} parent=5 // pred_region
      // Predicated region
      $region25: #{run.15} parent=23 // pred_check
        %p156 = pneg %p31
      $region26: #{run.15} parent=23 // pred_check_branch
        %158 = sbr.rel (%p156) target = $region28
      $region27: #{run.15} parent=23 // pred_region
        %p159 = scmp.lt.s32.totalorder %s11, 1
        %s160 = scalar_select %p159, %s11, 1
        %s161 = smul.addr %s160, 8
        %s162 = smul.addr %s161, 8
        %s163 = scalar_lea.vmem %s0, %s162
      $region28: #{run.15} parent=23 // pred_fallthru
        _
    $region24: #{run.15} parent=5 // pred_fallthru
      _
    %p164 = scmp.le.s32.totalorder 1, %s11
    %p165 = scmp.lt.s32.totalorder %s11, 3
    %p166 = pnand %p164, %p165
    %p167 = pneg %p166
    // Predicated region
    $region29: #{run.15} parent=5 // pred_check
      _
    $region30: #{run.15} parent=5 // pred_check_branch
      %169 = sbr.rel (%p166) target = $region32
    $region31: #{run.15} parent=5 // pred_region
      %s170 = ssub.s32 %s11, 1
      %p171 = scmp.lt.s32.totalorder %s16, 1
      %s172 = scalar_select %p171, %s16, 1
      %s173 = smul.addr %s172, 8
      %s174 = smul.addr %s173, 8
      %s175 = scalar_lea.vmem %s0, %s174
      %p176 = pneg %p37
      %p177 = pneg %p34
      %p178 = pneg %p58
      %p179 = pneg %p55
      %p180 = pneg %p79
      %p181 = pneg %p76
      %p182 = pneg %p105
      %p183 = pneg %p102
      %p184 = scmp.lt.s32.totalorder %s16, 1
      %s185 = scalar_select %p184, %s16, 1
      %s186 = smul.addr %s185, 8
      %s187 = smul.addr %s186, 8
      %s188 = scalar_lea.vmem %s3, %s187
      %p189 = pneg %p131
      %p190 = pneg %p128
      %p191 = scmp.lt.s32.totalorder %s16, 1
      %s192 = scalar_select %p191, %s16, 1
      %s193 = smul.addr %s192, 2
      %s194 = scalar_lea.vmem %s4, %s193
      %p195 = scmp.lt.s32.totalorder %s16, 1
      %s196 = scalar_select %p195, %s16, 1
      %s197 = smul.addr %s196, 8
      %s198 = smul.addr %s197, 8
      %s199 = scalar_lea.vmem %s0, %s198
      %p200 = scmp.lt.s32.totalorder %s16, 1
      %s201 = scalar_select %p200, %s16, 1
      %s202 = smul.addr %s201, 8
      %s203 = smul.addr %s202, 8
      %s204 = scalar_lea.vmem %s3, %s203
      %p205 = scmp.lt.s32.totalorder %s16, 1
      %s206 = scalar_select %p205, %s16, 1
      %s207 = smul.addr %s206, 2
      %s208 = scalar_lea.vmem %s4, %s207
      %v210 = vld [vmem:[%s199] sm:$0xff]
      %v211 = vld [vmem:[%s199 + $0x8] sm:$0xff]
      %v212 = vld [vmem:[%s199 + $0x10] sm:$0xff]
      %v213 = vld [vmem:[%s199 + $0x18] sm:$0xff]
      %v214 = vld [vmem:[%s199 + $0x20] sm:$0xff]
      %v215 = vld [vmem:[%s199 + $0x28] sm:$0xff]
      %v216 = vld [vmem:[%s199 + $0x30] sm:$0xff]
      %v217 = vld [vmem:[%s199 + $0x38] sm:$0xff]
      %vm218 = vcmask 64512
      %219 = vst.msk [vmem:[#allocation2] sm:$0xff] %vm218, 0.0
      %vm220 = vcmask 57344
      %221 = vst.msk [vmem:[#allocation2 + $0x8] sm:$0x1] %vm220, 0.0
      %222 = vst.msk [vmem:[#allocation2 + $0x49] sm:$0xff] %vm218, 0.0
      %223 = vst.msk [vmem:[#allocation2 + $0x51] sm:$0x1] %vm220, 0.0
      %224 = vst.msk [vmem:[#allocation2 + $0x9] sm:$0xff] %vm218, %v210
      %225 = vst.msk [vmem:[#allocation2 + $0x11] sm:$0xff] %vm218, %v211
      %226 = vst.msk [vmem:[#allocation2 + $0x19] sm:$0xff] %vm218, %v212
      %227 = vst.msk [vmem:[#allocation2 + $0x21] sm:$0xff] %vm218, %v213
      %228 = vst.msk [vmem:[#allocation2 + $0x29] sm:$0xff] %vm218, %v214
      %229 = vst.msk [vmem:[#allocation2 + $0x31] sm:$0xff] %vm218, %v215
      %230 = vst.msk [vmem:[#allocation2 + $0x39] sm:$0xff] %vm218, %v216
      %231 = vst.msk [vmem:[#allocation2 + $0x41] sm:$0xff] %vm218, %v217
      %v232 = vld [vmem:[%s1] sm:$0xff]
      %v233 = vld [vmem:[%s1 + $0x8] sm:$0xff]
      %v234 = vld [vmem:[%s1 + $0x10] sm:$0xff]
      %v235 = vld [vmem:[%s1 + $0x18] sm:$0xff]
      %v236 = vld [vmem:[%s1 + $0x20] sm:$0xff]
      %v237 = vld [vmem:[%s1 + $0x28] sm:$0xff]
      %v238 = vld [vmem:[%s1 + $0x30] sm:$0xff]
      %v239 = vld [vmem:[%s1 + $0x38] sm:$0xff]
      %v240 = vld [vmem:[#allocation2] sm:$0xff]
      %v241 = vld [vmem:[#allocation2 + $0x8] sm:$0xff]
      %v242 = vld [vmem:[#allocation2 + $0x10] sm:$0xff]
      %v243 = vld [vmem:[#allocation2 + $0x18] sm:$0xff]
      %v244 = vld [vmem:[#allocation2 + $0x20] sm:$0xff]
      %v245 = vld [vmem:[#allocation2 + $0x28] sm:$0xff]
      %v246 = vld [vmem:[#allocation2 + $0x30] sm:$0xff]
      %v247 = vld [vmem:[#allocation2 + $0x38] sm:$0xff]
      %249 = vset.pattern.permute.xlu0 0
      %250 = vperm.xlu0 %249, %v232
      %v251 = vpop.permute.xlu0 %250
      %254 = vset.pattern.permute.xlu0 0
      %255 = vperm.xlu0 %254, %v233
      %v256 = vpop.permute.xlu0 %255
      %259 = vset.pattern.permute.xlu0 0
      %260 = vperm.xlu0 %259, %v234
      %v261 = vpop.permute.xlu0 %260
      %264 = vset.pattern.permute.xlu0 0
      %265 = vperm.xlu0 %264, %v235
      %v266 = vpop.permute.xlu0 %265
      %269 = vset.pattern.permute.xlu0 0
      %270 = vperm.xlu0 %269, %v236
      %v271 = vpop.permute.xlu0 %270
      %274 = vset.pattern.permute.xlu0 0
      %275 = vperm.xlu0 %274, %v237
      %v276 = vpop.permute.xlu0 %275
      %279 = vset.pattern.permute.xlu0 0
      %280 = vperm.xlu0 %279, %v238
      %v281 = vpop.permute.xlu0 %280
      %284 = vset.pattern.permute.xlu0 0
      %285 = vperm.xlu0 %284, %v239
      %v286 = vpop.permute.xlu0 %285
      %v288 = vmul.f32 %v240, %v251
      %v289 = vmul.f32 %v241, %v256
      %v290 = vmul.f32 %v242, %v261
      %v291 = vmul.f32 %v243, %v266
      %v292 = vmul.f32 %v244, %v271
      %v293 = vmul.f32 %v245, %v276
      %v294 = vmul.f32 %v246, %v281
      %v295 = vmul.f32 %v247, %v286
      %v296 = vld [vmem:[#allocation2 + $0x1] sm:$0xff]
      %v297 = vld [vmem:[#allocation2 + $0x9] sm:$0xff]
      %v298 = vld [vmem:[#allocation2 + $0x11] sm:$0xff]
      %v299 = vld [vmem:[#allocation2 + $0x19] sm:$0xff]
      %v300 = vld [vmem:[#allocation2 + $0x21] sm:$0xff]
      %v301 = vld [vmem:[#allocation2 + $0x29] sm:$0xff]
      %v302 = vld [vmem:[#allocation2 + $0x31] sm:$0xff]
      %v303 = vld [vmem:[#allocation2 + $0x39] sm:$0xff]
      %v304 = vld [vmem:[#allocation2 + $0x2] sm:$0xff]
      %v305 = vld [vmem:[#allocation2 + $0xa] sm:$0xff]
      %v306 = vld [vmem:[#allocation2 + $0x12] sm:$0xff]
      %v307 = vld [vmem:[#allocation2 + $0x1a] sm:$0xff]
      %v308 = vld [vmem:[#allocation2 + $0x22] sm:$0xff]
      %v309 = vld [vmem:[#allocation2 + $0x2a] sm:$0xff]
      %v310 = vld [vmem:[#allocation2 + $0x32] sm:$0xff]
      %v311 = vld [vmem:[#allocation2 + $0x3a] sm:$0xff]
      %312 = vset.pattern.permute.xlu0 1
      %313 = vperm.xlu0 %312, %v232
      %v314 = vpop.permute.xlu0 %313
      %316 = vset.pattern.permute.xlu0 1
      %317 = vperm.xlu0 %316, %v233
      %v318 = vpop.permute.xlu0 %317
      %320 = vset.pattern.permute.xlu0 1
      %321 = vperm.xlu0 %320, %v234
      %v322 = vpop.permute.xlu0 %321
      %324 = vset.pattern.permute.xlu0 1
      %325 = vperm.xlu0 %324, %v235
      %v326 = vpop.permute.xlu0 %325
      %328 = vset.pattern.permute.xlu0 1
      %329 = vperm.xlu0 %328, %v236
      %v330 = vpop.permute.xlu0 %329
      %332 = vset.pattern.permute.xlu0 1
      %333 = vperm.xlu0 %332, %v237
      %v334 = vpop.permute.xlu0 %333
      %336 = vset.pattern.permute.xlu0 1
      %337 = vperm.xlu0 %336, %v238
      %v338 = vpop.permute.xlu0 %337
      %340 = vset.pattern.permute.xlu0 1
      %341 = vperm.xlu0 %340, %v239
      %v342 = vpop.permute.xlu0 %341
      %v344 = vmul.f32 %v304, %v314
      %v345 = vmul.f32 %v305, %v318
      %v346 = vmul.f32 %v306, %v322
      %v347 = vmul.f32 %v307, %v326
      %v348 = vmul.f32 %v308, %v330
      %v349 = vmul.f32 %v309, %v334
      %v350 = vmul.f32 %v310, %v338
      %v351 = vmul.f32 %v311, %v342
      %v352 = vld [vmem:[#allocation2 + $0x8] sm:$0xff]
      %v353 = vld [vmem:[#allocation2 + $0x10] sm:$0xff]
      %v354 = vld [vmem:[#allocation2 + $0x18] sm:$0xff]
      %v355 = vld [vmem:[#allocation2 + $0x20] sm:$0xff]
      %v356 = vld [vmem:[#allocation2 + $0x28] sm:$0xff]
      %v357 = vld [vmem:[#allocation2 + $0x30] sm:$0xff]
      %v358 = vld [vmem:[#allocation2 + $0x38] sm:$0xff]
      %v359 = vld [vmem:[#allocation2 + $0x40] sm:$0xff]
      %v360 = vmul.f32 %v352, %v251
      %v361 = vmul.f32 %v353, %v256
      %v362 = vmul.f32 %v354, %v261
      %v363 = vmul.f32 %v355, %v266
      %v364 = vmul.f32 %v356, %v271
      %v365 = vmul.f32 %v357, %v276
      %v366 = vmul.f32 %v358, %v281
      %v367 = vmul.f32 %v359, %v286
      %v368 = vld [vmem:[#allocation2 + $0x9] sm:$0xff]
      %v369 = vld [vmem:[#allocation2 + $0x11] sm:$0xff]
      %v370 = vld [vmem:[#allocation2 + $0x19] sm:$0xff]
      %v371 = vld [vmem:[#allocation2 + $0x21] sm:$0xff]
      %v372 = vld [vmem:[#allocation2 + $0x29] sm:$0xff]
      %v373 = vld [vmem:[#allocation2 + $0x31] sm:$0xff]
      %v374 = vld [vmem:[#allocation2 + $0x39] sm:$0xff]
      %v375 = vld [vmem:[#allocation2 + $0x41] sm:$0xff]
      %v376 = vld [vmem:[#allocation2 + $0xa] sm:$0xff]
      %v377 = vld [vmem:[#allocation2 + $0x12] sm:$0xff]
      %v378 = vld [vmem:[#allocation2 + $0x1a] sm:$0xff]
      %v379 = vld [vmem:[#allocation2 + $0x22] sm:$0xff]
      %v380 = vld [vmem:[#allocation2 + $0x2a] sm:$0xff]
      %v381 = vld [vmem:[#allocation2 + $0x32] sm:$0xff]
      %v382 = vld [vmem:[#allocation2 + $0x3a] sm:$0xff]
      %v383 = vld [vmem:[#allocation2 + $0x42] sm:$0xff]
      %v384 = vmul.f32 %v376, %v314
      %v385 = vmul.f32 %v377, %v318
      %v386 = vmul.f32 %v378, %v322
      %v387 = vmul.f32 %v379, %v326
      %v388 = vmul.f32 %v380, %v330
      %v389 = vmul.f32 %v381, %v334
      %v390 = vmul.f32 %v382, %v338
      %v391 = vmul.f32 %v383, %v342
      %v392 = vld [vmem:[#allocation2 + $0x48] sm:$0xff]
      %v393 = vmul.f32 %v353, %v251
      %v394 = vmul.f32 %v354, %v256
      %v395 = vmul.f32 %v355, %v261
      %v396 = vmul.f32 %v356, %v266
      %v397 = vmul.f32 %v357, %v271
      %v398 = vmul.f32 %v358, %v276
      %v399 = vmul.f32 %v359, %v281
      %v400 = vmul.f32 %v392, %v286
      %v401 = vld [vmem:[#allocation2 + $0x49] sm:$0xff]
      %v402 = vld [vmem:[#allocation2 + $0x4a] sm:$0xff]
      %v403 = vmul.f32 %v377, %v314
      %v404 = vmul.f32 %v378, %v318
      %v405 = vmul.f32 %v379, %v322
      %v406 = vmul.f32 %v380, %v326
      %v407 = vmul.f32 %v381, %v330
      %v408 = vmul.f32 %v382, %v334
      %v409 = vmul.f32 %v383, %v338
      %v410 = vmul.f32 %v402, %v342
      %419 = vrot.lane.b32.xlu0 %v296, 8
      %v420 = vpop.permute.xlu0 %419
      %421 = vrot.lane.b32.xlu0 %v297, 8
      %v422 = vpop.permute.xlu0 %421
      %423 = vrot.lane.b32.xlu0 %v298, 8
      %v424 = vpop.permute.xlu0 %423
      %425 = vrot.lane.b32.xlu0 %v299, 8
      %v426 = vpop.permute.xlu0 %425
      %427 = vrot.lane.b32.xlu0 %v300, 8
      %v428 = vpop.permute.xlu0 %427
      %429 = vrot.lane.b32.xlu0 %v301, 8
      %v430 = vpop.permute.xlu0 %429
      %431 = vrot.lane.b32.xlu0 %v302, 8
      %v432 = vpop.permute.xlu0 %431
      %433 = vrot.lane.b32.xlu0 %v303, 8
      %v434 = vpop.permute.xlu0 %433
      %451 = vrot.lane.b32.xlu0 %v344, 16
      %v452 = vpop.permute.xlu0 %451
      %453 = vrot.lane.b32.xlu0 %v345, 16
      %v454 = vpop.permute.xlu0 %453
      %455 = vrot.lane.b32.xlu0 %v346, 16
      %v456 = vpop.permute.xlu0 %455
      %457 = vrot.lane.b32.xlu0 %v347, 16
      %v458 = vpop.permute.xlu0 %457
      %459 = vrot.lane.b32.xlu0 %v348, 16
      %v460 = vpop.permute.xlu0 %459
      %461 = vrot.lane.b32.xlu0 %v349, 16
      %v462 = vpop.permute.xlu0 %461
      %463 = vrot.lane.b32.xlu0 %v350, 16
      %v464 = vpop.permute.xlu0 %463
      %465 = vrot.lane.b32.xlu0 %v351, 16
      %v466 = vpop.permute.xlu0 %465
      %483 = vrot.lane.b32.xlu0 %v360, 24
      %v484 = vpop.permute.xlu0 %483
      %485 = vrot.lane.b32.xlu0 %v361, 24
      %v486 = vpop.permute.xlu0 %485
      %487 = vrot.lane.b32.xlu0 %v362, 24
      %v488 = vpop.permute.xlu0 %487
      %489 = vrot.lane.b32.xlu0 %v363, 24
      %v490 = vpop.permute.xlu0 %489
      %491 = vrot.lane.b32.xlu0 %v364, 24
      %v492 = vpop.permute.xlu0 %491
      %493 = vrot.lane.b32.xlu0 %v365, 24
      %v494 = vpop.permute.xlu0 %493
      %495 = vrot.lane.b32.xlu0 %v366, 24
      %v496 = vpop.permute.xlu0 %495
      %497 = vrot.lane.b32.xlu0 %v367, 24
      %v498 = vpop.permute.xlu0 %497
      %515 = vrot.lane.b32.xlu0 %v368, 32
      %v516 = vpop.permute.xlu0 %515
      %517 = vrot.lane.b32.xlu0 %v369, 32
      %v518 = vpop.permute.xlu0 %517
      %519 = vrot.lane.b32.xlu0 %v370, 32
      %v520 = vpop.permute.xlu0 %519
      %521 = vrot.lane.b32.xlu0 %v371, 32
      %v522 = vpop.permute.xlu0 %521
      %523 = vrot.lane.b32.xlu0 %v372, 32
      %v524 = vpop.permute.xlu0 %523
      %525 = vrot.lane.b32.xlu0 %v373, 32
      %v526 = vpop.permute.xlu0 %525
      %527 = vrot.lane.b32.xlu0 %v374, 32
      %v528 = vpop.permute.xlu0 %527
      %529 = vrot.lane.b32.xlu0 %v375, 32
      %v530 = vpop.permute.xlu0 %529
      %547 = vrot.lane.b32.xlu0 %v384, 40
      %v548 = vpop.permute.xlu0 %547
      %549 = vrot.lane.b32.xlu0 %v385, 40
      %v550 = vpop.permute.xlu0 %549
      %551 = vrot.lane.b32.xlu0 %v386, 40
      %v552 = vpop.permute.xlu0 %551
      %553 = vrot.lane.b32.xlu0 %v387, 40
      %v554 = vpop.permute.xlu0 %553
      %555 = vrot.lane.b32.xlu0 %v388, 40
      %v556 = vpop.permute.xlu0 %555
      %557 = vrot.lane.b32.xlu0 %v389, 40
      %v558 = vpop.permute.xlu0 %557
      %559 = vrot.lane.b32.xlu0 %v390, 40
      %v560 = vpop.permute.xlu0 %559
      %561 = vrot.lane.b32.xlu0 %v391, 40
      %v562 = vpop.permute.xlu0 %561
      %579 = vrot.lane.b32.xlu0 %v393, 48
      %v580 = vpop.permute.xlu0 %579
      %581 = vrot.lane.b32.xlu0 %v394, 48
      %v582 = vpop.permute.xlu0 %581
      %583 = vrot.lane.b32.xlu0 %v395, 48
      %v584 = vpop.permute.xlu0 %583
      %585 = vrot.lane.b32.xlu0 %v396, 48
      %v586 = vpop.permute.xlu0 %585
      %587 = vrot.lane.b32.xlu0 %v397, 48
      %v588 = vpop.permute.xlu0 %587
      %589 = vrot.lane.b32.xlu0 %v398, 48
      %v590 = vpop.permute.xlu0 %589
      %591 = vrot.lane.b32.xlu0 %v399, 48
      %v592 = vpop.permute.xlu0 %591
      %593 = vrot.lane.b32.xlu0 %v400, 48
      %v594 = vpop.permute.xlu0 %593
      %604 = vrot.lane.b32.xlu0 %v369, 56
      %v605 = vpop.permute.xlu0 %604
      %606 = vrot.lane.b32.xlu0 %v370, 56
      %v607 = vpop.permute.xlu0 %606
      %608 = vrot.lane.b32.xlu0 %v371, 56
      %v609 = vpop.permute.xlu0 %608
      %610 = vrot.lane.b32.xlu0 %v372, 56
      %v611 = vpop.permute.xlu0 %610
      %612 = vrot.lane.b32.xlu0 %v373, 56
      %v613 = vpop.permute.xlu0 %612
      %614 = vrot.lane.b32.xlu0 %v374, 56
      %v615 = vpop.permute.xlu0 %614
      %616 = vrot.lane.b32.xlu0 %v375, 56
      %v617 = vpop.permute.xlu0 %616
      %618 = vrot.lane.b32.xlu0 %v401, 56
      %v619 = vpop.permute.xlu0 %618
      %636 = vrot.lane.b32.xlu0 %v403, 64
      %v637 = vpop.permute.xlu0 %636
      %638 = vrot.lane.b32.xlu0 %v404, 64
      %v639 = vpop.permute.xlu0 %638
      %640 = vrot.lane.b32.xlu0 %v405, 64
      %v641 = vpop.permute.xlu0 %640
      %642 = vrot.lane.b32.xlu0 %v406, 64
      %v643 = vpop.permute.xlu0 %642
      %644 = vrot.lane.b32.xlu0 %v407, 64
      %v645 = vpop.permute.xlu0 %644
      %646 = vrot.lane.b32.xlu0 %v408, 64
      %v647 = vpop.permute.xlu0 %646
      %648 = vrot.lane.b32.xlu0 %v409, 64
      %v649 = vpop.permute.xlu0 %648
      %650 = vrot.lane.b32.xlu0 %v410, 64
      %v651 = vpop.permute.xlu0 %650
      %v660 = vsel %vm218, %v288, %v420
      %v661 = vsel %vm218, %v289, %v422
      %v662 = vsel %vm218, %v290, %v424
      %v663 = vsel %vm218, %v291, %v426
      %v664 = vsel %vm218, %v292, %v428
      %v665 = vsel %vm218, %v293, %v430
      %v666 = vsel %vm218, %v294, %v432
      %v667 = vsel %vm218, %v295, %v434
      %vm668 = vcmask 130048
      %v669 = vsel %vm668, %v660, %v452
      %v670 = vsel %vm668, %v661, %v454
      %v671 = vsel %vm668, %v662, %v456
      %v672 = vsel %vm668, %v663, %v458
      %v673 = vsel %vm668, %v664, %v460
      %v674 = vsel %vm668, %v665, %v462
      %v675 = vsel %vm668, %v666, %v464
      %v676 = vsel %vm668, %v667, %v466
      %vm677 = vcmask 195584
      %v678 = vsel %vm677, %v669, %v484
      %v679 = vsel %vm677, %v670, %v486
      %v680 = vsel %vm677, %v671, %v488
      %v681 = vsel %vm677, %v672, %v490
      %v682 = vsel %vm677, %v673, %v492
      %v683 = vsel %vm677, %v674, %v494
      %v684 = vsel %vm677, %v675, %v496
      %v685 = vsel %vm677, %v676, %v498
      %vm686 = vcmask 261120
      %v687 = vsel %vm686, %v678, %v516
      %v688 = vsel %vm686, %v679, %v518
      %v689 = vsel %vm686, %v680, %v520
      %v690 = vsel %vm686, %v681, %v522
      %v691 = vsel %vm686, %v682, %v524
      %v692 = vsel %vm686, %v683, %v526
      %v693 = vsel %vm686, %v684, %v528
      %v694 = vsel %vm686, %v685, %v530
      %vm695 = vcmask 326656
      %v696 = vsel %vm695, %v687, %v548
      %v697 = vsel %vm695, %v688, %v550
      %v698 = vsel %vm695, %v689, %v552
      %v699 = vsel %vm695, %v690, %v554
      %v700 = vsel %vm695, %v691, %v556
      %v701 = vsel %vm695, %v692, %v558
      %v702 = vsel %vm695, %v693, %v560
      %v703 = vsel %vm695, %v694, %v562
      %vm704 = vcmask 392192
      %v705 = vsel %vm704, %v696, %v580
      %v706 = vsel %vm704, %v697, %v582
      %v707 = vsel %vm704, %v698, %v584
      %v708 = vsel %vm704, %v699, %v586
      %v709 = vsel %vm704, %v700, %v588
      %v710 = vsel %vm704, %v701, %v590
      %v711 = vsel %vm704, %v702, %v592
      %v712 = vsel %vm704, %v703, %v594
      %vm713 = vcmask 457728
      %v714 = vsel %vm713, %v705, %v605
      %v715 = vsel %vm713, %v706, %v607
      %v716 = vsel %vm713, %v707, %v609
      %v717 = vsel %vm713, %v708, %v611
      %v718 = vsel %vm713, %v709, %v613
      %v719 = vsel %vm713, %v710, %v615
      %v720 = vsel %vm713, %v711, %v617
      %v721 = vsel %vm713, %v712, %v619
      %vm722 = vcmask 523264
      %v723 = vsel %vm722, %v714, %v637
      %v724 = vsel %vm722, %v715, %v639
      %v725 = vsel %vm722, %v716, %v641
      %v726 = vsel %vm722, %v717, %v643
      %v727 = vsel %vm722, %v718, %v645
      %v728 = vsel %vm722, %v719, %v647
      %v729 = vsel %vm722, %v720, %v649
      %v730 = vsel %vm722, %v721, %v651
      %v731 = vpack.c.bf16 %v724, %v723
      %v732 = vpack.c.bf16 %v726, %v725
      %v733 = vpack.c.bf16 %v728, %v727
      %v734 = vpack.c.bf16 %v730, %v729
      %v735 = vld [vmem:[%s2] sm:$0xff]
      %v736 = vld [vmem:[%s2 + $0x8] sm:$0xff]
      %v737 = vld [vmem:[%s2 + $0x10] sm:$0xff]
      %v738 = vld [vmem:[%s2 + $0x18] sm:$0xff]
      %v739 = vld [vmem:[%s2 + $0x20] sm:$0xff]
      %v740 = vld [vmem:[%s2 + $0x28] sm:$0xff]
      %v741 = vld [vmem:[%s2 + $0x30] sm:$0xff]
      %v742 = vld [vmem:[%s2 + $0x38] sm:$0xff]
      %v743 = vld [vmem:[%s2 + $0x40] sm:$0xff]
      %v744 = vpack.c.bf16 %v736, %v735
      %v745 = vpack.c.bf16 %v738, %v737
      %v746 = vpack.c.bf16 %v740, %v739
      %v747 = vpack.c.bf16 %v742, %v741
      %v748 = vpack.c.bf16 %v743, %v743
      %vm749 = vcmask 588800
      %v751 = vsel %vm749, %v731, 0
      %v754 = vsel %vm749, %v732, 0
      %v757 = vsel %vm749, %v733, 0
      %v760 = vsel %vm749, %v734, 0
      %vm762 = vcmask 1043456
      %v764 = vsel %vm762, %v748, 0
      %766 = vmatprep.subr.bf16.mxu0 0
      %767 = vmatpush1.bf16.msra.mxu0 0
      %768 = vmatprep.subr.bf16.mxu0 0
      %769 = vmatpush1.bf16.msra.mxu0 0
      %770 = vmatprep.subr.bf16.mxu0 0
      %771 = vmatpush1.bf16.msra.mxu0 0
      %772 = vmatprep.subr.bf16.mxu0 0
      %773 = vmatpush1.bf16.msra.mxu0 %v764
      %774 = vmatprep.subr.bf16.mxu0 0
      %775 = vmatpush1.bf16.msra.mxu0 %v747
      %776 = vmatprep.subr.bf16.mxu0 0
      %777 = vmatpush1.bf16.msra.mxu0 %v746
      %778 = vmatprep.subr.bf16.mxu0 0
      %779 = vmatpush1.bf16.msra.mxu0 %v745
      %780 = vmatprep.subr.bf16.mxu0 0
      %781 = vmatpush1.bf16.msra.mxu0 %v744
      %782 = vmatprep.subr.bf16.mxu0 0
      %783 = vmatpush2.bf16.msra.mxu0 0
      %784 = vmatprep.subr.bf16.mxu0 0
      %785 = vmatpush2.bf16.msra.mxu0 0
      %786 = vmatprep.subr.bf16.mxu0 0
      %787 = vmatpush2.bf16.msra.mxu0 0
      %788 = vmatprep.subr.bf16.mxu0 0
      %789 = vmatpush2.bf16.msra.mxu0 0
      %790 = vmatprep.subr.bf16.mxu0 0
      %791 = vmatpush2.bf16.msra.mxu0 0
      %792 = vmatprep.subr.bf16.mxu0 0
      %793 = vmatpush2.bf16.msra.mxu0 0
      %794 = vmatprep.subr.bf16.mxu0 0
      %795 = vmatpush2.bf16.msra.mxu0 0
      %796 = vmatprep.subr.bf16.mxu0 0
      %797 = vmatpush2.bf16.msra.mxu0 0
      %798 = vmatprep.mubr.bf16.mxu0 0
      %799 = vmatmul.mubr.bf16.gmra.mxu0 %v751
      %v800 = vpop.f32.mrf.mxu0
      %v801 = vadd.f32 0.0, %v800
      %v802 = vpop.f32.mrf.mxu0
      %v803 = vpop.f32.mrf.mxu0
      %v804 = vadd.f32 0.0, %v803
      %v805 = vpop.f32.mrf.mxu0
      %806 = vmatprep.mubr.bf16.mxu0 0
      %807 = vmatmul.mubr.bf16.gmra.mxu0 %v754
      %v808 = vpop.f32.mrf.mxu0
      %v809 = vadd.f32 0.0, %v808
      %v810 = vpop.f32.mrf.mxu0
      %v811 = vpop.f32.mrf.mxu0
      %v812 = vadd.f32 0.0, %v811
      %v813 = vpop.f32.mrf.mxu0
      %814 = vmatprep.mubr.bf16.mxu0 0
      %815 = vmatmul.mubr.bf16.gmra.mxu0 %v757
      %v816 = vpop.f32.mrf.mxu0
      %v817 = vadd.f32 0.0, %v816
      %v818 = vpop.f32.mrf.mxu0
      %v819 = vpop.f32.mrf.mxu0
      %v820 = vadd.f32 0.0, %v819
      %v821 = vpop.f32.mrf.mxu0
      %822 = vmatprep.mubr.bf16.mxu0 0
      %823 = vmatmul.mubr.bf16.gmra.mxu0 %v760
      %v824 = vpop.f32.mrf.mxu0
      %v825 = vadd.f32 0.0, %v824
      %v826 = vpop.f32.mrf.mxu0
      %v827 = vpop.f32.mrf.mxu0
      %v828 = vadd.f32 0.0, %v827
      %v829 = vpop.f32.mrf.mxu0
      %830 = vdwg.mxu0
      %831 = vst.msk [vmem:[%s204] sm:$0xff] %vm218, %v801
      %832 = vst.msk [vmem:[%s204 + $0x8] sm:$0xff] %vm218, %v804
      %833 = vst.msk [vmem:[%s204 + $0x10] sm:$0xff] %vm218, %v809
      %834 = vst.msk [vmem:[%s204 + $0x18] sm:$0xff] %vm218, %v812
      %835 = vst.msk [vmem:[%s204 + $0x20] sm:$0xff] %vm218, %v817
      %836 = vst.msk [vmem:[%s204 + $0x28] sm:$0xff] %vm218, %v820
      %837 = vst.msk [vmem:[%s204 + $0x30] sm:$0xff] %vm218, %v825
      %838 = vst.msk [vmem:[%s204 + $0x38] sm:$0xff] %vm218, %v828
      %v839 = vsel %vm218, %v801, 0.0
      %v840 = vsel %vm218, %v804, 0.0
      %v841 = vadd.f32 %v839, %v840
      %v842 = vsel %vm218, %v809, 0.0
      %v843 = vadd.f32 %v841, %v842
      %v844 = vsel %vm218, %v812, 0.0
      %v845 = vadd.f32 %v843, %v844
      %v846 = vsel %vm218, %v817, 0.0
      %v847 = vadd.f32 %v845, %v846
      %v848 = vsel %vm218, %v820, 0.0
      %v849 = vadd.f32 %v847, %v848
      %v850 = vsel %vm218, %v825, 0.0
      %v851 = vadd.f32 %v849, %v850
      %v852 = vsel %vm218, %v828, 0.0
      %v853 = vadd.f32 %v851, %v852
      %v854 = vrot.slane %v853, 4
      %v855 = vadd.f32 %v853, %v854
      %v856 = vrot.slane %v855, 2
      %v857 = vadd.f32 %v855, %v856
      %v858 = vrot.slane %v857, 1
      %v859 = vadd.f32 %v857, %v858
      %860 = vst.msk [vmem:[%s208] sm:$0x1] %vm220, %v859
      %v861 = vmul.f32 %v801, %v801
      %v862 = vmul.f32 %v804, %v804
      %v863 = vmul.f32 %v809, %v809
      %v864 = vmul.f32 %v812, %v812
      %v865 = vmul.f32 %v817, %v817
      %v866 = vmul.f32 %v820, %v820
      %v867 = vmul.f32 %v825, %v825
      %v868 = vmul.f32 %v828, %v828
      %v869 = vsel %vm218, %v861, 0.0
      %v870 = vsel %vm218, %v862, 0.0
      %v871 = vadd.f32 %v869, %v870
      %v872 = vsel %vm218, %v863, 0.0
      %v873 = vadd.f32 %v871, %v872
      %v874 = vsel %vm218, %v864, 0.0
      %v875 = vadd.f32 %v873, %v874
      %v876 = vsel %vm218, %v865, 0.0
      %v877 = vadd.f32 %v875, %v876
      %v878 = vsel %vm218, %v866, 0.0
      %v879 = vadd.f32 %v877, %v878
      %v880 = vsel %vm218, %v867, 0.0
      %v881 = vadd.f32 %v879, %v880
      %v882 = vsel %vm218, %v868, 0.0
      %v883 = vadd.f32 %v881, %v882
      %v884 = vrot.slane %v883, 4
      %v885 = vadd.f32 %v883, %v884
      %v886 = vrot.slane %v885, 2
      %v887 = vadd.f32 %v885, %v886
      %v888 = vrot.slane %v887, 1
      %v889 = vadd.f32 %v887, %v888
      %890 = vst.msk [vmem:[%s208 + $0x1] sm:$0x1] %vm220, %v889
      %p891 = scmp.lt.s32.totalorder %s16, 1
      %s892 = scalar_select %p891, %s16, 1
      %s893 = smul.addr %s892, 8
      %s894 = smul.addr %s893, 8
      %s895 = scalar_lea.vmem %s3, %s894
      %p896 = scmp.lt.s32.totalorder %s16, 1
      %s897 = scalar_select %p896, %s16, 1
      %s898 = smul.addr %s897, 2
      %s899 = scalar_lea.vmem %s4, %s898
      // Predicated region
      $region33: #{run.15} parent=31 // pred_check
        %p900 = pneg %p102
      $region34: #{run.15} parent=31 // pred_check_branch
        %902 = sbr.rel (%p900) target = $region36
      $region35: #{run.15} parent=31 // pred_region
        _
      $region36: #{run.15} parent=31 // pred_fallthru
        _
      // Predicated region
      $region37: #{run.15} parent=31 // pred_check
        %p903 = pneg %p128
      $region38: #{run.15} parent=31 // pred_check_branch
        %905 = sbr.rel (%p903) target = $region40
      $region39: #{run.15} parent=31 // pred_region
        _
      $region40: #{run.15} parent=31 // pred_fallthru
        _
    $region32: #{run.15} parent=5 // pred_fallthru
      _
    %p906 = scmp.le.s32.totalorder 2, %s11
    // Predicated region
    $region41: #{run.15} parent=5 // pred_check
      %p907 = pneg %p906
    $region42: #{run.15} parent=5 // pred_check_branch
      %909 = sbr.rel (%p907) target = $region44
    $region43: #{run.15} parent=5 // pred_region
      %s910 = ssub.s32 %s11, 2
      // Predicated region
      $region45: #{run.15} parent=43 // pred_check
        %p911 = pneg %p108
      $region46: #{run.15} parent=43 // pred_check_branch
        %913 = sbr.rel (%p911) target = $region48
      $region47: #{run.15} parent=43 // pred_region
        %p914 = scmp.lt.s32.totalorder %s17, 1
        %s915 = scalar_select %p914, %s17, 1
        %s916 = smul.addr %s915, 8
        %s917 = smul.addr %s916, 8
        %s918 = scalar_lea.vmem %s3, %s917
      $region48: #{run.15} parent=43 // pred_fallthru
        _
      // Predicated region
      $region49: #{run.15} parent=43 // pred_check
        %p919 = pneg %p134
      $region50: #{run.15} parent=43 // pred_check_branch
        %921 = sbr.rel (%p919) target = $region52
      $region51: #{run.15} parent=43 // pred_region
        %p922 = scmp.lt.s32.totalorder %s17, 1
        %s923 = scalar_select %p922, %s17, 1
        %s924 = smul.addr %s923, 2
        %s925 = scalar_lea.vmem %s4, %s924
      $region52: #{run.15} parent=43 // pred_fallthru
        _
    $region44: #{run.15} parent=5 // pred_fallthru
      _
  $region6: #{run.15} parent=0 // loop_footer
    %s15 = sadd.s32 1, %s11
  $region7: #{run.15} parent=0 // loop_footer_branch
    %10 = sbr.rel target = $region3
  $region8: #{run.15} parent=0 // loop_exit
    _

// kernel: run.17
$region0: #{run.17}
  #allocation0 [shape = 'u32[]', space=smem, size = 0x4, offset = 0x4, fixed_abs, tag = 'smem constant byte address 0x4 - core index']
  #allocation1 [shape = 'u32[144,128]{1,0:T(1,128)}', space=vmem, size = 0x12000, scoped, tag = 'internal scratch']
  %s0 = inlined_call_operand.vmem [shape: f32[2,64,8], index: 0, kind: input, shape index: {}]
  %s1 = inlined_call_operand.vmem [shape: f32[2,16,16,32], index: 1, kind: input, shape index: {}]
  %s2 = inlined_call_operand.vmem [shape: f32[8,32], index: 2, kind: input, shape index: {}]
  %s3 = inlined_call_operand.vmem [shape: f32[1,32], index: 3, kind: input, shape index: {}]
  %s4 = inlined_call_operand.vmem [shape: f32[16,8,1], index: 4, kind: input, shape index: {}]
  %s5 = inlined_call_operand.vmem [shape: f32[8,16], index: 5, kind: input, shape index: {}]
  %s6 = inlined_call_operand.vmem [shape: f32[2,16,16,32], index: 6, kind: output, shape index: {}]
  %s7 = sld [smem:[#allocation0]]
  $region57: #{run.17} parent=0
    _
  %s9 = ssub.s32 1, %s7
  %s10 = scalar_select 0, %s9, %s7
  loop: start=0, step=1, limit=4
  $region2: #{run.17} parent=0 // loop_pre_header
    _
  $region3: #{run.17} parent=0 // loop_header
    %s12 = sphi 0, %s16
    %p13 = scmp.ge.s32.totalorder %s12, 4
    %s22 = sphi 0, %s24
    %s25 = sphi 0, %s22
    %s26 = sphi 0, %s25
    %s42 = sphi 0, %s26
    %s48 = sphi 0, %s50
    %s51 = sphi 0, %s48
    %s52 = sphi 0, %s51
    %s68 = sphi 0, %s52
    %s72 = sphi 0, %s72
    %s74 = sphi 0, %s72
    %s75 = sphi 0, %s74
    %s89 = sphi 0, %s75
    %s93 = sphi 0, %s93
    %s95 = sphi 0, %s93
    %s96 = sphi 0, %s95
    %s110 = sphi 0, %s96
    %s114 = sphi 0, %s114
    %s116 = sphi 0, %s114
    %s117 = sphi 0, %s116
    %s131 = sphi 0, %s117
    %s135 = sphi 0, %s135
    %s137 = sphi 0, %s135
    %s138 = sphi 0, %s137
    %s152 = sphi 0, %s138
    %s158 = sphi 0, %s160
    %s161 = sphi 0, %s158
    %s162 = sphi 0, %s161
    %s178 = sphi 0, %s162
  $region4: #{run.17} parent=0 // loop_header_branch
    %15 = sbr.rel (%p13) target = $region8
  $region5: #{run.17} parent=0 // loop_body
    %s17 = ssub.s32 %s12, 1
    %s18 = ssub.s32 %s12, 2
    %s19 = sadd.s32 %s12, 1
    %s20 = ssub.s32 %s12, %s19
    %p21 = scmp.eq.s32.totalorder %s20, 0
    %s23 = sadd.s32 %s22, 1
    %s24 = scalar_select %p21, %s22, %s23
    %p27 = pneg %p21
    %p28 = scmp.eq.s32.totalorder %s12, 1
    %p29 = por %p27, %p28
    %p30 = scmp.ne.s32.totalorder %s22, %s25
    %p31 = scmp.eq.s32.totalorder %s12, 0
    %p32 = por %p30, %p31
    %p33 = scmp.ne.s32.totalorder %s22, %s25
    %p34 = scmp.eq.s32.totalorder %s17, 1
    %p35 = por %p33, %p34
    %p36 = scmp.ne.s32.totalorder %s25, %s26
    %p37 = scmp.eq.s32.totalorder %s17, 0
    %p38 = por %p36, %p37
    %p39 = scmp.ne.s32.totalorder %s25, %s26
    %p40 = scmp.eq.s32.totalorder %s18, 1
    %p41 = por %p39, %p40
    %p43 = scmp.ne.s32.totalorder %s26, %s42
    %p44 = scmp.eq.s32.totalorder %s18, 0
    %p45 = por %p43, %p44
    %s46 = ssub.s32 %s12, %s19
    %p47 = scmp.eq.s32.totalorder %s46, 0
    %s49 = sadd.s32 %s48, 1
    %s50 = scalar_select %p47, %s48, %s49
    %p53 = pneg %p47
    %p54 = scmp.eq.s32.totalorder %s12, 1
    %p55 = por %p53, %p54
    %p56 = scmp.ne.s32.totalorder %s48, %s51
    %p57 = scmp.eq.s32.totalorder %s12, 0
    %p58 = por %p56, %p57
    %p59 = scmp.ne.s32.totalorder %s48, %s51
    %p60 = scmp.eq.s32.totalorder %s17, 1
    %p61 = por %p59, %p60
    %p62 = scmp.ne.s32.totalorder %s51, %s52
    %p63 = scmp.eq.s32.totalorder %s17, 0
    %p64 = por %p62, %p63
    %p65 = scmp.ne.s32.totalorder %s51, %s52
    %p66 = scmp.eq.s32.totalorder %s18, 1
    %p67 = por %p65, %p66
    %p69 = scmp.ne.s32.totalorder %s52, %s68
    %p70 = scmp.eq.s32.totalorder %s18, 0
    %p71 = por %p69, %p70
    %s73 = sadd.s32 %s72, 1
    %p76 = scmp.eq.s32.totalorder %s12, 1
    %p77 = scmp.ne.s32.totalorder %s72, %s74
    %p78 = scmp.eq.s32.totalorder %s12, 0
    %p79 = por %p77, %p78
    %p80 = scmp.ne.s32.totalorder %s72, %s74
    %p81 = scmp.eq.s32.totalorder %s17, 1
    %p82 = por %p80, %p81
    %p83 = scmp.ne.s32.totalorder %s74, %s75
    %p84 = scmp.eq.s32.totalorder %s17, 0
    %p85 = por %p83, %p84
    %p86 = scmp.ne.s32.totalorder %s74, %s75
    %p87 = scmp.eq.s32.totalorder %s18, 1
    %p88 = por %p86, %p87
    %p90 = scmp.ne.s32.totalorder %s75, %s89
    %p91 = scmp.eq.s32.totalorder %s18, 0
    %p92 = por %p90, %p91
    %s94 = sadd.s32 %s93, 1
    %p97 = scmp.eq.s32.totalorder %s12, 1
    %p98 = scmp.ne.s32.totalorder %s93, %s95
    %p99 = scmp.eq.s32.totalorder %s12, 0
    %p100 = por %p98, %p99
    %p101 = scmp.ne.s32.totalorder %s93, %s95
    %p102 = scmp.eq.s32.totalorder %s17, 1
    %p103 = por %p101, %p102
    %p104 = scmp.ne.s32.totalorder %s95, %s96
    %p105 = scmp.eq.s32.totalorder %s17, 0
    %p106 = por %p104, %p105
    %p107 = scmp.ne.s32.totalorder %s95, %s96
    %p108 = scmp.eq.s32.totalorder %s18, 1
    %p109 = por %p107, %p108
    %p111 = scmp.ne.s32.totalorder %s96, %s110
    %p112 = scmp.eq.s32.totalorder %s18, 0
    %p113 = por %p111, %p112
    %s115 = sadd.s32 %s114, 1
    %p118 = scmp.eq.s32.totalorder %s12, 1
    %p119 = scmp.ne.s32.totalorder %s114, %s116
    %p120 = scmp.eq.s32.totalorder %s12, 0
    %p121 = por %p119, %p120
    %p122 = scmp.ne.s32.totalorder %s114, %s116
    %p123 = scmp.eq.s32.totalorder %s17, 1
    %p124 = por %p122, %p123
    %p125 = scmp.ne.s32.totalorder %s116, %s117
    %p126 = scmp.eq.s32.totalorder %s17, 0
    %p127 = por %p125, %p126
    %p128 = scmp.ne.s32.totalorder %s116, %s117
    %p129 = scmp.eq.s32.totalorder %s18, 1
    %p130 = por %p128, %p129
    %p132 = scmp.ne.s32.totalorder %s117, %s131
    %p133 = scmp.eq.s32.totalorder %s18, 0
    %p134 = por %p132, %p133
    %s136 = sadd.s32 %s135, 1
    %p139 = scmp.eq.s32.totalorder %s12, 1
    %p140 = scmp.ne.s32.totalorder %s135, %s137
    %p141 = scmp.eq.s32.totalorder %s12, 0
    %p142 = por %p140, %p141
    %p143 = scmp.ne.s32.totalorder %s135, %s137
    %p144 = scmp.eq.s32.totalorder %s17, 1
    %p145 = por %p143, %p144
    %p146 = scmp.ne.s32.totalorder %s137, %s138
    %p147 = scmp.eq.s32.totalorder %s17, 0
    %p148 = por %p146, %p147
    %p149 = scmp.ne.s32.totalorder %s137, %s138
    %p150 = scmp.eq.s32.totalorder %s18, 1
    %p151 = por %p149, %p150
    %p153 = scmp.ne.s32.totalorder %s138, %s152
    %p154 = scmp.eq.s32.totalorder %s18, 0
    %p155 = por %p153, %p154
    %s156 = ssub.s32 %s12, %s19
    %p157 = scmp.eq.s32.totalorder %s156, 0
    %s159 = sadd.s32 %s158, 1
    %s160 = scalar_select %p157, %s158, %s159
    %p163 = pneg %p157
    %p164 = scmp.eq.s32.totalorder %s12, 1
    %p165 = por %p163, %p164
    %p166 = scmp.ne.s32.totalorder %s158, %s161
    %p167 = scmp.eq.s32.totalorder %s12, 0
    %p168 = por %p166, %p167
    %p169 = scmp.ne.s32.totalorder %s158, %s161
    %p170 = scmp.eq.s32.totalorder %s17, 1
    %p171 = por %p169, %p170
    %p172 = scmp.ne.s32.totalorder %s161, %s162
    %p173 = scmp.eq.s32.totalorder %s17, 0
    %p174 = por %p172, %p173
    %p175 = scmp.ne.s32.totalorder %s161, %s162
    %p176 = scmp.eq.s32.totalorder %s18, 1
    %p177 = por %p175, %p176
    %p179 = scmp.ne.s32.totalorder %s162, %s178
    %p180 = scmp.eq.s32.totalorder %s18, 0
    %p181 = por %p179, %p180
    %p182 = scmp.le.s32.totalorder 1, %s12
    %p183 = scmp.lt.s32.totalorder %s12, 3
    %p184 = pnand %p182, %p183
    %p185 = pneg %p184
    // Predicated region
    $region9: #{run.17} parent=5 // pred_check
      _
    $region10: #{run.17} parent=5 // pred_check_branch
      %187 = sbr.rel (%p184) target = $region12
    $region11: #{run.17} parent=5 // pred_region
      %s188 = ssub.s32 %s12, 1
      // Predicated region
      $region13: #{run.17} parent=11 // pred_check
        %p189 = pneg %p85
      $region14: #{run.17} parent=11 // pred_check_branch
        %191 = sbr.rel (%p189) target = $region16
      $region15: #{run.17} parent=11 // pred_region
        _
      $region16: #{run.17} parent=11 // pred_fallthru
        _
      // Predicated region
      $region17: #{run.17} parent=11 // pred_check
        %p192 = pneg %p106
      $region18: #{run.17} parent=11 // pred_check_branch
        %194 = sbr.rel (%p192) target = $region20
      $region19: #{run.17} parent=11 // pred_region
        _
      $region20: #{run.17} parent=11 // pred_fallthru
        _
      // Predicated region
      $region21: #{run.17} parent=11 // pred_check
        %p195 = pneg %p127
      $region22: #{run.17} parent=11 // pred_check_branch
        %197 = sbr.rel (%p195) target = $region24
      $region23: #{run.17} parent=11 // pred_region
        _
      $region24: #{run.17} parent=11 // pred_fallthru
        _
      // Predicated region
      $region25: #{run.17} parent=11 // pred_check
        %p198 = pneg %p148
      $region26: #{run.17} parent=11 // pred_check_branch
        %200 = sbr.rel (%p198) target = $region28
      $region27: #{run.17} parent=11 // pred_region
        _
      $region28: #{run.17} parent=11 // pred_fallthru
        _
    $region12: #{run.17} parent=5 // pred_fallthru
      _
    %p201 = scmp.lt.s32.totalorder %s12, 2
    // Predicated region
    $region29: #{run.17} parent=5 // pred_check
      %p202 = pneg %p201
    $region30: #{run.17} parent=5 // pred_check_branch
      %204 = sbr.rel (%p202) target = $region32
    $region31: #{run.17} parent=5 // pred_region
      // Predicated region
      $region33: #{run.17} parent=31 // pred_check
        %p205 = pneg %p32
      $region34: #{run.17} parent=31 // pred_check_branch
        %207 = sbr.rel (%p205) target = $region36
      $region35: #{run.17} parent=31 // pred_region
        %p208 = scmp.lt.s32.totalorder %s12, 1
        %s209 = scalar_select %p208, %s12, 1
        %s210 = smul.addr %s209, 8
        %s211 = smul.addr %s210, 8
        %s212 = scalar_lea.vmem %s0, %s211
      $region36: #{run.17} parent=31 // pred_fallthru
        _
      // Predicated region
      $region37: #{run.17} parent=31 // pred_check
        %p213 = pneg %p58
      $region38: #{run.17} parent=31 // pred_check_branch
        %215 = sbr.rel (%p213) target = $region40
      $region39: #{run.17} parent=31 // pred_region
        %p216 = scmp.lt.s32.totalorder %s12, 1
        %s217 = scalar_select %p216, %s12, 1
        %s218 = smul.addr %s217, 32
        %s219 = smul.addr %s218, 8
        %s220 = scalar_lea.vmem %s1, %s219
      $region40: #{run.17} parent=31 // pred_fallthru
        _
    $region32: #{run.17} parent=5 // pred_fallthru
      _
    %p221 = scmp.le.s32.totalorder 1, %s12
    %p222 = scmp.lt.s32.totalorder %s12, 3
    %p223 = pnand %p221, %p222
    %p224 = pneg %p223
    // Predicated region
    $region41: #{run.17} parent=5 // pred_check
      _
    $region42: #{run.17} parent=5 // pred_check_branch
      %226 = sbr.rel (%p223) target = $region44
    $region43: #{run.17} parent=5 // pred_region
      %s227 = ssub.s32 %s12, 1
      %p228 = scmp.lt.s32.totalorder %s17, 1
      %s229 = scalar_select %p228, %s17, 1
      %s230 = smul.addr %s229, 8
      %s231 = smul.addr %s230, 8
      %s232 = scalar_lea.vmem %s0, %s231
      %p233 = pneg %p38
      %p234 = pneg %p35
      %p235 = scmp.lt.s32.totalorder %s17, 1
      %s236 = scalar_select %p235, %s17, 1
      %s237 = smul.addr %s236, 32
      %s238 = smul.addr %s237, 8
      %s239 = scalar_lea.vmem %s1, %s238
      %p240 = pneg %p64
      %p241 = pneg %p61
      %p242 = pneg %p85
      %p243 = pneg %p82
      %p244 = pneg %p106
      %p245 = pneg %p103
      %p246 = pneg %p127
      %p247 = pneg %p124
      %p248 = pneg %p148
      %p249 = pneg %p145
      %p250 = pneg %p174
      %p251 = pneg %p171
      %p252 = scmp.lt.s32.totalorder %s17, 1
      %s253 = scalar_select %p252, %s17, 1
      %s254 = smul.addr %s253, 32
      %s255 = smul.addr %s254, 8
      %s256 = scalar_lea.vmem %s6, %s255
      %p257 = scmp.lt.s32.totalorder %s17, 1
      %s258 = scalar_select %p257, %s17, 1
      %s259 = smul.addr %s258, 8
      %s260 = smul.addr %s259, 8
      %s261 = scalar_lea.vmem %s0, %s260
      %p262 = scmp.lt.s32.totalorder %s17, 1
      %s263 = scalar_select %p262, %s17, 1
      %s264 = smul.addr %s263, 32
      %s265 = smul.addr %s264, 8
      %s266 = scalar_lea.vmem %s1, %s265
      %p267 = scmp.lt.s32.totalorder %s17, 1
      %s268 = scalar_select %p267, %s17, 1
      %s269 = smul.addr %s268, 32
      %s270 = smul.addr %s269, 8
      %s271 = scalar_lea.vmem %s6, %s270
      %v272 = vld [vmem:[%s261] sm:$0xff]
      %v273 = vld [vmem:[%s261 + $0x8] sm:$0xff]
      %v274 = vld [vmem:[%s261 + $0x10] sm:$0xff]
      %v275 = vld [vmem:[%s261 + $0x18] sm:$0xff]
      %v276 = vld [vmem:[%s261 + $0x20] sm:$0xff]
      %v277 = vld [vmem:[%s261 + $0x28] sm:$0xff]
      %v278 = vld [vmem:[%s261 + $0x30] sm:$0xff]
      %v279 = vld [vmem:[%s261 + $0x38] sm:$0xff]
      %v280 = vld [vmem:[%s2] sm:$0xff]
      %v281 = vld [vmem:[%s3] sm:$0x1]
      %v283 = vlaneseq
      %v284 = vshrl.u32 %v283, 7
      %v285 = vsub.s32 0, %v284
      %v286 = vrot.slane %v281, %v285
      %vm288 = vcmask 64512
      %v290 = vsel %vm288, %v272, 0
      %v293 = vsel %vm288, %v273, 0
      %v296 = vsel %vm288, %v274, 0
      %v299 = vsel %vm288, %v275, 0
      %v302 = vsel %vm288, %v276, 0
      %v305 = vsel %vm288, %v277, 0
      %v308 = vsel %vm288, %v278, 0
      %v311 = vsel %vm288, %v279, 0
      %313 = vmatprep.subr.mxu0 0.0
      %314 = vmatpush1.msra.mxu0 0.0
      %315 = vmatprep.subr.mxu0 0.0
      %316 = vmatpush1.msra.mxu0 0.0
      %317 = vmatprep.subr.mxu0 0.0
      %318 = vmatpush1.msra.mxu0 0.0
      %319 = vmatprep.subr.mxu0 0.0
      %320 = vmatpush1.msra.mxu0 0.0
      %321 = vmatprep.subr.mxu0 0.0
      %322 = vmatpush1.msra.mxu0 0.0
      %323 = vmatprep.subr.mxu0 0.0
      %324 = vmatpush1.msra.mxu0 0.0
      %325 = vmatprep.subr.mxu0 0.0
      %326 = vmatpush1.msra.mxu0 0.0
      %327 = vmatprep.subr.mxu0 0.0
      %328 = vmatpush1.msra.mxu0 0.0
      %329 = vmatprep.subr.mxu0 0.0
      %330 = vmatpush1.msra.mxu0 0.0
      %331 = vmatprep.subr.mxu0 0.0
      %332 = vmatpush1.msra.mxu0 0.0
      %333 = vmatprep.subr.mxu0 0.0
      %334 = vmatpush1.msra.mxu0 0.0
      %335 = vmatprep.subr.mxu0 0.0
      %336 = vmatpush1.msra.mxu0 0.0
      %337 = vmatprep.subr.mxu0 0.0
      %338 = vmatpush1.msra.mxu0 0.0
      %339 = vmatprep.subr.mxu0 0.0
      %340 = vmatpush1.msra.mxu0 0.0
      %341 = vmatprep.subr.mxu0 0.0
      %342 = vmatpush1.msra.mxu0 0.0
      %343 = vmatprep.subr.mxu0 0.0
      %344 = vmatpush1.msra.mxu0 %v280
      %345 = vmatprep.subr.mxu0 0.0
      %346 = vmatpush2.msra.mxu0 0.0
      %347 = vmatprep.subr.mxu0 0.0
      %348 = vmatpush2.msra.mxu0 0.0
      %349 = vmatprep.subr.mxu0 0.0
      %350 = vmatpush2.msra.mxu0 0.0
      %351 = vmatprep.subr.mxu0 0.0
      %352 = vmatpush2.msra.mxu0 0.0
      %353 = vmatprep.subr.mxu0 0.0
      %354 = vmatpush2.msra.mxu0 0.0
      %355 = vmatprep.subr.mxu0 0.0
      %356 = vmatpush2.msra.mxu0 0.0
      %357 = vmatprep.subr.mxu0 0.0
      %358 = vmatpush2.msra.mxu0 0.0
      %359 = vmatprep.subr.mxu0 0.0
      %360 = vmatpush2.msra.mxu0 0.0
      %361 = vmatprep.subr.mxu0 0.0
      %362 = vmatpush2.msra.mxu0 0.0
      %363 = vmatprep.subr.mxu0 0.0
      %364 = vmatpush2.msra.mxu0 0.0
      %365 = vmatprep.subr.mxu0 0.0
      %366 = vmatpush2.msra.mxu0 0.0
      %367 = vmatprep.subr.mxu0 0.0
      %368 = vmatpush2.msra.mxu0 0.0
      %369 = vmatprep.subr.mxu0 0.0
      %370 = vmatpush2.msra.mxu0 0.0
      %371 = vmatprep.subr.mxu0 0.0
      %372 = vmatpush2.msra.mxu0 0.0
      %373 = vmatprep.subr.mxu0 0.0
      %374 = vmatpush2.msra.mxu0 0.0
      %375 = vmatprep.subr.mxu0 0.0
      %376 = vmatpush2.msra.mxu0 0.0
      %377 = vmatprep.mubr.f32.mxu0 0.0
      %378 = vmatmul.mubr.f32.gmra.mxu0 %v290
      %v379 = vpop.f32.mrf.mxu0
      %v380 = vadd.f32 %v286, %v379
      %v381 = vpop.f32.mrf.mxu0
      %382 = vmatprep.mubr.f32.mxu0 0.0
      %383 = vmatmul.mubr.f32.gmra.mxu0 %v293
      %v384 = vpop.f32.mrf.mxu0
      %v385 = vadd.f32 %v286, %v384
      %v386 = vpop.f32.mrf.mxu0
      %387 = vmatprep.mubr.f32.mxu0 0.0
      %388 = vmatmul.mubr.f32.gmra.mxu0 %v296
      %v389 = vpop.f32.mrf.mxu0
      %v390 = vadd.f32 %v286, %v389
      %v391 = vpop.f32.mrf.mxu0
      %392 = vmatprep.mubr.f32.mxu0 0.0
      %393 = vmatmul.mubr.f32.gmra.mxu0 %v299
      %v394 = vpop.f32.mrf.mxu0
      %v395 = vadd.f32 %v286, %v394
      %v396 = vpop.f32.mrf.mxu0
      %397 = vmatprep.mubr.f32.mxu0 0.0
      %398 = vmatmul.mubr.f32.gmra.mxu0 %v302
      %v399 = vpop.f32.mrf.mxu0
      %v400 = vadd.f32 %v286, %v399
      %v401 = vpop.f32.mrf.mxu0
      %402 = vmatprep.mubr.f32.mxu0 0.0
      %403 = vmatmul.mubr.f32.gmra.mxu0 %v305
      %v404 = vpop.f32.mrf.mxu0
      %v405 = vadd.f32 %v286, %v404
      %v406 = vpop.f32.mrf.mxu0
      %407 = vmatprep.mubr.f32.mxu0 0.0
      %408 = vmatmul.mubr.f32.gmra.mxu0 %v308
      %v409 = vpop.f32.mrf.mxu0
      %v410 = vadd.f32 %v286, %v409
      %v411 = vpop.f32.mrf.mxu0
      %412 = vmatprep.mubr.f32.mxu0 0.0
      %413 = vmatmul.mubr.f32.gmra.mxu0 %v311
      %v414 = vpop.f32.mrf.mxu0
      %v415 = vadd.f32 %v286, %v414
      %v416 = vpop.f32.mrf.mxu0
      %417 = vdwg.mxu0
      %418 = vxpose.xlu0.b32.start [1/16] %v380, 128
      %419 = vxpose.xlu0.b32.cont [2/16] 0.0, 128
      %420 = vxpose.xlu0.b32.cont [3/16] 0.0, 128
      %421 = vxpose.xlu0.b32.cont [4/16] 0.0, 128
      %422 = vxpose.xlu0.b32.cont [5/16] 0.0, 128
      %423 = vxpose.xlu0.b32.cont [6/16] 0.0, 128
      %424 = vxpose.xlu0.b32.cont [7/16] 0.0, 128
      %425 = vxpose.xlu0.b32.cont [8/16] 0.0, 128
      %426 = vxpose.xlu0.b32.cont [9/16] 0.0, 128
      %427 = vxpose.xlu0.b32.cont [10/16] 0.0, 128
      %428 = vxpose.xlu0.b32.cont [11/16] 0.0, 128
      %429 = vxpose.xlu0.b32.cont [12/16] 0.0, 128
      %430 = vxpose.xlu0.b32.cont [13/16] 0.0, 128
      %431 = vxpose.xlu0.b32.cont [14/16] 0.0, 128
      %432 = vxpose.xlu0.b32.cont [15/16] 0.0, 128
      %433 = vxpose.xlu0.b32.end [16/16] 0.0, 128
      %v434 = vpop.trf.xlu0
      %v435 = vpop.trf.xlu0
      %v436 = vpop.trf.xlu0
      %v437 = vpop.trf.xlu0
      %v438 = vpop.trf.xlu0
      %v439 = vpop.trf.xlu0
      %v440 = vpop.trf.xlu0
      %v441 = vpop.trf.xlu0
      %v442 = vpop.trf.xlu0
      %v443 = vpop.trf.xlu0
      %v444 = vpop.trf.xlu0
      %v445 = vpop.trf.xlu0
      %v446 = vpop.trf.xlu0
      %v447 = vpop.trf.xlu0
      %v448 = vpop.trf.xlu0
      %v449 = vpop.trf.xlu0
      %450 = vxpose.xlu0.b32.start [1/16] %v385, 128
      %451 = vxpose.xlu0.b32.cont [2/16] 0.0, 128
      %452 = vxpose.xlu0.b32.cont [3/16] 0.0, 128
      %453 = vxpose.xlu0.b32.cont [4/16] 0.0, 128
      %454 = vxpose.xlu0.b32.cont [5/16] 0.0, 128
      %455 = vxpose.xlu0.b32.cont [6/16] 0.0, 128
      %456 = vxpose.xlu0.b32.cont [7/16] 0.0, 128
      %457 = vxpose.xlu0.b32.cont [8/16] 0.0, 128
      %458 = vxpose.xlu0.b32.cont [9/16] 0.0, 128
      %459 = vxpose.xlu0.b32.cont [10/16] 0.0, 128
      %460 = vxpose.xlu0.b32.cont [11/16] 0.0, 128
      %461 = vxpose.xlu0.b32.cont [12/16] 0.0, 128
      %462 = vxpose.xlu0.b32.cont [13/16] 0.0, 128
      %463 = vxpose.xlu0.b32.cont [14/16] 0.0, 128
      %464 = vxpose.xlu0.b32.cont [15/16] 0.0, 128
      %465 = vxpose.xlu0.b32.end [16/16] 0.0, 128
      %v466 = vpop.trf.xlu0
      %v467 = vpop.trf.xlu0
      %v468 = vpop.trf.xlu0
      %v469 = vpop.trf.xlu0
      %v470 = vpop.trf.xlu0
      %v471 = vpop.trf.xlu0
      %v472 = vpop.trf.xlu0
      %v473 = vpop.trf.xlu0
      %v474 = vpop.trf.xlu0
      %v475 = vpop.trf.xlu0
      %v476 = vpop.trf.xlu0
      %v477 = vpop.trf.xlu0
      %v478 = vpop.trf.xlu0
      %v479 = vpop.trf.xlu0
      %v480 = vpop.trf.xlu0
      %v481 = vpop.trf.xlu0
      %482 = vxpose.xlu0.b32.start [1/16] %v390, 128
      %483 = vxpose.xlu0.b32.cont [2/16] 0.0, 128
      %484 = vxpose.xlu0.b32.cont [3/16] 0.0, 128
      %485 = vxpose.xlu0.b32.cont [4/16] 0.0, 128
      %486 = vxpose.xlu0.b32.cont [5/16] 0.0, 128
      %487 = vxpose.xlu0.b32.cont [6/16] 0.0, 128
      %488 = vxpose.xlu0.b32.cont [7/16] 0.0, 128
      %489 = vxpose.xlu0.b32.cont [8/16] 0.0, 128
      %490 = vxpose.xlu0.b32.cont [9/16] 0.0, 128
      %491 = vxpose.xlu0.b32.cont [10/16] 0.0, 128
      %492 = vxpose.xlu0.b32.cont [11/16] 0.0, 128
      %493 = vxpose.xlu0.b32.cont [12/16] 0.0, 128
      %494 = vxpose.xlu0.b32.cont [13/16] 0.0, 128
      %495 = vxpose.xlu0.b32.cont [14/16] 0.0, 128
      %496 = vxpose.xlu0.b32.cont [15/16] 0.0, 128
      %497 = vxpose.xlu0.b32.end [16/16] 0.0, 128
      %v498 = vpop.trf.xlu0
      %v499 = vpop.trf.xlu0
      %v500 = vpop.trf.xlu0
      %v501 = vpop.trf.xlu0
      %v502 = vpop.trf.xlu0
      %v503 = vpop.trf.xlu0
      %v504 = vpop.trf.xlu0
      %v505 = vpop.trf.xlu0
      %v506 = vpop.trf.xlu0
      %v507 = vpop.trf.xlu0
      %v508 = vpop.trf.xlu0
      %v509 = vpop.trf.xlu0
      %v510 = vpop.trf.xlu0
      %v511 = vpop.trf.xlu0
      %v512 = vpop.trf.xlu0
      %v513 = vpop.trf.xlu0
      %514 = vxpose.xlu0.b32.start [1/16] %v395, 128
      %515 = vxpose.xlu0.b32.cont [2/16] 0.0, 128
      %516 = vxpose.xlu0.b32.cont [3/16] 0.0, 128
      %517 = vxpose.xlu0.b32.cont [4/16] 0.0, 128
      %518 = vxpose.xlu0.b32.cont [5/16] 0.0, 128
      %519 = vxpose.xlu0.b32.cont [6/16] 0.0, 128
      %520 = vxpose.xlu0.b32.cont [7/16] 0.0, 128
      %521 = vxpose.xlu0.b32.cont [8/16] 0.0, 128
      %522 = vxpose.xlu0.b32.cont [9/16] 0.0, 128
      %523 = vxpose.xlu0.b32.cont [10/16] 0.0, 128
      %524 = vxpose.xlu0.b32.cont [11/16] 0.0, 128
      %525 = vxpose.xlu0.b32.cont [12/16] 0.0, 128
      %526 = vxpose.xlu0.b32.cont [13/16] 0.0, 128
      %527 = vxpose.xlu0.b32.cont [14/16] 0.0, 128
      %528 = vxpose.xlu0.b32.cont [15/16] 0.0, 128
      %529 = vxpose.xlu0.b32.end [16/16] 0.0, 128
      %v530 = vpop.trf.xlu0
      %v531 = vpop.trf.xlu0
      %v532 = vpop.trf.xlu0
      %v533 = vpop.trf.xlu0
      %v534 = vpop.trf.xlu0
      %v535 = vpop.trf.xlu0
      %v536 = vpop.trf.xlu0
      %v537 = vpop.trf.xlu0
      %v538 = vpop.trf.xlu0
      %v539 = vpop.trf.xlu0
      %v540 = vpop.trf.xlu0
      %v541 = vpop.trf.xlu0
      %v542 = vpop.trf.xlu0
      %v543 = vpop.trf.xlu0
      %v544 = vpop.trf.xlu0
      %v545 = vpop.trf.xlu0
      %546 = vxpose.xlu0.b32.start [1/16] %v400, 128
      %547 = vxpose.xlu0.b32.cont [2/16] 0.0, 128
      %548 = vxpose.xlu0.b32.cont [3/16] 0.0, 128
      %549 = vxpose.xlu0.b32.cont [4/16] 0.0, 128
      %550 = vxpose.xlu0.b32.cont [5/16] 0.0, 128
      %551 = vxpose.xlu0.b32.cont [6/16] 0.0, 128
      %552 = vxpose.xlu0.b32.cont [7/16] 0.0, 128
      %553 = vxpose.xlu0.b32.cont [8/16] 0.0, 128
      %554 = vxpose.xlu0.b32.cont [9/16] 0.0, 128
      %555 = vxpose.xlu0.b32.cont [10/16] 0.0, 128
      %556 = vxpose.xlu0.b32.cont [11/16] 0.0, 128
      %557 = vxpose.xlu0.b32.cont [12/16] 0.0, 128
      %558 = vxpose.xlu0.b32.cont [13/16] 0.0, 128
      %559 = vxpose.xlu0.b32.cont [14/16] 0.0, 128
      %560 = vxpose.xlu0.b32.cont [15/16] 0.0, 128
      %561 = vxpose.xlu0.b32.end [16/16] 0.0, 128
      %v562 = vpop.trf.xlu0
      %v563 = vpop.trf.xlu0
      %v564 = vpop.trf.xlu0
      %v565 = vpop.trf.xlu0
      %v566 = vpop.trf.xlu0
      %v567 = vpop.trf.xlu0
      %v568 = vpop.trf.xlu0
      %v569 = vpop.trf.xlu0
      %v570 = vpop.trf.xlu0
      %v571 = vpop.trf.xlu0
      %v572 = vpop.trf.xlu0
      %v573 = vpop.trf.xlu0
      %v574 = vpop.trf.xlu0
      %v575 = vpop.trf.xlu0
      %v576 = vpop.trf.xlu0
      %v577 = vpop.trf.xlu0
      %578 = vxpose.xlu0.b32.start [1/16] %v405, 128
      %579 = vxpose.xlu0.b32.cont [2/16] 0.0, 128
      %580 = vxpose.xlu0.b32.cont [3/16] 0.0, 128
      %581 = vxpose.xlu0.b32.cont [4/16] 0.0, 128
      %582 = vxpose.xlu0.b32.cont [5/16] 0.0, 128
      %583 = vxpose.xlu0.b32.cont [6/16] 0.0, 128
      %584 = vxpose.xlu0.b32.cont [7/16] 0.0, 128
      %585 = vxpose.xlu0.b32.cont [8/16] 0.0, 128
      %586 = vxpose.xlu0.b32.cont [9/16] 0.0, 128
      %587 = vxpose.xlu0.b32.cont [10/16] 0.0, 128
      %588 = vxpose.xlu0.b32.cont [11/16] 0.0, 128
      %589 = vxpose.xlu0.b32.cont [12/16] 0.0, 128
      %590 = vxpose.xlu0.b32.cont [13/16] 0.0, 128
      %591 = vxpose.xlu0.b32.cont [14/16] 0.0, 128
      %592 = vxpose.xlu0.b32.cont [15/16] 0.0, 128
      %593 = vxpose.xlu0.b32.end [16/16] 0.0, 128
      %v594 = vpop.trf.xlu0
      %v595 = vpop.trf.xlu0
      %v596 = vpop.trf.xlu0
      %v597 = vpop.trf.xlu0
      %v598 = vpop.trf.xlu0
      %v599 = vpop.trf.xlu0
      %v600 = vpop.trf.xlu0
      %v601 = vpop.trf.xlu0
      %v602 = vpop.trf.xlu0
      %v603 = vpop.trf.xlu0
      %v604 = vpop.trf.xlu0
      %v605 = vpop.trf.xlu0
      %v606 = vpop.trf.xlu0
      %v607 = vpop.trf.xlu0
      %v608 = vpop.trf.xlu0
      %v609 = vpop.trf.xlu0
      %610 = vxpose.xlu0.b32.start [1/16] %v410, 128
      %611 = vxpose.xlu0.b32.cont [2/16] 0.0, 128
      %612 = vxpose.xlu0.b32.cont [3/16] 0.0, 128
      %613 = vxpose.xlu0.b32.cont [4/16] 0.0, 128
      %614 = vxpose.xlu0.b32.cont [5/16] 0.0, 128
      %615 = vxpose.xlu0.b32.cont [6/16] 0.0, 128
      %616 = vxpose.xlu0.b32.cont [7/16] 0.0, 128
      %617 = vxpose.xlu0.b32.cont [8/16] 0.0, 128
      %618 = vxpose.xlu0.b32.cont [9/16] 0.0, 128
      %619 = vxpose.xlu0.b32.cont [10/16] 0.0, 128
      %620 = vxpose.xlu0.b32.cont [11/16] 0.0, 128
      %621 = vxpose.xlu0.b32.cont [12/16] 0.0, 128
      %622 = vxpose.xlu0.b32.cont [13/16] 0.0, 128
      %623 = vxpose.xlu0.b32.cont [14/16] 0.0, 128
      %624 = vxpose.xlu0.b32.cont [15/16] 0.0, 128
      %625 = vxpose.xlu0.b32.end [16/16] 0.0, 128
      %v626 = vpop.trf.xlu0
      %v627 = vpop.trf.xlu0
      %v628 = vpop.trf.xlu0
      %v629 = vpop.trf.xlu0
      %v630 = vpop.trf.xlu0
      %v631 = vpop.trf.xlu0
      %v632 = vpop.trf.xlu0
      %v633 = vpop.trf.xlu0
      %v634 = vpop.trf.xlu0
      %v635 = vpop.trf.xlu0
      %v636 = vpop.trf.xlu0
      %v637 = vpop.trf.xlu0
      %v638 = vpop.trf.xlu0
      %v639 = vpop.trf.xlu0
      %v640 = vpop.trf.xlu0
      %v641 = vpop.trf.xlu0
      %642 = vxpose.xlu0.b32.start [1/16] %v415, 128
      %643 = vxpose.xlu0.b32.cont [2/16] 0.0, 128
      %644 = vxpose.xlu0.b32.cont [3/16] 0.0, 128
      %645 = vxpose.xlu0.b32.cont [4/16] 0.0, 128
      %646 = vxpose.xlu0.b32.cont [5/16] 0.0, 128
      %647 = vxpose.xlu0.b32.cont [6/16] 0.0, 128
      %648 = vxpose.xlu0.b32.cont [7/16] 0.0, 128
      %649 = vxpose.xlu0.b32.cont [8/16] 0.0, 128
      %650 = vxpose.xlu0.b32.cont [9/16] 0.0, 128
      %651 = vxpose.xlu0.b32.cont [10/16] 0.0, 128
      %652 = vxpose.xlu0.b32.cont [11/16] 0.0, 128
      %653 = vxpose.xlu0.b32.cont [12/16] 0.0, 128
      %654 = vxpose.xlu0.b32.cont [13/16] 0.0, 128
      %655 = vxpose.xlu0.b32.cont [14/16] 0.0, 128
      %656 = vxpose.xlu0.b32.cont [15/16] 0.0, 128
      %657 = vxpose.xlu0.b32.end [16/16] 0.0, 128
      %v658 = vpop.trf.xlu0
      %v659 = vpop.trf.xlu0
      %v660 = vpop.trf.xlu0
      %v661 = vpop.trf.xlu0
      %v662 = vpop.trf.xlu0
      %v663 = vpop.trf.xlu0
      %v664 = vpop.trf.xlu0
      %v665 = vpop.trf.xlu0
      %v666 = vpop.trf.xlu0
      %v667 = vpop.trf.xlu0
      %v668 = vpop.trf.xlu0
      %v669 = vpop.trf.xlu0
      %v670 = vpop.trf.xlu0
      %v671 = vpop.trf.xlu0
      %v672 = vpop.trf.xlu0
      %v673 = vpop.trf.xlu0
      %v674 = vld [vmem:[%s5] sm:$0xff]
      %v676 = vsel %vm288, %v434, 0
      %v679 = vsel %vm288, %v435, 0
      %v682 = vsel %vm288, %v436, 0
      %v685 = vsel %vm288, %v437, 0
      %v688 = vsel %vm288, %v466, 0
      %v691 = vsel %vm288, %v467, 0
      %v694 = vsel %vm288, %v468, 0
      %v697 = vsel %vm288, %v469, 0
      %v700 = vsel %vm288, %v498, 0
      %v703 = vsel %vm288, %v499, 0
      %v706 = vsel %vm288, %v500, 0
      %v709 = vsel %vm288, %v501, 0
      %v712 = vsel %vm288, %v530, 0
      %v715 = vsel %vm288, %v531, 0
      %v718 = vsel %vm288, %v532, 0
      %v721 = vsel %vm288, %v533, 0
      %v724 = vsel %vm288, %v562, 0
      %v727 = vsel %vm288, %v563, 0
      %v730 = vsel %vm288, %v564, 0
      %v733 = vsel %vm288, %v565, 0
      %v736 = vsel %vm288, %v594, 0
      %v739 = vsel %vm288, %v595, 0
      %v742 = vsel %vm288, %v596, 0
      %v745 = vsel %vm288, %v597, 0
      %v748 = vsel %vm288, %v626, 0
      %v751 = vsel %vm288, %v627, 0
      %v754 = vsel %vm288, %v628, 0
      %v757 = vsel %vm288, %v629, 0
      %v760 = vsel %vm288, %v658, 0
      %v763 = vsel %vm288, %v659, 0
      %v766 = vsel %vm288, %v660, 0
      %v769 = vsel %vm288, %v661, 0
      %771 = vmatprep.subr.mxu0 0.0
      %772 = vmatpush1.msra.mxu0 0.0
      %773 = vmatprep.subr.mxu0 0.0
      %774 = vmatpush1.msra.mxu0 0.0
      %775 = vmatprep.subr.mxu0 0.0
      %776 = vmatpush1.msra.mxu0 0.0
      %777 = vmatprep.subr.mxu0 0.0
      %778 = vmatpush1.msra.mxu0 0.0
      %779 = vmatprep.subr.mxu0 0.0
      %780 = vmatpush1.msra.mxu0 0.0
      %781 = vmatprep.subr.mxu0 0.0
      %782 = vmatpush1.msra.mxu0 0.0
      %783 = vmatprep.subr.mxu0 0.0
      %784 = vmatpush1.msra.mxu0 0.0
      %785 = vmatprep.subr.mxu0 0.0
      %786 = vmatpush1.msra.mxu0 0.0
      %787 = vmatprep.subr.mxu0 0.0
      %788 = vmatpush1.msra.mxu0 0.0
      %789 = vmatprep.subr.mxu0 0.0
      %790 = vmatpush1.msra.mxu0 0.0
      %791 = vmatprep.subr.mxu0 0.0
      %792 = vmatpush1.msra.mxu0 0.0
      %793 = vmatprep.subr.mxu0 0.0
      %794 = vmatpush1.msra.mxu0 0.0
      %795 = vmatprep.subr.mxu0 0.0
      %796 = vmatpush1.msra.mxu0 0.0
      %797 = vmatprep.subr.mxu0 0.0
      %798 = vmatpush1.msra.mxu0 0.0
      %799 = vmatprep.subr.mxu0 0.0
      %800 = vmatpush1.msra.mxu0 0.0
      %801 = vmatprep.subr.mxu0 0.0
      %802 = vmatpush1.msra.mxu0 %v674
      %803 = vmatprep.subr.mxu0 0.0
      %804 = vmatpush2.msra.mxu0 0.0
      %805 = vmatprep.subr.mxu0 0.0
      %806 = vmatpush2.msra.mxu0 0.0
      %807 = vmatprep.subr.mxu0 0.0
      %808 = vmatpush2.msra.mxu0 0.0
      %809 = vmatprep.subr.mxu0 0.0
      %810 = vmatpush2.msra.mxu0 0.0
      %811 = vmatprep.subr.mxu0 0.0
      %812 = vmatpush2.msra.mxu0 0.0
      %813 = vmatprep.subr.mxu0 0.0
      %814 = vmatpush2.msra.mxu0 0.0
      %815 = vmatprep.subr.mxu0 0.0
      %816 = vmatpush2.msra.mxu0 0.0
      %817 = vmatprep.subr.mxu0 0.0
      %818 = vmatpush2.msra.mxu0 0.0
      %819 = vmatprep.subr.mxu0 0.0
      %820 = vmatpush2.msra.mxu0 0.0
      %821 = vmatprep.subr.mxu0 0.0
      %822 = vmatpush2.msra.mxu0 0.0
      %823 = vmatprep.subr.mxu0 0.0
      %824 = vmatpush2.msra.mxu0 0.0
      %825 = vmatprep.subr.mxu0 0.0
      %826 = vmatpush2.msra.mxu0 0.0
      %827 = vmatprep.subr.mxu0 0.0
      %828 = vmatpush2.msra.mxu0 0.0
      %829 = vmatprep.subr.mxu0 0.0
      %830 = vmatpush2.msra.mxu0 0.0
      %831 = vmatprep.subr.mxu0 0.0
      %832 = vmatpush2.msra.mxu0 0.0
      %833 = vmatprep.subr.mxu0 0.0
      %834 = vmatpush2.msra.mxu0 0.0
      %835 = vmatprep.mubr.f32.mxu0 0.0
      %836 = vmatmul.mubr.f32.gmra.mxu0 %v676
      %v837 = vpop.f32.mrf.mxu0
      %v838 = vadd.f32 0.0, %v837
      %v839 = vpop.f32.mrf.mxu0
      %840 = vmatprep.mubr.f32.mxu0 0.0
      %841 = vmatmul.mubr.f32.gmra.mxu0 %v679
      %v842 = vpop.f32.mrf.mxu0
      %v843 = vadd.f32 0.0, %v842
      %v844 = vpop.f32.mrf.mxu0
      %845 = vmatprep.mubr.f32.mxu0 0.0
      %846 = vmatmul.mubr.f32.gmra.mxu0 %v682
      %v847 = vpop.f32.mrf.mxu0
      %v848 = vadd.f32 0.0, %v847
      %v849 = vpop.f32.mrf.mxu0
      %850 = vmatprep.mubr.f32.mxu0 0.0
      %851 = vmatmul.mubr.f32.gmra.mxu0 %v685
      %v852 = vpop.f32.mrf.mxu0
      %v853 = vadd.f32 0.0, %v852
      %v854 = vpop.f32.mrf.mxu0
      %855 = vmatprep.mubr.f32.mxu0 0.0
      %856 = vmatmul.mubr.f32.gmra.mxu0 %v688
      %v857 = vpop.f32.mrf.mxu0
      %v858 = vadd.f32 0.0, %v857
      %v859 = vpop.f32.mrf.mxu0
      %860 = vmatprep.mubr.f32.mxu0 0.0
      %861 = vmatmul.mubr.f32.gmra.mxu0 %v691
      %v862 = vpop.f32.mrf.mxu0
      %v863 = vadd.f32 0.0, %v862
      %v864 = vpop.f32.mrf.mxu0
      %865 = vmatprep.mubr.f32.mxu0 0.0
      %866 = vmatmul.mubr.f32.gmra.mxu0 %v694
      %v867 = vpop.f32.mrf.mxu0
      %v868 = vadd.f32 0.0, %v867
      %v869 = vpop.f32.mrf.mxu0
      %870 = vmatprep.mubr.f32.mxu0 0.0
      %871 = vmatmul.mubr.f32.gmra.mxu0 %v697
      %v872 = vpop.f32.mrf.mxu0
      %v873 = vadd.f32 0.0, %v872
      %v874 = vpop.f32.mrf.mxu0
      %875 = vmatprep.mubr.f32.mxu0 0.0
      %876 = vmatmul.mubr.f32.gmra.mxu0 %v700
      %v877 = vpop.f32.mrf.mxu0
      %v878 = vadd.f32 0.0, %v877
      %v879 = vpop.f32.mrf.mxu0
      %880 = vmatprep.mubr.f32.mxu0 0.0
      %881 = vmatmul.mubr.f32.gmra.mxu0 %v703
      %v882 = vpop.f32.mrf.mxu0
      %v883 = vadd.f32 0.0, %v882
      %v884 = vpop.f32.mrf.mxu0
      %885 = vmatprep.mubr.f32.mxu0 0.0
      %886 = vmatmul.mubr.f32.gmra.mxu0 %v706
      %v887 = vpop.f32.mrf.mxu0
      %v888 = vadd.f32 0.0, %v887
      %v889 = vpop.f32.mrf.mxu0
      %890 = vmatprep.mubr.f32.mxu0 0.0
      %891 = vmatmul.mubr.f32.gmra.mxu0 %v709
      %v892 = vpop.f32.mrf.mxu0
      %v893 = vadd.f32 0.0, %v892
      %v894 = vpop.f32.mrf.mxu0
      %895 = vmatprep.mubr.f32.mxu0 0.0
      %896 = vmatmul.mubr.f32.gmra.mxu0 %v712
      %v897 = vpop.f32.mrf.mxu0
      %v898 = vadd.f32 0.0, %v897
      %v899 = vpop.f32.mrf.mxu0
      %900 = vmatprep.mubr.f32.mxu0 0.0
      %901 = vmatmul.mubr.f32.gmra.mxu0 %v715
      %v902 = vpop.f32.mrf.mxu0
      %v903 = vadd.f32 0.0, %v902
      %v904 = vpop.f32.mrf.mxu0
      %905 = vmatprep.mubr.f32.mxu0 0.0
      %906 = vmatmul.mubr.f32.gmra.mxu0 %v718
      %v907 = vpop.f32.mrf.mxu0
      %v908 = vadd.f32 0.0, %v907
      %v909 = vpop.f32.mrf.mxu0
      %910 = vmatprep.mubr.f32.mxu0 0.0
      %911 = vmatmul.mubr.f32.gmra.mxu0 %v721
      %v912 = vpop.f32.mrf.mxu0
      %v913 = vadd.f32 0.0, %v912
      %v914 = vpop.f32.mrf.mxu0
      %915 = vmatprep.mubr.f32.mxu0 0.0
      %916 = vmatmul.mubr.f32.gmra.mxu0 %v724
      %v917 = vpop.f32.mrf.mxu0
      %v918 = vadd.f32 0.0, %v917
      %v919 = vpop.f32.mrf.mxu0
      %920 = vmatprep.mubr.f32.mxu0 0.0
      %921 = vmatmul.mubr.f32.gmra.mxu0 %v727
      %v922 = vpop.f32.mrf.mxu0
      %v923 = vadd.f32 0.0, %v922
      %v924 = vpop.f32.mrf.mxu0
      %925 = vmatprep.mubr.f32.mxu0 0.0
      %926 = vmatmul.mubr.f32.gmra.mxu0 %v730
      %v927 = vpop.f32.mrf.mxu0
      %v928 = vadd.f32 0.0, %v927
      %v929 = vpop.f32.mrf.mxu0
      %930 = vmatprep.mubr.f32.mxu0 0.0
      %931 = vmatmul.mubr.f32.gmra.mxu0 %v733
      %v932 = vpop.f32.mrf.mxu0
      %v933 = vadd.f32 0.0, %v932
      %v934 = vpop.f32.mrf.mxu0
      %935 = vmatprep.mubr.f32.mxu0 0.0
      %936 = vmatmul.mubr.f32.gmra.mxu0 %v736
      %v937 = vpop.f32.mrf.mxu0
      %v938 = vadd.f32 0.0, %v937
      %v939 = vpop.f32.mrf.mxu0
      %940 = vmatprep.mubr.f32.mxu0 0.0
      %941 = vmatmul.mubr.f32.gmra.mxu0 %v739
      %v942 = vpop.f32.mrf.mxu0
      %v943 = vadd.f32 0.0, %v942
      %v944 = vpop.f32.mrf.mxu0
      %945 = vmatprep.mubr.f32.mxu0 0.0
      %946 = vmatmul.mubr.f32.gmra.mxu0 %v742
      %v947 = vpop.f32.mrf.mxu0
      %v948 = vadd.f32 0.0, %v947
      %v949 = vpop.f32.mrf.mxu0
      %950 = vmatprep.mubr.f32.mxu0 0.0
      %951 = vmatmul.mubr.f32.gmra.mxu0 %v745
      %v952 = vpop.f32.mrf.mxu0
      %v953 = vadd.f32 0.0, %v952
      %v954 = vpop.f32.mrf.mxu0
      %955 = vmatprep.mubr.f32.mxu0 0.0
      %956 = vmatmul.mubr.f32.gmra.mxu0 %v748
      %v957 = vpop.f32.mrf.mxu0
      %v958 = vadd.f32 0.0, %v957
      %v959 = vpop.f32.mrf.mxu0
      %960 = vmatprep.mubr.f32.mxu0 0.0
      %961 = vmatmul.mubr.f32.gmra.mxu0 %v751
      %v962 = vpop.f32.mrf.mxu0
      %v963 = vadd.f32 0.0, %v962
      %v964 = vpop.f32.mrf.mxu0
      %965 = vmatprep.mubr.f32.mxu0 0.0
      %966 = vmatmul.mubr.f32.gmra.mxu0 %v754
      %v967 = vpop.f32.mrf.mxu0
      %v968 = vadd.f32 0.0, %v967
      %v969 = vpop.f32.mrf.mxu0
      %970 = vmatprep.mubr.f32.mxu0 0.0
      %971 = vmatmul.mubr.f32.gmra.mxu0 %v757
      %v972 = vpop.f32.mrf.mxu0
      %v973 = vadd.f32 0.0, %v972
      %v974 = vpop.f32.mrf.mxu0
      %975 = vmatprep.mubr.f32.mxu0 0.0
      %976 = vmatmul.mubr.f32.gmra.mxu0 %v760
      %v977 = vpop.f32.mrf.mxu0
      %v978 = vadd.f32 0.0, %v977
      %v979 = vpop.f32.mrf.mxu0
      %980 = vmatprep.mubr.f32.mxu0 0.0
      %981 = vmatmul.mubr.f32.gmra.mxu0 %v763
      %v982 = vpop.f32.mrf.mxu0
      %v983 = vadd.f32 0.0, %v982
      %v984 = vpop.f32.mrf.mxu0
      %985 = vmatprep.mubr.f32.mxu0 0.0
      %986 = vmatmul.mubr.f32.gmra.mxu0 %v766
      %v987 = vpop.f32.mrf.mxu0
      %v988 = vadd.f32 0.0, %v987
      %v989 = vpop.f32.mrf.mxu0
      %990 = vmatprep.mubr.f32.mxu0 0.0
      %991 = vmatmul.mubr.f32.gmra.mxu0 %v769
      %v992 = vpop.f32.mrf.mxu0
      %v993 = vadd.f32 0.0, %v992
      %v994 = vpop.f32.mrf.mxu0
      %995 = vdwg.mxu0
      %996 = vxpose.xlu0.b32.start [1/16] %v838, 128
      %997 = vxpose.xlu0.b32.cont [2/16] %v843, 128
      %998 = vxpose.xlu0.b32.cont [3/16] %v848, 128
      %999 = vxpose.xlu0.b32.cont [4/16] %v853, 128
      %1000 = vxpose.xlu0.b32.cont [5/16] 0.0, 128
      %1001 = vxpose.xlu0.b32.cont [6/16] 0.0, 128
      %1002 = vxpose.xlu0.b32.cont [7/16] 0.0, 128
      %1003 = vxpose.xlu0.b32.cont [8/16] 0.0, 128
      %1004 = vxpose.xlu0.b32.cont [9/16] 0.0, 128
      %1005 = vxpose.xlu0.b32.cont [10/16] 0.0, 128
      %1006 = vxpose.xlu0.b32.cont [11/16] 0.0, 128
      %1007 = vxpose.xlu0.b32.cont [12/16] 0.0, 128
      %1008 = vxpose.xlu0.b32.cont [13/16] 0.0, 128
      %1009 = vxpose.xlu0.b32.cont [14/16] 0.0, 128
      %1010 = vxpose.xlu0.b32.cont [15/16] 0.0, 128
      %1011 = vxpose.xlu0.b32.end [16/16] 0.0, 128
      %v1012 = vpop.trf.xlu0
      %v1013 = vpop.trf.xlu0
      %v1014 = vpop.trf.xlu0
      %v1015 = vpop.trf.xlu0
      %v1016 = vpop.trf.xlu0
      %v1017 = vpop.trf.xlu0
      %v1018 = vpop.trf.xlu0
      %v1019 = vpop.trf.xlu0
      %v1020 = vpop.trf.xlu0
      %v1021 = vpop.trf.xlu0
      %v1022 = vpop.trf.xlu0
      %v1023 = vpop.trf.xlu0
      %v1024 = vpop.trf.xlu0
      %v1025 = vpop.trf.xlu0
      %v1026 = vpop.trf.xlu0
      %v1027 = vpop.trf.xlu0
      %1028 = vxpose.xlu0.b32.start [1/16] %v858, 128
      %1029 = vxpose.xlu0.b32.cont [2/16] %v863, 128
      %1030 = vxpose.xlu0.b32.cont [3/16] %v868, 128
      %1031 = vxpose.xlu0.b32.cont [4/16] %v873, 128
      %1032 = vxpose.xlu0.b32.cont [5/16] 0.0, 128
      %1033 = vxpose.xlu0.b32.cont [6/16] 0.0, 128
      %1034 = vxpose.xlu0.b32.cont [7/16] 0.0, 128
      %1035 = vxpose.xlu0.b32.cont [8/16] 0.0, 128
      %1036 = vxpose.xlu0.b32.cont [9/16] 0.0, 128
      %1037 = vxpose.xlu0.b32.cont [10/16] 0.0, 128
      %1038 = vxpose.xlu0.b32.cont [11/16] 0.0, 128
      %1039 = vxpose.xlu0.b32.cont [12/16] 0.0, 128
      %1040 = vxpose.xlu0.b32.cont [13/16] 0.0, 128
      %1041 = vxpose.xlu0.b32.cont [14/16] 0.0, 128
      %1042 = vxpose.xlu0.b32.cont [15/16] 0.0, 128
      %1043 = vxpose.xlu0.b32.end [16/16] 0.0, 128
      %v1044 = vpop.trf.xlu0
      %v1045 = vpop.trf.xlu0
      %v1046 = vpop.trf.xlu0
      %v1047 = vpop.trf.xlu0
      %v1048 = vpop.trf.xlu0
      %v1049 = vpop.trf.xlu0
      %v1050 = vpop.trf.xlu0
      %v1051 = vpop.trf.xlu0
      %v1052 = vpop.trf.xlu0
      %v1053 = vpop.trf.xlu0
      %v1054 = vpop.trf.xlu0
      %v1055 = vpop.trf.xlu0
      %v1056 = vpop.trf.xlu0
      %v1057 = vpop.trf.xlu0
      %v1058 = vpop.trf.xlu0
      %v1059 = vpop.trf.xlu0
      %1060 = vxpose.xlu0.b32.start [1/16] %v878, 128
      %1061 = vxpose.xlu0.b32.cont [2/16] %v883, 128
      %1062 = vxpose.xlu0.b32.cont [3/16] %v888, 128
      %1063 = vxpose.xlu0.b32.cont [4/16] %v893, 128
      %1064 = vxpose.xlu0.b32.cont [5/16] 0.0, 128
      %1065 = vxpose.xlu0.b32.cont [6/16] 0.0, 128
      %1066 = vxpose.xlu0.b32.cont [7/16] 0.0, 128
      %1067 = vxpose.xlu0.b32.cont [8/16] 0.0, 128
      %1068 = vxpose.xlu0.b32.cont [9/16] 0.0, 128
      %1069 = vxpose.xlu0.b32.cont [10/16] 0.0, 128
      %1070 = vxpose.xlu0.b32.cont [11/16] 0.0, 128
      %1071 = vxpose.xlu0.b32.cont [12/16] 0.0, 128
      %1072 = vxpose.xlu0.b32.cont [13/16] 0.0, 128
      %1073 = vxpose.xlu0.b32.cont [14/16] 0.0, 128
      %1074 = vxpose.xlu0.b32.cont [15/16] 0.0, 128
      %1075 = vxpose.xlu0.b32.end [16/16] 0.0, 128
      %v1076 = vpop.trf.xlu0
      %v1077 = vpop.trf.xlu0
      %v1078 = vpop.trf.xlu0
      %v1079 = vpop.trf.xlu0
      %v1080 = vpop.trf.xlu0
      %v1081 = vpop.trf.xlu0
      %v1082 = vpop.trf.xlu0
      %v1083 = vpop.trf.xlu0
      %v1084 = vpop.trf.xlu0
      %v1085 = vpop.trf.xlu0
      %v1086 = vpop.trf.xlu0
      %v1087 = vpop.trf.xlu0
      %v1088 = vpop.trf.xlu0
      %v1089 = vpop.trf.xlu0
      %v1090 = vpop.trf.xlu0
      %v1091 = vpop.trf.xlu0
      %1092 = vxpose.xlu0.b32.start [1/16] %v898, 128
      %1093 = vxpose.xlu0.b32.cont [2/16] %v903, 128
      %1094 = vxpose.xlu0.b32.cont [3/16] %v908, 128
      %1095 = vxpose.xlu0.b32.cont [4/16] %v913, 128
      %1096 = vxpose.xlu0.b32.cont [5/16] 0.0, 128
      %1097 = vxpose.xlu0.b32.cont [6/16] 0.0, 128
      %1098 = vxpose.xlu0.b32.cont [7/16] 0.0, 128
      %1099 = vxpose.xlu0.b32.cont [8/16] 0.0, 128
      %1100 = vxpose.xlu0.b32.cont [9/16] 0.0, 128
      %1101 = vxpose.xlu0.b32.cont [10/16] 0.0, 128
      %1102 = vxpose.xlu0.b32.cont [11/16] 0.0, 128
      %1103 = vxpose.xlu0.b32.cont [12/16] 0.0, 128
      %1104 = vxpose.xlu0.b32.cont [13/16] 0.0, 128
      %1105 = vxpose.xlu0.b32.cont [14/16] 0.0, 128
      %1106 = vxpose.xlu0.b32.cont [15/16] 0.0, 128
      %1107 = vxpose.xlu0.b32.end [16/16] 0.0, 128
      %v1108 = vpop.trf.xlu0
      %v1109 = vpop.trf.xlu0
      %v1110 = vpop.trf.xlu0
      %v1111 = vpop.trf.xlu0
      %v1112 = vpop.trf.xlu0
      %v1113 = vpop.trf.xlu0
      %v1114 = vpop.trf.xlu0
      %v1115 = vpop.trf.xlu0
      %v1116 = vpop.trf.xlu0
      %v1117 = vpop.trf.xlu0
      %v1118 = vpop.trf.xlu0
      %v1119 = vpop.trf.xlu0
      %v1120 = vpop.trf.xlu0
      %v1121 = vpop.trf.xlu0
      %v1122 = vpop.trf.xlu0
      %v1123 = vpop.trf.xlu0
      %1124 = vxpose.xlu0.b32.start [1/16] %v918, 128
      %1125 = vxpose.xlu0.b32.cont [2/16] %v923, 128
      %1126 = vxpose.xlu0.b32.cont [3/16] %v928, 128
      %1127 = vxpose.xlu0.b32.cont [4/16] %v933, 128
      %1128 = vxpose.xlu0.b32.cont [5/16] 0.0, 128
      %1129 = vxpose.xlu0.b32.cont [6/16] 0.0, 128
      %1130 = vxpose.xlu0.b32.cont [7/16] 0.0, 128
      %1131 = vxpose.xlu0.b32.cont [8/16] 0.0, 128
      %1132 = vxpose.xlu0.b32.cont [9/16] 0.0, 128
      %1133 = vxpose.xlu0.b32.cont [10/16] 0.0, 128
      %1134 = vxpose.xlu0.b32.cont [11/16] 0.0, 128
      %1135 = vxpose.xlu0.b32.cont [12/16] 0.0, 128
      %1136 = vxpose.xlu0.b32.cont [13/16] 0.0, 128
      %1137 = vxpose.xlu0.b32.cont [14/16] 0.0, 128
      %1138 = vxpose.xlu0.b32.cont [15/16] 0.0, 128
      %1139 = vxpose.xlu0.b32.end [16/16] 0.0, 128
      %v1140 = vpop.trf.xlu0
      %v1141 = vpop.trf.xlu0
      %v1142 = vpop.trf.xlu0
      %v1143 = vpop.trf.xlu0
      %v1144 = vpop.trf.xlu0
      %v1145 = vpop.trf.xlu0
      %v1146 = vpop.trf.xlu0
      %v1147 = vpop.trf.xlu0
      %v1148 = vpop.trf.xlu0
      %v1149 = vpop.trf.xlu0
      %v1150 = vpop.trf.xlu0
      %v1151 = vpop.trf.xlu0
      %v1152 = vpop.trf.xlu0
      %v1153 = vpop.trf.xlu0
      %v1154 = vpop.trf.xlu0
      %v1155 = vpop.trf.xlu0
      %1156 = vxpose.xlu0.b32.start [1/16] %v938, 128
      %1157 = vxpose.xlu0.b32.cont [2/16] %v943, 128
      %1158 = vxpose.xlu0.b32.cont [3/16] %v948, 128
      %1159 = vxpose.xlu0.b32.cont [4/16] %v953, 128
      %1160 = vxpose.xlu0.b32.cont [5/16] 0.0, 128
      %1161 = vxpose.xlu0.b32.cont [6/16] 0.0, 128
      %1162 = vxpose.xlu0.b32.cont [7/16] 0.0, 128
      %1163 = vxpose.xlu0.b32.cont [8/16] 0.0, 128
      %1164 = vxpose.xlu0.b32.cont [9/16] 0.0, 128
      %1165 = vxpose.xlu0.b32.cont [10/16] 0.0, 128
      %1166 = vxpose.xlu0.b32.cont [11/16] 0.0, 128
      %1167 = vxpose.xlu0.b32.cont [12/16] 0.0, 128
      %1168 = vxpose.xlu0.b32.cont [13/16] 0.0, 128
      %1169 = vxpose.xlu0.b32.cont [14/16] 0.0, 128
      %1170 = vxpose.xlu0.b32.cont [15/16] 0.0, 128
      %1171 = vxpose.xlu0.b32.end [16/16] 0.0, 128
      %v1172 = vpop.trf.xlu0
      %v1173 = vpop.trf.xlu0
      %v1174 = vpop.trf.xlu0
      %v1175 = vpop.trf.xlu0
      %v1176 = vpop.trf.xlu0
      %v1177 = vpop.trf.xlu0
      %v1178 = vpop.trf.xlu0
      %v1179 = vpop.trf.xlu0
      %v1180 = vpop.trf.xlu0
      %v1181 = vpop.trf.xlu0
      %v1182 = vpop.trf.xlu0
      %v1183 = vpop.trf.xlu0
      %v1184 = vpop.trf.xlu0
      %v1185 = vpop.trf.xlu0
      %v1186 = vpop.trf.xlu0
      %v1187 = vpop.trf.xlu0
      %1188 = vxpose.xlu0.b32.start [1/16] %v958, 128
      %1189 = vxpose.xlu0.b32.cont [2/16] %v963, 128
      %1190 = vxpose.xlu0.b32.cont [3/16] %v968, 128
      %1191 = vxpose.xlu0.b32.cont [4/16] %v973, 128
      %1192 = vxpose.xlu0.b32.cont [5/16] 0.0, 128
      %1193 = vxpose.xlu0.b32.cont [6/16] 0.0, 128
      %1194 = vxpose.xlu0.b32.cont [7/16] 0.0, 128
      %1195 = vxpose.xlu0.b32.cont [8/16] 0.0, 128
      %1196 = vxpose.xlu0.b32.cont [9/16] 0.0, 128
      %1197 = vxpose.xlu0.b32.cont [10/16] 0.0, 128
      %1198 = vxpose.xlu0.b32.cont [11/16] 0.0, 128
      %1199 = vxpose.xlu0.b32.cont [12/16] 0.0, 128
      %1200 = vxpose.xlu0.b32.cont [13/16] 0.0, 128
      %1201 = vxpose.xlu0.b32.cont [14/16] 0.0, 128
      %1202 = vxpose.xlu0.b32.cont [15/16] 0.0, 128
      %1203 = vxpose.xlu0.b32.end [16/16] 0.0, 128
      %v1204 = vpop.trf.xlu0
      %v1205 = vpop.trf.xlu0
      %v1206 = vpop.trf.xlu0
      %v1207 = vpop.trf.xlu0
      %v1208 = vpop.trf.xlu0
      %v1209 = vpop.trf.xlu0
      %v1210 = vpop.trf.xlu0
      %v1211 = vpop.trf.xlu0
      %v1212 = vpop.trf.xlu0
      %v1213 = vpop.trf.xlu0
      %v1214 = vpop.trf.xlu0
      %v1215 = vpop.trf.xlu0
      %v1216 = vpop.trf.xlu0
      %v1217 = vpop.trf.xlu0
      %v1218 = vpop.trf.xlu0
      %v1219 = vpop.trf.xlu0
      %1220 = vxpose.xlu0.b32.start [1/16] %v978, 128
      %1221 = vxpose.xlu0.b32.cont [2/16] %v983, 128
      %1222 = vxpose.xlu0.b32.cont [3/16] %v988, 128
      %1223 = vxpose.xlu0.b32.cont [4/16] %v993, 128
      %1224 = vxpose.xlu0.b32.cont [5/16] 0.0, 128
      %1225 = vxpose.xlu0.b32.cont [6/16] 0.0, 128
      %1226 = vxpose.xlu0.b32.cont [7/16] 0.0, 128
      %1227 = vxpose.xlu0.b32.cont [8/16] 0.0, 128
      %1228 = vxpose.xlu0.b32.cont [9/16] 0.0, 128
      %1229 = vxpose.xlu0.b32.cont [10/16] 0.0, 128
      %1230 = vxpose.xlu0.b32.cont [11/16] 0.0, 128
      %1231 = vxpose.xlu0.b32.cont [12/16] 0.0, 128
      %1232 = vxpose.xlu0.b32.cont [13/16] 0.0, 128
      %1233 = vxpose.xlu0.b32.cont [14/16] 0.0, 128
      %1234 = vxpose.xlu0.b32.cont [15/16] 0.0, 128
      %1235 = vxpose.xlu0.b32.end [16/16] 0.0, 128
      %v1236 = vpop.trf.xlu0
      %v1237 = vpop.trf.xlu0
      %v1238 = vpop.trf.xlu0
      %v1239 = vpop.trf.xlu0
      %v1240 = vpop.trf.xlu0
      %v1241 = vpop.trf.xlu0
      %v1242 = vpop.trf.xlu0
      %v1243 = vpop.trf.xlu0
      %v1244 = vpop.trf.xlu0
      %v1245 = vpop.trf.xlu0
      %v1246 = vpop.trf.xlu0
      %v1247 = vpop.trf.xlu0
      %v1248 = vpop.trf.xlu0
      %v1249 = vpop.trf.xlu0
      %v1250 = vpop.trf.xlu0
      %v1251 = vpop.trf.xlu0
      %v1252 = vld [vmem:[%s266] sm:$0xff]
      %v1253 = vld [vmem:[%s266 + $0x8] sm:$0xff]
      %v1254 = vld [vmem:[%s266 + $0x10] sm:$0xff]
      %v1255 = vld [vmem:[%s266 + $0x18] sm:$0xff]
      %v1256 = vld [vmem:[%s266 + $0x20] sm:$0xff]
      %v1257 = vld [vmem:[%s266 + $0x28] sm:$0xff]
      %v1258 = vld [vmem:[%s266 + $0x30] sm:$0xff]
      %v1259 = vld [vmem:[%s266 + $0x38] sm:$0xff]
      %v1260 = vld [vmem:[%s266 + $0x40] sm:$0xff]
      %v1261 = vld [vmem:[%s266 + $0x48] sm:$0xff]
      %v1262 = vld [vmem:[%s266 + $0x50] sm:$0xff]
      %v1263 = vld [vmem:[%s266 + $0x58] sm:$0xff]
      %v1264 = vld [vmem:[%s266 + $0x60] sm:$0xff]
      %v1265 = vld [vmem:[%s266 + $0x68] sm:$0xff]
      %v1266 = vld [vmem:[%s266 + $0x70] sm:$0xff]
      %v1267 = vld [vmem:[%s266 + $0x78] sm:$0xff]
      %v1268 = vld [vmem:[%s266 + $0x80] sm:$0xff]
      %v1269 = vld [vmem:[%s266 + $0x88] sm:$0xff]
      %v1270 = vld [vmem:[%s266 + $0x90] sm:$0xff]
      %v1271 = vld [vmem:[%s266 + $0x98] sm:$0xff]
      %v1272 = vld [vmem:[%s266 + $0xa0] sm:$0xff]
      %v1273 = vld [vmem:[%s266 + $0xa8] sm:$0xff]
      %v1274 = vld [vmem:[%s266 + $0xb0] sm:$0xff]
      %v1275 = vld [vmem:[%s266 + $0xb8] sm:$0xff]
      %v1276 = vld [vmem:[%s266 + $0xc0] sm:$0xff]
      %v1277 = vld [vmem:[%s266 + $0xc8] sm:$0xff]
      %v1278 = vld [vmem:[%s266 + $0xd0] sm:$0xff]
      %v1279 = vld [vmem:[%s266 + $0xd8] sm:$0xff]
      %v1280 = vld [vmem:[%s266 + $0xe0] sm:$0xff]
      %v1281 = vld [vmem:[%s266 + $0xe8] sm:$0xff]
      %v1282 = vld [vmem:[%s266 + $0xf0] sm:$0xff]
      %v1283 = vld [vmem:[%s266 + $0xf8] sm:$0xff]
      %v1284 = vld [vmem:[%s4] sm:$0x1]
      %v1285 = vld [vmem:[%s4 + $0x8] sm:$0x1]
      %v1286 = vld [vmem:[%s4 + $0x10] sm:$0x1]
      %v1287 = vld [vmem:[%s4 + $0x18] sm:$0x1]
      %v1288 = vld [vmem:[%s4 + $0x20] sm:$0x1]
      %v1289 = vld [vmem:[%s4 + $0x28] sm:$0x1]
      %v1290 = vld [vmem:[%s4 + $0x30] sm:$0x1]
      %v1291 = vld [vmem:[%s4 + $0x38] sm:$0x1]
      %v1292 = vld [vmem:[%s4 + $0x40] sm:$0x1]
      %v1293 = vld [vmem:[%s4 + $0x48] sm:$0x1]
      %v1294 = vld [vmem:[%s4 + $0x50] sm:$0x1]
      %v1295 = vld [vmem:[%s4 + $0x58] sm:$0x1]
      %v1296 = vld [vmem:[%s4 + $0x60] sm:$0x1]
      %v1297 = vld [vmem:[%s4 + $0x68] sm:$0x1]
      %v1298 = vld [vmem:[%s4 + $0x70] sm:$0x1]
      %v1299 = vld [vmem:[%s4 + $0x78] sm:$0x1]
      %s1301 = vtos %v1284
      %v1302 = vstv %s1301
      %s1305 = vtos %v1285
      %v1306 = vstv %s1305
      %s1309 = vtos %v1286
      %v1310 = vstv %s1309
      %s1313 = vtos %v1287
      %v1314 = vstv %s1313
      %s1317 = vtos %v1288
      %v1318 = vstv %s1317
      %s1321 = vtos %v1289
      %v1322 = vstv %s1321
      %s1325 = vtos %v1290
      %v1326 = vstv %s1325
      %s1329 = vtos %v1291
      %v1330 = vstv %s1329
      %s1333 = vtos %v1292
      %v1334 = vstv %s1333
      %s1337 = vtos %v1293
      %v1338 = vstv %s1337
      %s1341 = vtos %v1294
      %v1342 = vstv %s1341
      %s1345 = vtos %v1295
      %v1346 = vstv %s1345
      %s1349 = vtos %v1296
      %v1350 = vstv %s1349
      %s1353 = vtos %v1297
      %v1354 = vstv %s1353
      %s1357 = vtos %v1298
      %v1358 = vstv %s1357
      %s1361 = vtos %v1299
      %v1362 = vstv %s1361
      %v1364 = vmul.f32 %v1302, %v1012
      %v1365 = vmul.f32 %v1302, %v1013
      %v1366 = vmul.f32 %v1306, %v1012
      %v1367 = vmul.f32 %v1306, %v1013
      %v1368 = vmul.f32 %v1310, %v1012
      %v1369 = vmul.f32 %v1310, %v1013
      %v1370 = vmul.f32 %v1314, %v1012
      %v1371 = vmul.f32 %v1314, %v1013
      %v1372 = vmul.f32 %v1318, %v1012
      %v1373 = vmul.f32 %v1318, %v1013
      %v1374 = vmul.f32 %v1322, %v1012
      %v1375 = vmul.f32 %v1322, %v1013
      %v1376 = vmul.f32 %v1326, %v1012
      %v1377 = vmul.f32 %v1326, %v1013
      %v1378 = vmul.f32 %v1330, %v1012
      %v1379 = vmul.f32 %v1330, %v1013
      %v1380 = vmul.f32 %v1334, %v1012
      %v1381 = vmul.f32 %v1334, %v1013
      %v1382 = vmul.f32 %v1338, %v1012
      %v1383 = vmul.f32 %v1338, %v1013
      %v1384 = vmul.f32 %v1342, %v1012
      %v1385 = vmul.f32 %v1342, %v1013
      %v1386 = vmul.f32 %v1346, %v1012
      %v1387 = vmul.f32 %v1346, %v1013
      %v1388 = vmul.f32 %v1350, %v1012
      %v1389 = vmul.f32 %v1350, %v1013
      %v1390 = vmul.f32 %v1354, %v1012
      %v1391 = vmul.f32 %v1354, %v1013
      %v1392 = vmul.f32 %v1358, %v1012
      %v1393 = vmul.f32 %v1358, %v1013
      %v1394 = vmul.f32 %v1362, %v1012
      %v1395 = vmul.f32 %v1362, %v1013
      %v1396 = vadd.f32 %v1252, %v1364
      %v1397 = vadd.f32 %v1253, %v1365
      %v1398 = vadd.f32 %v1254, %v1366
      %v1399 = vadd.f32 %v1255, %v1367
      %v1400 = vadd.f32 %v1256, %v1368
      %v1401 = vadd.f32 %v1257, %v1369
      %v1402 = vadd.f32 %v1258, %v1370
      %v1403 = vadd.f32 %v1259, %v1371
      %v1404 = vadd.f32 %v1260, %v1372
      %v1405 = vadd.f32 %v1261, %v1373
      %v1406 = vadd.f32 %v1262, %v1374
      %v1407 = vadd.f32 %v1263, %v1375
      %v1408 = vadd.f32 %v1264, %v1376
      %v1409 = vadd.f32 %v1265, %v1377
      %v1410 = vadd.f32 %v1266, %v1378
      %v1411 = vadd.f32 %v1267, %v1379
      %v1412 = vadd.f32 %v1268, %v1380
      %v1413 = vadd.f32 %v1269, %v1381
      %v1414 = vadd.f32 %v1270, %v1382
      %v1415 = vadd.f32 %v1271, %v1383
      %v1416 = vadd.f32 %v1272, %v1384
      %v1417 = vadd.f32 %v1273, %v1385
      %v1418 = vadd.f32 %v1274, %v1386
      %v1419 = vadd.f32 %v1275, %v1387
      %v1420 = vadd.f32 %v1276, %v1388
      %v1421 = vadd.f32 %v1277, %v1389
      %v1422 = vadd.f32 %v1278, %v1390
      %v1423 = vadd.f32 %v1279, %v1391
      %v1424 = vadd.f32 %v1280, %v1392
      %v1425 = vadd.f32 %v1281, %v1393
      %v1426 = vadd.f32 %v1282, %v1394
      %v1427 = vadd.f32 %v1283, %v1395
      %v1428 = vld [vmem:[%s4 + $0x1] sm:$0x1]
      %v1429 = vld [vmem:[%s4 + $0x9] sm:$0x1]
      %v1430 = vld [vmem:[%s4 + $0x11] sm:$0x1]
      %v1431 = vld [vmem:[%s4 + $0x19] sm:$0x1]
      %v1432 = vld [vmem:[%s4 + $0x21] sm:$0x1]
      %v1433 = vld [vmem:[%s4 + $0x29] sm:$0x1]
      %v1434 = vld [vmem:[%s4 + $0x31] sm:$0x1]
      %v1435 = vld [vmem:[%s4 + $0x39] sm:$0x1]
      %v1436 = vld [vmem:[%s4 + $0x41] sm:$0x1]
      %v1437 = vld [vmem:[%s4 + $0x49] sm:$0x1]
      %v1438 = vld [vmem:[%s4 + $0x51] sm:$0x1]
      %v1439 = vld [vmem:[%s4 + $0x59] sm:$0x1]
      %v1440 = vld [vmem:[%s4 + $0x61] sm:$0x1]
      %v1441 = vld [vmem:[%s4 + $0x69] sm:$0x1]
      %v1442 = vld [vmem:[%s4 + $0x71] sm:$0x1]
      %v1443 = vld [vmem:[%s4 + $0x79] sm:$0x1]
      %s1445 = vtos %v1428
      %v1446 = vstv %s1445
      %s1449 = vtos %v1429
      %v1450 = vstv %s1449
      %s1453 = vtos %v1430
      %v1454 = vstv %s1453
      %s1457 = vtos %v1431
      %v1458 = vstv %s1457
      %s1461 = vtos %v1432
      %v1462 = vstv %s1461
      %s1465 = vtos %v1433
      %v1466 = vstv %s1465
      %s1469 = vtos %v1434
      %v1470 = vstv %s1469
      %s1473 = vtos %v1435
      %v1474 = vstv %s1473
      %s1477 = vtos %v1436
      %v1478 = vstv %s1477
      %s1481 = vtos %v1437
      %v1482 = vstv %s1481
      %s1485 = vtos %v1438
      %v1486 = vstv %s1485
      %s1489 = vtos %v1439
      %v1490 = vstv %s1489
      %s1493 = vtos %v1440
      %v1494 = vstv %s1493
      %s1497 = vtos %v1441
      %v1498 = vstv %s1497
      %s1501 = vtos %v1442
      %v1502 = vstv %s1501
      %s1505 = vtos %v1443
      %v1506 = vstv %s1505
      %v1508 = vmul.f32 %v1446, %v1044
      %v1509 = vmul.f32 %v1446, %v1045
      %v1510 = vmul.f32 %v1450, %v1044
      %v1511 = vmul.f32 %v1450, %v1045
      %v1512 = vmul.f32 %v1454, %v1044
      %v1513 = vmul.f32 %v1454, %v1045
      %v1514 = vmul.f32 %v1458, %v1044
      %v1515 = vmul.f32 %v1458, %v1045
      %v1516 = vmul.f32 %v1462, %v1044
      %v1517 = vmul.f32 %v1462, %v1045
      %v1518 = vmul.f32 %v1466, %v1044
      %v1519 = vmul.f32 %v1466, %v1045
      %v1520 = vmul.f32 %v1470, %v1044
      %v1521 = vmul.f32 %v1470, %v1045
      %v1522 = vmul.f32 %v1474, %v1044
      %v1523 = vmul.f32 %v1474, %v1045
      %v1524 = vmul.f32 %v1478, %v1044
      %v1525 = vmul.f32 %v1478, %v1045
      %v1526 = vmul.f32 %v1482, %v1044
      %v1527 = vmul.f32 %v1482, %v1045
      %v1528 = vmul.f32 %v1486, %v1044
      %v1529 = vmul.f32 %v1486, %v1045
      %v1530 = vmul.f32 %v1490, %v1044
      %v1531 = vmul.f32 %v1490, %v1045
      %v1532 = vmul.f32 %v1494, %v1044
      %v1533 = vmul.f32 %v1494, %v1045
      %v1534 = vmul.f32 %v1498, %v1044
      %v1535 = vmul.f32 %v1498, %v1045
      %v1536 = vmul.f32 %v1502, %v1044
      %v1537 = vmul.f32 %v1502, %v1045
      %v1538 = vmul.f32 %v1506, %v1044
      %v1539 = vmul.f32 %v1506, %v1045
      %v1540 = vadd.f32 %v1396, %v1508
      %v1541 = vadd.f32 %v1397, %v1509
      %v1542 = vadd.f32 %v1398, %v1510
      %v1543 = vadd.f32 %v1399, %v1511
      %v1544 = vadd.f32 %v1400, %v1512
      %v1545 = vadd.f32 %v1401, %v1513
      %v1546 = vadd.f32 %v1402, %v1514
      %v1547 = vadd.f32 %v1403, %v1515
      %v1548 = vadd.f32 %v1404, %v1516
      %v1549 = vadd.f32 %v1405, %v1517
      %v1550 = vadd.f32 %v1406, %v1518
      %v1551 = vadd.f32 %v1407, %v1519
      %v1552 = vadd.f32 %v1408, %v1520
      %v1553 = vadd.f32 %v1409, %v1521
      %v1554 = vadd.f32 %v1410, %v1522
      %v1555 = vadd.f32 %v1411, %v1523
      %v1556 = vadd.f32 %v1412, %v1524
      %v1557 = vadd.f32 %v1413, %v1525
      %v1558 = vadd.f32 %v1414, %v1526
      %v1559 = vadd.f32 %v1415, %v1527
      %v1560 = vadd.f32 %v1416, %v1528
      %v1561 = vadd.f32 %v1417, %v1529
      %v1562 = vadd.f32 %v1418, %v1530
      %v1563 = vadd.f32 %v1419, %v1531
      %v1564 = vadd.f32 %v1420, %v1532
      %v1565 = vadd.f32 %v1421, %v1533
      %v1566 = vadd.f32 %v1422, %v1534
      %v1567 = vadd.f32 %v1423, %v1535
      %v1568 = vadd.f32 %v1424, %v1536
      %v1569 = vadd.f32 %v1425, %v1537
      %v1570 = vadd.f32 %v1426, %v1538
      %v1571 = vadd.f32 %v1427, %v1539
      %v1572 = vld [vmem:[%s4 + $0x2] sm:$0x1]
      %v1573 = vld [vmem:[%s4 + $0xa] sm:$0x1]
      %v1574 = vld [vmem:[%s4 + $0x12] sm:$0x1]
      %v1575 = vld [vmem:[%s4 + $0x1a] sm:$0x1]
      %v1576 = vld [vmem:[%s4 + $0x22] sm:$0x1]
      %v1577 = vld [vmem:[%s4 + $0x2a] sm:$0x1]
      %v1578 = vld [vmem:[%s4 + $0x32] sm:$0x1]
      %v1579 = vld [vmem:[%s4 + $0x3a] sm:$0x1]
      %v1580 = vld [vmem:[%s4 + $0x42] sm:$0x1]
      %v1581 = vld [vmem:[%s4 + $0x4a] sm:$0x1]
      %v1582 = vld [vmem:[%s4 + $0x52] sm:$0x1]
      %v1583 = vld [vmem:[%s4 + $0x5a] sm:$0x1]
      %v1584 = vld [vmem:[%s4 + $0x62] sm:$0x1]
      %v1585 = vld [vmem:[%s4 + $0x6a] sm:$0x1]
      %v1586 = vld [vmem:[%s4 + $0x72] sm:$0x1]
      %v1587 = vld [vmem:[%s4 + $0x7a] sm:$0x1]
      %s1589 = vtos %v1572
      %v1590 = vstv %s1589
      %s1593 = vtos %v1573
      %v1594 = vstv %s1593
      %s1597 = vtos %v1574
      %v1598 = vstv %s1597
      %s1601 = vtos %v1575
      %v1602 = vstv %s1601
      %s1605 = vtos %v1576
      %v1606 = vstv %s1605
      %s1609 = vtos %v1577
      %v1610 = vstv %s1609
      %s1613 = vtos %v1578
      %v1614 = vstv %s1613
      %s1617 = vtos %v1579
      %v1618 = vstv %s1617
      %s1621 = vtos %v1580
      %v1622 = vstv %s1621
      %s1625 = vtos %v1581
      %v1626 = vstv %s1625
      %s1629 = vtos %v1582
      %v1630 = vstv %s1629
      %s1633 = vtos %v1583
      %v1634 = vstv %s1633
      %s1637 = vtos %v1584
      %v1638 = vstv %s1637
      %s1641 = vtos %v1585
      %v1642 = vstv %s1641
      %s1645 = vtos %v1586
      %v1646 = vstv %s1645
      %s1649 = vtos %v1587
      %v1650 = vstv %s1649
      %v1652 = vmul.f32 %v1590, %v1076
      %v1653 = vmul.f32 %v1590, %v1077
      %v1654 = vmul.f32 %v1594, %v1076
      %v1655 = vmul.f32 %v1594, %v1077
      %v1656 = vmul.f32 %v1598, %v1076
      %v1657 = vmul.f32 %v1598, %v1077
      %v1658 = vmul.f32 %v1602, %v1076
      %v1659 = vmul.f32 %v1602, %v1077
      %v1660 = vmul.f32 %v1606, %v1076
      %v1661 = vmul.f32 %v1606, %v1077
      %v1662 = vmul.f32 %v1610, %v1076
      %v1663 = vmul.f32 %v1610, %v1077
      %v1664 = vmul.f32 %v1614, %v1076
      %v1665 = vmul.f32 %v1614, %v1077
      %v1666 = vmul.f32 %v1618, %v1076
      %v1667 = vmul.f32 %v1618, %v1077
      %v1668 = vmul.f32 %v1622, %v1076
      %v1669 = vmul.f32 %v1622, %v1077
      %v1670 = vmul.f32 %v1626, %v1076
      %v1671 = vmul.f32 %v1626, %v1077
      %v1672 = vmul.f32 %v1630, %v1076
      %v1673 = vmul.f32 %v1630, %v1077
      %v1674 = vmul.f32 %v1634, %v1076
      %v1675 = vmul.f32 %v1634, %v1077
      %v1676 = vmul.f32 %v1638, %v1076
      %v1677 = vmul.f32 %v1638, %v1077
      %v1678 = vmul.f32 %v1642, %v1076
      %v1679 = vmul.f32 %v1642, %v1077
      %v1680 = vmul.f32 %v1646, %v1076
      %v1681 = vmul.f32 %v1646, %v1077
      %v1682 = vmul.f32 %v1650, %v1076
      %v1683 = vmul.f32 %v1650, %v1077
      %v1684 = vadd.f32 %v1540, %v1652
      %v1685 = vadd.f32 %v1541, %v1653
      %v1686 = vadd.f32 %v1542, %v1654
      %v1687 = vadd.f32 %v1543, %v1655
      %v1688 = vadd.f32 %v1544, %v1656
      %v1689 = vadd.f32 %v1545, %v1657
      %v1690 = vadd.f32 %v1546, %v1658
      %v1691 = vadd.f32 %v1547, %v1659
      %v1692 = vadd.f32 %v1548, %v1660
      %v1693 = vadd.f32 %v1549, %v1661
      %v1694 = vadd.f32 %v1550, %v1662
      %v1695 = vadd.f32 %v1551, %v1663
      %v1696 = vadd.f32 %v1552, %v1664
      %v1697 = vadd.f32 %v1553, %v1665
      %v1698 = vadd.f32 %v1554, %v1666
      %v1699 = vadd.f32 %v1555, %v1667
      %v1700 = vadd.f32 %v1556, %v1668
      %v1701 = vadd.f32 %v1557, %v1669
      %v1702 = vadd.f32 %v1558, %v1670
      %v1703 = vadd.f32 %v1559, %v1671
      %v1704 = vadd.f32 %v1560, %v1672
      %v1705 = vadd.f32 %v1561, %v1673
      %v1706 = vadd.f32 %v1562, %v1674
      %v1707 = vadd.f32 %v1563, %v1675
      %v1708 = vadd.f32 %v1564, %v1676
      %v1709 = vadd.f32 %v1565, %v1677
      %v1710 = vadd.f32 %v1566, %v1678
      %v1711 = vadd.f32 %v1567, %v1679
      %v1712 = vadd.f32 %v1568, %v1680
      %v1713 = vadd.f32 %v1569, %v1681
      %v1714 = vadd.f32 %v1570, %v1682
      %v1715 = vadd.f32 %v1571, %v1683
      %v1716 = vld [vmem:[%s4 + $0x3] sm:$0x1]
      %v1717 = vld [vmem:[%s4 + $0xb] sm:$0x1]
      %v1718 = vld [vmem:[%s4 + $0x13] sm:$0x1]
      %v1719 = vld [vmem:[%s4 + $0x1b] sm:$0x1]
      %v1720 = vld [vmem:[%s4 + $0x23] sm:$0x1]
      %v1721 = vld [vmem:[%s4 + $0x2b] sm:$0x1]
      %v1722 = vld [vmem:[%s4 + $0x33] sm:$0x1]
      %v1723 = vld [vmem:[%s4 + $0x3b] sm:$0x1]
      %v1724 = vld [vmem:[%s4 + $0x43] sm:$0x1]
      %v1725 = vld [vmem:[%s4 + $0x4b] sm:$0x1]
      %v1726 = vld [vmem:[%s4 + $0x53] sm:$0x1]
      %v1727 = vld [vmem:[%s4 + $0x5b] sm:$0x1]
      %v1728 = vld [vmem:[%s4 + $0x63] sm:$0x1]
      %v1729 = vld [vmem:[%s4 + $0x6b] sm:$0x1]
      %v1730 = vld [vmem:[%s4 + $0x73] sm:$0x1]
      %v1731 = vld [vmem:[%s4 + $0x7b] sm:$0x1]
      %s1733 = vtos %v1716
      %v1734 = vstv %s1733
      %s1737 = vtos %v1717
      %v1738 = vstv %s1737
      %s1741 = vtos %v1718
      %v1742 = vstv %s1741
      %s1745 = vtos %v1719
      %v1746 = vstv %s1745
      %s1749 = vtos %v1720
      %v1750 = vstv %s1749
      %s1753 = vtos %v1721
      %v1754 = vstv %s1753
      %s1757 = vtos %v1722
      %v1758 = vstv %s1757
      %s1761 = vtos %v1723
      %v1762 = vstv %s1761
      %s1765 = vtos %v1724
      %v1766 = vstv %s1765
      %s1769 = vtos %v1725
      %v1770 = vstv %s1769
      %s1773 = vtos %v1726
      %v1774 = vstv %s1773
      %s1777 = vtos %v1727
      %v1778 = vstv %s1777
      %s1781 = vtos %v1728
      %v1782 = vstv %s1781
      %s1785 = vtos %v1729
      %v1786 = vstv %s1785
      %s1789 = vtos %v1730
      %v1790 = vstv %s1789
      %s1793 = vtos %v1731
      %v1794 = vstv %s1793
      %v1796 = vmul.f32 %v1734, %v1108
      %v1797 = vmul.f32 %v1734, %v1109
      %v1798 = vmul.f32 %v1738, %v1108
      %v1799 = vmul.f32 %v1738, %v1109
      %v1800 = vmul.f32 %v1742, %v1108
      %v1801 = vmul.f32 %v1742, %v1109
      %v1802 = vmul.f32 %v1746, %v1108
      %v1803 = vmul.f32 %v1746, %v1109
      %v1804 = vmul.f32 %v1750, %v1108
      %v1805 = vmul.f32 %v1750, %v1109
      %v1806 = vmul.f32 %v1754, %v1108
      %v1807 = vmul.f32 %v1754, %v1109
      %v1808 = vmul.f32 %v1758, %v1108
      %v1809 = vmul.f32 %v1758, %v1109
      %v1810 = vmul.f32 %v1762, %v1108
      %v1811 = vmul.f32 %v1762, %v1109
      %v1812 = vmul.f32 %v1766, %v1108
      %v1813 = vmul.f32 %v1766, %v1109
      %v1814 = vmul.f32 %v1770, %v1108
      %v1815 = vmul.f32 %v1770, %v1109
      %v1816 = vmul.f32 %v1774, %v1108
      %v1817 = vmul.f32 %v1774, %v1109
      %v1818 = vmul.f32 %v1778, %v1108
      %v1819 = vmul.f32 %v1778, %v1109
      %v1820 = vmul.f32 %v1782, %v1108
      %v1821 = vmul.f32 %v1782, %v1109
      %v1822 = vmul.f32 %v1786, %v1108
      %v1823 = vmul.f32 %v1786, %v1109
      %v1824 = vmul.f32 %v1790, %v1108
      %v1825 = vmul.f32 %v1790, %v1109
      %v1826 = vmul.f32 %v1794, %v1108
      %v1827 = vmul.f32 %v1794, %v1109
      %v1828 = vadd.f32 %v1684, %v1796
      %v1829 = vadd.f32 %v1685, %v1797
      %v1830 = vadd.f32 %v1686, %v1798
      %v1831 = vadd.f32 %v1687, %v1799
      %v1832 = vadd.f32 %v1688, %v1800
      %v1833 = vadd.f32 %v1689, %v1801
      %v1834 = vadd.f32 %v1690, %v1802
      %v1835 = vadd.f32 %v1691, %v1803
      %v1836 = vadd.f32 %v1692, %v1804
      %v1837 = vadd.f32 %v1693, %v1805
      %v1838 = vadd.f32 %v1694, %v1806
      %v1839 = vadd.f32 %v1695, %v1807
      %v1840 = vadd.f32 %v1696, %v1808
      %v1841 = vadd.f32 %v1697, %v1809
      %v1842 = vadd.f32 %v1698, %v1810
      %v1843 = vadd.f32 %v1699, %v1811
      %v1844 = vadd.f32 %v1700, %v1812
      %v1845 = vadd.f32 %v1701, %v1813
      %v1846 = vadd.f32 %v1702, %v1814
      %v1847 = vadd.f32 %v1703, %v1815
      %v1848 = vadd.f32 %v1704, %v1816
      %v1849 = vadd.f32 %v1705, %v1817
      %v1850 = vadd.f32 %v1706, %v1818
      %v1851 = vadd.f32 %v1707, %v1819
      %v1852 = vadd.f32 %v1708, %v1820
      %v1853 = vadd.f32 %v1709, %v1821
      %v1854 = vadd.f32 %v1710, %v1822
      %v1855 = vadd.f32 %v1711, %v1823
      %v1856 = vadd.f32 %v1712, %v1824
      %v1857 = vadd.f32 %v1713, %v1825
      %v1858 = vadd.f32 %v1714, %v1826
      %v1859 = vadd.f32 %v1715, %v1827
      %v1860 = vld [vmem:[%s4 + $0x4] sm:$0x1]
      %v1861 = vld [vmem:[%s4 + $0xc] sm:$0x1]
      %v1862 = vld [vmem:[%s4 + $0x14] sm:$0x1]
      %v1863 = vld [vmem:[%s4 + $0x1c] sm:$0x1]
      %v1864 = vld [vmem:[%s4 + $0x24] sm:$0x1]
      %v1865 = vld [vmem:[%s4 + $0x2c] sm:$0x1]
      %v1866 = vld [vmem:[%s4 + $0x34] sm:$0x1]
      %v1867 = vld [vmem:[%s4 + $0x3c] sm:$0x1]
      %v1868 = vld [vmem:[%s4 + $0x44] sm:$0x1]
      %v1869 = vld [vmem:[%s4 + $0x4c] sm:$0x1]
      %v1870 = vld [vmem:[%s4 + $0x54] sm:$0x1]
      %v1871 = vld [vmem:[%s4 + $0x5c] sm:$0x1]
      %v1872 = vld [vmem:[%s4 + $0x64] sm:$0x1]
      %v1873 = vld [vmem:[%s4 + $0x6c] sm:$0x1]
      %v1874 = vld [vmem:[%s4 + $0x74] sm:$0x1]
      %v1875 = vld [vmem:[%s4 + $0x7c] sm:$0x1]
      %s1877 = vtos %v1860
      %v1878 = vstv %s1877
      %s1881 = vtos %v1861
      %v1882 = vstv %s1881
      %s1885 = vtos %v1862
      %v1886 = vstv %s1885
      %s1889 = vtos %v1863
      %v1890 = vstv %s1889
      %s1893 = vtos %v1864
      %v1894 = vstv %s1893
      %s1897 = vtos %v1865
      %v1898 = vstv %s1897
      %s1901 = vtos %v1866
      %v1902 = vstv %s1901
      %s1905 = vtos %v1867
      %v1906 = vstv %s1905
      %s1909 = vtos %v1868
      %v1910 = vstv %s1909
      %s1913 = vtos %v1869
      %v1914 = vstv %s1913
      %s1917 = vtos %v1870
      %v1918 = vstv %s1917
      %s1921 = vtos %v1871
      %v1922 = vstv %s1921
      %s1925 = vtos %v1872
      %v1926 = vstv %s1925
      %s1929 = vtos %v1873
      %v1930 = vstv %s1929
      %s1933 = vtos %v1874
      %v1934 = vstv %s1933
      %s1937 = vtos %v1875
      %v1938 = vstv %s1937
      %v1940 = vmul.f32 %v1878, %v1140
      %v1941 = vmul.f32 %v1878, %v1141
      %v1942 = vmul.f32 %v1882, %v1140
      %v1943 = vmul.f32 %v1882, %v1141
      %v1944 = vmul.f32 %v1886, %v1140
      %v1945 = vmul.f32 %v1886, %v1141
      %v1946 = vmul.f32 %v1890, %v1140
      %v1947 = vmul.f32 %v1890, %v1141
      %v1948 = vmul.f32 %v1894, %v1140
      %v1949 = vmul.f32 %v1894, %v1141
      %v1950 = vmul.f32 %v1898, %v1140
      %v1951 = vmul.f32 %v1898, %v1141
      %v1952 = vmul.f32 %v1902, %v1140
      %v1953 = vmul.f32 %v1902, %v1141
      %v1954 = vmul.f32 %v1906, %v1140
      %v1955 = vmul.f32 %v1906, %v1141
      %v1956 = vmul.f32 %v1910, %v1140
      %v1957 = vmul.f32 %v1910, %v1141
      %v1958 = vmul.f32 %v1914, %v1140
      %v1959 = vmul.f32 %v1914, %v1141
      %v1960 = vmul.f32 %v1918, %v1140
      %v1961 = vmul.f32 %v1918, %v1141
      %v1962 = vmul.f32 %v1922, %v1140
      %v1963 = vmul.f32 %v1922, %v1141
      %v1964 = vmul.f32 %v1926, %v1140
      %v1965 = vmul.f32 %v1926, %v1141
      %v1966 = vmul.f32 %v1930, %v1140
      %v1967 = vmul.f32 %v1930, %v1141
      %v1968 = vmul.f32 %v1934, %v1140
      %v1969 = vmul.f32 %v1934, %v1141
      %v1970 = vmul.f32 %v1938, %v1140
      %v1971 = vmul.f32 %v1938, %v1141
      %v1972 = vadd.f32 %v1828, %v1940
      %v1973 = vadd.f32 %v1829, %v1941
      %v1974 = vadd.f32 %v1830, %v1942
      %v1975 = vadd.f32 %v1831, %v1943
      %v1976 = vadd.f32 %v1832, %v1944
      %v1977 = vadd.f32 %v1833, %v1945
      %v1978 = vadd.f32 %v1834, %v1946
      %v1979 = vadd.f32 %v1835, %v1947
      %v1980 = vadd.f32 %v1836, %v1948
      %v1981 = vadd.f32 %v1837, %v1949
      %v1982 = vadd.f32 %v1838, %v1950
      %v1983 = vadd.f32 %v1839, %v1951
      %v1984 = vadd.f32 %v1840, %v1952
      %v1985 = vadd.f32 %v1841, %v1953
      %v1986 = vadd.f32 %v1842, %v1954
      %v1987 = vadd.f32 %v1843, %v1955
      %v1988 = vadd.f32 %v1844, %v1956
      %v1989 = vadd.f32 %v1845, %v1957
      %v1990 = vadd.f32 %v1846, %v1958
      %v1991 = vadd.f32 %v1847, %v1959
      %v1992 = vadd.f32 %v1848, %v1960
      %v1993 = vadd.f32 %v1849, %v1961
      %v1994 = vadd.f32 %v1850, %v1962
      %v1995 = vadd.f32 %v1851, %v1963
      %v1996 = vadd.f32 %v1852, %v1964
      %v1997 = vadd.f32 %v1853, %v1965
      %v1998 = vadd.f32 %v1854, %v1966
      %v1999 = vadd.f32 %v1855, %v1967
      %v2000 = vadd.f32 %v1856, %v1968
      %v2001 = vadd.f32 %v1857, %v1969
      %v2002 = vadd.f32 %v1858, %v1970
      %v2003 = vadd.f32 %v1859, %v1971
      %v2004 = vld [vmem:[%s4 + $0x5] sm:$0x1]
      %v2005 = vld [vmem:[%s4 + $0xd] sm:$0x1]
      %v2006 = vld [vmem:[%s4 + $0x15] sm:$0x1]
      %v2007 = vld [vmem:[%s4 + $0x1d] sm:$0x1]
      %v2008 = vld [vmem:[%s4 + $0x25] sm:$0x1]
      %v2009 = vld [vmem:[%s4 + $0x2d] sm:$0x1]
      %v2010 = vld [vmem:[%s4 + $0x35] sm:$0x1]
      %v2011 = vld [vmem:[%s4 + $0x3d] sm:$0x1]
      %v2012 = vld [vmem:[%s4 + $0x45] sm:$0x1]
      %v2013 = vld [vmem:[%s4 + $0x4d] sm:$0x1]
      %v2014 = vld [vmem:[%s4 + $0x55] sm:$0x1]
      %v2015 = vld [vmem:[%s4 + $0x5d] sm:$0x1]
      %v2016 = vld [vmem:[%s4 + $0x65] sm:$0x1]
      %v2017 = vld [vmem:[%s4 + $0x6d] sm:$0x1]
      %v2018 = vld [vmem:[%s4 + $0x75] sm:$0x1]
      %v2019 = vld [vmem:[%s4 + $0x7d] sm:$0x1]
      %s2021 = vtos %v2004
      %v2022 = vstv %s2021
      %s2025 = vtos %v2005
      %v2026 = vstv %s2025
      %s2029 = vtos %v2006
      %v2030 = vstv %s2029
      %s2033 = vtos %v2007
      %v2034 = vstv %s2033
      %s2037 = vtos %v2008
      %v2038 = vstv %s2037
      %s2041 = vtos %v2009
      %v2042 = vstv %s2041
      %s2045 = vtos %v2010
      %v2046 = vstv %s2045
      %s2049 = vtos %v2011
      %v2050 = vstv %s2049
      %s2053 = vtos %v2012
      %v2054 = vstv %s2053
      %s2057 = vtos %v2013
      %v2058 = vstv %s2057
      %s2061 = vtos %v2014
      %v2062 = vstv %s2061
      %s2065 = vtos %v2015
      %v2066 = vstv %s2065
      %s2069 = vtos %v2016
      %v2070 = vstv %s2069
      %s2073 = vtos %v2017
      %v2074 = vstv %s2073
      %s2077 = vtos %v2018
      %v2078 = vstv %s2077
      %s2081 = vtos %v2019
      %v2082 = vstv %s2081
      %v2084 = vmul.f32 %v2022, %v1172
      %v2085 = vmul.f32 %v2022, %v1173
      %v2086 = vmul.f32 %v2026, %v1172
      %v2087 = vmul.f32 %v2026, %v1173
      %v2088 = vmul.f32 %v2030, %v1172
      %v2089 = vmul.f32 %v2030, %v1173
      %v2090 = vmul.f32 %v2034, %v1172
      %v2091 = vmul.f32 %v2034, %v1173
      %v2092 = vmul.f32 %v2038, %v1172
      %v2093 = vmul.f32 %v2038, %v1173
      %v2094 = vmul.f32 %v2042, %v1172
      %v2095 = vmul.f32 %v2042, %v1173
      %v2096 = vmul.f32 %v2046, %v1172
      %v2097 = vmul.f32 %v2046, %v1173
      %v2098 = vmul.f32 %v2050, %v1172
      %v2099 = vmul.f32 %v2050, %v1173
      %v2100 = vmul.f32 %v2054, %v1172
      %v2101 = vmul.f32 %v2054, %v1173
      %v2102 = vmul.f32 %v2058, %v1172
      %v2103 = vmul.f32 %v2058, %v1173
      %v2104 = vmul.f32 %v2062, %v1172
      %v2105 = vmul.f32 %v2062, %v1173
      %v2106 = vmul.f32 %v2066, %v1172
      %v2107 = vmul.f32 %v2066, %v1173
      %v2108 = vmul.f32 %v2070, %v1172
      %v2109 = vmul.f32 %v2070, %v1173
      %v2110 = vmul.f32 %v2074, %v1172
      %v2111 = vmul.f32 %v2074, %v1173
      %v2112 = vmul.f32 %v2078, %v1172
      %v2113 = vmul.f32 %v2078, %v1173
      %v2114 = vmul.f32 %v2082, %v1172
      %v2115 = vmul.f32 %v2082, %v1173
      %v2116 = vadd.f32 %v1972, %v2084
      %v2117 = vadd.f32 %v1973, %v2085
      %v2118 = vadd.f32 %v1974, %v2086
      %v2119 = vadd.f32 %v1975, %v2087
      %v2120 = vadd.f32 %v1976, %v2088
      %v2121 = vadd.f32 %v1977, %v2089
      %v2122 = vadd.f32 %v1978, %v2090
      %v2123 = vadd.f32 %v1979, %v2091
      %v2124 = vadd.f32 %v1980, %v2092
      %v2125 = vadd.f32 %v1981, %v2093
      %v2126 = vadd.f32 %v1982, %v2094
      %v2127 = vadd.f32 %v1983, %v2095
      %v2128 = vadd.f32 %v1984, %v2096
      %v2129 = vadd.f32 %v1985, %v2097
      %v2130 = vadd.f32 %v1986, %v2098
      %v2131 = vadd.f32 %v1987, %v2099
      %v2132 = vadd.f32 %v1988, %v2100
      %v2133 = vadd.f32 %v1989, %v2101
      %v2134 = vadd.f32 %v1990, %v2102
      %v2135 = vadd.f32 %v1991, %v2103
      %v2136 = vadd.f32 %v1992, %v2104
      %v2137 = vadd.f32 %v1993, %v2105
      %v2138 = vadd.f32 %v1994, %v2106
      %v2139 = vadd.f32 %v1995, %v2107
      %v2140 = vadd.f32 %v1996, %v2108
      %v2141 = vadd.f32 %v1997, %v2109
      %v2142 = vadd.f32 %v1998, %v2110
      %v2143 = vadd.f32 %v1999, %v2111
      %v2144 = vadd.f32 %v2000, %v2112
      %v2145 = vadd.f32 %v2001, %v2113
      %v2146 = vadd.f32 %v2002, %v2114
      %v2147 = vadd.f32 %v2003, %v2115
      %v2148 = vld [vmem:[%s4 + $0x6] sm:$0x1]
      %v2149 = vld [vmem:[%s4 + $0xe] sm:$0x1]
      %v2150 = vld [vmem:[%s4 + $0x16] sm:$0x1]
      %v2151 = vld [vmem:[%s4 + $0x1e] sm:$0x1]
      %v2152 = vld [vmem:[%s4 + $0x26] sm:$0x1]
      %v2153 = vld [vmem:[%s4 + $0x2e] sm:$0x1]
      %v2154 = vld [vmem:[%s4 + $0x36] sm:$0x1]
      %v2155 = vld [vmem:[%s4 + $0x3e] sm:$0x1]
      %v2156 = vld [vmem:[%s4 + $0x46] sm:$0x1]
      %v2157 = vld [vmem:[%s4 + $0x4e] sm:$0x1]
      %v2158 = vld [vmem:[%s4 + $0x56] sm:$0x1]
      %v2159 = vld [vmem:[%s4 + $0x5e] sm:$0x1]
      %v2160 = vld [vmem:[%s4 + $0x66] sm:$0x1]
      %v2161 = vld [vmem:[%s4 + $0x6e] sm:$0x1]
      %v2162 = vld [vmem:[%s4 + $0x76] sm:$0x1]
      %v2163 = vld [vmem:[%s4 + $0x7e] sm:$0x1]
      %s2165 = vtos %v2148
      %v2166 = vstv %s2165
      %s2169 = vtos %v2149
      %v2170 = vstv %s2169
      %s2173 = vtos %v2150
      %v2174 = vstv %s2173
      %s2177 = vtos %v2151
      %v2178 = vstv %s2177
      %s2181 = vtos %v2152
      %v2182 = vstv %s2181
      %s2185 = vtos %v2153
      %v2186 = vstv %s2185
      %s2189 = vtos %v2154
      %v2190 = vstv %s2189
      %s2193 = vtos %v2155
      %v2194 = vstv %s2193
      %s2197 = vtos %v2156
      %v2198 = vstv %s2197
      %s2201 = vtos %v2157
      %v2202 = vstv %s2201
      %s2205 = vtos %v2158
      %v2206 = vstv %s2205
      %s2209 = vtos %v2159
      %v2210 = vstv %s2209
      %s2213 = vtos %v2160
      %v2214 = vstv %s2213
      %s2217 = vtos %v2161
      %v2218 = vstv %s2217
      %s2221 = vtos %v2162
      %v2222 = vstv %s2221
      %s2225 = vtos %v2163
      %v2226 = vstv %s2225
      %v2228 = vmul.f32 %v2166, %v1204
      %v2229 = vmul.f32 %v2166, %v1205
      %v2230 = vmul.f32 %v2170, %v1204
      %v2231 = vmul.f32 %v2170, %v1205
      %v2232 = vmul.f32 %v2174, %v1204
      %v2233 = vmul.f32 %v2174, %v1205
      %v2234 = vmul.f32 %v2178, %v1204
      %v2235 = vmul.f32 %v2178, %v1205
      %v2236 = vmul.f32 %v2182, %v1204
      %v2237 = vmul.f32 %v2182, %v1205
      %v2238 = vmul.f32 %v2186, %v1204
      %v2239 = vmul.f32 %v2186, %v1205
      %v2240 = vmul.f32 %v2190, %v1204
      %v2241 = vmul.f32 %v2190, %v1205
      %v2242 = vmul.f32 %v2194, %v1204
      %v2243 = vmul.f32 %v2194, %v1205
      %v2244 = vmul.f32 %v2198, %v1204
      %v2245 = vmul.f32 %v2198, %v1205
      %v2246 = vmul.f32 %v2202, %v1204
      %v2247 = vmul.f32 %v2202, %v1205
      %v2248 = vmul.f32 %v2206, %v1204
      %v2249 = vmul.f32 %v2206, %v1205
      %v2250 = vmul.f32 %v2210, %v1204
      %v2251 = vmul.f32 %v2210, %v1205
      %v2252 = vmul.f32 %v2214, %v1204
      %v2253 = vmul.f32 %v2214, %v1205
      %v2254 = vmul.f32 %v2218, %v1204
      %v2255 = vmul.f32 %v2218, %v1205
      %v2256 = vmul.f32 %v2222, %v1204
      %v2257 = vmul.f32 %v2222, %v1205
      %v2258 = vmul.f32 %v2226, %v1204
      %v2259 = vmul.f32 %v2226, %v1205
      %v2260 = vadd.f32 %v2116, %v2228
      %v2261 = vadd.f32 %v2117, %v2229
      %v2262 = vadd.f32 %v2118, %v2230
      %v2263 = vadd.f32 %v2119, %v2231
      %v2264 = vadd.f32 %v2120, %v2232
      %v2265 = vadd.f32 %v2121, %v2233
      %v2266 = vadd.f32 %v2122, %v2234
      %v2267 = vadd.f32 %v2123, %v2235
      %v2268 = vadd.f32 %v2124, %v2236
      %v2269 = vadd.f32 %v2125, %v2237
      %v2270 = vadd.f32 %v2126, %v2238
      %v2271 = vadd.f32 %v2127, %v2239
      %v2272 = vadd.f32 %v2128, %v2240
      %v2273 = vadd.f32 %v2129, %v2241
      %v2274 = vadd.f32 %v2130, %v2242
      %v2275 = vadd.f32 %v2131, %v2243
      %v2276 = vadd.f32 %v2132, %v2244
      %v2277 = vadd.f32 %v2133, %v2245
      %v2278 = vadd.f32 %v2134, %v2246
      %v2279 = vadd.f32 %v2135, %v2247
      %v2280 = vadd.f32 %v2136, %v2248
      %v2281 = vadd.f32 %v2137, %v2249
      %v2282 = vadd.f32 %v2138, %v2250
      %v2283 = vadd.f32 %v2139, %v2251
      %v2284 = vadd.f32 %v2140, %v2252
      %v2285 = vadd.f32 %v2141, %v2253
      %v2286 = vadd.f32 %v2142, %v2254
      %v2287 = vadd.f32 %v2143, %v2255
      %v2288 = vadd.f32 %v2144, %v2256
      %v2289 = vadd.f32 %v2145, %v2257
      %v2290 = vadd.f32 %v2146, %v2258
      %v2291 = vadd.f32 %v2147, %v2259
      %v2292 = vld [vmem:[%s4 + $0x7] sm:$0x1]
      %v2293 = vld [vmem:[%s4 + $0xf] sm:$0x1]
      %v2294 = vld [vmem:[%s4 + $0x17] sm:$0x1]
      %v2295 = vld [vmem:[%s4 + $0x1f] sm:$0x1]
      %v2296 = vld [vmem:[%s4 + $0x27] sm:$0x1]
      %v2297 = vld [vmem:[%s4 + $0x2f] sm:$0x1]
      %v2298 = vld [vmem:[%s4 + $0x37] sm:$0x1]
      %v2299 = vld [vmem:[%s4 + $0x3f] sm:$0x1]
      %v2300 = vld [vmem:[%s4 + $0x47] sm:$0x1]
      %v2301 = vld [vmem:[%s4 + $0x4f] sm:$0x1]
      %v2302 = vld [vmem:[%s4 + $0x57] sm:$0x1]
      %v2303 = vld [vmem:[%s4 + $0x5f] sm:$0x1]
      %v2304 = vld [vmem:[%s4 + $0x67] sm:$0x1]
      %v2305 = vld [vmem:[%s4 + $0x6f] sm:$0x1]
      %v2306 = vld [vmem:[%s4 + $0x77] sm:$0x1]
      %v2307 = vld [vmem:[%s4 + $0x7f] sm:$0x1]
      %s2309 = vtos %v2292
      %v2310 = vstv %s2309
      %s2313 = vtos %v2293
      %v2314 = vstv %s2313
      %s2317 = vtos %v2294
      %v2318 = vstv %s2317
      %s2321 = vtos %v2295
      %v2322 = vstv %s2321
      %s2325 = vtos %v2296
      %v2326 = vstv %s2325
      %s2329 = vtos %v2297
      %v2330 = vstv %s2329
      %s2333 = vtos %v2298
      %v2334 = vstv %s2333
      %s2337 = vtos %v2299
      %v2338 = vstv %s2337
      %s2341 = vtos %v2300
      %v2342 = vstv %s2341
      %s2345 = vtos %v2301
      %v2346 = vstv %s2345
      %s2349 = vtos %v2302
      %v2350 = vstv %s2349
      %s2353 = vtos %v2303
      %v2354 = vstv %s2353
      %s2357 = vtos %v2304
      %v2358 = vstv %s2357
      %s2361 = vtos %v2305
      %v2362 = vstv %s2361
      %s2365 = vtos %v2306
      %v2366 = vstv %s2365
      %s2369 = vtos %v2307
      %v2370 = vstv %s2369
      %v2372 = vmul.f32 %v2310, %v1236
      %v2373 = vmul.f32 %v2310, %v1237
      %v2374 = vmul.f32 %v2314, %v1236
      %v2375 = vmul.f32 %v2314, %v1237
      %v2376 = vmul.f32 %v2318, %v1236
      %v2377 = vmul.f32 %v2318, %v1237
      %v2378 = vmul.f32 %v2322, %v1236
      %v2379 = vmul.f32 %v2322, %v1237
      %v2380 = vmul.f32 %v2326, %v1236
      %v2381 = vmul.f32 %v2326, %v1237
      %v2382 = vmul.f32 %v2330, %v1236
      %v2383 = vmul.f32 %v2330, %v1237
      %v2384 = vmul.f32 %v2334, %v1236
      %v2385 = vmul.f32 %v2334, %v1237
      %v2386 = vmul.f32 %v2338, %v1236
      %v2387 = vmul.f32 %v2338, %v1237
      %v2388 = vmul.f32 %v2342, %v1236
      %v2389 = vmul.f32 %v2342, %v1237
      %v2390 = vmul.f32 %v2346, %v1236
      %v2391 = vmul.f32 %v2346, %v1237
      %v2392 = vmul.f32 %v2350, %v1236
      %v2393 = vmul.f32 %v2350, %v1237
      %v2394 = vmul.f32 %v2354, %v1236
      %v2395 = vmul.f32 %v2354, %v1237
      %v2396 = vmul.f32 %v2358, %v1236
      %v2397 = vmul.f32 %v2358, %v1237
      %v2398 = vmul.f32 %v2362, %v1236
      %v2399 = vmul.f32 %v2362, %v1237
      %v2400 = vmul.f32 %v2366, %v1236
      %v2401 = vmul.f32 %v2366, %v1237
      %v2402 = vmul.f32 %v2370, %v1236
      %v2403 = vmul.f32 %v2370, %v1237
      %v2404 = vadd.f32 %v2260, %v2372
      %v2405 = vadd.f32 %v2261, %v2373
      %v2406 = vadd.f32 %v2262, %v2374
      %v2407 = vadd.f32 %v2263, %v2375
      %v2408 = vadd.f32 %v2264, %v2376
      %v2409 = vadd.f32 %v2265, %v2377
      %v2410 = vadd.f32 %v2266, %v2378
      %v2411 = vadd.f32 %v2267, %v2379
      %v2412 = vadd.f32 %v2268, %v2380
      %v2413 = vadd.f32 %v2269, %v2381
      %v2414 = vadd.f32 %v2270, %v2382
      %v2415 = vadd.f32 %v2271, %v2383
      %v2416 = vadd.f32 %v2272, %v2384
      %v2417 = vadd.f32 %v2273, %v2385
      %v2418 = vadd.f32 %v2274, %v2386
      %v2419 = vadd.f32 %v2275, %v2387
      %v2420 = vadd.f32 %v2276, %v2388
      %v2421 = vadd.f32 %v2277, %v2389
      %v2422 = vadd.f32 %v2278, %v2390
      %v2423 = vadd.f32 %v2279, %v2391
      %v2424 = vadd.f32 %v2280, %v2392
      %v2425 = vadd.f32 %v2281, %v2393
      %v2426 = vadd.f32 %v2282, %v2394
      %v2427 = vadd.f32 %v2283, %v2395
      %v2428 = vadd.f32 %v2284, %v2396
      %v2429 = vadd.f32 %v2285, %v2397
      %v2430 = vadd.f32 %v2286, %v2398
      %v2431 = vadd.f32 %v2287, %v2399
      %v2432 = vadd.f32 %v2288, %v2400
      %v2433 = vadd.f32 %v2289, %v2401
      %v2434 = vadd.f32 %v2290, %v2402
      %v2435 = vadd.f32 %v2291, %v2403
      %vm2436 = vcmask 261120
      %2437 = vst.msk [vmem:[%s271] sm:$0xff] %vm2436, %v2404
      %2438 = vst.msk [vmem:[%s271 + $0x8] sm:$0xff] %vm2436, %v2405
      %2439 = vst.msk [vmem:[%s271 + $0x10] sm:$0xff] %vm2436, %v2406
      %2440 = vst.msk [vmem:[%s271 + $0x18] sm:$0xff] %vm2436, %v2407
      %2441 = vst.msk [vmem:[%s271 + $0x20] sm:$0xff] %vm2436, %v2408
      %2442 = vst.msk [vmem:[%s271 + $0x28] sm:$0xff] %vm2436, %v2409
      %2443 = vst.msk [vmem:[%s271 + $0x30] sm:$0xff] %vm2436, %v2410
      %2444 = vst.msk [vmem:[%s271 + $0x38] sm:$0xff] %vm2436, %v2411
      %2445 = vst.msk [vmem:[%s271 + $0x40] sm:$0xff] %vm2436, %v2412
      %2446 = vst.msk [vmem:[%s271 + $0x48] sm:$0xff] %vm2436, %v2413
      %2447 = vst.msk [vmem:[%s271 + $0x50] sm:$0xff] %vm2436, %v2414
      %2448 = vst.msk [vmem:[%s271 + $0x58] sm:$0xff] %vm2436, %v2415
      %2449 = vst.msk [vmem:[%s271 + $0x60] sm:$0xff] %vm2436, %v2416
      %2450 = vst.msk [vmem:[%s271 + $0x68] sm:$0xff] %vm2436, %v2417
      %2451 = vst.msk [vmem:[%s271 + $0x70] sm:$0xff] %vm2436, %v2418
      %2452 = vst.msk [vmem:[%s271 + $0x78] sm:$0xff] %vm2436, %v2419
      %2453 = vst.msk [vmem:[%s271 + $0x80] sm:$0xff] %vm2436, %v2420
      %2454 = vst.msk [vmem:[%s271 + $0x88] sm:$0xff] %vm2436, %v2421
      %2455 = vst.msk [vmem:[%s271 + $0x90] sm:$0xff] %vm2436, %v2422
      %2456 = vst.msk [vmem:[%s271 + $0x98] sm:$0xff] %vm2436, %v2423
      %2457 = vst.msk [vmem:[%s271 + $0xa0] sm:$0xff] %vm2436, %v2424
      %2458 = vst.msk [vmem:[%s271 + $0xa8] sm:$0xff] %vm2436, %v2425
      %2459 = vst.msk [vmem:[%s271 + $0xb0] sm:$0xff] %vm2436, %v2426
      %2460 = vst.msk [vmem:[%s271 + $0xb8] sm:$0xff] %vm2436, %v2427
      %2461 = vst.msk [vmem:[%s271 + $0xc0] sm:$0xff] %vm2436, %v2428
      %2462 = vst.msk [vmem:[%s271 + $0xc8] sm:$0xff] %vm2436, %v2429
      %2463 = vst.msk [vmem:[%s271 + $0xd0] sm:$0xff] %vm2436, %v2430
      %2464 = vst.msk [vmem:[%s271 + $0xd8] sm:$0xff] %vm2436, %v2431
      %2465 = vst.msk [vmem:[%s271 + $0xe0] sm:$0xff] %vm2436, %v2432
      %2466 = vst.msk [vmem:[%s271 + $0xe8] sm:$0xff] %vm2436, %v2433
      %2467 = vst.msk [vmem:[%s271 + $0xf0] sm:$0xff] %vm2436, %v2434
      %2468 = vst.msk [vmem:[%s271 + $0xf8] sm:$0xff] %vm2436, %v2435
      %p2469 = scmp.lt.s32.totalorder %s17, 1
      %s2470 = scalar_select %p2469, %s17, 1
      %s2471 = smul.addr %s2470, 32
      %s2472 = smul.addr %s2471, 8
      %s2473 = scalar_lea.vmem %s6, %s2472
      // Predicated region
      $region45: #{run.17} parent=43 // pred_check
        %p2474 = pneg %p171
      $region46: #{run.17} parent=43 // pred_check_branch
        %2476 = sbr.rel (%p2474) target = $region48
      $region47: #{run.17} parent=43 // pred_region
        _
      $region48: #{run.17} parent=43 // pred_fallthru
        _
    $region44: #{run.17} parent=5 // pred_fallthru
      _
    %p2477 = scmp.le.s32.totalorder 2, %s12
    // Predicated region
    $region49: #{run.17} parent=5 // pred_check
      %p2478 = pneg %p2477
    $region50: #{run.17} parent=5 // pred_check_branch
      %2480 = sbr.rel (%p2478) target = $region52
    $region51: #{run.17} parent=5 // pred_region
      %s2481 = ssub.s32 %s12, 2
      // Predicated region
      $region53: #{run.17} parent=51 // pred_check
        %p2482 = pneg %p177
      $region54: #{run.17} parent=51 // pred_check_branch
        %2484 = sbr.rel (%p2482) target = $region56
      $region55: #{run.17} parent=51 // pred_region
        %p2485 = scmp.lt.s32.totalorder %s18, 1
        %s2486 = scalar_select %p2485, %s18, 1
        %s2487 = smul.addr %s2486, 32
        %s2488 = smul.addr %s2487, 8
        %s2489 = scalar_lea.vmem %s6, %s2488
      $region56: #{run.17} parent=51 // pred_fallthru
        _
    $region52: #{run.17} parent=5 // pred_fallthru
      _
  $region6: #{run.17} parent=0 // loop_footer
    %s16 = sadd.s32 1, %s12
  $region7: #{run.17} parent=0 // loop_footer_branch
    %11 = sbr.rel target = $region3
  $region8: #{run.17} parent=0 // loop_exit
    _

// kernel: run.19
$region0: #{run.19}
  #allocation0 [shape = 'u32[]', space=smem, size = 0x4, offset = 0x4, fixed_abs, tag = 'smem constant byte address 0x4 - core index']
  #allocation1 [shape = 'u32[144,128]{1,0:T(1,128)}', space=vmem, size = 0x12000, scoped, tag = 'internal scratch']
  #allocation2 [shape = 'f32[82,40]{1,0:T(8,128)}', space=vmem, size = 0xb000, scoped, tag = 'scratch operand']
  %s0 = inlined_call_operand.vmem [shape: f32[2,64,8], index: 0, kind: input, shape index: {}]
  %s1 = inlined_call_operand.vmem [shape: f32[2,64,32], index: 1, kind: input, shape index: {}]
  %s2 = inlined_call_operand.vmem [shape: f32[64,2], index: 2, kind: input, shape index: {}]
  %s3 = inlined_call_operand.vmem [shape: f32[360,8], index: 3, kind: input, shape index: {}]
  %s4 = inlined_call_operand.vmem [shape: f32[2,64,8], index: 4, kind: output, shape index: {0}]
  %s5 = inlined_call_operand.vmem [shape: f32[2,2,8], index: 5, kind: output, shape index: {1}]
  %6 = xla_tuple %s4, %s5
  %s7 = sld [smem:[#allocation0]]
  $region57: #{run.19} parent=0
    _
  %s9 = ssub.s32 1, %s7
  %s10 = scalar_select 0, %s9, %s7
  loop: start=0, step=1, limit=4
  $region2: #{run.19} parent=0 // loop_pre_header
    _
  $region3: #{run.19} parent=0 // loop_header
    %s12 = sphi 0, %s16
    %p13 = scmp.ge.s32.totalorder %s12, 4
    %s22 = sphi 0, %s24
    %s25 = sphi 0, %s22
    %s26 = sphi 0, %s25
    %s42 = sphi 0, %s26
    %s48 = sphi 0, %s50
    %s51 = sphi 0, %s48
    %s52 = sphi 0, %s51
    %s68 = sphi 0, %s52
    %s72 = sphi 0, %s72
    %s74 = sphi 0, %s72
    %s75 = sphi 0, %s74
    %s89 = sphi 0, %s75
    %s93 = sphi 0, %s93
    %s95 = sphi 0, %s93
    %s96 = sphi 0, %s95
    %s110 = sphi 0, %s96
    %s116 = sphi 0, %s118
    %s119 = sphi 0, %s116
    %s120 = sphi 0, %s119
    %s136 = sphi 0, %s120
    %s142 = sphi 0, %s144
    %s145 = sphi 0, %s142
    %s146 = sphi 0, %s145
    %s162 = sphi 0, %s146
  $region4: #{run.19} parent=0 // loop_header_branch
    %15 = sbr.rel (%p13) target = $region8
  $region5: #{run.19} parent=0 // loop_body
    %s17 = ssub.s32 %s12, 1
    %s18 = ssub.s32 %s12, 2
    %s19 = sadd.s32 %s12, 1
    %s20 = ssub.s32 %s12, %s19
    %p21 = scmp.eq.s32.totalorder %s20, 0
    %s23 = sadd.s32 %s22, 1
    %s24 = scalar_select %p21, %s22, %s23
    %p27 = pneg %p21
    %p28 = scmp.eq.s32.totalorder %s12, 1
    %p29 = por %p27, %p28
    %p30 = scmp.ne.s32.totalorder %s22, %s25
    %p31 = scmp.eq.s32.totalorder %s12, 0
    %p32 = por %p30, %p31
    %p33 = scmp.ne.s32.totalorder %s22, %s25
    %p34 = scmp.eq.s32.totalorder %s17, 1
    %p35 = por %p33, %p34
    %p36 = scmp.ne.s32.totalorder %s25, %s26
    %p37 = scmp.eq.s32.totalorder %s17, 0
    %p38 = por %p36, %p37
    %p39 = scmp.ne.s32.totalorder %s25, %s26
    %p40 = scmp.eq.s32.totalorder %s18, 1
    %p41 = por %p39, %p40
    %p43 = scmp.ne.s32.totalorder %s26, %s42
    %p44 = scmp.eq.s32.totalorder %s18, 0
    %p45 = por %p43, %p44
    %s46 = ssub.s32 %s12, %s19
    %p47 = scmp.eq.s32.totalorder %s46, 0
    %s49 = sadd.s32 %s48, 1
    %s50 = scalar_select %p47, %s48, %s49
    %p53 = pneg %p47
    %p54 = scmp.eq.s32.totalorder %s12, 1
    %p55 = por %p53, %p54
    %p56 = scmp.ne.s32.totalorder %s48, %s51
    %p57 = scmp.eq.s32.totalorder %s12, 0
    %p58 = por %p56, %p57
    %p59 = scmp.ne.s32.totalorder %s48, %s51
    %p60 = scmp.eq.s32.totalorder %s17, 1
    %p61 = por %p59, %p60
    %p62 = scmp.ne.s32.totalorder %s51, %s52
    %p63 = scmp.eq.s32.totalorder %s17, 0
    %p64 = por %p62, %p63
    %p65 = scmp.ne.s32.totalorder %s51, %s52
    %p66 = scmp.eq.s32.totalorder %s18, 1
    %p67 = por %p65, %p66
    %p69 = scmp.ne.s32.totalorder %s52, %s68
    %p70 = scmp.eq.s32.totalorder %s18, 0
    %p71 = por %p69, %p70
    %s73 = sadd.s32 %s72, 1
    %p76 = scmp.eq.s32.totalorder %s12, 1
    %p77 = scmp.ne.s32.totalorder %s72, %s74
    %p78 = scmp.eq.s32.totalorder %s12, 0
    %p79 = por %p77, %p78
    %p80 = scmp.ne.s32.totalorder %s72, %s74
    %p81 = scmp.eq.s32.totalorder %s17, 1
    %p82 = por %p80, %p81
    %p83 = scmp.ne.s32.totalorder %s74, %s75
    %p84 = scmp.eq.s32.totalorder %s17, 0
    %p85 = por %p83, %p84
    %p86 = scmp.ne.s32.totalorder %s74, %s75
    %p87 = scmp.eq.s32.totalorder %s18, 1
    %p88 = por %p86, %p87
    %p90 = scmp.ne.s32.totalorder %s75, %s89
    %p91 = scmp.eq.s32.totalorder %s18, 0
    %p92 = por %p90, %p91
    %s94 = sadd.s32 %s93, 1
    %p97 = scmp.eq.s32.totalorder %s12, 1
    %p98 = scmp.ne.s32.totalorder %s93, %s95
    %p99 = scmp.eq.s32.totalorder %s12, 0
    %p100 = por %p98, %p99
    %p101 = scmp.ne.s32.totalorder %s93, %s95
    %p102 = scmp.eq.s32.totalorder %s17, 1
    %p103 = por %p101, %p102
    %p104 = scmp.ne.s32.totalorder %s95, %s96
    %p105 = scmp.eq.s32.totalorder %s17, 0
    %p106 = por %p104, %p105
    %p107 = scmp.ne.s32.totalorder %s95, %s96
    %p108 = scmp.eq.s32.totalorder %s18, 1
    %p109 = por %p107, %p108
    %p111 = scmp.ne.s32.totalorder %s96, %s110
    %p112 = scmp.eq.s32.totalorder %s18, 0
    %p113 = por %p111, %p112
    %s114 = ssub.s32 %s12, %s19
    %p115 = scmp.eq.s32.totalorder %s114, 0
    %s117 = sadd.s32 %s116, 1
    %s118 = scalar_select %p115, %s116, %s117
    %p121 = pneg %p115
    %p122 = scmp.eq.s32.totalorder %s12, 1
    %p123 = por %p121, %p122
    %p124 = scmp.ne.s32.totalorder %s116, %s119
    %p125 = scmp.eq.s32.totalorder %s12, 0
    %p126 = por %p124, %p125
    %p127 = scmp.ne.s32.totalorder %s116, %s119
    %p128 = scmp.eq.s32.totalorder %s17, 1
    %p129 = por %p127, %p128
    %p130 = scmp.ne.s32.totalorder %s119, %s120
    %p131 = scmp.eq.s32.totalorder %s17, 0
    %p132 = por %p130, %p131
    %p133 = scmp.ne.s32.totalorder %s119, %s120
    %p134 = scmp.eq.s32.totalorder %s18, 1
    %p135 = por %p133, %p134
    %p137 = scmp.ne.s32.totalorder %s120, %s136
    %p138 = scmp.eq.s32.totalorder %s18, 0
    %p139 = por %p137, %p138
    %s140 = ssub.s32 %s12, %s19
    %p141 = scmp.eq.s32.totalorder %s140, 0
    %s143 = sadd.s32 %s142, 1
    %s144 = scalar_select %p141, %s142, %s143
    %p147 = pneg %p141
    %p148 = scmp.eq.s32.totalorder %s12, 1
    %p149 = por %p147, %p148
    %p150 = scmp.ne.s32.totalorder %s142, %s145
    %p151 = scmp.eq.s32.totalorder %s12, 0
    %p152 = por %p150, %p151
    %p153 = scmp.ne.s32.totalorder %s142, %s145
    %p154 = scmp.eq.s32.totalorder %s17, 1
    %p155 = por %p153, %p154
    %p156 = scmp.ne.s32.totalorder %s145, %s146
    %p157 = scmp.eq.s32.totalorder %s17, 0
    %p158 = por %p156, %p157
    %p159 = scmp.ne.s32.totalorder %s145, %s146
    %p160 = scmp.eq.s32.totalorder %s18, 1
    %p161 = por %p159, %p160
    %p163 = scmp.ne.s32.totalorder %s146, %s162
    %p164 = scmp.eq.s32.totalorder %s18, 0
    %p165 = por %p163, %p164
    %p166 = scmp.le.s32.totalorder 1, %s12
    %p167 = scmp.lt.s32.totalorder %s12, 3
    %p168 = pnand %p166, %p167
    %p169 = pneg %p168
    // Predicated region
    $region9: #{run.19} parent=5 // pred_check
      _
    $region10: #{run.19} parent=5 // pred_check_branch
      %171 = sbr.rel (%p168) target = $region12
    $region11: #{run.19} parent=5 // pred_region
      %s172 = ssub.s32 %s12, 1
      // Predicated region
      $region13: #{run.19} parent=11 // pred_check
        %p173 = pneg %p85
      $region14: #{run.19} parent=11 // pred_check_branch
        %175 = sbr.rel (%p173) target = $region16
      $region15: #{run.19} parent=11 // pred_region
        _
      $region16: #{run.19} parent=11 // pred_fallthru
        _
      // Predicated region
      $region17: #{run.19} parent=11 // pred_check
        %p176 = pneg %p106
      $region18: #{run.19} parent=11 // pred_check_branch
        %178 = sbr.rel (%p176) target = $region20
      $region19: #{run.19} parent=11 // pred_region
        _
      $region20: #{run.19} parent=11 // pred_fallthru
        _
    $region12: #{run.19} parent=5 // pred_fallthru
      _
    %p179 = scmp.lt.s32.totalorder %s12, 2
    // Predicated region
    $region21: #{run.19} parent=5 // pred_check
      %p180 = pneg %p179
    $region22: #{run.19} parent=5 // pred_check_branch
      %182 = sbr.rel (%p180) target = $region24
    $region23: #{run.19} parent=5 // pred_region
      // Predicated region
      $region25: #{run.19} parent=23 // pred_check
        %p183 = pneg %p32
      $region26: #{run.19} parent=23 // pred_check_branch
        %185 = sbr.rel (%p183) target = $region28
      $region27: #{run.19} parent=23 // pred_region
        %p186 = scmp.lt.s32.totalorder %s12, 1
        %s187 = scalar_select %p186, %s12, 1
        %s188 = smul.addr %s187, 8
        %s189 = smul.addr %s188, 8
        %s190 = scalar_lea.vmem %s0, %s189
      $region28: #{run.19} parent=23 // pred_fallthru
        _
      // Predicated region
      $region29: #{run.19} parent=23 // pred_check
        %p191 = pneg %p58
      $region30: #{run.19} parent=23 // pred_check_branch
        %193 = sbr.rel (%p191) target = $region32
      $region31: #{run.19} parent=23 // pred_region
        %p194 = scmp.lt.s32.totalorder %s12, 1
        %s195 = scalar_select %p194, %s12, 1
        %s196 = smul.addr %s195, 8
        %s197 = smul.addr %s196, 8
        %s198 = scalar_lea.vmem %s1, %s197
      $region32: #{run.19} parent=23 // pred_fallthru
        _
    $region24: #{run.19} parent=5 // pred_fallthru
      _
    %p199 = scmp.le.s32.totalorder 1, %s12
    %p200 = scmp.lt.s32.totalorder %s12, 3
    %p201 = pnand %p199, %p200
    %p202 = pneg %p201
    // Predicated region
    $region33: #{run.19} parent=5 // pred_check
      _
    $region34: #{run.19} parent=5 // pred_check_branch
      %204 = sbr.rel (%p201) target = $region36
    $region35: #{run.19} parent=5 // pred_region
      %s205 = ssub.s32 %s12, 1
      %p206 = scmp.lt.s32.totalorder %s17, 1
      %s207 = scalar_select %p206, %s17, 1
      %s208 = smul.addr %s207, 8
      %s209 = smul.addr %s208, 8
      %s210 = scalar_lea.vmem %s0, %s209
      %p211 = pneg %p38
      %p212 = pneg %p35
      %p213 = scmp.lt.s32.totalorder %s17, 1
      %s214 = scalar_select %p213, %s17, 1
      %s215 = smul.addr %s214, 8
      %s216 = smul.addr %s215, 8
      %s217 = scalar_lea.vmem %s1, %s216
      %p218 = pneg %p64
      %p219 = pneg %p61
      %p220 = pneg %p85
      %p221 = pneg %p82
      %p222 = pneg %p106
      %p223 = pneg %p103
      %p224 = pneg %p132
      %p225 = pneg %p129
      %p226 = scmp.lt.s32.totalorder %s17, 1
      %s227 = scalar_select %p226, %s17, 1
      %s228 = smul.addr %s227, 8
      %s229 = smul.addr %s228, 8
      %s230 = scalar_lea.vmem %s4, %s229
      %p231 = pneg %p158
      %p232 = pneg %p155
      %p233 = scmp.lt.s32.totalorder %s17, 1
      %s234 = scalar_select %p233, %s17, 1
      %s235 = smul.addr %s234, 2
      %s236 = scalar_lea.vmem %s5, %s235
      %p237 = scmp.lt.s32.totalorder %s17, 1
      %s238 = scalar_select %p237, %s17, 1
      %s239 = smul.addr %s238, 8
      %s240 = smul.addr %s239, 8
      %s241 = scalar_lea.vmem %s0, %s240
      %p242 = scmp.lt.s32.totalorder %s17, 1
      %s243 = scalar_select %p242, %s17, 1
      %s244 = smul.addr %s243, 8
      %s245 = smul.addr %s244, 8
      %s246 = scalar_lea.vmem %s1, %s245
      %p247 = scmp.lt.s32.totalorder %s17, 1
      %s248 = scalar_select %p247, %s17, 1
      %s249 = smul.addr %s248, 8
      %s250 = smul.addr %s249, 8
      %s251 = scalar_lea.vmem %s4, %s250
      %p252 = scmp.lt.s32.totalorder %s17, 1
      %s253 = scalar_select %p252, %s17, 1
      %s254 = smul.addr %s253, 2
      %s255 = scalar_lea.vmem %s5, %s254
      %v257 = vld [vmem:[%s241] sm:$0xff]
      %v258 = vld [vmem:[%s241 + $0x8] sm:$0xff]
      %v259 = vld [vmem:[%s241 + $0x10] sm:$0xff]
      %v260 = vld [vmem:[%s241 + $0x18] sm:$0xff]
      %v261 = vld [vmem:[%s241 + $0x20] sm:$0xff]
      %v262 = vld [vmem:[%s241 + $0x28] sm:$0xff]
      %v263 = vld [vmem:[%s241 + $0x30] sm:$0xff]
      %v264 = vld [vmem:[%s241 + $0x38] sm:$0xff]
      %v265 = vld [vmem:[%s246] sm:$0xff]
      %v266 = vld [vmem:[%s246 + $0x8] sm:$0xff]
      %v267 = vld [vmem:[%s246 + $0x10] sm:$0xff]
      %v268 = vld [vmem:[%s246 + $0x18] sm:$0xff]
      %v269 = vld [vmem:[%s246 + $0x20] sm:$0xff]
      %v270 = vld [vmem:[%s246 + $0x28] sm:$0xff]
      %v271 = vld [vmem:[%s246 + $0x30] sm:$0xff]
      %v272 = vld [vmem:[%s246 + $0x38] sm:$0xff]
      %281 = vrot.lane.b32.xlu0 %v265, 8
      %v282 = vpop.permute.xlu0 %281
      %283 = vrot.lane.b32.xlu0 %v266, 8
      %v284 = vpop.permute.xlu0 %283
      %285 = vrot.lane.b32.xlu0 %v267, 8
      %v286 = vpop.permute.xlu0 %285
      %287 = vrot.lane.b32.xlu0 %v268, 8
      %v288 = vpop.permute.xlu0 %287
      %289 = vrot.lane.b32.xlu0 %v269, 8
      %v290 = vpop.permute.xlu0 %289
      %291 = vrot.lane.b32.xlu0 %v270, 8
      %v292 = vpop.permute.xlu0 %291
      %293 = vrot.lane.b32.xlu0 %v271, 8
      %v294 = vpop.permute.xlu0 %293
      %295 = vrot.lane.b32.xlu0 %v272, 8
      %v296 = vpop.permute.xlu0 %295
      %vm305 = vcmask 64512
      %v306 = vsel %vm305, %v257, %v282
      %v307 = vsel %vm305, %v258, %v284
      %v308 = vsel %vm305, %v259, %v286
      %v309 = vsel %vm305, %v260, %v288
      %v310 = vsel %vm305, %v261, %v290
      %v311 = vsel %vm305, %v262, %v292
      %v312 = vsel %vm305, %v263, %v294
      %v313 = vsel %vm305, %v264, %v296
      %vm314 = vcmask 326656
      %315 = vst.msk [vmem:[#allocation2] sm:$0xff] %vm314, 0.0
      %vm316 = vcmask 319488
      %317 = vst.msk [vmem:[#allocation2 + $0x8] sm:$0x1] %vm316, 0.0
      %318 = vst.msk [vmem:[#allocation2 + $0x49] sm:$0xff] %vm314, 0.0
      %319 = vst.msk [vmem:[#allocation2 + $0x51] sm:$0x1] %vm316, 0.0
      %320 = vst.msk [vmem:[#allocation2 + $0x9] sm:$0xff] %vm314, %v306
      %321 = vst.msk [vmem:[#allocation2 + $0x11] sm:$0xff] %vm314, %v307
      %322 = vst.msk [vmem:[#allocation2 + $0x19] sm:$0xff] %vm314, %v308
      %323 = vst.msk [vmem:[#allocation2 + $0x21] sm:$0xff] %vm314, %v309
      %324 = vst.msk [vmem:[#allocation2 + $0x29] sm:$0xff] %vm314, %v310
      %325 = vst.msk [vmem:[#allocation2 + $0x31] sm:$0xff] %vm314, %v311
      %326 = vst.msk [vmem:[#allocation2 + $0x39] sm:$0xff] %vm314, %v312
      %327 = vst.msk [vmem:[#allocation2 + $0x41] sm:$0xff] %vm314, %v313
      %v328 = vld [vmem:[%s2] sm:$0xff]
      %v329 = vld [vmem:[%s2 + $0x8] sm:$0xff]
      %v330 = vld [vmem:[%s2 + $0x10] sm:$0xff]
      %v331 = vld [vmem:[%s2 + $0x18] sm:$0xff]
      %v332 = vld [vmem:[%s2 + $0x20] sm:$0xff]
      %v333 = vld [vmem:[%s2 + $0x28] sm:$0xff]
      %v334 = vld [vmem:[%s2 + $0x30] sm:$0xff]
      %v335 = vld [vmem:[%s2 + $0x38] sm:$0xff]
      %v336 = vld [vmem:[#allocation2] sm:$0xff]
      %v337 = vld [vmem:[#allocation2 + $0x8] sm:$0xff]
      %v338 = vld [vmem:[#allocation2 + $0x10] sm:$0xff]
      %v339 = vld [vmem:[#allocation2 + $0x18] sm:$0xff]
      %v340 = vld [vmem:[#allocation2 + $0x20] sm:$0xff]
      %v341 = vld [vmem:[#allocation2 + $0x28] sm:$0xff]
      %v342 = vld [vmem:[#allocation2 + $0x30] sm:$0xff]
      %v343 = vld [vmem:[#allocation2 + $0x38] sm:$0xff]
      %345 = vset.pattern.permute.xlu0 0
      %346 = vperm.xlu0 %345, %v328
      %v347 = vpop.permute.xlu0 %346
      %350 = vset.pattern.permute.xlu0 0
      %351 = vperm.xlu0 %350, %v329
      %v352 = vpop.permute.xlu0 %351
      %355 = vset.pattern.permute.xlu0 0
      %356 = vperm.xlu0 %355, %v330
      %v357 = vpop.permute.xlu0 %356
      %360 = vset.pattern.permute.xlu0 0
      %361 = vperm.xlu0 %360, %v331
      %v362 = vpop.permute.xlu0 %361
      %365 = vset.pattern.permute.xlu0 0
      %366 = vperm.xlu0 %365, %v332
      %v367 = vpop.permute.xlu0 %366
      %370 = vset.pattern.permute.xlu0 0
      %371 = vperm.xlu0 %370, %v333
      %v372 = vpop.permute.xlu0 %371
      %375 = vset.pattern.permute.xlu0 0
      %376 = vperm.xlu0 %375, %v334
      %v377 = vpop.permute.xlu0 %376
      %380 = vset.pattern.permute.xlu0 0
      %381 = vperm.xlu0 %380, %v335
      %v382 = vpop.permute.xlu0 %381
      %v384 = vmul.f32 %v336, %v347
      %v385 = vmul.f32 %v337, %v352
      %v386 = vmul.f32 %v338, %v357
      %v387 = vmul.f32 %v339, %v362
      %v388 = vmul.f32 %v340, %v367
      %v389 = vmul.f32 %v341, %v372
      %v390 = vmul.f32 %v342, %v377
      %v391 = vmul.f32 %v343, %v382
      %v392 = vld [vmem:[#allocation2 + $0x1] sm:$0xff]
      %v393 = vld [vmem:[#allocation2 + $0x9] sm:$0xff]
      %v394 = vld [vmem:[#allocation2 + $0x11] sm:$0xff]
      %v395 = vld [vmem:[#allocation2 + $0x19] sm:$0xff]
      %v396 = vld [vmem:[#allocation2 + $0x21] sm:$0xff]
      %v397 = vld [vmem:[#allocation2 + $0x29] sm:$0xff]
      %v398 = vld [vmem:[#allocation2 + $0x31] sm:$0xff]
      %v399 = vld [vmem:[#allocation2 + $0x39] sm:$0xff]
      %v400 = vld [vmem:[#allocation2 + $0x2] sm:$0xff]
      %v401 = vld [vmem:[#allocation2 + $0xa] sm:$0xff]
      %v402 = vld [vmem:[#allocation2 + $0x12] sm:$0xff]
      %v403 = vld [vmem:[#allocation2 + $0x1a] sm:$0xff]
      %v404 = vld [vmem:[#allocation2 + $0x22] sm:$0xff]
      %v405 = vld [vmem:[#allocation2 + $0x2a] sm:$0xff]
      %v406 = vld [vmem:[#allocation2 + $0x32] sm:$0xff]
      %v407 = vld [vmem:[#allocation2 + $0x3a] sm:$0xff]
      %408 = vset.pattern.permute.xlu0 1
      %409 = vperm.xlu0 %408, %v328
      %v410 = vpop.permute.xlu0 %409
      %412 = vset.pattern.permute.xlu0 1
      %413 = vperm.xlu0 %412, %v329
      %v414 = vpop.permute.xlu0 %413
      %416 = vset.pattern.permute.xlu0 1
      %417 = vperm.xlu0 %416, %v330
      %v418 = vpop.permute.xlu0 %417
      %420 = vset.pattern.permute.xlu0 1
      %421 = vperm.xlu0 %420, %v331
      %v422 = vpop.permute.xlu0 %421
      %424 = vset.pattern.permute.xlu0 1
      %425 = vperm.xlu0 %424, %v332
      %v426 = vpop.permute.xlu0 %425
      %428 = vset.pattern.permute.xlu0 1
      %429 = vperm.xlu0 %428, %v333
      %v430 = vpop.permute.xlu0 %429
      %432 = vset.pattern.permute.xlu0 1
      %433 = vperm.xlu0 %432, %v334
      %v434 = vpop.permute.xlu0 %433
      %436 = vset.pattern.permute.xlu0 1
      %437 = vperm.xlu0 %436, %v335
      %v438 = vpop.permute.xlu0 %437
      %v440 = vmul.f32 %v400, %v410
      %v441 = vmul.f32 %v401, %v414
      %v442 = vmul.f32 %v402, %v418
      %v443 = vmul.f32 %v403, %v422
      %v444 = vmul.f32 %v404, %v426
      %v445 = vmul.f32 %v405, %v430
      %v446 = vmul.f32 %v406, %v434
      %v447 = vmul.f32 %v407, %v438
      %v448 = vld [vmem:[#allocation2 + $0x8] sm:$0xff]
      %v449 = vld [vmem:[#allocation2 + $0x10] sm:$0xff]
      %v450 = vld [vmem:[#allocation2 + $0x18] sm:$0xff]
      %v451 = vld [vmem:[#allocation2 + $0x20] sm:$0xff]
      %v452 = vld [vmem:[#allocation2 + $0x28] sm:$0xff]
      %v453 = vld [vmem:[#allocation2 + $0x30] sm:$0xff]
      %v454 = vld [vmem:[#allocation2 + $0x38] sm:$0xff]
      %v455 = vld [vmem:[#allocation2 + $0x40] sm:$0xff]
      %v456 = vmul.f32 %v448, %v347
      %v457 = vmul.f32 %v449, %v352
      %v458 = vmul.f32 %v450, %v357
      %v459 = vmul.f32 %v451, %v362
      %v460 = vmul.f32 %v452, %v367
      %v461 = vmul.f32 %v453, %v372
      %v462 = vmul.f32 %v454, %v377
      %v463 = vmul.f32 %v455, %v382
      %v464 = vld [vmem:[#allocation2 + $0x9] sm:$0xff]
      %v465 = vld [vmem:[#allocation2 + $0x11] sm:$0xff]
      %v466 = vld [vmem:[#allocation2 + $0x19] sm:$0xff]
      %v467 = vld [vmem:[#allocation2 + $0x21] sm:$0xff]
      %v468 = vld [vmem:[#allocation2 + $0x29] sm:$0xff]
      %v469 = vld [vmem:[#allocation2 + $0x31] sm:$0xff]
      %v470 = vld [vmem:[#allocation2 + $0x39] sm:$0xff]
      %v471 = vld [vmem:[#allocation2 + $0x41] sm:$0xff]
      %v472 = vld [vmem:[#allocation2 + $0xa] sm:$0xff]
      %v473 = vld [vmem:[#allocation2 + $0x12] sm:$0xff]
      %v474 = vld [vmem:[#allocation2 + $0x1a] sm:$0xff]
      %v475 = vld [vmem:[#allocation2 + $0x22] sm:$0xff]
      %v476 = vld [vmem:[#allocation2 + $0x2a] sm:$0xff]
      %v477 = vld [vmem:[#allocation2 + $0x32] sm:$0xff]
      %v478 = vld [vmem:[#allocation2 + $0x3a] sm:$0xff]
      %v479 = vld [vmem:[#allocation2 + $0x42] sm:$0xff]
      %v480 = vmul.f32 %v472, %v410
      %v481 = vmul.f32 %v473, %v414
      %v482 = vmul.f32 %v474, %v418
      %v483 = vmul.f32 %v475, %v422
      %v484 = vmul.f32 %v476, %v426
      %v485 = vmul.f32 %v477, %v430
      %v486 = vmul.f32 %v478, %v434
      %v487 = vmul.f32 %v479, %v438
      %v488 = vld [vmem:[#allocation2 + $0x48] sm:$0xff]
      %v489 = vmul.f32 %v449, %v347
      %v490 = vmul.f32 %v450, %v352
      %v491 = vmul.f32 %v451, %v357
      %v492 = vmul.f32 %v452, %v362
      %v493 = vmul.f32 %v453, %v367
      %v494 = vmul.f32 %v454, %v372
      %v495 = vmul.f32 %v455, %v377
      %v496 = vmul.f32 %v488, %v382
      %v497 = vld [vmem:[#allocation2 + $0x49] sm:$0xff]
      %v498 = vld [vmem:[#allocation2 + $0x4a] sm:$0xff]
      %v499 = vmul.f32 %v473, %v410
      %v500 = vmul.f32 %v474, %v414
      %v501 = vmul.f32 %v475, %v418
      %v502 = vmul.f32 %v476, %v422
      %v503 = vmul.f32 %v477, %v426
      %v504 = vmul.f32 %v478, %v430
      %v505 = vmul.f32 %v479, %v434
      %v506 = vmul.f32 %v498, %v438
      %515 = vrot.lane.b32.xlu0 %v392, 40
      %v516 = vpop.permute.xlu0 %515
      %517 = vrot.lane.b32.xlu0 %v393, 40
      %v518 = vpop.permute.xlu0 %517
      %519 = vrot.lane.b32.xlu0 %v394, 40
      %v520 = vpop.permute.xlu0 %519
      %521 = vrot.lane.b32.xlu0 %v395, 40
      %v522 = vpop.permute.xlu0 %521
      %523 = vrot.lane.b32.xlu0 %v396, 40
      %v524 = vpop.permute.xlu0 %523
      %525 = vrot.lane.b32.xlu0 %v397, 40
      %v526 = vpop.permute.xlu0 %525
      %527 = vrot.lane.b32.xlu0 %v398, 40
      %v528 = vpop.permute.xlu0 %527
      %529 = vrot.lane.b32.xlu0 %v399, 40
      %v530 = vpop.permute.xlu0 %529
      %547 = vrot.lane.b32.xlu0 %v440, 80
      %v548 = vpop.permute.xlu0 %547
      %549 = vrot.lane.b32.xlu0 %v441, 80
      %v550 = vpop.permute.xlu0 %549
      %551 = vrot.lane.b32.xlu0 %v442, 80
      %v552 = vpop.permute.xlu0 %551
      %553 = vrot.lane.b32.xlu0 %v443, 80
      %v554 = vpop.permute.xlu0 %553
      %555 = vrot.lane.b32.xlu0 %v444, 80
      %v556 = vpop.permute.xlu0 %555
      %557 = vrot.lane.b32.xlu0 %v445, 80
      %v558 = vpop.permute.xlu0 %557
      %559 = vrot.lane.b32.xlu0 %v446, 80
      %v560 = vpop.permute.xlu0 %559
      %561 = vrot.lane.b32.xlu0 %v447, 80
      %v562 = vpop.permute.xlu0 %561
      %579 = vrot.lane.b32.xlu0 %v456, 120
      %v580 = vpop.permute.xlu0 %579
      %581 = vrot.lane.b32.xlu0 %v457, 120
      %v582 = vpop.permute.xlu0 %581
      %583 = vrot.lane.b32.xlu0 %v458, 120
      %v584 = vpop.permute.xlu0 %583
      %585 = vrot.lane.b32.xlu0 %v459, 120
      %v586 = vpop.permute.xlu0 %585
      %587 = vrot.lane.b32.xlu0 %v460, 120
      %v588 = vpop.permute.xlu0 %587
      %589 = vrot.lane.b32.xlu0 %v461, 120
      %v590 = vpop.permute.xlu0 %589
      %591 = vrot.lane.b32.xlu0 %v462, 120
      %v592 = vpop.permute.xlu0 %591
      %593 = vrot.lane.b32.xlu0 %v463, 120
      %v594 = vpop.permute.xlu0 %593
      %611 = vrot.lane.b32.xlu0 %v464, 32
      %v612 = vpop.permute.xlu0 %611
      %613 = vrot.lane.b32.xlu0 %v465, 32
      %v614 = vpop.permute.xlu0 %613
      %615 = vrot.lane.b32.xlu0 %v466, 32
      %v616 = vpop.permute.xlu0 %615
      %617 = vrot.lane.b32.xlu0 %v467, 32
      %v618 = vpop.permute.xlu0 %617
      %619 = vrot.lane.b32.xlu0 %v468, 32
      %v620 = vpop.permute.xlu0 %619
      %621 = vrot.lane.b32.xlu0 %v469, 32
      %v622 = vpop.permute.xlu0 %621
      %623 = vrot.lane.b32.xlu0 %v470, 32
      %v624 = vpop.permute.xlu0 %623
      %625 = vrot.lane.b32.xlu0 %v471, 32
      %v626 = vpop.permute.xlu0 %625
      %643 = vrot.lane.b32.xlu0 %v480, 72
      %v644 = vpop.permute.xlu0 %643
      %645 = vrot.lane.b32.xlu0 %v481, 72
      %v646 = vpop.permute.xlu0 %645
      %647 = vrot.lane.b32.xlu0 %v482, 72
      %v648 = vpop.permute.xlu0 %647
      %649 = vrot.lane.b32.xlu0 %v483, 72
      %v650 = vpop.permute.xlu0 %649
      %651 = vrot.lane.b32.xlu0 %v484, 72
      %v652 = vpop.permute.xlu0 %651
      %653 = vrot.lane.b32.xlu0 %v485, 72
      %v654 = vpop.permute.xlu0 %653
      %655 = vrot.lane.b32.xlu0 %v486, 72
      %v656 = vpop.permute.xlu0 %655
      %657 = vrot.lane.b32.xlu0 %v487, 72
      %v658 = vpop.permute.xlu0 %657
      %675 = vrot.lane.b32.xlu0 %v489, 112
      %v676 = vpop.permute.xlu0 %675
      %677 = vrot.lane.b32.xlu0 %v490, 112
      %v678 = vpop.permute.xlu0 %677
      %679 = vrot.lane.b32.xlu0 %v491, 112
      %v680 = vpop.permute.xlu0 %679
      %681 = vrot.lane.b32.xlu0 %v492, 112
      %v682 = vpop.permute.xlu0 %681
      %683 = vrot.lane.b32.xlu0 %v493, 112
      %v684 = vpop.permute.xlu0 %683
      %685 = vrot.lane.b32.xlu0 %v494, 112
      %v686 = vpop.permute.xlu0 %685
      %687 = vrot.lane.b32.xlu0 %v495, 112
      %v688 = vpop.permute.xlu0 %687
      %689 = vrot.lane.b32.xlu0 %v496, 112
      %v690 = vpop.permute.xlu0 %689
      %700 = vrot.lane.b32.xlu0 %v465, 24
      %v701 = vpop.permute.xlu0 %700
      %702 = vrot.lane.b32.xlu0 %v466, 24
      %v703 = vpop.permute.xlu0 %702
      %704 = vrot.lane.b32.xlu0 %v467, 24
      %v705 = vpop.permute.xlu0 %704
      %706 = vrot.lane.b32.xlu0 %v468, 24
      %v707 = vpop.permute.xlu0 %706
      %708 = vrot.lane.b32.xlu0 %v469, 24
      %v709 = vpop.permute.xlu0 %708
      %710 = vrot.lane.b32.xlu0 %v470, 24
      %v711 = vpop.permute.xlu0 %710
      %712 = vrot.lane.b32.xlu0 %v471, 24
      %v713 = vpop.permute.xlu0 %712
      %714 = vrot.lane.b32.xlu0 %v497, 24
      %v715 = vpop.permute.xlu0 %714
      %732 = vrot.lane.b32.xlu0 %v499, 64
      %v733 = vpop.permute.xlu0 %732
      %734 = vrot.lane.b32.xlu0 %v500, 64
      %v735 = vpop.permute.xlu0 %734
      %736 = vrot.lane.b32.xlu0 %v501, 64
      %v737 = vpop.permute.xlu0 %736
      %738 = vrot.lane.b32.xlu0 %v502, 64
      %v739 = vpop.permute.xlu0 %738
      %740 = vrot.lane.b32.xlu0 %v503, 64
      %v741 = vpop.permute.xlu0 %740
      %742 = vrot.lane.b32.xlu0 %v504, 64
      %v743 = vpop.permute.xlu0 %742
      %744 = vrot.lane.b32.xlu0 %v505, 64
      %v745 = vpop.permute.xlu0 %744
      %746 = vrot.lane.b32.xlu0 %v506, 64
      %v747 = vpop.permute.xlu0 %746
      %v756 = vsel %vm314, %v384, %v516
      %v757 = vsel %vm314, %v385, %v518
      %v758 = vsel %vm314, %v386, %v520
      %v759 = vsel %vm314, %v387, %v522
      %v760 = vsel %vm314, %v388, %v524
      %v761 = vsel %vm314, %v389, %v526
      %v762 = vsel %vm314, %v390, %v528
      %v763 = vsel %vm314, %v391, %v530
      %vm764 = vcmask 654336
      %v765 = vsel %vm764, %v756, %v548
      %v766 = vsel %vm764, %v757, %v550
      %v767 = vsel %vm764, %v758, %v552
      %v768 = vsel %vm764, %v759, %v554
      %v769 = vsel %vm764, %v760, %v556
      %v770 = vsel %vm764, %v761, %v558
      %v771 = vsel %vm764, %v762, %v560
      %v772 = vsel %vm764, %v763, %v562
      %vm773 = vcmask 982016
      %v774 = vsel %vm773, %v765, %v580
      %v775 = vsel %vm773, %v766, %v582
      %v776 = vsel %vm773, %v767, %v584
      %v777 = vsel %vm773, %v768, %v586
      %v778 = vsel %vm773, %v769, %v588
      %v779 = vsel %vm773, %v770, %v590
      %v780 = vsel %vm773, %v771, %v592
      %v781 = vsel %vm773, %v772, %v594
      %vm782 = vcmask 261120
      %v783 = vsel %vm782, %v580, %v612
      %v784 = vsel %vm782, %v582, %v614
      %v785 = vsel %vm782, %v584, %v616
      %v786 = vsel %vm782, %v586, %v618
      %v787 = vsel %vm782, %v588, %v620
      %v788 = vsel %vm782, %v590, %v622
      %v789 = vsel %vm782, %v592, %v624
      %v790 = vsel %vm782, %v594, %v626
      %vm791 = vcmask 588800
      %v792 = vsel %vm791, %v783, %v644
      %v793 = vsel %vm791, %v784, %v646
      %v794 = vsel %vm791, %v785, %v648
      %v795 = vsel %vm791, %v786, %v650
      %v796 = vsel %vm791, %v787, %v652
      %v797 = vsel %vm791, %v788, %v654
      %v798 = vsel %vm791, %v789, %v656
      %v799 = vsel %vm791, %v790, %v658
      %vm800 = vcmask 916480
      %v801 = vsel %vm800, %v792, %v676
      %v802 = vsel %vm800, %v793, %v678
      %v803 = vsel %vm800, %v794, %v680
      %v804 = vsel %vm800, %v795, %v682
      %v805 = vsel %vm800, %v796, %v684
      %v806 = vsel %vm800, %v797, %v686
      %v807 = vsel %vm800, %v798, %v688
      %v808 = vsel %vm800, %v799, %v690
      %vm809 = vcmask 195584
      %v810 = vsel %vm809, %v676, %v701
      %v811 = vsel %vm809, %v678, %v703
      %v812 = vsel %vm809, %v680, %v705
      %v813 = vsel %vm809, %v682, %v707
      %v814 = vsel %vm809, %v684, %v709
      %v815 = vsel %vm809, %v686, %v711
      %v816 = vsel %vm809, %v688, %v713
      %v817 = vsel %vm809, %v690, %v715
      %vm818 = vcmask 523264
      %v819 = vsel %vm818, %v810, %v733
      %v820 = vsel %vm818, %v811, %v735
      %v821 = vsel %vm818, %v812, %v737
      %v822 = vsel %vm818, %v813, %v739
      %v823 = vsel %vm818, %v814, %v741
      %v824 = vsel %vm818, %v815, %v743
      %v825 = vsel %vm818, %v816, %v745
      %v826 = vsel %vm818, %v817, %v747
      %v827 = vpack.c.bf16 %v775, %v774
      %v828 = vpack.c.bf16 %v802, %v801
      %v829 = vpack.c.bf16 %v820, %v819
      %v830 = vpack.c.bf16 %v777, %v776
      %v831 = vpack.c.bf16 %v804, %v803
      %v832 = vpack.c.bf16 %v822, %v821
      %v833 = vpack.c.bf16 %v779, %v778
      %v834 = vpack.c.bf16 %v806, %v805
      %v835 = vpack.c.bf16 %v824, %v823
      %v836 = vpack.c.bf16 %v781, %v780
      %v837 = vpack.c.bf16 %v808, %v807
      %v838 = vpack.c.bf16 %v826, %v825
      %v839 = vld [vmem:[%s3] sm:$0xff]
      %v840 = vld [vmem:[%s3 + $0x8] sm:$0xff]
      %v841 = vld [vmem:[%s3 + $0x10] sm:$0xff]
      %v842 = vld [vmem:[%s3 + $0x18] sm:$0xff]
      %v843 = vld [vmem:[%s3 + $0x20] sm:$0xff]
      %v844 = vld [vmem:[%s3 + $0x28] sm:$0xff]
      %v845 = vld [vmem:[%s3 + $0x30] sm:$0xff]
      %v846 = vld [vmem:[%s3 + $0x38] sm:$0xff]
      %v847 = vld [vmem:[%s3 + $0x40] sm:$0xff]
      %v848 = vld [vmem:[%s3 + $0x48] sm:$0xff]
      %v849 = vld [vmem:[%s3 + $0x50] sm:$0xff]
      %v850 = vld [vmem:[%s3 + $0x58] sm:$0xff]
      %v851 = vld [vmem:[%s3 + $0x60] sm:$0xff]
      %v852 = vld [vmem:[%s3 + $0x68] sm:$0xff]
      %v853 = vld [vmem:[%s3 + $0x70] sm:$0xff]
      %v854 = vld [vmem:[%s3 + $0x78] sm:$0xff]
      %v855 = vld [vmem:[%s3 + $0x80] sm:$0xff]
      %v856 = vld [vmem:[%s3 + $0x88] sm:$0xff]
      %v857 = vld [vmem:[%s3 + $0x90] sm:$0xff]
      %v858 = vld [vmem:[%s3 + $0x98] sm:$0xff]
      %v859 = vld [vmem:[%s3 + $0xa0] sm:$0xff]
      %v860 = vld [vmem:[%s3 + $0xa8] sm:$0xff]
      %v861 = vld [vmem:[%s3 + $0xb0] sm:$0xff]
      %v862 = vld [vmem:[%s3 + $0xb8] sm:$0xff]
      %v863 = vld [vmem:[%s3 + $0xc0] sm:$0xff]
      %v864 = vld [vmem:[%s3 + $0xc8] sm:$0xff]
      %v865 = vld [vmem:[%s3 + $0xd0] sm:$0xff]
      %v866 = vld [vmem:[%s3 + $0xd8] sm:$0xff]
      %v867 = vld [vmem:[%s3 + $0xe0] sm:$0xff]
      %v868 = vld [vmem:[%s3 + $0xe8] sm:$0xff]
      %v869 = vld [vmem:[%s3 + $0xf0] sm:$0xff]
      %v870 = vld [vmem:[%s3 + $0xf8] sm:$0xff]
      %v871 = vld [vmem:[%s3 + $0x100] sm:$0xff]
      %v872 = vld [vmem:[%s3 + $0x108] sm:$0xff]
      %v873 = vld [vmem:[%s3 + $0x110] sm:$0xff]
      %v874 = vld [vmem:[%s3 + $0x118] sm:$0xff]
      %v875 = vld [vmem:[%s3 + $0x120] sm:$0xff]
      %v876 = vld [vmem:[%s3 + $0x128] sm:$0xff]
      %v877 = vld [vmem:[%s3 + $0x130] sm:$0xff]
      %v878 = vld [vmem:[%s3 + $0x138] sm:$0xff]
      %v879 = vld [vmem:[%s3 + $0x140] sm:$0xff]
      %v880 = vld [vmem:[%s3 + $0x148] sm:$0xff]
      %v881 = vld [vmem:[%s3 + $0x150] sm:$0xff]
      %v882 = vld [vmem:[%s3 + $0x158] sm:$0xff]
      %v883 = vld [vmem:[%s3 + $0x160] sm:$0xff]
      %v884 = vpack.c.bf16 %v840, %v839
      %v885 = vpack.c.bf16 %v842, %v841
      %v886 = vpack.c.bf16 %v844, %v843
      %v887 = vpack.c.bf16 %v846, %v845
      %v888 = vpack.c.bf16 %v848, %v847
      %v889 = vpack.c.bf16 %v850, %v849
      %v890 = vpack.c.bf16 %v852, %v851
      %v891 = vpack.c.bf16 %v854, %v853
      %v892 = vpack.c.bf16 %v856, %v855
      %v893 = vpack.c.bf16 %v858, %v857
      %v894 = vpack.c.bf16 %v860, %v859
      %v895 = vpack.c.bf16 %v862, %v861
      %v896 = vpack.c.bf16 %v864, %v863
      %v897 = vpack.c.bf16 %v866, %v865
      %v898 = vpack.c.bf16 %v868, %v867
      %v899 = vpack.c.bf16 %v870, %v869
      %v900 = vpack.c.bf16 %v872, %v871
      %v901 = vpack.c.bf16 %v874, %v873
      %v902 = vpack.c.bf16 %v876, %v875
      %v903 = vpack.c.bf16 %v878, %v877
      %v904 = vpack.c.bf16 %v880, %v879
      %v905 = vpack.c.bf16 %v882, %v881
      %v906 = vpack.c.bf16 %v883, %v883
      %vm907 = vcmask 850944
      %v909 = vsel %vm907, %v829, 0
      %v912 = vsel %vm907, %v832, 0
      %v915 = vsel %vm907, %v835, 0
      %v918 = vsel %vm907, %v838, 0
      %vm920 = vcmask 1043456
      %v922 = vsel %vm920, %v906, 0
      %924 = vmatprep.subr.bf16.mxu0 0
      %925 = vmatpush1.bf16.msra.mxu0 %v891
      %926 = vmatprep.subr.bf16.mxu0 0
      %927 = vmatpush1.bf16.msra.mxu0 %v890
      %928 = vmatprep.subr.bf16.mxu0 0
      %929 = vmatpush1.bf16.msra.mxu0 %v889
      %930 = vmatprep.subr.bf16.mxu0 0
      %931 = vmatpush1.bf16.msra.mxu0 %v888
      %932 = vmatprep.subr.bf16.mxu0 0
      %933 = vmatpush1.bf16.msra.mxu0 %v887
      %934 = vmatprep.subr.bf16.mxu0 0
      %935 = vmatpush1.bf16.msra.mxu0 %v886
      %936 = vmatprep.subr.bf16.mxu0 0
      %937 = vmatpush1.bf16.msra.mxu0 %v885
      %938 = vmatprep.subr.bf16.mxu0 0
      %939 = vmatpush1.bf16.msra.mxu0 %v884
      %940 = vmatprep.subr.bf16.mxu0 0
      %941 = vmatpush2.bf16.msra.mxu0 %v899
      %942 = vmatprep.subr.bf16.mxu0 0
      %943 = vmatpush2.bf16.msra.mxu0 %v898
      %944 = vmatprep.subr.bf16.mxu0 0
      %945 = vmatpush2.bf16.msra.mxu0 %v897
      %946 = vmatprep.subr.bf16.mxu0 0
      %947 = vmatpush2.bf16.msra.mxu0 %v896
      %948 = vmatprep.subr.bf16.mxu0 0
      %949 = vmatpush2.bf16.msra.mxu0 %v895
      %950 = vmatprep.subr.bf16.mxu0 0
      %951 = vmatpush2.bf16.msra.mxu0 %v894
      %952 = vmatprep.subr.bf16.mxu0 0
      %953 = vmatpush2.bf16.msra.mxu0 %v893
      %954 = vmatprep.subr.bf16.mxu0 0
      %955 = vmatpush2.bf16.msra.mxu0 %v892
      %956 = vmatprep.mubr.bf16.mxu0 %v828
      %957 = vmatmul.mubr.bf16.gmra.mxu0 %v827
      %v958 = vpop.f32.mrf.mxu0
      %v959 = vadd.f32 0.0, %v958
      %v960 = vpop.f32.mrf.mxu0
      %v961 = vpop.f32.mrf.mxu0
      %v962 = vadd.f32 0.0, %v961
      %v963 = vpop.f32.mrf.mxu0
      %964 = vmatprep.mubr.bf16.mxu0 %v831
      %965 = vmatmul.mubr.bf16.gmra.mxu0 %v830
      %v966 = vpop.f32.mrf.mxu0
      %v967 = vadd.f32 0.0, %v966
      %v968 = vpop.f32.mrf.mxu0
      %v969 = vpop.f32.mrf.mxu0
      %v970 = vadd.f32 0.0, %v969
      %v971 = vpop.f32.mrf.mxu0
      %972 = vmatprep.mubr.bf16.mxu0 %v834
      %973 = vmatmul.mubr.bf16.gmra.mxu0 %v833
      %v974 = vpop.f32.mrf.mxu0
      %v975 = vadd.f32 0.0, %v974
      %v976 = vpop.f32.mrf.mxu0
      %v977 = vpop.f32.mrf.mxu0
      %v978 = vadd.f32 0.0, %v977
      %v979 = vpop.f32.mrf.mxu0
      %980 = vmatprep.mubr.bf16.mxu0 %v837
      %981 = vmatmul.mubr.bf16.gmra.mxu0 %v836
      %v982 = vpop.f32.mrf.mxu0
      %v983 = vadd.f32 0.0, %v982
      %v984 = vpop.f32.mrf.mxu0
      %v985 = vpop.f32.mrf.mxu0
      %v986 = vadd.f32 0.0, %v985
      %v987 = vpop.f32.mrf.mxu0
      %988 = vdwg.mxu0
      %989 = vmatprep.subr.bf16.mxu0 0
      %990 = vmatpush1.bf16.msra.mxu0 0
      %991 = vmatprep.subr.bf16.mxu0 0
      %992 = vmatpush1.bf16.msra.mxu0 %v922
      %993 = vmatprep.subr.bf16.mxu0 0
      %994 = vmatpush1.bf16.msra.mxu0 %v905
      %995 = vmatprep.subr.bf16.mxu0 0
      %996 = vmatpush1.bf16.msra.mxu0 %v904
      %997 = vmatprep.subr.bf16.mxu0 0
      %998 = vmatpush1.bf16.msra.mxu0 %v903
      %999 = vmatprep.subr.bf16.mxu0 0
      %1000 = vmatpush1.bf16.msra.mxu0 %v902
      %1001 = vmatprep.subr.bf16.mxu0 0
      %1002 = vmatpush1.bf16.msra.mxu0 %v901
      %1003 = vmatprep.subr.bf16.mxu0 0
      %1004 = vmatpush1.bf16.msra.mxu0 %v900
      %1005 = vmatprep.subr.bf16.mxu0 0
      %1006 = vmatpush2.bf16.msra.mxu0 0
      %1007 = vmatprep.subr.bf16.mxu0 0
      %1008 = vmatpush2.bf16.msra.mxu0 0
      %1009 = vmatprep.subr.bf16.mxu0 0
      %1010 = vmatpush2.bf16.msra.mxu0 0
      %1011 = vmatprep.subr.bf16.mxu0 0
      %1012 = vmatpush2.bf16.msra.mxu0 0
      %1013 = vmatprep.subr.bf16.mxu0 0
      %1014 = vmatpush2.bf16.msra.mxu0 0
      %1015 = vmatprep.subr.bf16.mxu0 0
      %1016 = vmatpush2.bf16.msra.mxu0 0
      %1017 = vmatprep.subr.bf16.mxu0 0
      %1018 = vmatpush2.bf16.msra.mxu0 0
      %1019 = vmatprep.subr.bf16.mxu0 0
      %1020 = vmatpush2.bf16.msra.mxu0 0
      %1021 = vmatprep.mubr.bf16.mxu0 0
      %1022 = vmatmul.mubr.bf16.gmra.mxu0 %v909
      %v1023 = vpop.f32.mrf.mxu0
      %v1024 = vadd.f32 %v959, %v1023
      %v1025 = vpop.f32.mrf.mxu0
      %v1026 = vpop.f32.mrf.mxu0
      %v1027 = vadd.f32 %v962, %v1026
      %v1028 = vpop.f32.mrf.mxu0
      %1029 = vmatprep.mubr.bf16.mxu0 0
      %1030 = vmatmul.mubr.bf16.gmra.mxu0 %v912
      %v1031 = vpop.f32.mrf.mxu0
      %v1032 = vadd.f32 %v967, %v1031
      %v1033 = vpop.f32.mrf.mxu0
      %v1034 = vpop.f32.mrf.mxu0
      %v1035 = vadd.f32 %v970, %v1034
      %v1036 = vpop.f32.mrf.mxu0
      %1037 = vmatprep.mubr.bf16.mxu0 0
      %1038 = vmatmul.mubr.bf16.gmra.mxu0 %v915
      %v1039 = vpop.f32.mrf.mxu0
      %v1040 = vadd.f32 %v975, %v1039
      %v1041 = vpop.f32.mrf.mxu0
      %v1042 = vpop.f32.mrf.mxu0
      %v1043 = vadd.f32 %v978, %v1042
      %v1044 = vpop.f32.mrf.mxu0
      %1045 = vmatprep.mubr.bf16.mxu0 0
      %1046 = vmatmul.mubr.bf16.gmra.mxu0 %v918
      %v1047 = vpop.f32.mrf.mxu0
      %v1048 = vadd.f32 %v983, %v1047
      %v1049 = vpop.f32.mrf.mxu0
      %v1050 = vpop.f32.mrf.mxu0
      %v1051 = vadd.f32 %v986, %v1050
      %v1052 = vpop.f32.mrf.mxu0
      %1053 = vdwg.mxu0
      %1054 = vst.msk [vmem:[%s251] sm:$0xff] %vm305, %v1024
      %1055 = vst.msk [vmem:[%s251 + $0x8] sm:$0xff] %vm305, %v1027
      %1056 = vst.msk [vmem:[%s251 + $0x10] sm:$0xff] %vm305, %v1032
      %1057 = vst.msk [vmem:[%s251 + $0x18] sm:$0xff] %vm305, %v1035
      %1058 = vst.msk [vmem:[%s251 + $0x20] sm:$0xff] %vm305, %v1040
      %1059 = vst.msk [vmem:[%s251 + $0x28] sm:$0xff] %vm305, %v1043
      %1060 = vst.msk [vmem:[%s251 + $0x30] sm:$0xff] %vm305, %v1048
      %1061 = vst.msk [vmem:[%s251 + $0x38] sm:$0xff] %vm305, %v1051
      %v1062 = vsel %vm305, %v1024, 0.0
      %v1063 = vsel %vm305, %v1027, 0.0
      %v1064 = vadd.f32 %v1062, %v1063
      %v1065 = vsel %vm305, %v1032, 0.0
      %v1066 = vadd.f32 %v1064, %v1065
      %v1067 = vsel %vm305, %v1035, 0.0
      %v1068 = vadd.f32 %v1066, %v1067
      %v1069 = vsel %vm305, %v1040, 0.0
      %v1070 = vadd.f32 %v1068, %v1069
      %v1071 = vsel %vm305, %v1043, 0.0
      %v1072 = vadd.f32 %v1070, %v1071
      %v1073 = vsel %vm305, %v1048, 0.0
      %v1074 = vadd.f32 %v1072, %v1073
      %v1075 = vsel %vm305, %v1051, 0.0
      %v1076 = vadd.f32 %v1074, %v1075
      %v1077 = vrot.slane %v1076, 4
      %v1078 = vadd.f32 %v1076, %v1077
      %v1079 = vrot.slane %v1078, 2
      %v1080 = vadd.f32 %v1078, %v1079
      %v1081 = vrot.slane %v1080, 1
      %v1082 = vadd.f32 %v1080, %v1081
      %vm1083 = vcmask 57344
      %1084 = vst.msk [vmem:[%s255] sm:$0x1] %vm1083, %v1082
      %v1085 = vmul.f32 %v1024, %v1024
      %v1086 = vmul.f32 %v1027, %v1027
      %v1087 = vmul.f32 %v1032, %v1032
      %v1088 = vmul.f32 %v1035, %v1035
      %v1089 = vmul.f32 %v1040, %v1040
      %v1090 = vmul.f32 %v1043, %v1043
      %v1091 = vmul.f32 %v1048, %v1048
      %v1092 = vmul.f32 %v1051, %v1051
      %v1093 = vsel %vm305, %v1085, 0.0
      %v1094 = vsel %vm305, %v1086, 0.0
      %v1095 = vadd.f32 %v1093, %v1094
      %v1096 = vsel %vm305, %v1087, 0.0
      %v1097 = vadd.f32 %v1095, %v1096
      %v1098 = vsel %vm305, %v1088, 0.0
      %v1099 = vadd.f32 %v1097, %v1098
      %v1100 = vsel %vm305, %v1089, 0.0
      %v1101 = vadd.f32 %v1099, %v1100
      %v1102 = vsel %vm305, %v1090, 0.0
      %v1103 = vadd.f32 %v1101, %v1102
      %v1104 = vsel %vm305, %v1091, 0.0
      %v1105 = vadd.f32 %v1103, %v1104
      %v1106 = vsel %vm305, %v1092, 0.0
      %v1107 = vadd.f32 %v1105, %v1106
      %v1108 = vrot.slane %v1107, 4
      %v1109 = vadd.f32 %v1107, %v1108
      %v1110 = vrot.slane %v1109, 2
      %v1111 = vadd.f32 %v1109, %v1110
      %v1112 = vrot.slane %v1111, 1
      %v1113 = vadd.f32 %v1111, %v1112
      %1114 = vst.msk [vmem:[%s255 + $0x1] sm:$0x1] %vm1083, %v1113
      %p1115 = scmp.lt.s32.totalorder %s17, 1
      %s1116 = scalar_select %p1115, %s17, 1
      %s1117 = smul.addr %s1116, 8
      %s1118 = smul.addr %s1117, 8
      %s1119 = scalar_lea.vmem %s4, %s1118
      %p1120 = scmp.lt.s32.totalorder %s17, 1
      %s1121 = scalar_select %p1120, %s17, 1
      %s1122 = smul.addr %s1121, 2
      %s1123 = scalar_lea.vmem %s5, %s1122
      // Predicated region
      $region37: #{run.19} parent=35 // pred_check
        %p1124 = pneg %p129
      $region38: #{run.19} parent=35 // pred_check_branch
        %1126 = sbr.rel (%p1124) target = $region40
      $region39: #{run.19} parent=35 // pred_region
        _
      $region40: #{run.19} parent=35 // pred_fallthru
        _
      // Predicated region
      $region41: #{run.19} parent=35 // pred_check
        %p1127 = pneg %p155
      $region42: #{run.19} parent=35 // pred_check_branch
        %1129 = sbr.rel (%p1127) target = $region44
      $region43: #{run.19} parent=35 // pred_region
        _
      $region44: #{run.19} parent=35 // pred_fallthru
        _
    $region36: #{run.19} parent=5 // pred_fallthru
      _
    %p1130 = scmp.le.s32.totalorder 2, %s12
    // Predicated region
    $region45: #{run.19} parent=5 // pred_check
      %p1131 = pneg %p1130
    $region46: #{run.19} parent=5 // pred_check_branch
      %1133 = sbr.rel (%p1131) target = $region48
    $region47: #{run.19} parent=5 // pred_region
      %s1134 = ssub.s32 %s12, 2
      // Predicated region
      $region49: #{run.19} parent=47 // pred_check
        %p1135 = pneg %p135
      $region50: #{run.19} parent=47 // pred_check_branch
        %1137 = sbr.rel (%p1135) target = $region52
      $region51: #{run.19} parent=47 // pred_region
        %p1138 = scmp.lt.s32.totalorder %s18, 1
        %s1139 = scalar_select %p1138, %s18, 1
        %s1140 = smul.addr %s1139, 8
        %s1141 = smul.addr %s1140, 8
        %s1142 = scalar_lea.vmem %s4, %s1141
      $region52: #{run.19} parent=47 // pred_fallthru
        _
      // Predicated region
      $region53: #{run.19} parent=47 // pred_check
        %p1143 = pneg %p161
      $region54: #{run.19} parent=47 // pred_check_branch
        %1145 = sbr.rel (%p1143) target = $region56
      $region55: #{run.19} parent=47 // pred_region
        %p1146 = scmp.lt.s32.totalorder %s18, 1
        %s1147 = scalar_select %p1146, %s18, 1
        %s1148 = smul.addr %s1147, 2
        %s1149 = scalar_lea.vmem %s5, %s1148
      $region56: #{run.19} parent=47 // pred_fallthru
        _
    $region48: #{run.19} parent=5 // pred_fallthru
      _
  $region6: #{run.19} parent=0 // loop_footer
    %s16 = sadd.s32 1, %s12
  $region7: #{run.19} parent=0 // loop_footer_branch
    %11 = sbr.rel target = $region3
  $region8: #{run.19} parent=0 // loop_exit
    _

// kernel: run.23
$region0: #{run.23}
  #allocation0 [shape = 'u32[]', space=smem, size = 0x4, offset = 0x4, fixed_abs, tag = 'smem constant byte address 0x4 - core index']
  #allocation1 [shape = 'u32[144,128]{1,0:T(1,128)}', space=vmem, size = 0x12000, scoped, tag = 'internal scratch']
  %s0 = inlined_call_operand.vmem [shape: f32[2,64,8], index: 0, kind: input, shape index: {}]
  %s1 = inlined_call_operand.vmem [shape: f32[2,16,16,32], index: 1, kind: input, shape index: {}]
  %s2 = inlined_call_operand.vmem [shape: f32[8,32], index: 2, kind: input, shape index: {}]
  %s3 = inlined_call_operand.vmem [shape: f32[1,32], index: 3, kind: input, shape index: {}]
  %s4 = inlined_call_operand.vmem [shape: f32[16,8,1], index: 4, kind: input, shape index: {}]
  %s5 = inlined_call_operand.vmem [shape: f32[8,16], index: 5, kind: input, shape index: {}]
  %s6 = inlined_call_operand.hbm [shape: f32[2,16,16,32], index: 6, kind: output, shape index: {}]
  %s7 = sld [smem:[#allocation0]]
  $region57: #{run.23} parent=0
    _
  %s9 = ssub.s32 1, %s7
  %s10 = scalar_select 0, %s9, %s7
  $region1: #{run.23} parent=0
    #allocation2 [shape = 'u8[262144]{0}', space=vmem, size = 0x40000, scoped, tag = 'output window, operand 0']
    #allocation3 [shape = 's32[2]{0}', space=sflag, size = 0x8, scoped, tag = 'scoped memory for run.23']
    %11 = vsyncpa [#allocation3], 0
    %s12 = scalar_lea.sflag [#allocation3], 1
    %13 = vsyncpa %s12, 0
    loop: start=0, step=1, limit=4
    $region2: #{run.23} parent=1 // loop_pre_header
      _
    $region3: #{run.23} parent=1 // loop_header
      %s15 = sphi 0, %s19
      %p16 = scmp.ge.s32.totalorder %s15, 4
      %s25 = sphi 0, %s27
      %s28 = sphi 0, %s25
      %s29 = sphi 0, %s28
      %s45 = sphi 0, %s29
      %s51 = sphi 0, %s53
      %s54 = sphi 0, %s51
      %s55 = sphi 0, %s54
      %s71 = sphi 0, %s55
      %s75 = sphi 0, %s75
      %s77 = sphi 0, %s75
      %s78 = sphi 0, %s77
      %s92 = sphi 0, %s78
      %s96 = sphi 0, %s96
      %s98 = sphi 0, %s96
      %s99 = sphi 0, %s98
      %s113 = sphi 0, %s99
      %s117 = sphi 0, %s117
      %s119 = sphi 0, %s117
      %s120 = sphi 0, %s119
      %s134 = sphi 0, %s120
      %s138 = sphi 0, %s138
      %s140 = sphi 0, %s138
      %s141 = sphi 0, %s140
      %s155 = sphi 0, %s141
      %s161 = sphi 0, %s163
      %s164 = sphi 0, %s161
      %s165 = sphi 0, %s164
      %s181 = sphi 0, %s165
    $region4: #{run.23} parent=1 // loop_header_branch
      %18 = sbr.rel (%p16) target = $region8
    $region5: #{run.23} parent=1 // loop_body
      %s20 = ssub.s32 %s15, 1
      %s21 = ssub.s32 %s15, 2
      %s22 = sadd.s32 %s15, 1
      %s23 = ssub.s32 %s15, %s22
      %p24 = scmp.eq.s32.totalorder %s23, 0
      %s26 = sadd.s32 %s25, 1
      %s27 = scalar_select %p24, %s25, %s26
      %p30 = pneg %p24
      %p31 = scmp.eq.s32.totalorder %s15, 1
      %p32 = por %p30, %p31
      %p33 = scmp.ne.s32.totalorder %s25, %s28
      %p34 = scmp.eq.s32.totalorder %s15, 0
      %p35 = por %p33, %p34
      %p36 = scmp.ne.s32.totalorder %s25, %s28
      %p37 = scmp.eq.s32.totalorder %s20, 1
      %p38 = por %p36, %p37
      %p39 = scmp.ne.s32.totalorder %s28, %s29
      %p40 = scmp.eq.s32.totalorder %s20, 0
      %p41 = por %p39, %p40
      %p42 = scmp.ne.s32.totalorder %s28, %s29
      %p43 = scmp.eq.s32.totalorder %s21, 1
      %p44 = por %p42, %p43
      %p46 = scmp.ne.s32.totalorder %s29, %s45
      %p47 = scmp.eq.s32.totalorder %s21, 0
      %p48 = por %p46, %p47
      %s49 = ssub.s32 %s15, %s22
      %p50 = scmp.eq.s32.totalorder %s49, 0
      %s52 = sadd.s32 %s51, 1
      %s53 = scalar_select %p50, %s51, %s52
      %p56 = pneg %p50
      %p57 = scmp.eq.s32.totalorder %s15, 1
      %p58 = por %p56, %p57
      %p59 = scmp.ne.s32.totalorder %s51, %s54
      %p60 = scmp.eq.s32.totalorder %s15, 0
      %p61 = por %p59, %p60
      %p62 = scmp.ne.s32.totalorder %s51, %s54
      %p63 = scmp.eq.s32.totalorder %s20, 1
      %p64 = por %p62, %p63
      %p65 = scmp.ne.s32.totalorder %s54, %s55
      %p66 = scmp.eq.s32.totalorder %s20, 0
      %p67 = por %p65, %p66
      %p68 = scmp.ne.s32.totalorder %s54, %s55
      %p69 = scmp.eq.s32.totalorder %s21, 1
      %p70 = por %p68, %p69
      %p72 = scmp.ne.s32.totalorder %s55, %s71
      %p73 = scmp.eq.s32.totalorder %s21, 0
      %p74 = por %p72, %p73
      %s76 = sadd.s32 %s75, 1
      %p79 = scmp.eq.s32.totalorder %s15, 1
      %p80 = scmp.ne.s32.totalorder %s75, %s77
      %p81 = scmp.eq.s32.totalorder %s15, 0
      %p82 = por %p80, %p81
      %p83 = scmp.ne.s32.totalorder %s75, %s77
      %p84 = scmp.eq.s32.totalorder %s20, 1
      %p85 = por %p83, %p84
      %p86 = scmp.ne.s32.totalorder %s77, %s78
      %p87 = scmp.eq.s32.totalorder %s20, 0
      %p88 = por %p86, %p87
      %p89 = scmp.ne.s32.totalorder %s77, %s78
      %p90 = scmp.eq.s32.totalorder %s21, 1
      %p91 = por %p89, %p90
      %p93 = scmp.ne.s32.totalorder %s78, %s92
      %p94 = scmp.eq.s32.totalorder %s21, 0
      %p95 = por %p93, %p94
      %s97 = sadd.s32 %s96, 1
      %p100 = scmp.eq.s32.totalorder %s15, 1
      %p101 = scmp.ne.s32.totalorder %s96, %s98
      %p102 = scmp.eq.s32.totalorder %s15, 0
      %p103 = por %p101, %p102
      %p104 = scmp.ne.s32.totalorder %s96, %s98
      %p105 = scmp.eq.s32.totalorder %s20, 1
      %p106 = por %p104, %p105
      %p107 = scmp.ne.s32.totalorder %s98, %s99
      %p108 = scmp.eq.s32.totalorder %s20, 0
      %p109 = por %p107, %p108
      %p110 = scmp.ne.s32.totalorder %s98, %s99
      %p111 = scmp.eq.s32.totalorder %s21, 1
      %p112 = por %p110, %p111
      %p114 = scmp.ne.s32.totalorder %s99, %s113
      %p115 = scmp.eq.s32.totalorder %s21, 0
      %p116 = por %p114, %p115
      %s118 = sadd.s32 %s117, 1
      %p121 = scmp.eq.s32.totalorder %s15, 1
      %p122 = scmp.ne.s32.totalorder %s117, %s119
      %p123 = scmp.eq.s32.totalorder %s15, 0
      %p124 = por %p122, %p123
      %p125 = scmp.ne.s32.totalorder %s117, %s119
      %p126 = scmp.eq.s32.totalorder %s20, 1
      %p127 = por %p125, %p126
      %p128 = scmp.ne.s32.totalorder %s119, %s120
      %p129 = scmp.eq.s32.totalorder %s20, 0
      %p130 = por %p128, %p129
      %p131 = scmp.ne.s32.totalorder %s119, %s120
      %p132 = scmp.eq.s32.totalorder %s21, 1
      %p133 = por %p131, %p132
      %p135 = scmp.ne.s32.totalorder %s120, %s134
      %p136 = scmp.eq.s32.totalorder %s21, 0
      %p137 = por %p135, %p136
      %s139 = sadd.s32 %s138, 1
      %p142 = scmp.eq.s32.totalorder %s15, 1
      %p143 = scmp.ne.s32.totalorder %s138, %s140
      %p144 = scmp.eq.s32.totalorder %s15, 0
      %p145 = por %p143, %p144
      %p146 = scmp.ne.s32.totalorder %s138, %s140
      %p147 = scmp.eq.s32.totalorder %s20, 1
      %p148 = por %p146, %p147
      %p149 = scmp.ne.s32.totalorder %s140, %s141
      %p150 = scmp.eq.s32.totalorder %s20, 0
      %p151 = por %p149, %p150
      %p152 = scmp.ne.s32.totalorder %s140, %s141
      %p153 = scmp.eq.s32.totalorder %s21, 1
      %p154 = por %p152, %p153
      %p156 = scmp.ne.s32.totalorder %s141, %s155
      %p157 = scmp.eq.s32.totalorder %s21, 0
      %p158 = por %p156, %p157
      %s159 = ssub.s32 %s15, %s22
      %p160 = scmp.eq.s32.totalorder %s159, 0
      %s162 = sadd.s32 %s161, 1
      %s163 = scalar_select %p160, %s161, %s162
      %p166 = pneg %p160
      %p167 = scmp.eq.s32.totalorder %s15, 1
      %p168 = por %p166, %p167
      %p169 = scmp.ne.s32.totalorder %s161, %s164
      %p170 = scmp.eq.s32.totalorder %s15, 0
      %p171 = por %p169, %p170
      %p172 = scmp.ne.s32.totalorder %s161, %s164
      %p173 = scmp.eq.s32.totalorder %s20, 1
      %p174 = por %p172, %p173
      %p175 = scmp.ne.s32.totalorder %s164, %s165
      %p176 = scmp.eq.s32.totalorder %s20, 0
      %p177 = por %p175, %p176
      %p178 = scmp.ne.s32.totalorder %s164, %s165
      %p179 = scmp.eq.s32.totalorder %s21, 1
      %p180 = por %p178, %p179
      %p182 = scmp.ne.s32.totalorder %s165, %s181
      %p183 = scmp.eq.s32.totalorder %s21, 0
      %p184 = por %p182, %p183
      %p185 = scmp.le.s32.totalorder 1, %s15
      %p186 = scmp.lt.s32.totalorder %s15, 3
      %p187 = pnand %p185, %p186
      %p188 = pneg %p187
      // Predicated region
      $region9: #{run.23} parent=5 // pred_check
        _
      $region10: #{run.23} parent=5 // pred_check_branch
        %190 = sbr.rel (%p187) target = $region12
      $region11: #{run.23} parent=5 // pred_region
        %s191 = ssub.s32 %s15, 1
        // Predicated region
        $region13: #{run.23} parent=11 // pred_check
          %p192 = pneg %p88
        $region14: #{run.23} parent=11 // pred_check_branch
          %194 = sbr.rel (%p192) target = $region16
        $region15: #{run.23} parent=11 // pred_region
          _
        $region16: #{run.23} parent=11 // pred_fallthru
          _
        // Predicated region
        $region17: #{run.23} parent=11 // pred_check
          %p195 = pneg %p109
        $region18: #{run.23} parent=11 // pred_check_branch
          %197 = sbr.rel (%p195) target = $region20
        $region19: #{run.23} parent=11 // pred_region
          _
        $region20: #{run.23} parent=11 // pred_fallthru
          _
        // Predicated region
        $region21: #{run.23} parent=11 // pred_check
          %p198 = pneg %p130
        $region22: #{run.23} parent=11 // pred_check_branch
          %200 = sbr.rel (%p198) target = $region24
        $region23: #{run.23} parent=11 // pred_region
          _
        $region24: #{run.23} parent=11 // pred_fallthru
          _
        // Predicated region
        $region25: #{run.23} parent=11 // pred_check
          %p201 = pneg %p151
        $region26: #{run.23} parent=11 // pred_check_branch
          %203 = sbr.rel (%p201) target = $region28
        $region27: #{run.23} parent=11 // pred_region
          _
        $region28: #{run.23} parent=11 // pred_fallthru
          _
      $region12: #{run.23} parent=5 // pred_fallthru
        _
      %p204 = scmp.lt.s32.totalorder %s15, 2
      // Predicated region
      $region29: #{run.23} parent=5 // pred_check
        %p205 = pneg %p204
      $region30: #{run.23} parent=5 // pred_check_branch
        %207 = sbr.rel (%p205) target = $region32
      $region31: #{run.23} parent=5 // pred_region
        // Predicated region
        $region33: #{run.23} parent=31 // pred_check
          %p208 = pneg %p35
        $region34: #{run.23} parent=31 // pred_check_branch
          %210 = sbr.rel (%p208) target = $region36
        $region35: #{run.23} parent=31 // pred_region
          %p211 = scmp.lt.s32.totalorder %s15, 1
          %s212 = scalar_select %p211, %s15, 1
          %s213 = smul.addr %s212, 8
          %s214 = smul.addr %s213, 8
          %s215 = scalar_lea.vmem %s0, %s214
        $region36: #{run.23} parent=31 // pred_fallthru
          _
        // Predicated region
        $region37: #{run.23} parent=31 // pred_check
          %p216 = pneg %p61
        $region38: #{run.23} parent=31 // pred_check_branch
          %218 = sbr.rel (%p216) target = $region40
        $region39: #{run.23} parent=31 // pred_region
          %p219 = scmp.lt.s32.totalorder %s15, 1
          %s220 = scalar_select %p219, %s15, 1
          %s221 = smul.addr %s220, 32
          %s222 = smul.addr %s221, 8
          %s223 = scalar_lea.vmem %s1, %s222
        $region40: #{run.23} parent=31 // pred_fallthru
          _
      $region32: #{run.23} parent=5 // pred_fallthru
        _
      %p224 = scmp.le.s32.totalorder 1, %s15
      %p225 = scmp.lt.s32.totalorder %s15, 3
      %p226 = pnand %p224, %p225
      %p227 = pneg %p226
      // Predicated region
      $region41: #{run.23} parent=5 // pred_check
        _
      $region42: #{run.23} parent=5 // pred_check_branch
        %229 = sbr.rel (%p226) target = $region44
      $region43: #{run.23} parent=5 // pred_region
        %s230 = ssub.s32 %s15, 1
        %p231 = scmp.lt.s32.totalorder %s20, 1
        %s232 = scalar_select %p231, %s20, 1
        %s233 = smul.addr %s232, 8
        %s234 = smul.addr %s233, 8
        %s235 = scalar_lea.vmem %s0, %s234
        %p236 = pneg %p41
        %p237 = pneg %p38
        %p238 = scmp.lt.s32.totalorder %s20, 1
        %s239 = scalar_select %p238, %s20, 1
        %s240 = smul.addr %s239, 32
        %s241 = smul.addr %s240, 8
        %s242 = scalar_lea.vmem %s1, %s241
        %p243 = pneg %p67
        %p244 = pneg %p64
        %p245 = pneg %p88
        %p246 = pneg %p85
        %p247 = pneg %p109
        %p248 = pneg %p106
        %p249 = pneg %p130
        %p250 = pneg %p127
        %p251 = pneg %p151
        %p252 = pneg %p148
        %p253 = pneg %p177
        %p254 = pneg %p174
        %s255 = sand.u32 %s164, 1
        %s256 = scalar_lea.sflag [#allocation3], %s255
        %s257 = sand.u32 %s164, 1
        %s258 = smul.addr %s257, 256
        %s259 = scalar_lea.vmem [#allocation2], %s258
        %p260 = scmp.lt.s32.totalorder %s20, 1
        %s261 = scalar_select %p260, %s20, 1
        %s262 = smul.addr %s261, 8
        %s263 = smul.addr %s262, 8
        %s264 = scalar_lea.vmem %s0, %s263
        %p265 = scmp.lt.s32.totalorder %s20, 1
        %s266 = scalar_select %p265, %s20, 1
        %s267 = smul.addr %s266, 32
        %s268 = smul.addr %s267, 8
        %s269 = scalar_lea.vmem %s1, %s268
        %v270 = vld [vmem:[%s264] sm:$0xff]
        %v271 = vld [vmem:[%s264 + $0x8] sm:$0xff]
        %v272 = vld [vmem:[%s264 + $0x10] sm:$0xff]
        %v273 = vld [vmem:[%s264 + $0x18] sm:$0xff]
        %v274 = vld [vmem:[%s264 + $0x20] sm:$0xff]
        %v275 = vld [vmem:[%s264 + $0x28] sm:$0xff]
        %v276 = vld [vmem:[%s264 + $0x30] sm:$0xff]
        %v277 = vld [vmem:[%s264 + $0x38] sm:$0xff]
        %v278 = vld [vmem:[%s2] sm:$0xff]
        %v279 = vld [vmem:[%s3] sm:$0x1]
        %v281 = vlaneseq
        %v282 = vshrl.u32 %v281, 7
        %v283 = vsub.s32 0, %v282
        %v284 = vrot.slane %v279, %v283
        %vm286 = vcmask 64512
        %v288 = vsel %vm286, %v270, 0
        %v291 = vsel %vm286, %v271, 0
        %v294 = vsel %vm286, %v272, 0
        %v297 = vsel %vm286, %v273, 0
        %v300 = vsel %vm286, %v274, 0
        %v303 = vsel %vm286, %v275, 0
        %v306 = vsel %vm286, %v276, 0
        %v309 = vsel %vm286, %v277, 0
        %311 = vmatprep.subr.mxu0 0.0
        %312 = vmatpush1.msra.mxu0 0.0
        %313 = vmatprep.subr.mxu0 0.0
        %314 = vmatpush1.msra.mxu0 0.0
        %315 = vmatprep.subr.mxu0 0.0
        %316 = vmatpush1.msra.mxu0 0.0
        %317 = vmatprep.subr.mxu0 0.0
        %318 = vmatpush1.msra.mxu0 0.0
        %319 = vmatprep.subr.mxu0 0.0
        %320 = vmatpush1.msra.mxu0 0.0
        %321 = vmatprep.subr.mxu0 0.0
        %322 = vmatpush1.msra.mxu0 0.0
        %323 = vmatprep.subr.mxu0 0.0
        %324 = vmatpush1.msra.mxu0 0.0
        %325 = vmatprep.subr.mxu0 0.0
        %326 = vmatpush1.msra.mxu0 0.0
        %327 = vmatprep.subr.mxu0 0.0
        %328 = vmatpush1.msra.mxu0 0.0
        %329 = vmatprep.subr.mxu0 0.0
        %330 = vmatpush1.msra.mxu0 0.0
        %331 = vmatprep.subr.mxu0 0.0
        %332 = vmatpush1.msra.mxu0 0.0
        %333 = vmatprep.subr.mxu0 0.0
        %334 = vmatpush1.msra.mxu0 0.0
        %335 = vmatprep.subr.mxu0 0.0
        %336 = vmatpush1.msra.mxu0 0.0
        %337 = vmatprep.subr.mxu0 0.0
        %338 = vmatpush1.msra.mxu0 0.0
        %339 = vmatprep.subr.mxu0 0.0
        %340 = vmatpush1.msra.mxu0 0.0
        %341 = vmatprep.subr.mxu0 0.0
        %342 = vmatpush1.msra.mxu0 %v278
        %343 = vmatprep.subr.mxu0 0.0
        %344 = vmatpush2.msra.mxu0 0.0
        %345 = vmatprep.subr.mxu0 0.0
        %346 = vmatpush2.msra.mxu0 0.0
        %347 = vmatprep.subr.mxu0 0.0
        %348 = vmatpush2.msra.mxu0 0.0
        %349 = vmatprep.subr.mxu0 0.0
        %350 = vmatpush2.msra.mxu0 0.0
        %351 = vmatprep.subr.mxu0 0.0
        %352 = vmatpush2.msra.mxu0 0.0
        %353 = vmatprep.subr.mxu0 0.0
        %354 = vmatpush2.msra.mxu0 0.0
        %355 = vmatprep.subr.mxu0 0.0
        %356 = vmatpush2.msra.mxu0 0.0
        %357 = vmatprep.subr.mxu0 0.0
        %358 = vmatpush2.msra.mxu0 0.0
        %359 = vmatprep.subr.mxu0 0.0
        %360 = vmatpush2.msra.mxu0 0.0
        %361 = vmatprep.subr.mxu0 0.0
        %362 = vmatpush2.msra.mxu0 0.0
        %363 = vmatprep.subr.mxu0 0.0
        %364 = vmatpush2.msra.mxu0 0.0
        %365 = vmatprep.subr.mxu0 0.0
        %366 = vmatpush2.msra.mxu0 0.0
        %367 = vmatprep.subr.mxu0 0.0
        %368 = vmatpush2.msra.mxu0 0.0
        %369 = vmatprep.subr.mxu0 0.0
        %370 = vmatpush2.msra.mxu0 0.0
        %371 = vmatprep.subr.mxu0 0.0
        %372 = vmatpush2.msra.mxu0 0.0
        %373 = vmatprep.subr.mxu0 0.0
        %374 = vmatpush2.msra.mxu0 0.0
        %375 = vmatprep.mubr.f32.mxu0 0.0
        %376 = vmatmul.mubr.f32.gmra.mxu0 %v288
        %v377 = vpop.f32.mrf.mxu0
        %v378 = vadd.f32 %v284, %v377
        %v379 = vpop.f32.mrf.mxu0
        %380 = vmatprep.mubr.f32.mxu0 0.0
        %381 = vmatmul.mubr.f32.gmra.mxu0 %v291
        %v382 = vpop.f32.mrf.mxu0
        %v383 = vadd.f32 %v284, %v382
        %v384 = vpop.f32.mrf.mxu0
        %385 = vmatprep.mubr.f32.mxu0 0.0
        %386 = vmatmul.mubr.f32.gmra.mxu0 %v294
        %v387 = vpop.f32.mrf.mxu0
        %v388 = vadd.f32 %v284, %v387
        %v389 = vpop.f32.mrf.mxu0
        %390 = vmatprep.mubr.f32.mxu0 0.0
        %391 = vmatmul.mubr.f32.gmra.mxu0 %v297
        %v392 = vpop.f32.mrf.mxu0
        %v393 = vadd.f32 %v284, %v392
        %v394 = vpop.f32.mrf.mxu0
        %395 = vmatprep.mubr.f32.mxu0 0.0
        %396 = vmatmul.mubr.f32.gmra.mxu0 %v300
        %v397 = vpop.f32.mrf.mxu0
        %v398 = vadd.f32 %v284, %v397
        %v399 = vpop.f32.mrf.mxu0
        %400 = vmatprep.mubr.f32.mxu0 0.0
        %401 = vmatmul.mubr.f32.gmra.mxu0 %v303
        %v402 = vpop.f32.mrf.mxu0
        %v403 = vadd.f32 %v284, %v402
        %v404 = vpop.f32.mrf.mxu0
        %405 = vmatprep.mubr.f32.mxu0 0.0
        %406 = vmatmul.mubr.f32.gmra.mxu0 %v306
        %v407 = vpop.f32.mrf.mxu0
        %v408 = vadd.f32 %v284, %v407
        %v409 = vpop.f32.mrf.mxu0
        %410 = vmatprep.mubr.f32.mxu0 0.0
        %411 = vmatmul.mubr.f32.gmra.mxu0 %v309
        %v412 = vpop.f32.mrf.mxu0
        %v413 = vadd.f32 %v284, %v412
        %v414 = vpop.f32.mrf.mxu0
        %415 = vdwg.mxu0
        %416 = vxpose.xlu0.b32.start [1/16] %v378, 128
        %417 = vxpose.xlu0.b32.cont [2/16] 0.0, 128
        %418 = vxpose.xlu0.b32.cont [3/16] 0.0, 128
        %419 = vxpose.xlu0.b32.cont [4/16] 0.0, 128
        %420 = vxpose.xlu0.b32.cont [5/16] 0.0, 128
        %421 = vxpose.xlu0.b32.cont [6/16] 0.0, 128
        %422 = vxpose.xlu0.b32.cont [7/16] 0.0, 128
        %423 = vxpose.xlu0.b32.cont [8/16] 0.0, 128
        %424 = vxpose.xlu0.b32.cont [9/16] 0.0, 128
        %425 = vxpose.xlu0.b32.cont [10/16] 0.0, 128
        %426 = vxpose.xlu0.b32.cont [11/16] 0.0, 128
        %427 = vxpose.xlu0.b32.cont [12/16] 0.0, 128
        %428 = vxpose.xlu0.b32.cont [13/16] 0.0, 128
        %429 = vxpose.xlu0.b32.cont [14/16] 0.0, 128
        %430 = vxpose.xlu0.b32.cont [15/16] 0.0, 128
        %431 = vxpose.xlu0.b32.end [16/16] 0.0, 128
        %v432 = vpop.trf.xlu0
        %v433 = vpop.trf.xlu0
        %v434 = vpop.trf.xlu0
        %v435 = vpop.trf.xlu0
        %v436 = vpop.trf.xlu0
        %v437 = vpop.trf.xlu0
        %v438 = vpop.trf.xlu0
        %v439 = vpop.trf.xlu0
        %v440 = vpop.trf.xlu0
        %v441 = vpop.trf.xlu0
        %v442 = vpop.trf.xlu0
        %v443 = vpop.trf.xlu0
        %v444 = vpop.trf.xlu0
        %v445 = vpop.trf.xlu0
        %v446 = vpop.trf.xlu0
        %v447 = vpop.trf.xlu0
        %448 = vxpose.xlu0.b32.start [1/16] %v383, 128
        %449 = vxpose.xlu0.b32.cont [2/16] 0.0, 128
        %450 = vxpose.xlu0.b32.cont [3/16] 0.0, 128
        %451 = vxpose.xlu0.b32.cont [4/16] 0.0, 128
        %452 = vxpose.xlu0.b32.cont [5/16] 0.0, 128
        %453 = vxpose.xlu0.b32.cont [6/16] 0.0, 128
        %454 = vxpose.xlu0.b32.cont [7/16] 0.0, 128
        %455 = vxpose.xlu0.b32.cont [8/16] 0.0, 128
        %456 = vxpose.xlu0.b32.cont [9/16] 0.0, 128
        %457 = vxpose.xlu0.b32.cont [10/16] 0.0, 128
        %458 = vxpose.xlu0.b32.cont [11/16] 0.0, 128
        %459 = vxpose.xlu0.b32.cont [12/16] 0.0, 128
        %460 = vxpose.xlu0.b32.cont [13/16] 0.0, 128
        %461 = vxpose.xlu0.b32.cont [14/16] 0.0, 128
        %462 = vxpose.xlu0.b32.cont [15/16] 0.0, 128
        %463 = vxpose.xlu0.b32.end [16/16] 0.0, 128
        %v464 = vpop.trf.xlu0
        %v465 = vpop.trf.xlu0
        %v466 = vpop.trf.xlu0
        %v467 = vpop.trf.xlu0
        %v468 = vpop.trf.xlu0
        %v469 = vpop.trf.xlu0
        %v470 = vpop.trf.xlu0
        %v471 = vpop.trf.xlu0
        %v472 = vpop.trf.xlu0
        %v473 = vpop.trf.xlu0
        %v474 = vpop.trf.xlu0
        %v475 = vpop.trf.xlu0
        %v476 = vpop.trf.xlu0
        %v477 = vpop.trf.xlu0
        %v478 = vpop.trf.xlu0
        %v479 = vpop.trf.xlu0
        %480 = vxpose.xlu0.b32.start [1/16] %v388, 128
        %481 = vxpose.xlu0.b32.cont [2/16] 0.0, 128
        %482 = vxpose.xlu0.b32.cont [3/16] 0.0, 128
        %483 = vxpose.xlu0.b32.cont [4/16] 0.0, 128
        %484 = vxpose.xlu0.b32.cont [5/16] 0.0, 128
        %485 = vxpose.xlu0.b32.cont [6/16] 0.0, 128
        %486 = vxpose.xlu0.b32.cont [7/16] 0.0, 128
        %487 = vxpose.xlu0.b32.cont [8/16] 0.0, 128
        %488 = vxpose.xlu0.b32.cont [9/16] 0.0, 128
        %489 = vxpose.xlu0.b32.cont [10/16] 0.0, 128
        %490 = vxpose.xlu0.b32.cont [11/16] 0.0, 128
        %491 = vxpose.xlu0.b32.cont [12/16] 0.0, 128
        %492 = vxpose.xlu0.b32.cont [13/16] 0.0, 128
        %493 = vxpose.xlu0.b32.cont [14/16] 0.0, 128
        %494 = vxpose.xlu0.b32.cont [15/16] 0.0, 128
        %495 = vxpose.xlu0.b32.end [16/16] 0.0, 128
        %v496 = vpop.trf.xlu0
        %v497 = vpop.trf.xlu0
        %v498 = vpop.trf.xlu0
        %v499 = vpop.trf.xlu0
        %v500 = vpop.trf.xlu0
        %v501 = vpop.trf.xlu0
        %v502 = vpop.trf.xlu0
        %v503 = vpop.trf.xlu0
        %v504 = vpop.trf.xlu0
        %v505 = vpop.trf.xlu0
        %v506 = vpop.trf.xlu0
        %v507 = vpop.trf.xlu0
        %v508 = vpop.trf.xlu0
        %v509 = vpop.trf.xlu0
        %v510 = vpop.trf.xlu0
        %v511 = vpop.trf.xlu0
        %512 = vxpose.xlu0.b32.start [1/16] %v393, 128
        %513 = vxpose.xlu0.b32.cont [2/16] 0.0, 128
        %514 = vxpose.xlu0.b32.cont [3/16] 0.0, 128
        %515 = vxpose.xlu0.b32.cont [4/16] 0.0, 128
        %516 = vxpose.xlu0.b32.cont [5/16] 0.0, 128
        %517 = vxpose.xlu0.b32.cont [6/16] 0.0, 128
        %518 = vxpose.xlu0.b32.cont [7/16] 0.0, 128
        %519 = vxpose.xlu0.b32.cont [8/16] 0.0, 128
        %520 = vxpose.xlu0.b32.cont [9/16] 0.0, 128
        %521 = vxpose.xlu0.b32.cont [10/16] 0.0, 128
        %522 = vxpose.xlu0.b32.cont [11/16] 0.0, 128
        %523 = vxpose.xlu0.b32.cont [12/16] 0.0, 128
        %524 = vxpose.xlu0.b32.cont [13/16] 0.0, 128
        %525 = vxpose.xlu0.b32.cont [14/16] 0.0, 128
        %526 = vxpose.xlu0.b32.cont [15/16] 0.0, 128
        %527 = vxpose.xlu0.b32.end [16/16] 0.0, 128
        %v528 = vpop.trf.xlu0
        %v529 = vpop.trf.xlu0
        %v530 = vpop.trf.xlu0
        %v531 = vpop.trf.xlu0
        %v532 = vpop.trf.xlu0
        %v533 = vpop.trf.xlu0
        %v534 = vpop.trf.xlu0
        %v535 = vpop.trf.xlu0
        %v536 = vpop.trf.xlu0
        %v537 = vpop.trf.xlu0
        %v538 = vpop.trf.xlu0
        %v539 = vpop.trf.xlu0
        %v540 = vpop.trf.xlu0
        %v541 = vpop.trf.xlu0
        %v542 = vpop.trf.xlu0
        %v543 = vpop.trf.xlu0
        %544 = vxpose.xlu0.b32.start [1/16] %v398, 128
        %545 = vxpose.xlu0.b32.cont [2/16] 0.0, 128
        %546 = vxpose.xlu0.b32.cont [3/16] 0.0, 128
        %547 = vxpose.xlu0.b32.cont [4/16] 0.0, 128
        %548 = vxpose.xlu0.b32.cont [5/16] 0.0, 128
        %549 = vxpose.xlu0.b32.cont [6/16] 0.0, 128
        %550 = vxpose.xlu0.b32.cont [7/16] 0.0, 128
        %551 = vxpose.xlu0.b32.cont [8/16] 0.0, 128
        %552 = vxpose.xlu0.b32.cont [9/16] 0.0, 128
        %553 = vxpose.xlu0.b32.cont [10/16] 0.0, 128
        %554 = vxpose.xlu0.b32.cont [11/16] 0.0, 128
        %555 = vxpose.xlu0.b32.cont [12/16] 0.0, 128
        %556 = vxpose.xlu0.b32.cont [13/16] 0.0, 128
        %557 = vxpose.xlu0.b32.cont [14/16] 0.0, 128
        %558 = vxpose.xlu0.b32.cont [15/16] 0.0, 128
        %559 = vxpose.xlu0.b32.end [16/16] 0.0, 128
        %v560 = vpop.trf.xlu0
        %v561 = vpop.trf.xlu0
        %v562 = vpop.trf.xlu0
        %v563 = vpop.trf.xlu0
        %v564 = vpop.trf.xlu0
        %v565 = vpop.trf.xlu0
        %v566 = vpop.trf.xlu0
        %v567 = vpop.trf.xlu0
        %v568 = vpop.trf.xlu0
        %v569 = vpop.trf.xlu0
        %v570 = vpop.trf.xlu0
        %v571 = vpop.trf.xlu0
        %v572 = vpop.trf.xlu0
        %v573 = vpop.trf.xlu0
        %v574 = vpop.trf.xlu0
        %v575 = vpop.trf.xlu0
        %576 = vxpose.xlu0.b32.start [1/16] %v403, 128
        %577 = vxpose.xlu0.b32.cont [2/16] 0.0, 128
        %578 = vxpose.xlu0.b32.cont [3/16] 0.0, 128
        %579 = vxpose.xlu0.b32.cont [4/16] 0.0, 128
        %580 = vxpose.xlu0.b32.cont [5/16] 0.0, 128
        %581 = vxpose.xlu0.b32.cont [6/16] 0.0, 128
        %582 = vxpose.xlu0.b32.cont [7/16] 0.0, 128
        %583 = vxpose.xlu0.b32.cont [8/16] 0.0, 128
        %584 = vxpose.xlu0.b32.cont [9/16] 0.0, 128
        %585 = vxpose.xlu0.b32.cont [10/16] 0.0, 128
        %586 = vxpose.xlu0.b32.cont [11/16] 0.0, 128
        %587 = vxpose.xlu0.b32.cont [12/16] 0.0, 128
        %588 = vxpose.xlu0.b32.cont [13/16] 0.0, 128
        %589 = vxpose.xlu0.b32.cont [14/16] 0.0, 128
        %590 = vxpose.xlu0.b32.cont [15/16] 0.0, 128
        %591 = vxpose.xlu0.b32.end [16/16] 0.0, 128
        %v592 = vpop.trf.xlu0
        %v593 = vpop.trf.xlu0
        %v594 = vpop.trf.xlu0
        %v595 = vpop.trf.xlu0
        %v596 = vpop.trf.xlu0
        %v597 = vpop.trf.xlu0
        %v598 = vpop.trf.xlu0
        %v599 = vpop.trf.xlu0
        %v600 = vpop.trf.xlu0
        %v601 = vpop.trf.xlu0
        %v602 = vpop.trf.xlu0
        %v603 = vpop.trf.xlu0
        %v604 = vpop.trf.xlu0
        %v605 = vpop.trf.xlu0
        %v606 = vpop.trf.xlu0
        %v607 = vpop.trf.xlu0
        %608 = vxpose.xlu0.b32.start [1/16] %v408, 128
        %609 = vxpose.xlu0.b32.cont [2/16] 0.0, 128
        %610 = vxpose.xlu0.b32.cont [3/16] 0.0, 128
        %611 = vxpose.xlu0.b32.cont [4/16] 0.0, 128
        %612 = vxpose.xlu0.b32.cont [5/16] 0.0, 128
        %613 = vxpose.xlu0.b32.cont [6/16] 0.0, 128
        %614 = vxpose.xlu0.b32.cont [7/16] 0.0, 128
        %615 = vxpose.xlu0.b32.cont [8/16] 0.0, 128
        %616 = vxpose.xlu0.b32.cont [9/16] 0.0, 128
        %617 = vxpose.xlu0.b32.cont [10/16] 0.0, 128
        %618 = vxpose.xlu0.b32.cont [11/16] 0.0, 128
        %619 = vxpose.xlu0.b32.cont [12/16] 0.0, 128
        %620 = vxpose.xlu0.b32.cont [13/16] 0.0, 128
        %621 = vxpose.xlu0.b32.cont [14/16] 0.0, 128
        %622 = vxpose.xlu0.b32.cont [15/16] 0.0, 128
        %623 = vxpose.xlu0.b32.end [16/16] 0.0, 128
        %v624 = vpop.trf.xlu0
        %v625 = vpop.trf.xlu0
        %v626 = vpop.trf.xlu0
        %v627 = vpop.trf.xlu0
        %v628 = vpop.trf.xlu0
        %v629 = vpop.trf.xlu0
        %v630 = vpop.trf.xlu0
        %v631 = vpop.trf.xlu0
        %v632 = vpop.trf.xlu0
        %v633 = vpop.trf.xlu0
        %v634 = vpop.trf.xlu0
        %v635 = vpop.trf.xlu0
        %v636 = vpop.trf.xlu0
        %v637 = vpop.trf.xlu0
        %v638 = vpop.trf.xlu0
        %v639 = vpop.trf.xlu0
        %640 = vxpose.xlu0.b32.start [1/16] %v413, 128
        %641 = vxpose.xlu0.b32.cont [2/16] 0.0, 128
        %642 = vxpose.xlu0.b32.cont [3/16] 0.0, 128
        %643 = vxpose.xlu0.b32.cont [4/16] 0.0, 128
        %644 = vxpose.xlu0.b32.cont [5/16] 0.0, 128
        %645 = vxpose.xlu0.b32.cont [6/16] 0.0, 128
        %646 = vxpose.xlu0.b32.cont [7/16] 0.0, 128
        %647 = vxpose.xlu0.b32.cont [8/16] 0.0, 128
        %648 = vxpose.xlu0.b32.cont [9/16] 0.0, 128
        %649 = vxpose.xlu0.b32.cont [10/16] 0.0, 128
        %650 = vxpose.xlu0.b32.cont [11/16] 0.0, 128
        %651 = vxpose.xlu0.b32.cont [12/16] 0.0, 128
        %652 = vxpose.xlu0.b32.cont [13/16] 0.0, 128
        %653 = vxpose.xlu0.b32.cont [14/16] 0.0, 128
        %654 = vxpose.xlu0.b32.cont [15/16] 0.0, 128
        %655 = vxpose.xlu0.b32.end [16/16] 0.0, 128
        %v656 = vpop.trf.xlu0
        %v657 = vpop.trf.xlu0
        %v658 = vpop.trf.xlu0
        %v659 = vpop.trf.xlu0
        %v660 = vpop.trf.xlu0
        %v661 = vpop.trf.xlu0
        %v662 = vpop.trf.xlu0
        %v663 = vpop.trf.xlu0
        %v664 = vpop.trf.xlu0
        %v665 = vpop.trf.xlu0
        %v666 = vpop.trf.xlu0
        %v667 = vpop.trf.xlu0
        %v668 = vpop.trf.xlu0
        %v669 = vpop.trf.xlu0
        %v670 = vpop.trf.xlu0
        %v671 = vpop.trf.xlu0
        %v672 = vld [vmem:[%s5] sm:$0xff]
        %v674 = vsel %vm286, %v432, 0
        %v677 = vsel %vm286, %v433, 0
        %v680 = vsel %vm286, %v434, 0
        %v683 = vsel %vm286, %v435, 0
        %v686 = vsel %vm286, %v464, 0
        %v689 = vsel %vm286, %v465, 0
        %v692 = vsel %vm286, %v466, 0
        %v695 = vsel %vm286, %v467, 0
        %v698 = vsel %vm286, %v496, 0
        %v701 = vsel %vm286, %v497, 0
        %v704 = vsel %vm286, %v498, 0
        %v707 = vsel %vm286, %v499, 0
        %v710 = vsel %vm286, %v528, 0
        %v713 = vsel %vm286, %v529, 0
        %v716 = vsel %vm286, %v530, 0
        %v719 = vsel %vm286, %v531, 0
        %v722 = vsel %vm286, %v560, 0
        %v725 = vsel %vm286, %v561, 0
        %v728 = vsel %vm286, %v562, 0
        %v731 = vsel %vm286, %v563, 0
        %v734 = vsel %vm286, %v592, 0
        %v737 = vsel %vm286, %v593, 0
        %v740 = vsel %vm286, %v594, 0
        %v743 = vsel %vm286, %v595, 0
        %v746 = vsel %vm286, %v624, 0
        %v749 = vsel %vm286, %v625, 0
        %v752 = vsel %vm286, %v626, 0
        %v755 = vsel %vm286, %v627, 0
        %v758 = vsel %vm286, %v656, 0
        %v761 = vsel %vm286, %v657, 0
        %v764 = vsel %vm286, %v658, 0
        %v767 = vsel %vm286, %v659, 0
        %769 = vmatprep.subr.mxu0 0.0
        %770 = vmatpush1.msra.mxu0 0.0
        %771 = vmatprep.subr.mxu0 0.0
        %772 = vmatpush1.msra.mxu0 0.0
        %773 = vmatprep.subr.mxu0 0.0
        %774 = vmatpush1.msra.mxu0 0.0
        %775 = vmatprep.subr.mxu0 0.0
        %776 = vmatpush1.msra.mxu0 0.0
        %777 = vmatprep.subr.mxu0 0.0
        %778 = vmatpush1.msra.mxu0 0.0
        %779 = vmatprep.subr.mxu0 0.0
        %780 = vmatpush1.msra.mxu0 0.0
        %781 = vmatprep.subr.mxu0 0.0
        %782 = vmatpush1.msra.mxu0 0.0
        %783 = vmatprep.subr.mxu0 0.0
        %784 = vmatpush1.msra.mxu0 0.0
        %785 = vmatprep.subr.mxu0 0.0
        %786 = vmatpush1.msra.mxu0 0.0
        %787 = vmatprep.subr.mxu0 0.0
        %788 = vmatpush1.msra.mxu0 0.0
        %789 = vmatprep.subr.mxu0 0.0
        %790 = vmatpush1.msra.mxu0 0.0
        %791 = vmatprep.subr.mxu0 0.0
        %792 = vmatpush1.msra.mxu0 0.0
        %793 = vmatprep.subr.mxu0 0.0
        %794 = vmatpush1.msra.mxu0 0.0
        %795 = vmatprep.subr.mxu0 0.0
        %796 = vmatpush1.msra.mxu0 0.0
        %797 = vmatprep.subr.mxu0 0.0
        %798 = vmatpush1.msra.mxu0 0.0
        %799 = vmatprep.subr.mxu0 0.0
        %800 = vmatpush1.msra.mxu0 %v672
        %801 = vmatprep.subr.mxu0 0.0
        %802 = vmatpush2.msra.mxu0 0.0
        %803 = vmatprep.subr.mxu0 0.0
        %804 = vmatpush2.msra.mxu0 0.0
        %805 = vmatprep.subr.mxu0 0.0
        %806 = vmatpush2.msra.mxu0 0.0
        %807 = vmatprep.subr.mxu0 0.0
        %808 = vmatpush2.msra.mxu0 0.0
        %809 = vmatprep.subr.mxu0 0.0
        %810 = vmatpush2.msra.mxu0 0.0
        %811 = vmatprep.subr.mxu0 0.0
        %812 = vmatpush2.msra.mxu0 0.0
        %813 = vmatprep.subr.mxu0 0.0
        %814 = vmatpush2.msra.mxu0 0.0
        %815 = vmatprep.subr.mxu0 0.0
        %816 = vmatpush2.msra.mxu0 0.0
        %817 = vmatprep.subr.mxu0 0.0
        %818 = vmatpush2.msra.mxu0 0.0
        %819 = vmatprep.subr.mxu0 0.0
        %820 = vmatpush2.msra.mxu0 0.0
        %821 = vmatprep.subr.mxu0 0.0
        %822 = vmatpush2.msra.mxu0 0.0
        %823 = vmatprep.subr.mxu0 0.0
        %824 = vmatpush2.msra.mxu0 0.0
        %825 = vmatprep.subr.mxu0 0.0
        %826 = vmatpush2.msra.mxu0 0.0
        %827 = vmatprep.subr.mxu0 0.0
        %828 = vmatpush2.msra.mxu0 0.0
        %829 = vmatprep.subr.mxu0 0.0
        %830 = vmatpush2.msra.mxu0 0.0
        %831 = vmatprep.subr.mxu0 0.0
        %832 = vmatpush2.msra.mxu0 0.0
        %833 = vmatprep.mubr.f32.mxu0 0.0
        %834 = vmatmul.mubr.f32.gmra.mxu0 %v674
        %v835 = vpop.f32.mrf.mxu0
        %v836 = vadd.f32 0.0, %v835
        %v837 = vpop.f32.mrf.mxu0
        %838 = vmatprep.mubr.f32.mxu0 0.0
        %839 = vmatmul.mubr.f32.gmra.mxu0 %v677
        %v840 = vpop.f32.mrf.mxu0
        %v841 = vadd.f32 0.0, %v840
        %v842 = vpop.f32.mrf.mxu0
        %843 = vmatprep.mubr.f32.mxu0 0.0
        %844 = vmatmul.mubr.f32.gmra.mxu0 %v680
        %v845 = vpop.f32.mrf.mxu0
        %v846 = vadd.f32 0.0, %v845
        %v847 = vpop.f32.mrf.mxu0
        %848 = vmatprep.mubr.f32.mxu0 0.0
        %849 = vmatmul.mubr.f32.gmra.mxu0 %v683
        %v850 = vpop.f32.mrf.mxu0
        %v851 = vadd.f32 0.0, %v850
        %v852 = vpop.f32.mrf.mxu0
        %853 = vmatprep.mubr.f32.mxu0 0.0
        %854 = vmatmul.mubr.f32.gmra.mxu0 %v686
        %v855 = vpop.f32.mrf.mxu0
        %v856 = vadd.f32 0.0, %v855
        %v857 = vpop.f32.mrf.mxu0
        %858 = vmatprep.mubr.f32.mxu0 0.0
        %859 = vmatmul.mubr.f32.gmra.mxu0 %v689
        %v860 = vpop.f32.mrf.mxu0
        %v861 = vadd.f32 0.0, %v860
        %v862 = vpop.f32.mrf.mxu0
        %863 = vmatprep.mubr.f32.mxu0 0.0
        %864 = vmatmul.mubr.f32.gmra.mxu0 %v692
        %v865 = vpop.f32.mrf.mxu0
        %v866 = vadd.f32 0.0, %v865
        %v867 = vpop.f32.mrf.mxu0
        %868 = vmatprep.mubr.f32.mxu0 0.0
        %869 = vmatmul.mubr.f32.gmra.mxu0 %v695
        %v870 = vpop.f32.mrf.mxu0
        %v871 = vadd.f32 0.0, %v870
        %v872 = vpop.f32.mrf.mxu0
        %873 = vmatprep.mubr.f32.mxu0 0.0
        %874 = vmatmul.mubr.f32.gmra.mxu0 %v698
        %v875 = vpop.f32.mrf.mxu0
        %v876 = vadd.f32 0.0, %v875
        %v877 = vpop.f32.mrf.mxu0
        %878 = vmatprep.mubr.f32.mxu0 0.0
        %879 = vmatmul.mubr.f32.gmra.mxu0 %v701
        %v880 = vpop.f32.mrf.mxu0
        %v881 = vadd.f32 0.0, %v880
        %v882 = vpop.f32.mrf.mxu0
        %883 = vmatprep.mubr.f32.mxu0 0.0
        %884 = vmatmul.mubr.f32.gmra.mxu0 %v704
        %v885 = vpop.f32.mrf.mxu0
        %v886 = vadd.f32 0.0, %v885
        %v887 = vpop.f32.mrf.mxu0
        %888 = vmatprep.mubr.f32.mxu0 0.0
        %889 = vmatmul.mubr.f32.gmra.mxu0 %v707
        %v890 = vpop.f32.mrf.mxu0
        %v891 = vadd.f32 0.0, %v890
        %v892 = vpop.f32.mrf.mxu0
        %893 = vmatprep.mubr.f32.mxu0 0.0
        %894 = vmatmul.mubr.f32.gmra.mxu0 %v710
        %v895 = vpop.f32.mrf.mxu0
        %v896 = vadd.f32 0.0, %v895
        %v897 = vpop.f32.mrf.mxu0
        %898 = vmatprep.mubr.f32.mxu0 0.0
        %899 = vmatmul.mubr.f32.gmra.mxu0 %v713
        %v900 = vpop.f32.mrf.mxu0
        %v901 = vadd.f32 0.0, %v900
        %v902 = vpop.f32.mrf.mxu0
        %903 = vmatprep.mubr.f32.mxu0 0.0
        %904 = vmatmul.mubr.f32.gmra.mxu0 %v716
        %v905 = vpop.f32.mrf.mxu0
        %v906 = vadd.f32 0.0, %v905
        %v907 = vpop.f32.mrf.mxu0
        %908 = vmatprep.mubr.f32.mxu0 0.0
        %909 = vmatmul.mubr.f32.gmra.mxu0 %v719
        %v910 = vpop.f32.mrf.mxu0
        %v911 = vadd.f32 0.0, %v910
        %v912 = vpop.f32.mrf.mxu0
        %913 = vmatprep.mubr.f32.mxu0 0.0
        %914 = vmatmul.mubr.f32.gmra.mxu0 %v722
        %v915 = vpop.f32.mrf.mxu0
        %v916 = vadd.f32 0.0, %v915
        %v917 = vpop.f32.mrf.mxu0
        %918 = vmatprep.mubr.f32.mxu0 0.0
        %919 = vmatmul.mubr.f32.gmra.mxu0 %v725
        %v920 = vpop.f32.mrf.mxu0
        %v921 = vadd.f32 0.0, %v920
        %v922 = vpop.f32.mrf.mxu0
        %923 = vmatprep.mubr.f32.mxu0 0.0
        %924 = vmatmul.mubr.f32.gmra.mxu0 %v728
        %v925 = vpop.f32.mrf.mxu0
        %v926 = vadd.f32 0.0, %v925
        %v927 = vpop.f32.mrf.mxu0
        %928 = vmatprep.mubr.f32.mxu0 0.0
        %929 = vmatmul.mubr.f32.gmra.mxu0 %v731
        %v930 = vpop.f32.mrf.mxu0
        %v931 = vadd.f32 0.0, %v930
        %v932 = vpop.f32.mrf.mxu0
        %933 = vmatprep.mubr.f32.mxu0 0.0
        %934 = vmatmul.mubr.f32.gmra.mxu0 %v734
        %v935 = vpop.f32.mrf.mxu0
        %v936 = vadd.f32 0.0, %v935
        %v937 = vpop.f32.mrf.mxu0
        %938 = vmatprep.mubr.f32.mxu0 0.0
        %939 = vmatmul.mubr.f32.gmra.mxu0 %v737
        %v940 = vpop.f32.mrf.mxu0
        %v941 = vadd.f32 0.0, %v940
        %v942 = vpop.f32.mrf.mxu0
        %943 = vmatprep.mubr.f32.mxu0 0.0
        %944 = vmatmul.mubr.f32.gmra.mxu0 %v740
        %v945 = vpop.f32.mrf.mxu0
        %v946 = vadd.f32 0.0, %v945
        %v947 = vpop.f32.mrf.mxu0
        %948 = vmatprep.mubr.f32.mxu0 0.0
        %949 = vmatmul.mubr.f32.gmra.mxu0 %v743
        %v950 = vpop.f32.mrf.mxu0
        %v951 = vadd.f32 0.0, %v950
        %v952 = vpop.f32.mrf.mxu0
        %953 = vmatprep.mubr.f32.mxu0 0.0
        %954 = vmatmul.mubr.f32.gmra.mxu0 %v746
        %v955 = vpop.f32.mrf.mxu0
        %v956 = vadd.f32 0.0, %v955
        %v957 = vpop.f32.mrf.mxu0
        %958 = vmatprep.mubr.f32.mxu0 0.0
        %959 = vmatmul.mubr.f32.gmra.mxu0 %v749
        %v960 = vpop.f32.mrf.mxu0
        %v961 = vadd.f32 0.0, %v960
        %v962 = vpop.f32.mrf.mxu0
        %963 = vmatprep.mubr.f32.mxu0 0.0
        %964 = vmatmul.mubr.f32.gmra.mxu0 %v752
        %v965 = vpop.f32.mrf.mxu0
        %v966 = vadd.f32 0.0, %v965
        %v967 = vpop.f32.mrf.mxu0
        %968 = vmatprep.mubr.f32.mxu0 0.0
        %969 = vmatmul.mubr.f32.gmra.mxu0 %v755
        %v970 = vpop.f32.mrf.mxu0
        %v971 = vadd.f32 0.0, %v970
        %v972 = vpop.f32.mrf.mxu0
        %973 = vmatprep.mubr.f32.mxu0 0.0
        %974 = vmatmul.mubr.f32.gmra.mxu0 %v758
        %v975 = vpop.f32.mrf.mxu0
        %v976 = vadd.f32 0.0, %v975
        %v977 = vpop.f32.mrf.mxu0
        %978 = vmatprep.mubr.f32.mxu0 0.0
        %979 = vmatmul.mubr.f32.gmra.mxu0 %v761
        %v980 = vpop.f32.mrf.mxu0
        %v981 = vadd.f32 0.0, %v980
        %v982 = vpop.f32.mrf.mxu0
        %983 = vmatprep.mubr.f32.mxu0 0.0
        %984 = vmatmul.mubr.f32.gmra.mxu0 %v764
        %v985 = vpop.f32.mrf.mxu0
        %v986 = vadd.f32 0.0, %v985
        %v987 = vpop.f32.mrf.mxu0
        %988 = vmatprep.mubr.f32.mxu0 0.0
        %989 = vmatmul.mubr.f32.gmra.mxu0 %v767
        %v990 = vpop.f32.mrf.mxu0
        %v991 = vadd.f32 0.0, %v990
        %v992 = vpop.f32.mrf.mxu0
        %993 = vdwg.mxu0
        %994 = vxpose.xlu0.b32.start [1/16] %v836, 128
        %995 = vxpose.xlu0.b32.cont [2/16] %v841, 128
        %996 = vxpose.xlu0.b32.cont [3/16] %v846, 128
        %997 = vxpose.xlu0.b32.cont [4/16] %v851, 128
        %998 = vxpose.xlu0.b32.cont [5/16] 0.0, 128
        %999 = vxpose.xlu0.b32.cont [6/16] 0.0, 128
        %1000 = vxpose.xlu0.b32.cont [7/16] 0.0, 128
        %1001 = vxpose.xlu0.b32.cont [8/16] 0.0, 128
        %1002 = vxpose.xlu0.b32.cont [9/16] 0.0, 128
        %1003 = vxpose.xlu0.b32.cont [10/16] 0.0, 128
        %1004 = vxpose.xlu0.b32.cont [11/16] 0.0, 128
        %1005 = vxpose.xlu0.b32.cont [12/16] 0.0, 128
        %1006 = vxpose.xlu0.b32.cont [13/16] 0.0, 128
        %1007 = vxpose.xlu0.b32.cont [14/16] 0.0, 128
        %1008 = vxpose.xlu0.b32.cont [15/16] 0.0, 128
        %1009 = vxpose.xlu0.b32.end [16/16] 0.0, 128
        %v1010 = vpop.trf.xlu0
        %v1011 = vpop.trf.xlu0
        %v1012 = vpop.trf.xlu0
        %v1013 = vpop.trf.xlu0
        %v1014 = vpop.trf.xlu0
        %v1015 = vpop.trf.xlu0
        %v1016 = vpop.trf.xlu0
        %v1017 = vpop.trf.xlu0
        %v1018 = vpop.trf.xlu0
        %v1019 = vpop.trf.xlu0
        %v1020 = vpop.trf.xlu0
        %v1021 = vpop.trf.xlu0
        %v1022 = vpop.trf.xlu0
        %v1023 = vpop.trf.xlu0
        %v1024 = vpop.trf.xlu0
        %v1025 = vpop.trf.xlu0
        %1026 = vxpose.xlu0.b32.start [1/16] %v856, 128
        %1027 = vxpose.xlu0.b32.cont [2/16] %v861, 128
        %1028 = vxpose.xlu0.b32.cont [3/16] %v866, 128
        %1029 = vxpose.xlu0.b32.cont [4/16] %v871, 128
        %1030 = vxpose.xlu0.b32.cont [5/16] 0.0, 128
        %1031 = vxpose.xlu0.b32.cont [6/16] 0.0, 128
        %1032 = vxpose.xlu0.b32.cont [7/16] 0.0, 128
        %1033 = vxpose.xlu0.b32.cont [8/16] 0.0, 128
        %1034 = vxpose.xlu0.b32.cont [9/16] 0.0, 128
        %1035 = vxpose.xlu0.b32.cont [10/16] 0.0, 128
        %1036 = vxpose.xlu0.b32.cont [11/16] 0.0, 128
        %1037 = vxpose.xlu0.b32.cont [12/16] 0.0, 128
        %1038 = vxpose.xlu0.b32.cont [13/16] 0.0, 128
        %1039 = vxpose.xlu0.b32.cont [14/16] 0.0, 128
        %1040 = vxpose.xlu0.b32.cont [15/16] 0.0, 128
        %1041 = vxpose.xlu0.b32.end [16/16] 0.0, 128
        %v1042 = vpop.trf.xlu0
        %v1043 = vpop.trf.xlu0
        %v1044 = vpop.trf.xlu0
        %v1045 = vpop.trf.xlu0
        %v1046 = vpop.trf.xlu0
        %v1047 = vpop.trf.xlu0
        %v1048 = vpop.trf.xlu0
        %v1049 = vpop.trf.xlu0
        %v1050 = vpop.trf.xlu0
        %v1051 = vpop.trf.xlu0
        %v1052 = vpop.trf.xlu0
        %v1053 = vpop.trf.xlu0
        %v1054 = vpop.trf.xlu0
        %v1055 = vpop.trf.xlu0
        %v1056 = vpop.trf.xlu0
        %v1057 = vpop.trf.xlu0
        %1058 = vxpose.xlu0.b32.start [1/16] %v876, 128
        %1059 = vxpose.xlu0.b32.cont [2/16] %v881, 128
        %1060 = vxpose.xlu0.b32.cont [3/16] %v886, 128
        %1061 = vxpose.xlu0.b32.cont [4/16] %v891, 128
        %1062 = vxpose.xlu0.b32.cont [5/16] 0.0, 128
        %1063 = vxpose.xlu0.b32.cont [6/16] 0.0, 128
        %1064 = vxpose.xlu0.b32.cont [7/16] 0.0, 128
        %1065 = vxpose.xlu0.b32.cont [8/16] 0.0, 128
        %1066 = vxpose.xlu0.b32.cont [9/16] 0.0, 128
        %1067 = vxpose.xlu0.b32.cont [10/16] 0.0, 128
        %1068 = vxpose.xlu0.b32.cont [11/16] 0.0, 128
        %1069 = vxpose.xlu0.b32.cont [12/16] 0.0, 128
        %1070 = vxpose.xlu0.b32.cont [13/16] 0.0, 128
        %1071 = vxpose.xlu0.b32.cont [14/16] 0.0, 128
        %1072 = vxpose.xlu0.b32.cont [15/16] 0.0, 128
        %1073 = vxpose.xlu0.b32.end [16/16] 0.0, 128
        %v1074 = vpop.trf.xlu0
        %v1075 = vpop.trf.xlu0
        %v1076 = vpop.trf.xlu0
        %v1077 = vpop.trf.xlu0
        %v1078 = vpop.trf.xlu0
        %v1079 = vpop.trf.xlu0
        %v1080 = vpop.trf.xlu0
        %v1081 = vpop.trf.xlu0
        %v1082 = vpop.trf.xlu0
        %v1083 = vpop.trf.xlu0
        %v1084 = vpop.trf.xlu0
        %v1085 = vpop.trf.xlu0
        %v1086 = vpop.trf.xlu0
        %v1087 = vpop.trf.xlu0
        %v1088 = vpop.trf.xlu0
        %v1089 = vpop.trf.xlu0
        %1090 = vxpose.xlu0.b32.start [1/16] %v896, 128
        %1091 = vxpose.xlu0.b32.cont [2/16] %v901, 128
        %1092 = vxpose.xlu0.b32.cont [3/16] %v906, 128
        %1093 = vxpose.xlu0.b32.cont [4/16] %v911, 128
        %1094 = vxpose.xlu0.b32.cont [5/16] 0.0, 128
        %1095 = vxpose.xlu0.b32.cont [6/16] 0.0, 128
        %1096 = vxpose.xlu0.b32.cont [7/16] 0.0, 128
        %1097 = vxpose.xlu0.b32.cont [8/16] 0.0, 128
        %1098 = vxpose.xlu0.b32.cont [9/16] 0.0, 128
        %1099 = vxpose.xlu0.b32.cont [10/16] 0.0, 128
        %1100 = vxpose.xlu0.b32.cont [11/16] 0.0, 128
        %1101 = vxpose.xlu0.b32.cont [12/16] 0.0, 128
        %1102 = vxpose.xlu0.b32.cont [13/16] 0.0, 128
        %1103 = vxpose.xlu0.b32.cont [14/16] 0.0, 128
        %1104 = vxpose.xlu0.b32.cont [15/16] 0.0, 128
        %1105 = vxpose.xlu0.b32.end [16/16] 0.0, 128
        %v1106 = vpop.trf.xlu0
        %v1107 = vpop.trf.xlu0
        %v1108 = vpop.trf.xlu0
        %v1109 = vpop.trf.xlu0
        %v1110 = vpop.trf.xlu0
        %v1111 = vpop.trf.xlu0
        %v1112 = vpop.trf.xlu0
        %v1113 = vpop.trf.xlu0
        %v1114 = vpop.trf.xlu0
        %v1115 = vpop.trf.xlu0
        %v1116 = vpop.trf.xlu0
        %v1117 = vpop.trf.xlu0
        %v1118 = vpop.trf.xlu0
        %v1119 = vpop.trf.xlu0
        %v1120 = vpop.trf.xlu0
        %v1121 = vpop.trf.xlu0
        %1122 = vxpose.xlu0.b32.start [1/16] %v916, 128
        %1123 = vxpose.xlu0.b32.cont [2/16] %v921, 128
        %1124 = vxpose.xlu0.b32.cont [3/16] %v926, 128
        %1125 = vxpose.xlu0.b32.cont [4/16] %v931, 128
        %1126 = vxpose.xlu0.b32.cont [5/16] 0.0, 128
        %1127 = vxpose.xlu0.b32.cont [6/16] 0.0, 128
        %1128 = vxpose.xlu0.b32.cont [7/16] 0.0, 128
        %1129 = vxpose.xlu0.b32.cont [8/16] 0.0, 128
        %1130 = vxpose.xlu0.b32.cont [9/16] 0.0, 128
        %1131 = vxpose.xlu0.b32.cont [10/16] 0.0, 128
        %1132 = vxpose.xlu0.b32.cont [11/16] 0.0, 128
        %1133 = vxpose.xlu0.b32.cont [12/16] 0.0, 128
        %1134 = vxpose.xlu0.b32.cont [13/16] 0.0, 128
        %1135 = vxpose.xlu0.b32.cont [14/16] 0.0, 128
        %1136 = vxpose.xlu0.b32.cont [15/16] 0.0, 128
        %1137 = vxpose.xlu0.b32.end [16/16] 0.0, 128
        %v1138 = vpop.trf.xlu0
        %v1139 = vpop.trf.xlu0
        %v1140 = vpop.trf.xlu0
        %v1141 = vpop.trf.xlu0
        %v1142 = vpop.trf.xlu0
        %v1143 = vpop.trf.xlu0
        %v1144 = vpop.trf.xlu0
        %v1145 = vpop.trf.xlu0
        %v1146 = vpop.trf.xlu0
        %v1147 = vpop.trf.xlu0
        %v1148 = vpop.trf.xlu0
        %v1149 = vpop.trf.xlu0
        %v1150 = vpop.trf.xlu0
        %v1151 = vpop.trf.xlu0
        %v1152 = vpop.trf.xlu0
        %v1153 = vpop.trf.xlu0
        %1154 = vxpose.xlu0.b32.start [1/16] %v936, 128
        %1155 = vxpose.xlu0.b32.cont [2/16] %v941, 128
        %1156 = vxpose.xlu0.b32.cont [3/16] %v946, 128
        %1157 = vxpose.xlu0.b32.cont [4/16] %v951, 128
        %1158 = vxpose.xlu0.b32.cont [5/16] 0.0, 128
        %1159 = vxpose.xlu0.b32.cont [6/16] 0.0, 128
        %1160 = vxpose.xlu0.b32.cont [7/16] 0.0, 128
        %1161 = vxpose.xlu0.b32.cont [8/16] 0.0, 128
        %1162 = vxpose.xlu0.b32.cont [9/16] 0.0, 128
        %1163 = vxpose.xlu0.b32.cont [10/16] 0.0, 128
        %1164 = vxpose.xlu0.b32.cont [11/16] 0.0, 128
        %1165 = vxpose.xlu0.b32.cont [12/16] 0.0, 128
        %1166 = vxpose.xlu0.b32.cont [13/16] 0.0, 128
        %1167 = vxpose.xlu0.b32.cont [14/16] 0.0, 128
        %1168 = vxpose.xlu0.b32.cont [15/16] 0.0, 128
        %1169 = vxpose.xlu0.b32.end [16/16] 0.0, 128
        %v1170 = vpop.trf.xlu0
        %v1171 = vpop.trf.xlu0
        %v1172 = vpop.trf.xlu0
        %v1173 = vpop.trf.xlu0
        %v1174 = vpop.trf.xlu0
        %v1175 = vpop.trf.xlu0
        %v1176 = vpop.trf.xlu0
        %v1177 = vpop.trf.xlu0
        %v1178 = vpop.trf.xlu0
        %v1179 = vpop.trf.xlu0
        %v1180 = vpop.trf.xlu0
        %v1181 = vpop.trf.xlu0
        %v1182 = vpop.trf.xlu0
        %v1183 = vpop.trf.xlu0
        %v1184 = vpop.trf.xlu0
        %v1185 = vpop.trf.xlu0
        %1186 = vxpose.xlu0.b32.start [1/16] %v956, 128
        %1187 = vxpose.xlu0.b32.cont [2/16] %v961, 128
        %1188 = vxpose.xlu0.b32.cont [3/16] %v966, 128
        %1189 = vxpose.xlu0.b32.cont [4/16] %v971, 128
        %1190 = vxpose.xlu0.b32.cont [5/16] 0.0, 128
        %1191 = vxpose.xlu0.b32.cont [6/16] 0.0, 128
        %1192 = vxpose.xlu0.b32.cont [7/16] 0.0, 128
        %1193 = vxpose.xlu0.b32.cont [8/16] 0.0, 128
        %1194 = vxpose.xlu0.b32.cont [9/16] 0.0, 128
        %1195 = vxpose.xlu0.b32.cont [10/16] 0.0, 128
        %1196 = vxpose.xlu0.b32.cont [11/16] 0.0, 128
        %1197 = vxpose.xlu0.b32.cont [12/16] 0.0, 128
        %1198 = vxpose.xlu0.b32.cont [13/16] 0.0, 128
        %1199 = vxpose.xlu0.b32.cont [14/16] 0.0, 128
        %1200 = vxpose.xlu0.b32.cont [15/16] 0.0, 128
        %1201 = vxpose.xlu0.b32.end [16/16] 0.0, 128
        %v1202 = vpop.trf.xlu0
        %v1203 = vpop.trf.xlu0
        %v1204 = vpop.trf.xlu0
        %v1205 = vpop.trf.xlu0
        %v1206 = vpop.trf.xlu0
        %v1207 = vpop.trf.xlu0
        %v1208 = vpop.trf.xlu0
        %v1209 = vpop.trf.xlu0
        %v1210 = vpop.trf.xlu0
        %v1211 = vpop.trf.xlu0
        %v1212 = vpop.trf.xlu0
        %v1213 = vpop.trf.xlu0
        %v1214 = vpop.trf.xlu0
        %v1215 = vpop.trf.xlu0
        %v1216 = vpop.trf.xlu0
        %v1217 = vpop.trf.xlu0
        %1218 = vxpose.xlu0.b32.start [1/16] %v976, 128
        %1219 = vxpose.xlu0.b32.cont [2/16] %v981, 128
        %1220 = vxpose.xlu0.b32.cont [3/16] %v986, 128
        %1221 = vxpose.xlu0.b32.cont [4/16] %v991, 128
        %1222 = vxpose.xlu0.b32.cont [5/16] 0.0, 128
        %1223 = vxpose.xlu0.b32.cont [6/16] 0.0, 128
        %1224 = vxpose.xlu0.b32.cont [7/16] 0.0, 128
        %1225 = vxpose.xlu0.b32.cont [8/16] 0.0, 128
        %1226 = vxpose.xlu0.b32.cont [9/16] 0.0, 128
        %1227 = vxpose.xlu0.b32.cont [10/16] 0.0, 128
        %1228 = vxpose.xlu0.b32.cont [11/16] 0.0, 128
        %1229 = vxpose.xlu0.b32.cont [12/16] 0.0, 128
        %1230 = vxpose.xlu0.b32.cont [13/16] 0.0, 128
        %1231 = vxpose.xlu0.b32.cont [14/16] 0.0, 128
        %1232 = vxpose.xlu0.b32.cont [15/16] 0.0, 128
        %1233 = vxpose.xlu0.b32.end [16/16] 0.0, 128
        %v1234 = vpop.trf.xlu0
        %v1235 = vpop.trf.xlu0
        %v1236 = vpop.trf.xlu0
        %v1237 = vpop.trf.xlu0
        %v1238 = vpop.trf.xlu0
        %v1239 = vpop.trf.xlu0
        %v1240 = vpop.trf.xlu0
        %v1241 = vpop.trf.xlu0
        %v1242 = vpop.trf.xlu0
        %v1243 = vpop.trf.xlu0
        %v1244 = vpop.trf.xlu0
        %v1245 = vpop.trf.xlu0
        %v1246 = vpop.trf.xlu0
        %v1247 = vpop.trf.xlu0
        %v1248 = vpop.trf.xlu0
        %v1249 = vpop.trf.xlu0
        %v1250 = vld [vmem:[%s269] sm:$0xff]
        %v1251 = vld [vmem:[%s269 + $0x8] sm:$0xff]
        %v1252 = vld [vmem:[%s269 + $0x10] sm:$0xff]
        %v1253 = vld [vmem:[%s269 + $0x18] sm:$0xff]
        %v1254 = vld [vmem:[%s269 + $0x20] sm:$0xff]
        %v1255 = vld [vmem:[%s269 + $0x28] sm:$0xff]
        %v1256 = vld [vmem:[%s269 + $0x30] sm:$0xff]
        %v1257 = vld [vmem:[%s269 + $0x38] sm:$0xff]
        %v1258 = vld [vmem:[%s269 + $0x40] sm:$0xff]
        %v1259 = vld [vmem:[%s269 + $0x48] sm:$0xff]
        %v1260 = vld [vmem:[%s269 + $0x50] sm:$0xff]
        %v1261 = vld [vmem:[%s269 + $0x58] sm:$0xff]
        %v1262 = vld [vmem:[%s269 + $0x60] sm:$0xff]
        %v1263 = vld [vmem:[%s269 + $0x68] sm:$0xff]
        %v1264 = vld [vmem:[%s269 + $0x70] sm:$0xff]
        %v1265 = vld [vmem:[%s269 + $0x78] sm:$0xff]
        %v1266 = vld [vmem:[%s269 + $0x80] sm:$0xff]
        %v1267 = vld [vmem:[%s269 + $0x88] sm:$0xff]
        %v1268 = vld [vmem:[%s269 + $0x90] sm:$0xff]
        %v1269 = vld [vmem:[%s269 + $0x98] sm:$0xff]
        %v1270 = vld [vmem:[%s269 + $0xa0] sm:$0xff]
        %v1271 = vld [vmem:[%s269 + $0xa8] sm:$0xff]
        %v1272 = vld [vmem:[%s269 + $0xb0] sm:$0xff]
        %v1273 = vld [vmem:[%s269 + $0xb8] sm:$0xff]
        %v1274 = vld [vmem:[%s269 + $0xc0] sm:$0xff]
        %v1275 = vld [vmem:[%s269 + $0xc8] sm:$0xff]
        %v1276 = vld [vmem:[%s269 + $0xd0] sm:$0xff]
        %v1277 = vld [vmem:[%s269 + $0xd8] sm:$0xff]
        %v1278 = vld [vmem:[%s269 + $0xe0] sm:$0xff]
        %v1279 = vld [vmem:[%s269 + $0xe8] sm:$0xff]
        %v1280 = vld [vmem:[%s269 + $0xf0] sm:$0xff]
        %v1281 = vld [vmem:[%s269 + $0xf8] sm:$0xff]
        %v1282 = vld [vmem:[%s4] sm:$0x1]
        %v1283 = vld [vmem:[%s4 + $0x8] sm:$0x1]
        %v1284 = vld [vmem:[%s4 + $0x10] sm:$0x1]
        %v1285 = vld [vmem:[%s4 + $0x18] sm:$0x1]
        %v1286 = vld [vmem:[%s4 + $0x20] sm:$0x1]
        %v1287 = vld [vmem:[%s4 + $0x28] sm:$0x1]
        %v1288 = vld [vmem:[%s4 + $0x30] sm:$0x1]
        %v1289 = vld [vmem:[%s4 + $0x38] sm:$0x1]
        %v1290 = vld [vmem:[%s4 + $0x40] sm:$0x1]
        %v1291 = vld [vmem:[%s4 + $0x48] sm:$0x1]
        %v1292 = vld [vmem:[%s4 + $0x50] sm:$0x1]
        %v1293 = vld [vmem:[%s4 + $0x58] sm:$0x1]
        %v1294 = vld [vmem:[%s4 + $0x60] sm:$0x1]
        %v1295 = vld [vmem:[%s4 + $0x68] sm:$0x1]
        %v1296 = vld [vmem:[%s4 + $0x70] sm:$0x1]
        %v1297 = vld [vmem:[%s4 + $0x78] sm:$0x1]
        %s1299 = vtos %v1282
        %v1300 = vstv %s1299
        %s1303 = vtos %v1283
        %v1304 = vstv %s1303
        %s1307 = vtos %v1284
        %v1308 = vstv %s1307
        %s1311 = vtos %v1285
        %v1312 = vstv %s1311
        %s1315 = vtos %v1286
        %v1316 = vstv %s1315
        %s1319 = vtos %v1287
        %v1320 = vstv %s1319
        %s1323 = vtos %v1288
        %v1324 = vstv %s1323
        %s1327 = vtos %v1289
        %v1328 = vstv %s1327
        %s1331 = vtos %v1290
        %v1332 = vstv %s1331
        %s1335 = vtos %v1291
        %v1336 = vstv %s1335
        %s1339 = vtos %v1292
        %v1340 = vstv %s1339
        %s1343 = vtos %v1293
        %v1344 = vstv %s1343
        %s1347 = vtos %v1294
        %v1348 = vstv %s1347
        %s1351 = vtos %v1295
        %v1352 = vstv %s1351
        %s1355 = vtos %v1296
        %v1356 = vstv %s1355
        %s1359 = vtos %v1297
        %v1360 = vstv %s1359
        %v1362 = vmul.f32 %v1300, %v1010
        %v1363 = vmul.f32 %v1300, %v1011
        %v1364 = vmul.f32 %v1304, %v1010
        %v1365 = vmul.f32 %v1304, %v1011
        %v1366 = vmul.f32 %v1308, %v1010
        %v1367 = vmul.f32 %v1308, %v1011
        %v1368 = vmul.f32 %v1312, %v1010
        %v1369 = vmul.f32 %v1312, %v1011
        %v1370 = vmul.f32 %v1316, %v1010
        %v1371 = vmul.f32 %v1316, %v1011
        %v1372 = vmul.f32 %v1320, %v1010
        %v1373 = vmul.f32 %v1320, %v1011
        %v1374 = vmul.f32 %v1324, %v1010
        %v1375 = vmul.f32 %v1324, %v1011
        %v1376 = vmul.f32 %v1328, %v1010
        %v1377 = vmul.f32 %v1328, %v1011
        %v1378 = vmul.f32 %v1332, %v1010
        %v1379 = vmul.f32 %v1332, %v1011
        %v1380 = vmul.f32 %v1336, %v1010
        %v1381 = vmul.f32 %v1336, %v1011
        %v1382 = vmul.f32 %v1340, %v1010
        %v1383 = vmul.f32 %v1340, %v1011
        %v1384 = vmul.f32 %v1344, %v1010
        %v1385 = vmul.f32 %v1344, %v1011
        %v1386 = vmul.f32 %v1348, %v1010
        %v1387 = vmul.f32 %v1348, %v1011
        %v1388 = vmul.f32 %v1352, %v1010
        %v1389 = vmul.f32 %v1352, %v1011
        %v1390 = vmul.f32 %v1356, %v1010
        %v1391 = vmul.f32 %v1356, %v1011
        %v1392 = vmul.f32 %v1360, %v1010
        %v1393 = vmul.f32 %v1360, %v1011
        %v1394 = vadd.f32 %v1250, %v1362
        %v1395 = vadd.f32 %v1251, %v1363
        %v1396 = vadd.f32 %v1252, %v1364
        %v1397 = vadd.f32 %v1253, %v1365
        %v1398 = vadd.f32 %v1254, %v1366
        %v1399 = vadd.f32 %v1255, %v1367
        %v1400 = vadd.f32 %v1256, %v1368
        %v1401 = vadd.f32 %v1257, %v1369
        %v1402 = vadd.f32 %v1258, %v1370
        %v1403 = vadd.f32 %v1259, %v1371
        %v1404 = vadd.f32 %v1260, %v1372
        %v1405 = vadd.f32 %v1261, %v1373
        %v1406 = vadd.f32 %v1262, %v1374
        %v1407 = vadd.f32 %v1263, %v1375
        %v1408 = vadd.f32 %v1264, %v1376
        %v1409 = vadd.f32 %v1265, %v1377
        %v1410 = vadd.f32 %v1266, %v1378
        %v1411 = vadd.f32 %v1267, %v1379
        %v1412 = vadd.f32 %v1268, %v1380
        %v1413 = vadd.f32 %v1269, %v1381
        %v1414 = vadd.f32 %v1270, %v1382
        %v1415 = vadd.f32 %v1271, %v1383
        %v1416 = vadd.f32 %v1272, %v1384
        %v1417 = vadd.f32 %v1273, %v1385
        %v1418 = vadd.f32 %v1274, %v1386
        %v1419 = vadd.f32 %v1275, %v1387
        %v1420 = vadd.f32 %v1276, %v1388
        %v1421 = vadd.f32 %v1277, %v1389
        %v1422 = vadd.f32 %v1278, %v1390
        %v1423 = vadd.f32 %v1279, %v1391
        %v1424 = vadd.f32 %v1280, %v1392
        %v1425 = vadd.f32 %v1281, %v1393
        %v1426 = vld [vmem:[%s4 + $0x1] sm:$0x1]
        %v1427 = vld [vmem:[%s4 + $0x9] sm:$0x1]
        %v1428 = vld [vmem:[%s4 + $0x11] sm:$0x1]
        %v1429 = vld [vmem:[%s4 + $0x19] sm:$0x1]
        %v1430 = vld [vmem:[%s4 + $0x21] sm:$0x1]
        %v1431 = vld [vmem:[%s4 + $0x29] sm:$0x1]
        %v1432 = vld [vmem:[%s4 + $0x31] sm:$0x1]
        %v1433 = vld [vmem:[%s4 + $0x39] sm:$0x1]
        %v1434 = vld [vmem:[%s4 + $0x41] sm:$0x1]
        %v1435 = vld [vmem:[%s4 + $0x49] sm:$0x1]
        %v1436 = vld [vmem:[%s4 + $0x51] sm:$0x1]
        %v1437 = vld [vmem:[%s4 + $0x59] sm:$0x1]
        %v1438 = vld [vmem:[%s4 + $0x61] sm:$0x1]
        %v1439 = vld [vmem:[%s4 + $0x69] sm:$0x1]
        %v1440 = vld [vmem:[%s4 + $0x71] sm:$0x1]
        %v1441 = vld [vmem:[%s4 + $0x79] sm:$0x1]
        %s1443 = vtos %v1426
        %v1444 = vstv %s1443
        %s1447 = vtos %v1427
        %v1448 = vstv %s1447
        %s1451 = vtos %v1428
        %v1452 = vstv %s1451
        %s1455 = vtos %v1429
        %v1456 = vstv %s1455
        %s1459 = vtos %v1430
        %v1460 = vstv %s1459
        %s1463 = vtos %v1431
        %v1464 = vstv %s1463
        %s1467 = vtos %v1432
        %v1468 = vstv %s1467
        %s1471 = vtos %v1433
        %v1472 = vstv %s1471
        %s1475 = vtos %v1434
        %v1476 = vstv %s1475
        %s1479 = vtos %v1435
        %v1480 = vstv %s1479
        %s1483 = vtos %v1436
        %v1484 = vstv %s1483
        %s1487 = vtos %v1437
        %v1488 = vstv %s1487
        %s1491 = vtos %v1438
        %v1492 = vstv %s1491
        %s1495 = vtos %v1439
        %v1496 = vstv %s1495
        %s1499 = vtos %v1440
        %v1500 = vstv %s1499
        %s1503 = vtos %v1441
        %v1504 = vstv %s1503
        %v1506 = vmul.f32 %v1444, %v1042
        %v1507 = vmul.f32 %v1444, %v1043
        %v1508 = vmul.f32 %v1448, %v1042
        %v1509 = vmul.f32 %v1448, %v1043
        %v1510 = vmul.f32 %v1452, %v1042
        %v1511 = vmul.f32 %v1452, %v1043
        %v1512 = vmul.f32 %v1456, %v1042
        %v1513 = vmul.f32 %v1456, %v1043
        %v1514 = vmul.f32 %v1460, %v1042
        %v1515 = vmul.f32 %v1460, %v1043
        %v1516 = vmul.f32 %v1464, %v1042
        %v1517 = vmul.f32 %v1464, %v1043
        %v1518 = vmul.f32 %v1468, %v1042
        %v1519 = vmul.f32 %v1468, %v1043
        %v1520 = vmul.f32 %v1472, %v1042
        %v1521 = vmul.f32 %v1472, %v1043
        %v1522 = vmul.f32 %v1476, %v1042
        %v1523 = vmul.f32 %v1476, %v1043
        %v1524 = vmul.f32 %v1480, %v1042
        %v1525 = vmul.f32 %v1480, %v1043
        %v1526 = vmul.f32 %v1484, %v1042
        %v1527 = vmul.f32 %v1484, %v1043
        %v1528 = vmul.f32 %v1488, %v1042
        %v1529 = vmul.f32 %v1488, %v1043
        %v1530 = vmul.f32 %v1492, %v1042
        %v1531 = vmul.f32 %v1492, %v1043
        %v1532 = vmul.f32 %v1496, %v1042
        %v1533 = vmul.f32 %v1496, %v1043
        %v1534 = vmul.f32 %v1500, %v1042
        %v1535 = vmul.f32 %v1500, %v1043
        %v1536 = vmul.f32 %v1504, %v1042
        %v1537 = vmul.f32 %v1504, %v1043
        %v1538 = vadd.f32 %v1394, %v1506
        %v1539 = vadd.f32 %v1395, %v1507
        %v1540 = vadd.f32 %v1396, %v1508
        %v1541 = vadd.f32 %v1397, %v1509
        %v1542 = vadd.f32 %v1398, %v1510
        %v1543 = vadd.f32 %v1399, %v1511
        %v1544 = vadd.f32 %v1400, %v1512
        %v1545 = vadd.f32 %v1401, %v1513
        %v1546 = vadd.f32 %v1402, %v1514
        %v1547 = vadd.f32 %v1403, %v1515
        %v1548 = vadd.f32 %v1404, %v1516
        %v1549 = vadd.f32 %v1405, %v1517
        %v1550 = vadd.f32 %v1406, %v1518
        %v1551 = vadd.f32 %v1407, %v1519
        %v1552 = vadd.f32 %v1408, %v1520
        %v1553 = vadd.f32 %v1409, %v1521
        %v1554 = vadd.f32 %v1410, %v1522
        %v1555 = vadd.f32 %v1411, %v1523
        %v1556 = vadd.f32 %v1412, %v1524
        %v1557 = vadd.f32 %v1413, %v1525
        %v1558 = vadd.f32 %v1414, %v1526
        %v1559 = vadd.f32 %v1415, %v1527
        %v1560 = vadd.f32 %v1416, %v1528
        %v1561 = vadd.f32 %v1417, %v1529
        %v1562 = vadd.f32 %v1418, %v1530
        %v1563 = vadd.f32 %v1419, %v1531
        %v1564 = vadd.f32 %v1420, %v1532
        %v1565 = vadd.f32 %v1421, %v1533
        %v1566 = vadd.f32 %v1422, %v1534
        %v1567 = vadd.f32 %v1423, %v1535
        %v1568 = vadd.f32 %v1424, %v1536
        %v1569 = vadd.f32 %v1425, %v1537
        %v1570 = vld [vmem:[%s4 + $0x2] sm:$0x1]
        %v1571 = vld [vmem:[%s4 + $0xa] sm:$0x1]
        %v1572 = vld [vmem:[%s4 + $0x12] sm:$0x1]
        %v1573 = vld [vmem:[%s4 + $0x1a] sm:$0x1]
        %v1574 = vld [vmem:[%s4 + $0x22] sm:$0x1]
        %v1575 = vld [vmem:[%s4 + $0x2a] sm:$0x1]
        %v1576 = vld [vmem:[%s4 + $0x32] sm:$0x1]
        %v1577 = vld [vmem:[%s4 + $0x3a] sm:$0x1]
        %v1578 = vld [vmem:[%s4 + $0x42] sm:$0x1]
        %v1579 = vld [vmem:[%s4 + $0x4a] sm:$0x1]
        %v1580 = vld [vmem:[%s4 + $0x52] sm:$0x1]
        %v1581 = vld [vmem:[%s4 + $0x5a] sm:$0x1]
        %v1582 = vld [vmem:[%s4 + $0x62] sm:$0x1]
        %v1583 = vld [vmem:[%s4 + $0x6a] sm:$0x1]
        %v1584 = vld [vmem:[%s4 + $0x72] sm:$0x1]
        %v1585 = vld [vmem:[%s4 + $0x7a] sm:$0x1]
        %s1587 = vtos %v1570
        %v1588 = vstv %s1587
        %s1591 = vtos %v1571
        %v1592 = vstv %s1591
        %s1595 = vtos %v1572
        %v1596 = vstv %s1595
        %s1599 = vtos %v1573
        %v1600 = vstv %s1599
        %s1603 = vtos %v1574
        %v1604 = vstv %s1603
        %s1607 = vtos %v1575
        %v1608 = vstv %s1607
        %s1611 = vtos %v1576
        %v1612 = vstv %s1611
        %s1615 = vtos %v1577
        %v1616 = vstv %s1615
        %s1619 = vtos %v1578
        %v1620 = vstv %s1619
        %s1623 = vtos %v1579
        %v1624 = vstv %s1623
        %s1627 = vtos %v1580
        %v1628 = vstv %s1627
        %s1631 = vtos %v1581
        %v1632 = vstv %s1631
        %s1635 = vtos %v1582
        %v1636 = vstv %s1635
        %s1639 = vtos %v1583
        %v1640 = vstv %s1639
        %s1643 = vtos %v1584
        %v1644 = vstv %s1643
        %s1647 = vtos %v1585
        %v1648 = vstv %s1647
        %v1650 = vmul.f32 %v1588, %v1074
        %v1651 = vmul.f32 %v1588, %v1075
        %v1652 = vmul.f32 %v1592, %v1074
        %v1653 = vmul.f32 %v1592, %v1075
        %v1654 = vmul.f32 %v1596, %v1074
        %v1655 = vmul.f32 %v1596, %v1075
        %v1656 = vmul.f32 %v1600, %v1074
        %v1657 = vmul.f32 %v1600, %v1075
        %v1658 = vmul.f32 %v1604, %v1074
        %v1659 = vmul.f32 %v1604, %v1075
        %v1660 = vmul.f32 %v1608, %v1074
        %v1661 = vmul.f32 %v1608, %v1075
        %v1662 = vmul.f32 %v1612, %v1074
        %v1663 = vmul.f32 %v1612, %v1075
        %v1664 = vmul.f32 %v1616, %v1074
        %v1665 = vmul.f32 %v1616, %v1075
        %v1666 = vmul.f32 %v1620, %v1074
        %v1667 = vmul.f32 %v1620, %v1075
        %v1668 = vmul.f32 %v1624, %v1074
        %v1669 = vmul.f32 %v1624, %v1075
        %v1670 = vmul.f32 %v1628, %v1074
        %v1671 = vmul.f32 %v1628, %v1075
        %v1672 = vmul.f32 %v1632, %v1074
        %v1673 = vmul.f32 %v1632, %v1075
        %v1674 = vmul.f32 %v1636, %v1074
        %v1675 = vmul.f32 %v1636, %v1075
        %v1676 = vmul.f32 %v1640, %v1074
        %v1677 = vmul.f32 %v1640, %v1075
        %v1678 = vmul.f32 %v1644, %v1074
        %v1679 = vmul.f32 %v1644, %v1075
        %v1680 = vmul.f32 %v1648, %v1074
        %v1681 = vmul.f32 %v1648, %v1075
        %v1682 = vadd.f32 %v1538, %v1650
        %v1683 = vadd.f32 %v1539, %v1651
        %v1684 = vadd.f32 %v1540, %v1652
        %v1685 = vadd.f32 %v1541, %v1653
        %v1686 = vadd.f32 %v1542, %v1654
        %v1687 = vadd.f32 %v1543, %v1655
        %v1688 = vadd.f32 %v1544, %v1656
        %v1689 = vadd.f32 %v1545, %v1657
        %v1690 = vadd.f32 %v1546, %v1658
        %v1691 = vadd.f32 %v1547, %v1659
        %v1692 = vadd.f32 %v1548, %v1660
        %v1693 = vadd.f32 %v1549, %v1661
        %v1694 = vadd.f32 %v1550, %v1662
        %v1695 = vadd.f32 %v1551, %v1663
        %v1696 = vadd.f32 %v1552, %v1664
        %v1697 = vadd.f32 %v1553, %v1665
        %v1698 = vadd.f32 %v1554, %v1666
        %v1699 = vadd.f32 %v1555, %v1667
        %v1700 = vadd.f32 %v1556, %v1668
        %v1701 = vadd.f32 %v1557, %v1669
        %v1702 = vadd.f32 %v1558, %v1670
        %v1703 = vadd.f32 %v1559, %v1671
        %v1704 = vadd.f32 %v1560, %v1672
        %v1705 = vadd.f32 %v1561, %v1673
        %v1706 = vadd.f32 %v1562, %v1674
        %v1707 = vadd.f32 %v1563, %v1675
        %v1708 = vadd.f32 %v1564, %v1676
        %v1709 = vadd.f32 %v1565, %v1677
        %v1710 = vadd.f32 %v1566, %v1678
        %v1711 = vadd.f32 %v1567, %v1679
        %v1712 = vadd.f32 %v1568, %v1680
        %v1713 = vadd.f32 %v1569, %v1681
        %v1714 = vld [vmem:[%s4 + $0x3] sm:$0x1]
        %v1715 = vld [vmem:[%s4 + $0xb] sm:$0x1]
        %v1716 = vld [vmem:[%s4 + $0x13] sm:$0x1]
        %v1717 = vld [vmem:[%s4 + $0x1b] sm:$0x1]
        %v1718 = vld [vmem:[%s4 + $0x23] sm:$0x1]
        %v1719 = vld [vmem:[%s4 + $0x2b] sm:$0x1]
        %v1720 = vld [vmem:[%s4 + $0x33] sm:$0x1]
        %v1721 = vld [vmem:[%s4 + $0x3b] sm:$0x1]
        %v1722 = vld [vmem:[%s4 + $0x43] sm:$0x1]
        %v1723 = vld [vmem:[%s4 + $0x4b] sm:$0x1]
        %v1724 = vld [vmem:[%s4 + $0x53] sm:$0x1]
        %v1725 = vld [vmem:[%s4 + $0x5b] sm:$0x1]
        %v1726 = vld [vmem:[%s4 + $0x63] sm:$0x1]
        %v1727 = vld [vmem:[%s4 + $0x6b] sm:$0x1]
        %v1728 = vld [vmem:[%s4 + $0x73] sm:$0x1]
        %v1729 = vld [vmem:[%s4 + $0x7b] sm:$0x1]
        %s1731 = vtos %v1714
        %v1732 = vstv %s1731
        %s1735 = vtos %v1715
        %v1736 = vstv %s1735
        %s1739 = vtos %v1716
        %v1740 = vstv %s1739
        %s1743 = vtos %v1717
        %v1744 = vstv %s1743
        %s1747 = vtos %v1718
        %v1748 = vstv %s1747
        %s1751 = vtos %v1719
        %v1752 = vstv %s1751
        %s1755 = vtos %v1720
        %v1756 = vstv %s1755
        %s1759 = vtos %v1721
        %v1760 = vstv %s1759
        %s1763 = vtos %v1722
        %v1764 = vstv %s1763
        %s1767 = vtos %v1723
        %v1768 = vstv %s1767
        %s1771 = vtos %v1724
        %v1772 = vstv %s1771
        %s1775 = vtos %v1725
        %v1776 = vstv %s1775
        %s1779 = vtos %v1726
        %v1780 = vstv %s1779
        %s1783 = vtos %v1727
        %v1784 = vstv %s1783
        %s1787 = vtos %v1728
        %v1788 = vstv %s1787
        %s1791 = vtos %v1729
        %v1792 = vstv %s1791
        %v1794 = vmul.f32 %v1732, %v1106
        %v1795 = vmul.f32 %v1732, %v1107
        %v1796 = vmul.f32 %v1736, %v1106
        %v1797 = vmul.f32 %v1736, %v1107
        %v1798 = vmul.f32 %v1740, %v1106
        %v1799 = vmul.f32 %v1740, %v1107
        %v1800 = vmul.f32 %v1744, %v1106
        %v1801 = vmul.f32 %v1744, %v1107
        %v1802 = vmul.f32 %v1748, %v1106
        %v1803 = vmul.f32 %v1748, %v1107
        %v1804 = vmul.f32 %v1752, %v1106
        %v1805 = vmul.f32 %v1752, %v1107
        %v1806 = vmul.f32 %v1756, %v1106
        %v1807 = vmul.f32 %v1756, %v1107
        %v1808 = vmul.f32 %v1760, %v1106
        %v1809 = vmul.f32 %v1760, %v1107
        %v1810 = vmul.f32 %v1764, %v1106
        %v1811 = vmul.f32 %v1764, %v1107
        %v1812 = vmul.f32 %v1768, %v1106
        %v1813 = vmul.f32 %v1768, %v1107
        %v1814 = vmul.f32 %v1772, %v1106
        %v1815 = vmul.f32 %v1772, %v1107
        %v1816 = vmul.f32 %v1776, %v1106
        %v1817 = vmul.f32 %v1776, %v1107
        %v1818 = vmul.f32 %v1780, %v1106
        %v1819 = vmul.f32 %v1780, %v1107
        %v1820 = vmul.f32 %v1784, %v1106
        %v1821 = vmul.f32 %v1784, %v1107
        %v1822 = vmul.f32 %v1788, %v1106
        %v1823 = vmul.f32 %v1788, %v1107
        %v1824 = vmul.f32 %v1792, %v1106
        %v1825 = vmul.f32 %v1792, %v1107
        %v1826 = vadd.f32 %v1682, %v1794
        %v1827 = vadd.f32 %v1683, %v1795
        %v1828 = vadd.f32 %v1684, %v1796
        %v1829 = vadd.f32 %v1685, %v1797
        %v1830 = vadd.f32 %v1686, %v1798
        %v1831 = vadd.f32 %v1687, %v1799
        %v1832 = vadd.f32 %v1688, %v1800
        %v1833 = vadd.f32 %v1689, %v1801
        %v1834 = vadd.f32 %v1690, %v1802
        %v1835 = vadd.f32 %v1691, %v1803
        %v1836 = vadd.f32 %v1692, %v1804
        %v1837 = vadd.f32 %v1693, %v1805
        %v1838 = vadd.f32 %v1694, %v1806
        %v1839 = vadd.f32 %v1695, %v1807
        %v1840 = vadd.f32 %v1696, %v1808
        %v1841 = vadd.f32 %v1697, %v1809
        %v1842 = vadd.f32 %v1698, %v1810
        %v1843 = vadd.f32 %v1699, %v1811
        %v1844 = vadd.f32 %v1700, %v1812
        %v1845 = vadd.f32 %v1701, %v1813
        %v1846 = vadd.f32 %v1702, %v1814
        %v1847 = vadd.f32 %v1703, %v1815
        %v1848 = vadd.f32 %v1704, %v1816
        %v1849 = vadd.f32 %v1705, %v1817
        %v1850 = vadd.f32 %v1706, %v1818
        %v1851 = vadd.f32 %v1707, %v1819
        %v1852 = vadd.f32 %v1708, %v1820
        %v1853 = vadd.f32 %v1709, %v1821
        %v1854 = vadd.f32 %v1710, %v1822
        %v1855 = vadd.f32 %v1711, %v1823
        %v1856 = vadd.f32 %v1712, %v1824
        %v1857 = vadd.f32 %v1713, %v1825
        %v1858 = vld [vmem:[%s4 + $0x4] sm:$0x1]
        %v1859 = vld [vmem:[%s4 + $0xc] sm:$0x1]
        %v1860 = vld [vmem:[%s4 + $0x14] sm:$0x1]
        %v1861 = vld [vmem:[%s4 + $0x1c] sm:$0x1]
        %v1862 = vld [vmem:[%s4 + $0x24] sm:$0x1]
        %v1863 = vld [vmem:[%s4 + $0x2c] sm:$0x1]
        %v1864 = vld [vmem:[%s4 + $0x34] sm:$0x1]
        %v1865 = vld [vmem:[%s4 + $0x3c] sm:$0x1]
        %v1866 = vld [vmem:[%s4 + $0x44] sm:$0x1]
        %v1867 = vld [vmem:[%s4 + $0x4c] sm:$0x1]
        %v1868 = vld [vmem:[%s4 + $0x54] sm:$0x1]
        %v1869 = vld [vmem:[%s4 + $0x5c] sm:$0x1]
        %v1870 = vld [vmem:[%s4 + $0x64] sm:$0x1]
        %v1871 = vld [vmem:[%s4 + $0x6c] sm:$0x1]
        %v1872 = vld [vmem:[%s4 + $0x74] sm:$0x1]
        %v1873 = vld [vmem:[%s4 + $0x7c] sm:$0x1]
        %s1875 = vtos %v1858
        %v1876 = vstv %s1875
        %s1879 = vtos %v1859
        %v1880 = vstv %s1879
        %s1883 = vtos %v1860
        %v1884 = vstv %s1883
        %s1887 = vtos %v1861
        %v1888 = vstv %s1887
        %s1891 = vtos %v1862
        %v1892 = vstv %s1891
        %s1895 = vtos %v1863
        %v1896 = vstv %s1895
        %s1899 = vtos %v1864
        %v1900 = vstv %s1899
        %s1903 = vtos %v1865
        %v1904 = vstv %s1903
        %s1907 = vtos %v1866
        %v1908 = vstv %s1907
        %s1911 = vtos %v1867
        %v1912 = vstv %s1911
        %s1915 = vtos %v1868
        %v1916 = vstv %s1915
        %s1919 = vtos %v1869
        %v1920 = vstv %s1919
        %s1923 = vtos %v1870
        %v1924 = vstv %s1923
        %s1927 = vtos %v1871
        %v1928 = vstv %s1927
        %s1931 = vtos %v1872
        %v1932 = vstv %s1931
        %s1935 = vtos %v1873
        %v1936 = vstv %s1935
        %v1938 = vmul.f32 %v1876, %v1138
        %v1939 = vmul.f32 %v1876, %v1139
        %v1940 = vmul.f32 %v1880, %v1138
        %v1941 = vmul.f32 %v1880, %v1139
        %v1942 = vmul.f32 %v1884, %v1138
        %v1943 = vmul.f32 %v1884, %v1139
        %v1944 = vmul.f32 %v1888, %v1138
        %v1945 = vmul.f32 %v1888, %v1139
        %v1946 = vmul.f32 %v1892, %v1138
        %v1947 = vmul.f32 %v1892, %v1139
        %v1948 = vmul.f32 %v1896, %v1138
        %v1949 = vmul.f32 %v1896, %v1139
        %v1950 = vmul.f32 %v1900, %v1138
        %v1951 = vmul.f32 %v1900, %v1139
        %v1952 = vmul.f32 %v1904, %v1138
        %v1953 = vmul.f32 %v1904, %v1139
        %v1954 = vmul.f32 %v1908, %v1138
        %v1955 = vmul.f32 %v1908, %v1139
        %v1956 = vmul.f32 %v1912, %v1138
        %v1957 = vmul.f32 %v1912, %v1139
        %v1958 = vmul.f32 %v1916, %v1138
        %v1959 = vmul.f32 %v1916, %v1139
        %v1960 = vmul.f32 %v1920, %v1138
        %v1961 = vmul.f32 %v1920, %v1139
        %v1962 = vmul.f32 %v1924, %v1138
        %v1963 = vmul.f32 %v1924, %v1139
        %v1964 = vmul.f32 %v1928, %v1138
        %v1965 = vmul.f32 %v1928, %v1139
        %v1966 = vmul.f32 %v1932, %v1138
        %v1967 = vmul.f32 %v1932, %v1139
        %v1968 = vmul.f32 %v1936, %v1138
        %v1969 = vmul.f32 %v1936, %v1139
        %v1970 = vadd.f32 %v1826, %v1938
        %v1971 = vadd.f32 %v1827, %v1939
        %v1972 = vadd.f32 %v1828, %v1940
        %v1973 = vadd.f32 %v1829, %v1941
        %v1974 = vadd.f32 %v1830, %v1942
        %v1975 = vadd.f32 %v1831, %v1943
        %v1976 = vadd.f32 %v1832, %v1944
        %v1977 = vadd.f32 %v1833, %v1945
        %v1978 = vadd.f32 %v1834, %v1946
        %v1979 = vadd.f32 %v1835, %v1947
        %v1980 = vadd.f32 %v1836, %v1948
        %v1981 = vadd.f32 %v1837, %v1949
        %v1982 = vadd.f32 %v1838, %v1950
        %v1983 = vadd.f32 %v1839, %v1951
        %v1984 = vadd.f32 %v1840, %v1952
        %v1985 = vadd.f32 %v1841, %v1953
        %v1986 = vadd.f32 %v1842, %v1954
        %v1987 = vadd.f32 %v1843, %v1955
        %v1988 = vadd.f32 %v1844, %v1956
        %v1989 = vadd.f32 %v1845, %v1957
        %v1990 = vadd.f32 %v1846, %v1958
        %v1991 = vadd.f32 %v1847, %v1959
        %v1992 = vadd.f32 %v1848, %v1960
        %v1993 = vadd.f32 %v1849, %v1961
        %v1994 = vadd.f32 %v1850, %v1962
        %v1995 = vadd.f32 %v1851, %v1963
        %v1996 = vadd.f32 %v1852, %v1964
        %v1997 = vadd.f32 %v1853, %v1965
        %v1998 = vadd.f32 %v1854, %v1966
        %v1999 = vadd.f32 %v1855, %v1967
        %v2000 = vadd.f32 %v1856, %v1968
        %v2001 = vadd.f32 %v1857, %v1969
        %v2002 = vld [vmem:[%s4 + $0x5] sm:$0x1]
        %v2003 = vld [vmem:[%s4 + $0xd] sm:$0x1]
        %v2004 = vld [vmem:[%s4 + $0x15] sm:$0x1]
        %v2005 = vld [vmem:[%s4 + $0x1d] sm:$0x1]
        %v2006 = vld [vmem:[%s4 + $0x25] sm:$0x1]
        %v2007 = vld [vmem:[%s4 + $0x2d] sm:$0x1]
        %v2008 = vld [vmem:[%s4 + $0x35] sm:$0x1]
        %v2009 = vld [vmem:[%s4 + $0x3d] sm:$0x1]
        %v2010 = vld [vmem:[%s4 + $0x45] sm:$0x1]
        %v2011 = vld [vmem:[%s4 + $0x4d] sm:$0x1]
        %v2012 = vld [vmem:[%s4 + $0x55] sm:$0x1]
        %v2013 = vld [vmem:[%s4 + $0x5d] sm:$0x1]
        %v2014 = vld [vmem:[%s4 + $0x65] sm:$0x1]
        %v2015 = vld [vmem:[%s4 + $0x6d] sm:$0x1]
        %v2016 = vld [vmem:[%s4 + $0x75] sm:$0x1]
        %v2017 = vld [vmem:[%s4 + $0x7d] sm:$0x1]
        %s2019 = vtos %v2002
        %v2020 = vstv %s2019
        %s2023 = vtos %v2003
        %v2024 = vstv %s2023
        %s2027 = vtos %v2004
        %v2028 = vstv %s2027
        %s2031 = vtos %v2005
        %v2032 = vstv %s2031
        %s2035 = vtos %v2006
        %v2036 = vstv %s2035
        %s2039 = vtos %v2007
        %v2040 = vstv %s2039
        %s2043 = vtos %v2008
        %v2044 = vstv %s2043
        %s2047 = vtos %v2009
        %v2048 = vstv %s2047
        %s2051 = vtos %v2010
        %v2052 = vstv %s2051
        %s2055 = vtos %v2011
        %v2056 = vstv %s2055
        %s2059 = vtos %v2012
        %v2060 = vstv %s2059
        %s2063 = vtos %v2013
        %v2064 = vstv %s2063
        %s2067 = vtos %v2014
        %v2068 = vstv %s2067
        %s2071 = vtos %v2015
        %v2072 = vstv %s2071
        %s2075 = vtos %v2016
        %v2076 = vstv %s2075
        %s2079 = vtos %v2017
        %v2080 = vstv %s2079
        %v2082 = vmul.f32 %v2020, %v1170
        %v2083 = vmul.f32 %v2020, %v1171
        %v2084 = vmul.f32 %v2024, %v1170
        %v2085 = vmul.f32 %v2024, %v1171
        %v2086 = vmul.f32 %v2028, %v1170
        %v2087 = vmul.f32 %v2028, %v1171
        %v2088 = vmul.f32 %v2032, %v1170
        %v2089 = vmul.f32 %v2032, %v1171
        %v2090 = vmul.f32 %v2036, %v1170
        %v2091 = vmul.f32 %v2036, %v1171
        %v2092 = vmul.f32 %v2040, %v1170
        %v2093 = vmul.f32 %v2040, %v1171
        %v2094 = vmul.f32 %v2044, %v1170
        %v2095 = vmul.f32 %v2044, %v1171
        %v2096 = vmul.f32 %v2048, %v1170
        %v2097 = vmul.f32 %v2048, %v1171
        %v2098 = vmul.f32 %v2052, %v1170
        %v2099 = vmul.f32 %v2052, %v1171
        %v2100 = vmul.f32 %v2056, %v1170
        %v2101 = vmul.f32 %v2056, %v1171
        %v2102 = vmul.f32 %v2060, %v1170
        %v2103 = vmul.f32 %v2060, %v1171
        %v2104 = vmul.f32 %v2064, %v1170
        %v2105 = vmul.f32 %v2064, %v1171
        %v2106 = vmul.f32 %v2068, %v1170
        %v2107 = vmul.f32 %v2068, %v1171
        %v2108 = vmul.f32 %v2072, %v1170
        %v2109 = vmul.f32 %v2072, %v1171
        %v2110 = vmul.f32 %v2076, %v1170
        %v2111 = vmul.f32 %v2076, %v1171
        %v2112 = vmul.f32 %v2080, %v1170
        %v2113 = vmul.f32 %v2080, %v1171
        %v2114 = vadd.f32 %v1970, %v2082
        %v2115 = vadd.f32 %v1971, %v2083
        %v2116 = vadd.f32 %v1972, %v2084
        %v2117 = vadd.f32 %v1973, %v2085
        %v2118 = vadd.f32 %v1974, %v2086
        %v2119 = vadd.f32 %v1975, %v2087
        %v2120 = vadd.f32 %v1976, %v2088
        %v2121 = vadd.f32 %v1977, %v2089
        %v2122 = vadd.f32 %v1978, %v2090
        %v2123 = vadd.f32 %v1979, %v2091
        %v2124 = vadd.f32 %v1980, %v2092
        %v2125 = vadd.f32 %v1981, %v2093
        %v2126 = vadd.f32 %v1982, %v2094
        %v2127 = vadd.f32 %v1983, %v2095
        %v2128 = vadd.f32 %v1984, %v2096
        %v2129 = vadd.f32 %v1985, %v2097
        %v2130 = vadd.f32 %v1986, %v2098
        %v2131 = vadd.f32 %v1987, %v2099
        %v2132 = vadd.f32 %v1988, %v2100
        %v2133 = vadd.f32 %v1989, %v2101
        %v2134 = vadd.f32 %v1990, %v2102
        %v2135 = vadd.f32 %v1991, %v2103
        %v2136 = vadd.f32 %v1992, %v2104
        %v2137 = vadd.f32 %v1993, %v2105
        %v2138 = vadd.f32 %v1994, %v2106
        %v2139 = vadd.f32 %v1995, %v2107
        %v2140 = vadd.f32 %v1996, %v2108
        %v2141 = vadd.f32 %v1997, %v2109
        %v2142 = vadd.f32 %v1998, %v2110
        %v2143 = vadd.f32 %v1999, %v2111
        %v2144 = vadd.f32 %v2000, %v2112
        %v2145 = vadd.f32 %v2001, %v2113
        %v2146 = vld [vmem:[%s4 + $0x6] sm:$0x1]
        %v2147 = vld [vmem:[%s4 + $0xe] sm:$0x1]
        %v2148 = vld [vmem:[%s4 + $0x16] sm:$0x1]
        %v2149 = vld [vmem:[%s4 + $0x1e] sm:$0x1]
        %v2150 = vld [vmem:[%s4 + $0x26] sm:$0x1]
        %v2151 = vld [vmem:[%s4 + $0x2e] sm:$0x1]
        %v2152 = vld [vmem:[%s4 + $0x36] sm:$0x1]
        %v2153 = vld [vmem:[%s4 + $0x3e] sm:$0x1]
        %v2154 = vld [vmem:[%s4 + $0x46] sm:$0x1]
        %v2155 = vld [vmem:[%s4 + $0x4e] sm:$0x1]
        %v2156 = vld [vmem:[%s4 + $0x56] sm:$0x1]
        %v2157 = vld [vmem:[%s4 + $0x5e] sm:$0x1]
        %v2158 = vld [vmem:[%s4 + $0x66] sm:$0x1]
        %v2159 = vld [vmem:[%s4 + $0x6e] sm:$0x1]
        %v2160 = vld [vmem:[%s4 + $0x76] sm:$0x1]
        %v2161 = vld [vmem:[%s4 + $0x7e] sm:$0x1]
        %s2163 = vtos %v2146
        %v2164 = vstv %s2163
        %s2167 = vtos %v2147
        %v2168 = vstv %s2167
        %s2171 = vtos %v2148
        %v2172 = vstv %s2171
        %s2175 = vtos %v2149
        %v2176 = vstv %s2175
        %s2179 = vtos %v2150
        %v2180 = vstv %s2179
        %s2183 = vtos %v2151
        %v2184 = vstv %s2183
        %s2187 = vtos %v2152
        %v2188 = vstv %s2187
        %s2191 = vtos %v2153
        %v2192 = vstv %s2191
        %s2195 = vtos %v2154
        %v2196 = vstv %s2195
        %s2199 = vtos %v2155
        %v2200 = vstv %s2199
        %s2203 = vtos %v2156
        %v2204 = vstv %s2203
        %s2207 = vtos %v2157
        %v2208 = vstv %s2207
        %s2211 = vtos %v2158
        %v2212 = vstv %s2211
        %s2215 = vtos %v2159
        %v2216 = vstv %s2215
        %s2219 = vtos %v2160
        %v2220 = vstv %s2219
        %s2223 = vtos %v2161
        %v2224 = vstv %s2223
        %v2226 = vmul.f32 %v2164, %v1202
        %v2227 = vmul.f32 %v2164, %v1203
        %v2228 = vmul.f32 %v2168, %v1202
        %v2229 = vmul.f32 %v2168, %v1203
        %v2230 = vmul.f32 %v2172, %v1202
        %v2231 = vmul.f32 %v2172, %v1203
        %v2232 = vmul.f32 %v2176, %v1202
        %v2233 = vmul.f32 %v2176, %v1203
        %v2234 = vmul.f32 %v2180, %v1202
        %v2235 = vmul.f32 %v2180, %v1203
        %v2236 = vmul.f32 %v2184, %v1202
        %v2237 = vmul.f32 %v2184, %v1203
        %v2238 = vmul.f32 %v2188, %v1202
        %v2239 = vmul.f32 %v2188, %v1203
        %v2240 = vmul.f32 %v2192, %v1202
        %v2241 = vmul.f32 %v2192, %v1203
        %v2242 = vmul.f32 %v2196, %v1202
        %v2243 = vmul.f32 %v2196, %v1203
        %v2244 = vmul.f32 %v2200, %v1202
        %v2245 = vmul.f32 %v2200, %v1203
        %v2246 = vmul.f32 %v2204, %v1202
        %v2247 = vmul.f32 %v2204, %v1203
        %v2248 = vmul.f32 %v2208, %v1202
        %v2249 = vmul.f32 %v2208, %v1203
        %v2250 = vmul.f32 %v2212, %v1202
        %v2251 = vmul.f32 %v2212, %v1203
        %v2252 = vmul.f32 %v2216, %v1202
        %v2253 = vmul.f32 %v2216, %v1203
        %v2254 = vmul.f32 %v2220, %v1202
        %v2255 = vmul.f32 %v2220, %v1203
        %v2256 = vmul.f32 %v2224, %v1202
        %v2257 = vmul.f32 %v2224, %v1203
        %v2258 = vadd.f32 %v2114, %v2226
        %v2259 = vadd.f32 %v2115, %v2227
        %v2260 = vadd.f32 %v2116, %v2228
        %v2261 = vadd.f32 %v2117, %v2229
        %v2262 = vadd.f32 %v2118, %v2230
        %v2263 = vadd.f32 %v2119, %v2231
        %v2264 = vadd.f32 %v2120, %v2232
        %v2265 = vadd.f32 %v2121, %v2233
        %v2266 = vadd.f32 %v2122, %v2234
        %v2267 = vadd.f32 %v2123, %v2235
        %v2268 = vadd.f32 %v2124, %v2236
        %v2269 = vadd.f32 %v2125, %v2237
        %v2270 = vadd.f32 %v2126, %v2238
        %v2271 = vadd.f32 %v2127, %v2239
        %v2272 = vadd.f32 %v2128, %v2240
        %v2273 = vadd.f32 %v2129, %v2241
        %v2274 = vadd.f32 %v2130, %v2242
        %v2275 = vadd.f32 %v2131, %v2243
        %v2276 = vadd.f32 %v2132, %v2244
        %v2277 = vadd.f32 %v2133, %v2245
        %v2278 = vadd.f32 %v2134, %v2246
        %v2279 = vadd.f32 %v2135, %v2247
        %v2280 = vadd.f32 %v2136, %v2248
        %v2281 = vadd.f32 %v2137, %v2249
        %v2282 = vadd.f32 %v2138, %v2250
        %v2283 = vadd.f32 %v2139, %v2251
        %v2284 = vadd.f32 %v2140, %v2252
        %v2285 = vadd.f32 %v2141, %v2253
        %v2286 = vadd.f32 %v2142, %v2254
        %v2287 = vadd.f32 %v2143, %v2255
        %v2288 = vadd.f32 %v2144, %v2256
        %v2289 = vadd.f32 %v2145, %v2257
        %v2290 = vld [vmem:[%s4 + $0x7] sm:$0x1]
        %v2291 = vld [vmem:[%s4 + $0xf] sm:$0x1]
        %v2292 = vld [vmem:[%s4 + $0x17] sm:$0x1]
        %v2293 = vld [vmem:[%s4 + $0x1f] sm:$0x1]
        %v2294 = vld [vmem:[%s4 + $0x27] sm:$0x1]
        %v2295 = vld [vmem:[%s4 + $0x2f] sm:$0x1]
        %v2296 = vld [vmem:[%s4 + $0x37] sm:$0x1]
        %v2297 = vld [vmem:[%s4 + $0x3f] sm:$0x1]
        %v2298 = vld [vmem:[%s4 + $0x47] sm:$0x1]
        %v2299 = vld [vmem:[%s4 + $0x4f] sm:$0x1]
        %v2300 = vld [vmem:[%s4 + $0x57] sm:$0x1]
        %v2301 = vld [vmem:[%s4 + $0x5f] sm:$0x1]
        %v2302 = vld [vmem:[%s4 + $0x67] sm:$0x1]
        %v2303 = vld [vmem:[%s4 + $0x6f] sm:$0x1]
        %v2304 = vld [vmem:[%s4 + $0x77] sm:$0x1]
        %v2305 = vld [vmem:[%s4 + $0x7f] sm:$0x1]
        %s2307 = vtos %v2290
        %v2308 = vstv %s2307
        %s2311 = vtos %v2291
        %v2312 = vstv %s2311
        %s2315 = vtos %v2292
        %v2316 = vstv %s2315
        %s2319 = vtos %v2293
        %v2320 = vstv %s2319
        %s2323 = vtos %v2294
        %v2324 = vstv %s2323
        %s2327 = vtos %v2295
        %v2328 = vstv %s2327
        %s2331 = vtos %v2296
        %v2332 = vstv %s2331
        %s2335 = vtos %v2297
        %v2336 = vstv %s2335
        %s2339 = vtos %v2298
        %v2340 = vstv %s2339
        %s2343 = vtos %v2299
        %v2344 = vstv %s2343
        %s2347 = vtos %v2300
        %v2348 = vstv %s2347
        %s2351 = vtos %v2301
        %v2352 = vstv %s2351
        %s2355 = vtos %v2302
        %v2356 = vstv %s2355
        %s2359 = vtos %v2303
        %v2360 = vstv %s2359
        %s2363 = vtos %v2304
        %v2364 = vstv %s2363
        %s2367 = vtos %v2305
        %v2368 = vstv %s2367
        %v2370 = vmul.f32 %v2308, %v1234
        %v2371 = vmul.f32 %v2308, %v1235
        %v2372 = vmul.f32 %v2312, %v1234
        %v2373 = vmul.f32 %v2312, %v1235
        %v2374 = vmul.f32 %v2316, %v1234
        %v2375 = vmul.f32 %v2316, %v1235
        %v2376 = vmul.f32 %v2320, %v1234
        %v2377 = vmul.f32 %v2320, %v1235
        %v2378 = vmul.f32 %v2324, %v1234
        %v2379 = vmul.f32 %v2324, %v1235
        %v2380 = vmul.f32 %v2328, %v1234
        %v2381 = vmul.f32 %v2328, %v1235
        %v2382 = vmul.f32 %v2332, %v1234
        %v2383 = vmul.f32 %v2332, %v1235
        %v2384 = vmul.f32 %v2336, %v1234
        %v2385 = vmul.f32 %v2336, %v1235
        %v2386 = vmul.f32 %v2340, %v1234
        %v2387 = vmul.f32 %v2340, %v1235
        %v2388 = vmul.f32 %v2344, %v1234
        %v2389 = vmul.f32 %v2344, %v1235
        %v2390 = vmul.f32 %v2348, %v1234
        %v2391 = vmul.f32 %v2348, %v1235
        %v2392 = vmul.f32 %v2352, %v1234
        %v2393 = vmul.f32 %v2352, %v1235
        %v2394 = vmul.f32 %v2356, %v1234
        %v2395 = vmul.f32 %v2356, %v1235
        %v2396 = vmul.f32 %v2360, %v1234
        %v2397 = vmul.f32 %v2360, %v1235
        %v2398 = vmul.f32 %v2364, %v1234
        %v2399 = vmul.f32 %v2364, %v1235
        %v2400 = vmul.f32 %v2368, %v1234
        %v2401 = vmul.f32 %v2368, %v1235
        %v2402 = vadd.f32 %v2258, %v2370
        %v2403 = vadd.f32 %v2259, %v2371
        %v2404 = vadd.f32 %v2260, %v2372
        %v2405 = vadd.f32 %v2261, %v2373
        %v2406 = vadd.f32 %v2262, %v2374
        %v2407 = vadd.f32 %v2263, %v2375
        %v2408 = vadd.f32 %v2264, %v2376
        %v2409 = vadd.f32 %v2265, %v2377
        %v2410 = vadd.f32 %v2266, %v2378
        %v2411 = vadd.f32 %v2267, %v2379
        %v2412 = vadd.f32 %v2268, %v2380
        %v2413 = vadd.f32 %v2269, %v2381
        %v2414 = vadd.f32 %v2270, %v2382
        %v2415 = vadd.f32 %v2271, %v2383
        %v2416 = vadd.f32 %v2272, %v2384
        %v2417 = vadd.f32 %v2273, %v2385
        %v2418 = vadd.f32 %v2274, %v2386
        %v2419 = vadd.f32 %v2275, %v2387
        %v2420 = vadd.f32 %v2276, %v2388
        %v2421 = vadd.f32 %v2277, %v2389
        %v2422 = vadd.f32 %v2278, %v2390
        %v2423 = vadd.f32 %v2279, %v2391
        %v2424 = vadd.f32 %v2280, %v2392
        %v2425 = vadd.f32 %v2281, %v2393
        %v2426 = vadd.f32 %v2282, %v2394
        %v2427 = vadd.f32 %v2283, %v2395
        %v2428 = vadd.f32 %v2284, %v2396
        %v2429 = vadd.f32 %v2285, %v2397
        %v2430 = vadd.f32 %v2286, %v2398
        %v2431 = vadd.f32 %v2287, %v2399
        %v2432 = vadd.f32 %v2288, %v2400
        %v2433 = vadd.f32 %v2289, %v2401
        %vm2434 = vcmask 261120
        %2435 = vst.msk [vmem:[%s259] sm:$0xff] %vm2434, %v2402
        %2436 = vst.msk [vmem:[%s259 + $0x8] sm:$0xff] %vm2434, %v2403
        %2437 = vst.msk [vmem:[%s259 + $0x10] sm:$0xff] %vm2434, %v2404
        %2438 = vst.msk [vmem:[%s259 + $0x18] sm:$0xff] %vm2434, %v2405
        %2439 = vst.msk [vmem:[%s259 + $0x20] sm:$0xff] %vm2434, %v2406
        %2440 = vst.msk [vmem:[%s259 + $0x28] sm:$0xff] %vm2434, %v2407
        %2441 = vst.msk [vmem:[%s259 + $0x30] sm:$0xff] %vm2434, %v2408
        %2442 = vst.msk [vmem:[%s259 + $0x38] sm:$0xff] %vm2434, %v2409
        %2443 = vst.msk [vmem:[%s259 + $0x40] sm:$0xff] %vm2434, %v2410
        %2444 = vst.msk [vmem:[%s259 + $0x48] sm:$0xff] %vm2434, %v2411
        %2445 = vst.msk [vmem:[%s259 + $0x50] sm:$0xff] %vm2434, %v2412
        %2446 = vst.msk [vmem:[%s259 + $0x58] sm:$0xff] %vm2434, %v2413
        %2447 = vst.msk [vmem:[%s259 + $0x60] sm:$0xff] %vm2434, %v2414
        %2448 = vst.msk [vmem:[%s259 + $0x68] sm:$0xff] %vm2434, %v2415
        %2449 = vst.msk [vmem:[%s259 + $0x70] sm:$0xff] %vm2434, %v2416
        %2450 = vst.msk [vmem:[%s259 + $0x78] sm:$0xff] %vm2434, %v2417
        %2451 = vst.msk [vmem:[%s259 + $0x80] sm:$0xff] %vm2434, %v2418
        %2452 = vst.msk [vmem:[%s259 + $0x88] sm:$0xff] %vm2434, %v2419
        %2453 = vst.msk [vmem:[%s259 + $0x90] sm:$0xff] %vm2434, %v2420
        %2454 = vst.msk [vmem:[%s259 + $0x98] sm:$0xff] %vm2434, %v2421
        %2455 = vst.msk [vmem:[%s259 + $0xa0] sm:$0xff] %vm2434, %v2422
        %2456 = vst.msk [vmem:[%s259 + $0xa8] sm:$0xff] %vm2434, %v2423
        %2457 = vst.msk [vmem:[%s259 + $0xb0] sm:$0xff] %vm2434, %v2424
        %2458 = vst.msk [vmem:[%s259 + $0xb8] sm:$0xff] %vm2434, %v2425
        %2459 = vst.msk [vmem:[%s259 + $0xc0] sm:$0xff] %vm2434, %v2426
        %2460 = vst.msk [vmem:[%s259 + $0xc8] sm:$0xff] %vm2434, %v2427
        %2461 = vst.msk [vmem:[%s259 + $0xd0] sm:$0xff] %vm2434, %v2428
        %2462 = vst.msk [vmem:[%s259 + $0xd8] sm:$0xff] %vm2434, %v2429
        %2463 = vst.msk [vmem:[%s259 + $0xe0] sm:$0xff] %vm2434, %v2430
        %2464 = vst.msk [vmem:[%s259 + $0xe8] sm:$0xff] %vm2434, %v2431
        %2465 = vst.msk [vmem:[%s259 + $0xf0] sm:$0xff] %vm2434, %v2432
        %2466 = vst.msk [vmem:[%s259 + $0xf8] sm:$0xff] %vm2434, %v2433
        %s2467 = sand.u32 %s164, 1
        %s2468 = scalar_lea.sflag [#allocation3], %s2467
        %s2469 = sand.u32 %s164, 1
        %s2470 = smul.addr %s2469, 256
        %s2471 = scalar_lea.vmem [#allocation2], %s2470
        // Predicated region
        $region45: #{run.23} parent=43 // pred_check
          %p2472 = pneg %p174
        $region46: #{run.23} parent=43 // pred_check_branch
          %2474 = sbr.rel (%p2472) target = $region48
        $region47: #{run.23} parent=43 // pred_region
          %s2476 = ssub.s32 4096, 4096
          %2477 = vsyncadd %s2468, %s2476
          %s2478 = smul.addr %s20, 32
          %s2479 = smul.addr %s2478, 128
          %s2480 = scalar_lea.hbm %s6, %s2479
          %s2481 = sshll.u32 %s2471, 4
          %s2482 = int_to_ptr.vmem [resolvable:$true] %s2481
          %2487 = dma.vmem_to_hbm [thread:$0]  %s2482, 4096, %s2480, %s2468, 128, 128, 8
        $region48: #{run.23} parent=43 // pred_fallthru
          _
      $region44: #{run.23} parent=5 // pred_fallthru
        _
      %p2488 = scmp.le.s32.totalorder 2, %s15
      // Predicated region
      $region49: #{run.23} parent=5 // pred_check
        %p2489 = pneg %p2488
      $region50: #{run.23} parent=5 // pred_check_branch
        %2491 = sbr.rel (%p2489) target = $region52
      $region51: #{run.23} parent=5 // pred_region
        %s2492 = ssub.s32 %s15, 2
        // Predicated region
        $region53: #{run.23} parent=51 // pred_check
          %p2493 = pneg %p180
        $region54: #{run.23} parent=51 // pred_check_branch
          %2495 = sbr.rel (%p2493) target = $region56
        $region55: #{run.23} parent=51 // pred_region
          %s2496 = sand.u32 %s165, 1
          %s2497 = scalar_lea.sflag [#allocation3], %s2496
          %s2498 = sand.u32 %s165, 1
          %s2499 = smul.addr %s2498, 256
          %s2500 = scalar_lea.vmem [#allocation2], %s2499
          %2501 = dma.done %s2497, 4096
        $region56: #{run.23} parent=51 // pred_fallthru
          _
      $region52: #{run.23} parent=5 // pred_fallthru
        _
    $region6: #{run.23} parent=1 // loop_footer
      %s19 = sadd.s32 1, %s15
    $region7: #{run.23} parent=1 // loop_footer_branch
      %14 = sbr.rel target = $region3
    $region8: #{run.23} parent=1 // loop_exit
      _
    %2502 = vsyncpa [#allocation3], 1
    %s2503 = scalar_lea.sflag [#allocation3], 1
    %2504 = vsyncpa %s2503, 1

</llo_original>
